<compile_context>
chip_gen: v7x
topology: tpu7x:2x2x1
jax: 0.10.0
libtpu: 0.0.40
codegen_flags: <defaults>
</compile_context>

<pallas_src>
import jax
import jax.numpy as jnp
from jax.experimental import pallas as pl
from jax.experimental.pallas import tpu as pltpu


def coattention_kernel(q_ref, vt_ref, wbv_t_ref, wq_t_ref, wh_ref, ww_t_ref, ww_b_ref,
                       hw_ref, vword_ref):
    f32 = jnp.float32
    bf16 = jnp.bfloat16

    Q = q_ref[...]            # (G, T, E)   bf16
    Vt = vt_ref[...]          # (G, N, K)   bf16   (= V^T per batch element)
    W_bv_T = wbv_t_ref[...]   # (K, E+K)    bf16   (= [W_b; W_v]^T, VMEM-resident)
    W_q_T = wq_t_ref[...]     # (E, K)      bf16   (= W_q^T, VMEM-resident)
    w_h = wh_ref[...]         # (2, K)      f32    rows: [w_hv^T ; w_hq^T]
    W_w_T = ww_t_ref[...]     # (E, E)      bf16   (torch Linear weight, pre-transposed)
    b_w = ww_b_ref[...]       # (1, E)      f32

    G, T, E = Q.shape
    N, K = Vt.shape[1], Vt.shape[2]

    # [W_b V ; W_v V]^T for all G elements in ONE MXU-dense matmul:
    #   (G*N, K) @ (K, E+K) -> (G, N, E+K).  N = 128 per-g slabs are sublane-tile aligned,
    #   so both reshapes are free views.
    WbvVt = jnp.dot(Vt.reshape(G * N, K), W_bv_T,
                    preferred_element_type=f32).reshape(G, N, E + K)
    WbvVt_b = WbvVt.astype(bf16)                 # cast once, slice below (v5e VALU pressure)
    WbVt_b = WbvVt_b[:, :, :E]                   # (G, N, E)  == (W_b V)^T   bf16
    WvVt_b = WbvVt_b[:, :, E:]                   # (G, N, K)  == (W_v V)^T   bf16
    WvVt = WbvVt[:, :, E:]                       # (G, N, K)  f32 (for the tanh add)

    # Affinity in (T, N) layout (N = 128 on lanes -> dense vregs):
    #   C = Q (W_b V) : (G, T, N)
    C = jnp.einsum('gte,gne->gtn', Q, WbVt_b, preferred_element_type=f32)
    C_b = C.astype(bf16)

    # (W_q Q^T)^T = Q W_q^T : (G, T, K).  The (G*T, E) reshape is a small retile copy for
    # T = 8 bf16 slabs (~16 KB/step); kept because its lowering is known-good.
    QWq = jnp.dot(Q.reshape(G * T, E), W_q_T,
                  preferred_element_type=f32).reshape(G, T, K)
    QWq_b = QWq.astype(bf16)

    # H_v^T = tanh((W_v V)^T + C^T (Q W_q^T)) : (G, N, K)   (contract over T, tanh in f32)
    H_vt = jnp.tanh(WvVt + jnp.einsum('gtn,gtk->gnk', C_b, QWq_b,
                                      preferred_element_type=f32))
    # H_q^T = tanh(Q W_q^T + C (W_v V)^T) : (G, T, K)       (plain NN batched matmul)
    H_qt = jnp.tanh(QWq + jnp.einsum('gtn,gnk->gtk', C_b, WvVt_b,
                                     preferred_element_type=f32))

    # attention logits: contraction over K sits on the lane axis -> cheap lane reduce (f32)
    w_hv = w_h[0:1, :].reshape(1, 1, K)
    w_hq = w_h[1:2, :].reshape(1, 1, K)
    s_v = jnp.sum(H_vt * w_hv, axis=-1)          # (G, N)
    s_q = jnp.sum(H_qt * w_hq, axis=-1)          # (G, T)

    # softmax over spatial locations / tokens (torch dim=2), fully in f32.
    # NOTE: N and T equal their full (tile-friendly) extents here, so no padded columns can
    # leak into the softmax; padded shapes would need -inf masking of the padded logits.
    # pl.reciprocal(approx=True) -> ~2^-12 relative deviation from an exact softmax.
    e_v = jnp.exp(s_v - jnp.max(s_v, axis=-1, keepdims=True))
    a_v = e_v * pl.reciprocal(jnp.sum(e_v, axis=-1, keepdims=True), approx=True)
    e_q = jnp.exp(s_q - jnp.max(s_q, axis=-1, keepdims=True))
    a_q = e_q * pl.reciprocal(jnp.sum(e_q, axis=-1, keepdims=True), approx=True)

    # attended features: v = a_v V^T : (G, K),  q = a_q Q : (G, E)
    v_att = jnp.einsum('gon,gnk->gok', a_v[:, None, :].astype(bf16), Vt,
                       preferred_element_type=f32)[:, 0, :]
    q_att = jnp.einsum('got,gte->goe', a_q[:, None, :].astype(bf16), Q,
                       preferred_element_type=f32)[:, 0, :]

    # h_w = tanh(W_w(q_word + v_word));  torch Linear: x @ W^T + b  (W_w^T passed in)
    h = (q_att + v_att).astype(bf16)
    hw = jnp.tanh(jnp.dot(h, W_w_T, preferred_element_type=f32) + b_w)

    # dense (G, 128) stores
    hw_ref[...] = hw.astype(hw_ref.dtype)
    vword_ref[...] = v_att.astype(vword_ref.dtype)


# Conservative per-step VMEM budget: keeps the largest auto-picked G safe on v7x
# (64 MiB physical / 32 MiB scoped default) with headroom for Mosaic's own scratch.
_VMEM_BUDGET_BYTES = 24 * 1024 * 1024


def _vmem_bytes_estimate(G, T, E, N, K):
    """Rough per-step VMEM footprint: double-buffered streamed blocks + resident weights
    + f32/bf16 intermediates."""
    bf, f4 = 2, 4
    streamed = 2 * G * (N * K + T * E) * bf          # Vt + Q blocks, double-buffered
    outs = 2 * G * (E + K) * f4                      # h_w + v_word blocks, double-buffered
    weights = (K * (E + K) + E * K + E * E) * bf + (2 * K + E) * f4
    inter = G * ((N * (E + K)) * (f4 + bf)           # WbvVt (f32 + bf16 copy)
                 + (T * N) * (f4 + bf)               # C
                 + (T * K) * (f4 + bf)               # QWq
                 + (N * K) * f4                      # H_vt
                 + (T * K) * f4)                     # H_qt
    return streamed + outs + weights + inter


def _pick_group_size(B, T, E, N, K, group_size):
    """G = batch elements per grid step. Default keeps grid length >= 2 (v7x megacore) and
    caps G at 64, then clamps against the per-step VMEM budget."""
    if group_size is None:
        G = min(64, B // 2) if B >= 4 else B
    else:
        G = min(group_size, B)
    G = max(1, G)
    while G > 1 and _vmem_bytes_estimate(G, T, E, N, K) > _VMEM_BUDGET_BYTES:
        G = max(1, G // 2)
    return G


def coattention_forward(text_tensor, image_tensor_nchw, params, *, group_size=None):
    """JAX glue around the Pallas kernel. Returns (h_w, v_word) like the torch forward."""
    B, T, E = text_tensor.shape
    _, K, Himg, Wimg = image_tensor_nchw.shape
    N = Himg * Wimg
    bf16 = jnp.bfloat16

    G = _pick_group_size(B, T, E, N, K, group_size)

    # channel-first flatten (torch image.flatten(2)); cast to bf16 BEFORE the transpose and
    # pad so the one-time wrapper-side HBM pass moves half the bytes.
    Vt = image_tensor_nchw.reshape(B, K, N).astype(bf16).transpose(0, 2, 1)   # (B, N, K)
    Q_in = text_tensor.astype(bf16)

    # pad batch so every step is full (padded rows are computed independently and discarded
    # -> no effect on real rows, softmax stays finite).
    Bp = int(pl.cdiv(B, G)) * G
    if Bp != B:
        pad = Bp - B
        Q_in = jnp.pad(Q_in, ((0, pad), (0, 0), (0, 0)))
        Vt = jnp.pad(Vt, ((0, pad), (0, 0), (0, 0)))

    # one-time weight prep: stack W_b/W_v and pre-transpose everything the kernel consumes
    # on the RHS of a plain dot (no in-kernel 128x128 XLU transposes).
    W_bv_T = jnp.concatenate([params["W_b"], params["W_v"]], axis=0).T.astype(bf16)  # (K, E+K)
    W_q_T = params["W_q"].T.astype(bf16)                                             # (E, K)
    w_h = jnp.concatenate([params["w_hv"].reshape(1, K),
                           params["w_hq"].reshape(1, K)], axis=0).astype(jnp.float32)  # (2, K)
    W_w_T = params["W_w_w"].T.astype(bf16)                                           # (E, E)
    b_w = params["W_w_b"].reshape(1, E).astype(jnp.float32)

    full2 = lambda b: (0, 0)
    in_specs = [
        pl.BlockSpec((G, T, E), lambda b: (b, 0, 0)),   # Q, G batch elements per step
        pl.BlockSpec((G, N, K), lambda b: (b, 0, 0)),   # V^T, G batch elements per step
        pl.BlockSpec((K, E + K), full2),                # [W_b;W_v]^T   (VMEM-resident)
        pl.BlockSpec((E, K), full2),                    # W_q^T         (VMEM-resident)
        pl.BlockSpec((2, K), full2),                    # [w_hv^T;w_hq^T]
        pl.BlockSpec((E, E), full2),                    # W_w^T         (VMEM-resident)
        pl.BlockSpec((1, E), full2),                    # W_w bias
    ]
    out_specs = (
        pl.BlockSpec((G, E), lambda b: (b, 0)),         # h_w
        pl.BlockSpec((G, K), lambda b: (b, 0)),         # v_word
    )
    out_shape = (
        jax.ShapeDtypeStruct((Bp, E), jnp.float32),
        jax.ShapeDtypeStruct((Bp, K), jnp.float32),
    )

    # explicit VMEM limit so a larger auto-picked G never trips the scoped defaults
    # (16 MiB on v5e, 32 MiB on v6e/v7x); capped at v7x's 64 MiB physical.
    est = _vmem_bytes_estimate(G, T, E, N, K)
    vmem_limit = int(min(64 * 1024 * 1024, max(32 * 1024 * 1024, 2 * est)))

    h_w, v_word = pl.pallas_call(
        coattention_kernel,
        grid=(Bp // G,),
        in_specs=in_specs,
        out_specs=out_specs,
        out_shape=out_shape,
        compiler_params=pltpu.CompilerParams(
            dimension_semantics=("parallel",),
            vmem_limit_bytes=vmem_limit),
    )(Q_in, Vt, W_bv_T, W_q_T, w_h, W_w_T, b_w)

    # TODO(synk): the torch forward calls self.deflatten_img_tnsrs(v_word), but v_word is the
    # attention-pooled (B, k) vector, which that function cannot consume (it would raise in
    # PyTorch: split/transpose on a 2-D tensor). v_word is returned un-deflattened here.
    return h_w[:B], v_word[:B]


def coattention_reference(text_tensor, image_tensor_nchw, params):
    """Pure-JAX f32 reference mirroring the torch parallel_co_attention + W_w head."""
    B, T, E = text_tensor.shape
    _, K, Hh, Ww = image_tensor_nchw.shape
    V = image_tensor_nchw.reshape(B, K, Hh * Ww)
    Q = text_tensor
    WbV = jnp.einsum('ek,bkn->ben', params['W_b'], V)
    C = jnp.einsum('bte,ben->btn', Q, WbV)
    WqQt = jnp.einsum('ke,bte->bkt', params['W_q'], Q)
    WvV = jnp.einsum('kj,bjn->bkn', params['W_v'], V)
    H_v = jnp.tanh(WvV + jnp.einsum('bkt,btn->bkn', WqQt, C))
    H_q = jnp.tanh(WqQt + jnp.einsum('bkn,btn->bkt', WvV, C))
    a_v = jax.nn.softmax(jnp.einsum('k,bkn->bn', params['w_hv'][:, 0], H_v), axis=-1)
    a_q = jax.nn.softmax(jnp.einsum('k,bkt->bt', params['w_hq'][:, 0], H_q), axis=-1)
    v = jnp.einsum('bn,bkn->bk', a_v, V)
    q = jnp.einsum('bt,bte->be', a_q, Q)
    h_w = jnp.tanh((q + v) @ params['W_w_w'].T + params['W_w_b'][None, :])
    return h_w, v


if __name__ == "__main__":
    # tile-friendly shapes: embed_dim = k = 128, seq T = 8, image feature map 8x16 (N = 128),
    # batch 16 so the default G = 8 gives grid length 2 (keeps both v7x TensorCores busy).
    B, T, E, Himg, Wimg = 16, 8, 128, 8, 16
    K = E  # k == embed_dim so that q_word + v_word is well defined

    key = jax.random.PRNGKey(0)
    ks = jax.random.split(key, 9)
    scale = jnp.float32(0.05)  # deterministic scaled-normal init (same shapes as torch.randn)
    params = {
        "W_b": scale * jax.random.normal(ks[0], (E, K), jnp.float32),
        "W_v": scale * jax.random.normal(ks[1], (K, K), jnp.float32),
        "W_q": scale * jax.random.normal(ks[2], (K, E), jnp.float32),
        "w_hv": scale * jax.random.normal(ks[3], (K, 1), jnp.float32),
        "w_hq": scale * jax.random.normal(ks[4], (K, 1), jnp.float32),
        "W_w_w": scale * jax.random.normal(ks[5], (E, E), jnp.float32),  # nn.Linear weight
        "W_w_b": scale * jax.random.normal(ks[6], (E,), jnp.float32),    # nn.Linear bias
    }
    text_tensor = jax.random.normal(ks[7], (B, T, E), jnp.float32)
    image_tensor = jax.random.normal(ks[8], (B, K, Himg, Wimg), jnp.float32)  # NCHW

    h_w, v_word = coattention_forward(text_tensor, image_tensor, params)
    jax.block_until_ready((h_w, v_word))

    assert h_w.shape == (B, E) and v_word.shape == (B, K)
    assert bool(jnp.all(jnp.isfinite(h_w))) and bool(jnp.all(jnp.isfinite(v_word)))

    # loose sanity check against the f32 reference (kernel runs the MXU in bf16)
    h_ref, v_ref = coattention_reference(text_tensor, image_tensor, params)
    assert float(jnp.max(jnp.abs(h_w - h_ref))) < 0.1
    assert float(jnp.max(jnp.abs(v_word - v_ref))) < 0.1

    print("KERNEL_OK")
</pallas_src>

<mosaic_0001>
module attributes {stable_mosaic.version = 11 : i64} {
  func.func @coattention_kernel(%arg0: i32, %arg1: memref<8x8x128xbf16, #tpu.memory_space<vmem>>, %arg2: memref<8x128x128xbf16, #tpu.memory_space<vmem>>, %arg3: memref<128x256xbf16, #tpu.memory_space<vmem>>, %arg4: memref<128x128xbf16, #tpu.memory_space<vmem>>, %arg5: memref<2x128xf32, #tpu.memory_space<vmem>>, %arg6: memref<128x128xbf16, #tpu.memory_space<vmem>>, %arg7: memref<1x128xf32, #tpu.memory_space<vmem>>, %arg8: memref<8x128xf32, #tpu.memory_space<vmem>>, %arg9: memref<8x128xf32, #tpu.memory_space<vmem>>) attributes {dimension_semantics = [#tpu.dimension_semantics<parallel>], iteration_bounds = array<i64: 2>, scalar_prefetch = 0 : i64, scratch_operands = 0 : i64, tpu.core_type = #tpu.core_type<tc>, window_params = [{transform_indices = @transform_0, window_bounds = array<i64: 8, 8, 128>}, {transform_indices = @transform_1, window_bounds = array<i64: 8, 128, 128>}, {pipeline_mode = #tpu.pipeline_mode<synchronous>, transform_indices = @transform_2, window_bounds = array<i64: 128, 256>}, {pipeline_mode = #tpu.pipeline_mode<synchronous>, transform_indices = @transform_3, window_bounds = array<i64: 128, 128>}, {pipeline_mode = #tpu.pipeline_mode<synchronous>, transform_indices = @transform_4, window_bounds = array<i64: 2, 128>}, {pipeline_mode = #tpu.pipeline_mode<synchronous>, transform_indices = @transform_5, window_bounds = array<i64: 128, 128>}, {pipeline_mode = #tpu.pipeline_mode<synchronous>, transform_indices = @transform_6, window_bounds = array<i64: 1, 128>}, {transform_indices = @transform_7, window_bounds = array<i64: 8, 128>}, {transform_indices = @transform_8, window_bounds = array<i64: 8, 128>}]} {
    %c0 = arith.constant 0 : index
    %c0_0 = arith.constant 0 : index
    %c0_1 = arith.constant 0 : index
    %0 = vector.load %arg1[%c0, %c0_0, %c0_1] : memref<8x8x128xbf16, #tpu.memory_space<vmem>>, vector<8x8x128xbf16>
    %c0_2 = arith.constant 0 : index
    %c0_3 = arith.constant 0 : index
    %c0_4 = arith.constant 0 : index
    %1 = vector.load %arg2[%c0_2, %c0_3, %c0_4] : memref<8x128x128xbf16, #tpu.memory_space<vmem>>, vector<8x128x128xbf16>
    %c0_5 = arith.constant 0 : index
    %c0_6 = arith.constant 0 : index
    %2 = vector.load %arg3[%c0_5, %c0_6] : memref<128x256xbf16, #tpu.memory_space<vmem>>, vector<128x256xbf16>
    %c0_7 = arith.constant 0 : index
    %c0_8 = arith.constant 0 : index
    %3 = vector.load %arg4[%c0_7, %c0_8] : memref<128x128xbf16, #tpu.memory_space<vmem>>, vector<128x128xbf16>
    %c0_9 = arith.constant 0 : index
    %c0_10 = arith.constant 0 : index
    %4 = vector.load %arg5[%c0_9, %c0_10] : memref<2x128xf32, #tpu.memory_space<vmem>>, vector<2x128xf32>
    %c0_11 = arith.constant 0 : index
    %c0_12 = arith.constant 0 : index
    %5 = vector.load %arg6[%c0_11, %c0_12] : memref<128x128xbf16, #tpu.memory_space<vmem>>, vector<128x128xbf16>
    %c0_13 = arith.constant 0 : index
    %c0_14 = arith.constant 0 : index
    %6 = vector.load %arg7[%c0_13, %c0_14] : memref<1x128xf32, #tpu.memory_space<vmem>>, vector<1x128xf32>
    %7 = vector.shape_cast %1 : vector<8x128x128xbf16> to vector<1024x128xbf16>
    %cst = arith.constant dense<0.000000e+00> : vector<1024x256xf32>
    %8 = tpu.matmul %7, %2, %cst {dimension_numbers = #tpu.dot_dimension_numbers<[1], [0], [0], [1], [0, 0, 1, 1], [], []>} : vector<1024x128xbf16>, vector<128x256xbf16>, vector<1024x256xf32> -> vector<1024x256xf32>
    %9 = vector.shape_cast %8 : vector<1024x256xf32> to vector<8x128x256xf32>
    %10 = arith.truncf %9 : vector<8x128x256xf32> to vector<8x128x256xbf16>
    %11 = vector.extract_strided_slice %10 {offsets = [0, 0, 0], sizes = [8, 128, 128], strides = [1, 1, 1]} : vector<8x128x256xbf16> to vector<8x128x128xbf16>
    %12 = vector.extract_strided_slice %10 {offsets = [0, 0, 128], sizes = [8, 128, 128], strides = [1, 1, 1]} : vector<8x128x256xbf16> to vector<8x128x128xbf16>
    %13 = vector.extract_strided_slice %9 {offsets = [0, 0, 128], sizes = [8, 128, 128], strides = [1, 1, 1]} : vector<8x128x256xf32> to vector<8x128x128xf32>
    "tpu.trace_start"() <{level = 10 : i32, message = "gte,gne->gtn"}> : () -> ()
    %cst_15 = arith.constant dense<0.000000e+00> : vector<8x8x128xf32>
    %14 = tpu.matmul %0, %11, %cst_15 {dimension_numbers = #tpu.dot_dimension_numbers<[2], [2], [1], [1], [0, 0, 0, 1, 1, 1], [0], [0]>} : vector<8x8x128xbf16>, vector<8x128x128xbf16>, vector<8x8x128xf32> -> vector<8x8x128xf32>
    "tpu.trace_stop"() : () -> ()
    %15 = arith.truncf %14 : vector<8x8x128xf32> to vector<8x8x128xbf16>
    %16 = vector.shape_cast %0 : vector<8x8x128xbf16> to vector<64x128xbf16>
    %cst_16 = arith.constant dense<0.000000e+00> : vector<64x128xf32>
    %17 = tpu.matmul %16, %3, %cst_16 {dimension_numbers = #tpu.dot_dimension_numbers<[1], [0], [0], [1], [0, 0, 1, 1], [], []>} : vector<64x128xbf16>, vector<128x128xbf16>, vector<64x128xf32> -> vector<64x128xf32>
    %18 = vector.shape_cast %17 : vector<64x128xf32> to vector<8x8x128xf32>
    %19 = arith.truncf %18 : vector<8x8x128xf32> to vector<8x8x128xbf16>
    "tpu.trace_start"() <{level = 10 : i32, message = "gtn,gtk->gnk"}> : () -> ()
    %cst_17 = arith.constant dense<0.000000e+00> : vector<8x128x128xf32>
    %20 = tpu.matmul %15, %19, %cst_17 {dimension_numbers = #tpu.dot_dimension_numbers<[1], [1], [2], [2], [0, 0, 0, 2, 1, 2], [0], [0]>} : vector<8x8x128xbf16>, vector<8x8x128xbf16>, vector<8x128x128xf32> -> vector<8x128x128xf32>
    "tpu.trace_stop"() : () -> ()
    %21 = arith.addf %13, %20 : vector<8x128x128xf32>
    %22 = math.tanh %21 : vector<8x128x128xf32>
    "tpu.trace_start"() <{level = 10 : i32, message = "gtn,gnk->gtk"}> : () -> ()
    %cst_18 = arith.constant dense<0.000000e+00> : vector<8x8x128xf32>
    %23 = tpu.matmul %15, %12, %cst_18 {dimension_numbers = #tpu.dot_dimension_numbers<[2], [1], [1], [2], [0, 0, 0, 1, 1, 2], [0], [0]>} : vector<8x8x128xbf16>, vector<8x128x128xbf16>, vector<8x8x128xf32> -> vector<8x8x128xf32>
    "tpu.trace_stop"() : () -> ()
    %24 = arith.addf %18, %23 : vector<8x8x128xf32>
    %25 = math.tanh %24 : vector<8x8x128xf32>
    %26 = vector.extract_strided_slice %4 {offsets = [0, 0], sizes = [1, 128], strides = [1, 1]} : vector<2x128xf32> to vector<1x128xf32>
    %27 = vector.shape_cast %26 : vector<1x128xf32> to vector<1x1x128xf32>
    %28 = vector.extract_strided_slice %4 {offsets = [1, 0], sizes = [1, 128], strides = [1, 1]} : vector<2x128xf32> to vector<1x128xf32>
    %29 = vector.shape_cast %28 : vector<1x128xf32> to vector<1x1x128xf32>
    %30 = vector.broadcast %27 : vector<1x1x128xf32> to vector<8x128x128xf32>
    %31 = arith.mulf %22, %30 : vector<8x128x128xf32>
    %cst_19 = arith.constant dense<0.000000e+00> : vector<8x128xf32>
    %32 = vector.multi_reduction <add>, %31, %cst_19 [2] : vector<8x128x128xf32> to vector<8x128xf32>
    %33 = vector.broadcast %29 : vector<1x1x128xf32> to vector<8x8x128xf32>
    %34 = arith.mulf %25, %33 : vector<8x8x128xf32>
    %cst_20 = arith.constant dense<0.000000e+00> : vector<8x8xf32>
    %35 = vector.multi_reduction <add>, %34, %cst_20 [2] : vector<8x8x128xf32> to vector<8x8xf32>
    %cst_21 = arith.constant dense<0xFF800000> : vector<8xf32>
    %36 = vector.multi_reduction <maximumf>, %32, %cst_21 [1] : vector<8x128xf32> to vector<8xf32>
    %37 = vector.shape_cast %36 : vector<8xf32> to vector<8x1xf32>
    %38 = vector.broadcast %37 : vector<8x1xf32> to vector<8x128xf32>
    %39 = arith.subf %32, %38 : vector<8x128xf32>
    %40 = math.exp %39 : vector<8x128xf32>
    %cst_22 = arith.constant dense<0.000000e+00> : vector<8xf32>
    %41 = vector.multi_reduction <add>, %40, %cst_22 [1] : vector<8x128xf32> to vector<8xf32>
    %42 = vector.shape_cast %41 : vector<8xf32> to vector<8x1xf32>
    %43 = tpu.reciprocal %42 {approx = true} : vector<8x1xf32> -> vector<8x1xf32>
    %44 = vector.broadcast %43 : vector<8x1xf32> to vector<8x128xf32>
    %45 = arith.mulf %40, %44 : vector<8x128xf32>
    %cst_23 = arith.constant dense<0xFF800000> : vector<8xf32>
    %46 = vector.multi_reduction <maximumf>, %35, %cst_23 [1] : vector<8x8xf32> to vector<8xf32>
    %47 = vector.shape_cast %46 : vector<8xf32> to vector<8x1xf32>
    %48 = vector.broadcast %47 : vector<8x1xf32> to vector<8x8xf32>
    %49 = arith.subf %35, %48 : vector<8x8xf32>
    %50 = math.exp %49 : vector<8x8xf32>
    %cst_24 = arith.constant dense<0.000000e+00> : vector<8xf32>
    %51 = vector.multi_reduction <add>, %50, %cst_24 [1] : vector<8x8xf32> to vector<8xf32>
    %52 = vector.shape_cast %51 : vector<8xf32> to vector<8x1xf32>
    %53 = tpu.reciprocal %52 {approx = true} : vector<8x1xf32> -> vector<8x1xf32>
    %54 = vector.broadcast %53 : vector<8x1xf32> to vector<8x8xf32>
    %55 = arith.mulf %50, %54 : vector<8x8xf32>
    %56 = vector.shape_cast %45 : vector<8x128xf32> to vector<8x1x128xf32>
    %57 = arith.truncf %56 : vector<8x1x128xf32> to vector<8x1x128xbf16>
    "tpu.trace_start"() <{level = 10 : i32, message = "gon,gnk->gok"}> : () -> ()
    %cst_25 = arith.constant dense<0.000000e+00> : vector<8x1x128xf32>
    %58 = tpu.matmul %57, %1, %cst_25 {dimension_numbers = #tpu.dot_dimension_numbers<[2], [1], [1], [2], [0, 0, 0, 1, 1, 2], [0], [0]>} : vector<8x1x128xbf16>, vector<8x128x128xbf16>, vector<8x1x128xf32> -> vector<8x1x128xf32>
    "tpu.trace_stop"() : () -> ()
    %59 = vector.shape_cast %58 : vector<8x1x128xf32> to vector<8x128xf32>
    %60 = vector.shape_cast %55 : vector<8x8xf32> to vector<8x1x8xf32>
    %61 = arith.truncf %60 : vector<8x1x8xf32> to vector<8x1x8xbf16>
    "tpu.trace_start"() <{level = 10 : i32, message = "got,gte->goe"}> : () -> ()
    %cst_26 = arith.constant dense<0.000000e+00> : vector<8x1x128xf32>
    %62 = tpu.matmul %61, %0, %cst_26 {dimension_numbers = #tpu.dot_dimension_numbers<[2], [1], [1], [2], [0, 0, 0, 1, 1, 2], [0], [0]>} : vector<8x1x8xbf16>, vector<8x8x128xbf16>, vector<8x1x128xf32> -> vector<8x1x128xf32>
    "tpu.trace_stop"() : () -> ()
    %63 = vector.shape_cast %62 : vector<8x1x128xf32> to vector<8x128xf32>
    %64 = arith.addf %63, %59 : vector<8x128xf32>
    %65 = arith.truncf %64 : vector<8x128xf32> to vector<8x128xbf16>
    %cst_27 = arith.constant dense<0.000000e+00> : vector<8x128xf32>
    %66 = tpu.matmul %65, %5, %cst_27 {dimension_numbers = #tpu.dot_dimension_numbers<[1], [0], [0], [1], [0, 0, 1, 1], [], []>} : vector<8x128xbf16>, vector<128x128xbf16>, vector<8x128xf32> -> vector<8x128xf32>
    %67 = vector.broadcast %6 : vector<1x128xf32> to vector<8x128xf32>
    %68 = arith.addf %66, %67 : vector<8x128xf32>
    %69 = math.tanh %68 : vector<8x128xf32>
    %c0_28 = arith.constant 0 : index
    %c0_29 = arith.constant 0 : index
    %70 = vector.load %arg8[%c0_28, %c0_29] : memref<8x128xf32, #tpu.memory_space<vmem>>, vector<8x128xf32>
    tpu.vector_store %arg8[%c0_28, %c0_29], %69 {strides = array<i32>} : memref<8x128xf32, #tpu.memory_space<vmem>>, vector<8x128xf32>,
    %c0_30 = arith.constant 0 : index
    %c0_31 = arith.constant 0 : index
    %71 = vector.load %arg9[%c0_30, %c0_31] : memref<8x128xf32, #tpu.memory_space<vmem>>, vector<8x128xf32>
    tpu.vector_store %arg9[%c0_30, %c0_31], %59 {strides = array<i32>} : memref<8x128xf32, #tpu.memory_space<vmem>>, vector<8x128xf32>,
    return
  }
  func.func @transform_0(%arg0: i32) -> (i32, i32, i32) {
    %c0_i32 = arith.constant 0 : i32
    %c0_i32_0 = arith.constant 0 : i32
    %c0_i32_1 = arith.constant 0 : i32
    return %arg0, %c0_i32, %c0_i32_0 : i32, i32, i32
  }
  func.func @transform_1(%arg0: i32) -> (i32, i32, i32) {
    %c0_i32 = arith.constant 0 : i32
    %c0_i32_0 = arith.constant 0 : i32
    %c0_i32_1 = arith.constant 0 : i32
    return %arg0, %c0_i32, %c0_i32_0 : i32, i32, i32
  }
  func.func @transform_2(%arg0: i32) -> (i32, i32) {
    %c0_i32 = arith.constant 0 : i32
    %c0_i32_0 = arith.constant 0 : i32
    %c0_i32_1 = arith.constant 0 : i32
    return %c0_i32, %c0_i32_0 : i32, i32
  }
  func.func @transform_3(%arg0: i32) -> (i32, i32) {
    %c0_i32 = arith.constant 0 : i32
    %c0_i32_0 = arith.constant 0 : i32
    %c0_i32_1 = arith.constant 0 : i32
    return %c0_i32, %c0_i32_0 : i32, i32
  }
  func.func @transform_4(%arg0: i32) -> (i32, i32) {
    %c0_i32 = arith.constant 0 : i32
    %c0_i32_0 = arith.constant 0 : i32
    %c0_i32_1 = arith.constant 0 : i32
    return %c0_i32, %c0_i32_0 : i32, i32
  }
  func.func @transform_5(%arg0: i32) -> (i32, i32) {
    %c0_i32 = arith.constant 0 : i32
    %c0_i32_0 = arith.constant 0 : i32
    %c0_i32_1 = arith.constant 0 : i32
    return %c0_i32, %c0_i32_0 : i32, i32
  }
  func.func @transform_6(%arg0: i32) -> (i32, i32) {
    %c0_i32 = arith.constant 0 : i32
    %c0_i32_0 = arith.constant 0 : i32
    %c0_i32_1 = arith.constant 0 : i32
    return %c0_i32, %c0_i32_0 : i32, i32
  }
  func.func @transform_7(%arg0: i32) -> (i32, i32) {
    %c0_i32 = arith.constant 0 : i32
    %c0_i32_0 = arith.constant 0 : i32
    return %arg0, %c0_i32 : i32, i32
  }
  func.func @transform_8(%arg0: i32) -> (i32, i32) {
    %c0_i32 = arith.constant 0 : i32
    %c0_i32_0 = arith.constant 0 : i32
    return %arg0, %c0_i32 : i32, i32
  }
}

</mosaic_0001>

<llo_original>
// kernel: tpu_custom_call.1
$region0: #{tpu_custom_call.1}
  #allocation0 [shape = 'u32[]', space=smem, size = 0x4, offset = 0x4, fixed_abs, tag = 'smem constant byte address 0x4 - core index']
  #allocation1 [shape = 'u32[144,128]{1,0:T(1,128)}', space=vmem, size = 0x12000, scoped, tag = 'internal scratch']
  %s0 = inlined_call_operand.hbm [shape: bf16[16,8,128], index: 0, kind: input, shape index: {}]
  %s1 = inlined_call_operand.hbm [shape: bf16[16,128,128], index: 1, kind: input, shape index: {}]
  %s2 = inlined_call_operand.hbm [shape: bf16[128,256], index: 2, kind: input, shape index: {}]
  %s3 = inlined_call_operand.hbm [shape: bf16[128,128], index: 3, kind: input, shape index: {}]
  %s4 = inlined_call_operand.vmem [shape: f32[2,128], index: 4, kind: input, shape index: {}]
  %s5 = inlined_call_operand.hbm [shape: bf16[128,128], index: 5, kind: input, shape index: {}]
  %s6 = inlined_call_operand.vmem [shape: f32[1,128], index: 6, kind: input, shape index: {}]
  %s7 = inlined_call_operand.hbm [shape: f32[16,128], index: 7, kind: output, shape index: {0}]
  %s8 = inlined_call_operand.hbm [shape: f32[16,128], index: 8, kind: output, shape index: {1}]
  %9 = xla_tuple %s7, %s8
  %s10 = sld [smem:[#allocation0]]
  $region89: #{tpu_custom_call.1} parent=0
    _
  %s12 = ssub.s32 1, %s10
  %s13 = scalar_select 0, %s12, %s10
  $region1: #{tpu_custom_call.1} parent=0
    #allocation2 [shape = 'u8[32768]{0}', space=vmem, size = 0x8000, scoped, tag = 'input window, operand 0']
    #allocation3 [shape = 's32[2]{0}', space=sflag, size = 0x8, scoped, tag = 'scoped memory for tpu_custom_call.1']
    #allocation4 [shape = 's32[2]{0}', space=sflag, size = 0x8, scoped, tag = 'scoped memory for tpu_custom_call.1']
    #allocation5 [shape = 'u8[524288]{0}', space=vmem, size = 0x80000, scoped, tag = 'input window, operand 1']
    #allocation6 [shape = 's32[2]{0}', space=sflag, size = 0x8, scoped, tag = 'scoped memory for tpu_custom_call.1']
    #allocation7 [shape = 'u8[65536]{0}', space=vmem, size = 0x10000, scoped, tag = 'input window, operand 2, single buffered']
    #allocation8 [shape = 'u8[32768]{0}', space=vmem, size = 0x8000, scoped, tag = 'input window, operand 3, single buffered']
    #allocation9 [shape = 's32[1]{0}', space=sflag, size = 0x4, scoped, tag = 'scoped memory for tpu_custom_call.1']
    #allocation10 [shape = 'u8[32768]{0}', space=vmem, size = 0x8000, scoped, tag = 'input window, operand 5, single buffered']
    #allocation11 [shape = 'u8[8192]{0}', space=vmem, size = 0x2000, scoped, tag = 'output window, operand 0']
    #allocation12 [shape = 'u8[8192]{0}', space=vmem, size = 0x2000, scoped, tag = 'output window, operand 1']
    #allocation13 [shape = 's32[2]{0}', space=sflag, size = 0x8, scoped, tag = 'scoped memory for tpu_custom_call.1']
    %14 = vsyncpa [#allocation3], 0
    %s15 = scalar_lea.sflag [#allocation3], 1
    %16 = vsyncpa %s15, 0
    %17 = vsyncpa [#allocation6], 0
    %s18 = scalar_lea.sflag [#allocation6], 1
    %19 = vsyncpa %s18, 0
    %20 = vsyncpa [#allocation9], 0
    %21 = vsyncpa [#allocation4], 0
    %s22 = scalar_lea.sflag [#allocation4], 1
    %23 = vsyncpa %s22, 0
    %24 = vsyncpa [#allocation13], 0
    %s25 = scalar_lea.sflag [#allocation13], 1
    %26 = vsyncpa %s25, 0
    loop: start=0, step=1, limit=4
    $region2: #{tpu_custom_call.1} parent=1 // loop_pre_header
      _
    $region3: #{tpu_custom_call.1} parent=1 // loop_header
      %s28 = sphi 0, %s32
      %p29 = scmp.ge.s32.totalorder %s28, 4
      %s38 = sphi 0, %s40
      %s41 = sphi 0, %s38
      %s42 = sphi 0, %s41
      %s58 = sphi 0, %s42
      %s64 = sphi 0, %s66
      %s67 = sphi 0, %s64
      %s68 = sphi 0, %s67
      %s84 = sphi 0, %s68
      %s88 = sphi 0, %s88
      %s90 = sphi 0, %s88
      %s91 = sphi 0, %s90
      %s105 = sphi 0, %s91
      %s109 = sphi 0, %s109
      %s111 = sphi 0, %s109
      %s112 = sphi 0, %s111
      %s126 = sphi 0, %s112
      %s130 = sphi 0, %s130
      %s132 = sphi 0, %s130
      %s133 = sphi 0, %s132
      %s147 = sphi 0, %s133
      %s151 = sphi 0, %s151
      %s153 = sphi 0, %s151
      %s154 = sphi 0, %s153
      %s168 = sphi 0, %s154
      %s172 = sphi 0, %s172
      %s174 = sphi 0, %s172
      %s175 = sphi 0, %s174
      %s189 = sphi 0, %s175
      %s195 = sphi 0, %s197
      %s198 = sphi 0, %s195
      %s199 = sphi 0, %s198
      %s215 = sphi 0, %s199
      %s221 = sphi 0, %s223
      %s224 = sphi 0, %s221
      %s225 = sphi 0, %s224
      %s241 = sphi 0, %s225
    $region4: #{tpu_custom_call.1} parent=1 // loop_header_branch
      %31 = sbr.rel (%p29) target = $region8
    $region5: #{tpu_custom_call.1} parent=1 // loop_body
      %s33 = ssub.s32 %s28, 1
      %s34 = ssub.s32 %s28, 2
      %s35 = sadd.s32 %s28, 1
      %s36 = ssub.s32 %s28, %s35
      %p37 = scmp.eq.s32.totalorder %s36, 0
      %s39 = sadd.s32 %s38, 1
      %s40 = scalar_select %p37, %s38, %s39
      %p43 = pneg %p37
      %p44 = scmp.eq.s32.totalorder %s28, 1
      %p45 = por %p43, %p44
      %p46 = scmp.ne.s32.totalorder %s38, %s41
      %p47 = scmp.eq.s32.totalorder %s28, 0
      %p48 = por %p46, %p47
      %p49 = scmp.ne.s32.totalorder %s38, %s41
      %p50 = scmp.eq.s32.totalorder %s33, 1
      %p51 = por %p49, %p50
      %p52 = scmp.ne.s32.totalorder %s41, %s42
      %p53 = scmp.eq.s32.totalorder %s33, 0
      %p54 = por %p52, %p53
      %p55 = scmp.ne.s32.totalorder %s41, %s42
      %p56 = scmp.eq.s32.totalorder %s34, 1
      %p57 = por %p55, %p56
      %p59 = scmp.ne.s32.totalorder %s42, %s58
      %p60 = scmp.eq.s32.totalorder %s34, 0
      %p61 = por %p59, %p60
      %s62 = ssub.s32 %s28, %s35
      %p63 = scmp.eq.s32.totalorder %s62, 0
      %s65 = sadd.s32 %s64, 1
      %s66 = scalar_select %p63, %s64, %s65
      %p69 = pneg %p63
      %p70 = scmp.eq.s32.totalorder %s28, 1
      %p71 = por %p69, %p70
      %p72 = scmp.ne.s32.totalorder %s64, %s67
      %p73 = scmp.eq.s32.totalorder %s28, 0
      %p74 = por %p72, %p73
      %p75 = scmp.ne.s32.totalorder %s64, %s67
      %p76 = scmp.eq.s32.totalorder %s33, 1
      %p77 = por %p75, %p76
      %p78 = scmp.ne.s32.totalorder %s67, %s68
      %p79 = scmp.eq.s32.totalorder %s33, 0
      %p80 = por %p78, %p79
      %p81 = scmp.ne.s32.totalorder %s67, %s68
      %p82 = scmp.eq.s32.totalorder %s34, 1
      %p83 = por %p81, %p82
      %p85 = scmp.ne.s32.totalorder %s68, %s84
      %p86 = scmp.eq.s32.totalorder %s34, 0
      %p87 = por %p85, %p86
      %s89 = sadd.s32 %s88, 1
      %p92 = scmp.eq.s32.totalorder %s28, 1
      %p93 = scmp.ne.s32.totalorder %s88, %s90
      %p94 = scmp.eq.s32.totalorder %s28, 0
      %p95 = por %p93, %p94
      %p96 = scmp.ne.s32.totalorder %s88, %s90
      %p97 = scmp.eq.s32.totalorder %s33, 1
      %p98 = por %p96, %p97
      %p99 = scmp.ne.s32.totalorder %s90, %s91
      %p100 = scmp.eq.s32.totalorder %s33, 0
      %p101 = por %p99, %p100
      %p102 = scmp.ne.s32.totalorder %s90, %s91
      %p103 = scmp.eq.s32.totalorder %s34, 1
      %p104 = por %p102, %p103
      %p106 = scmp.ne.s32.totalorder %s91, %s105
      %p107 = scmp.eq.s32.totalorder %s34, 0
      %p108 = por %p106, %p107
      %s110 = sadd.s32 %s109, 1
      %p113 = scmp.eq.s32.totalorder %s28, 1
      %p114 = scmp.ne.s32.totalorder %s109, %s111
      %p115 = scmp.eq.s32.totalorder %s28, 0
      %p116 = por %p114, %p115
      %p117 = scmp.ne.s32.totalorder %s109, %s111
      %p118 = scmp.eq.s32.totalorder %s33, 1
      %p119 = por %p117, %p118
      %p120 = scmp.ne.s32.totalorder %s111, %s112
      %p121 = scmp.eq.s32.totalorder %s33, 0
      %p122 = por %p120, %p121
      %p123 = scmp.ne.s32.totalorder %s111, %s112
      %p124 = scmp.eq.s32.totalorder %s34, 1
      %p125 = por %p123, %p124
      %p127 = scmp.ne.s32.totalorder %s112, %s126
      %p128 = scmp.eq.s32.totalorder %s34, 0
      %p129 = por %p127, %p128
      %s131 = sadd.s32 %s130, 1
      %p134 = scmp.eq.s32.totalorder %s28, 1
      %p135 = scmp.ne.s32.totalorder %s130, %s132
      %p136 = scmp.eq.s32.totalorder %s28, 0
      %p137 = por %p135, %p136
      %p138 = scmp.ne.s32.totalorder %s130, %s132
      %p139 = scmp.eq.s32.totalorder %s33, 1
      %p140 = por %p138, %p139
      %p141 = scmp.ne.s32.totalorder %s132, %s133
      %p142 = scmp.eq.s32.totalorder %s33, 0
      %p143 = por %p141, %p142
      %p144 = scmp.ne.s32.totalorder %s132, %s133
      %p145 = scmp.eq.s32.totalorder %s34, 1
      %p146 = por %p144, %p145
      %p148 = scmp.ne.s32.totalorder %s133, %s147
      %p149 = scmp.eq.s32.totalorder %s34, 0
      %p150 = por %p148, %p149
      %s152 = sadd.s32 %s151, 1
      %p155 = scmp.eq.s32.totalorder %s28, 1
      %p156 = scmp.ne.s32.totalorder %s151, %s153
      %p157 = scmp.eq.s32.totalorder %s28, 0
      %p158 = por %p156, %p157
      %p159 = scmp.ne.s32.totalorder %s151, %s153
      %p160 = scmp.eq.s32.totalorder %s33, 1
      %p161 = por %p159, %p160
      %p162 = scmp.ne.s32.totalorder %s153, %s154
      %p163 = scmp.eq.s32.totalorder %s33, 0
      %p164 = por %p162, %p163
      %p165 = scmp.ne.s32.totalorder %s153, %s154
      %p166 = scmp.eq.s32.totalorder %s34, 1
      %p167 = por %p165, %p166
      %p169 = scmp.ne.s32.totalorder %s154, %s168
      %p170 = scmp.eq.s32.totalorder %s34, 0
      %p171 = por %p169, %p170
      %s173 = sadd.s32 %s172, 1
      %p176 = scmp.eq.s32.totalorder %s28, 1
      %p177 = scmp.ne.s32.totalorder %s172, %s174
      %p178 = scmp.eq.s32.totalorder %s28, 0
      %p179 = por %p177, %p178
      %p180 = scmp.ne.s32.totalorder %s172, %s174
      %p181 = scmp.eq.s32.totalorder %s33, 1
      %p182 = por %p180, %p181
      %p183 = scmp.ne.s32.totalorder %s174, %s175
      %p184 = scmp.eq.s32.totalorder %s33, 0
      %p185 = por %p183, %p184
      %p186 = scmp.ne.s32.totalorder %s174, %s175
      %p187 = scmp.eq.s32.totalorder %s34, 1
      %p188 = por %p186, %p187
      %p190 = scmp.ne.s32.totalorder %s175, %s189
      %p191 = scmp.eq.s32.totalorder %s34, 0
      %p192 = por %p190, %p191
      %s193 = ssub.s32 %s28, %s35
      %p194 = scmp.eq.s32.totalorder %s193, 0
      %s196 = sadd.s32 %s195, 1
      %s197 = scalar_select %p194, %s195, %s196
      %p200 = pneg %p194
      %p201 = scmp.eq.s32.totalorder %s28, 1
      %p202 = por %p200, %p201
      %p203 = scmp.ne.s32.totalorder %s195, %s198
      %p204 = scmp.eq.s32.totalorder %s28, 0
      %p205 = por %p203, %p204
      %p206 = scmp.ne.s32.totalorder %s195, %s198
      %p207 = scmp.eq.s32.totalorder %s33, 1
      %p208 = por %p206, %p207
      %p209 = scmp.ne.s32.totalorder %s198, %s199
      %p210 = scmp.eq.s32.totalorder %s33, 0
      %p211 = por %p209, %p210
      %p212 = scmp.ne.s32.totalorder %s198, %s199
      %p213 = scmp.eq.s32.totalorder %s34, 1
      %p214 = por %p212, %p213
      %p216 = scmp.ne.s32.totalorder %s199, %s215
      %p217 = scmp.eq.s32.totalorder %s34, 0
      %p218 = por %p216, %p217
      %s219 = ssub.s32 %s28, %s35
      %p220 = scmp.eq.s32.totalorder %s219, 0
      %s222 = sadd.s32 %s221, 1
      %s223 = scalar_select %p220, %s221, %s222
      %p226 = pneg %p220
      %p227 = scmp.eq.s32.totalorder %s28, 1
      %p228 = por %p226, %p227
      %p229 = scmp.ne.s32.totalorder %s221, %s224
      %p230 = scmp.eq.s32.totalorder %s28, 0
      %p231 = por %p229, %p230
      %p232 = scmp.ne.s32.totalorder %s221, %s224
      %p233 = scmp.eq.s32.totalorder %s33, 1
      %p234 = por %p232, %p233
      %p235 = scmp.ne.s32.totalorder %s224, %s225
      %p236 = scmp.eq.s32.totalorder %s33, 0
      %p237 = por %p235, %p236
      %p238 = scmp.ne.s32.totalorder %s224, %s225
      %p239 = scmp.eq.s32.totalorder %s34, 1
      %p240 = por %p238, %p239
      %p242 = scmp.ne.s32.totalorder %s225, %s241
      %p243 = scmp.eq.s32.totalorder %s34, 0
      %p244 = por %p242, %p243
      %p245 = scmp.le.s32.totalorder 1, %s28
      %p246 = scmp.lt.s32.totalorder %s28, 3
      %p247 = pnand %p245, %p246
      %p248 = pneg %p247
      // Predicated region
      $region9: #{tpu_custom_call.1} parent=5 // pred_check
        _
      $region10: #{tpu_custom_call.1} parent=5 // pred_check_branch
        %250 = sbr.rel (%p247) target = $region12
      $region11: #{tpu_custom_call.1} parent=5 // pred_region
        %s251 = ssub.s32 %s28, 1
        // Predicated region
        $region13: #{tpu_custom_call.1} parent=11 // pred_check
          %p252 = pneg %p101
        $region14: #{tpu_custom_call.1} parent=11 // pred_check_branch
          %254 = sbr.rel (%p252) target = $region16
        $region15: #{tpu_custom_call.1} parent=11 // pred_region
          %s256 = ssub.s32 2048, 2048
          %257 = vsyncadd [#allocation6], %s256
          %s258 = sshll.u32 [#allocation7], 4
          %s259 = int_to_ptr.vmem [resolvable:$true] %s258
          %264 = dma.hbm_to_vmem [thread:$0]  %s2, 2048, %s259, [#allocation6], 128, 128, 8
        $region16: #{tpu_custom_call.1} parent=11 // pred_fallthru
          _
        // Predicated region
        $region17: #{tpu_custom_call.1} parent=11 // pred_check
          %p265 = pneg %p122
        $region18: #{tpu_custom_call.1} parent=11 // pred_check_branch
          %267 = sbr.rel (%p265) target = $region20
        $region19: #{tpu_custom_call.1} parent=11 // pred_region
          %s269 = ssub.s32 1024, 1024
          %270 = vsyncadd [#allocation9], %s269
          %s271 = sshll.u32 [#allocation8], 4
          %s272 = int_to_ptr.vmem [resolvable:$true] %s271
          %277 = dma.hbm_to_vmem [thread:$0]  %s3, 1024, %s272, [#allocation9], 64, 64, 4
        $region20: #{tpu_custom_call.1} parent=11 // pred_fallthru
          _
        // Predicated region
        $region21: #{tpu_custom_call.1} parent=11 // pred_check
          %p278 = pneg %p143
        $region22: #{tpu_custom_call.1} parent=11 // pred_check_branch
          %280 = sbr.rel (%p278) target = $region24
        $region23: #{tpu_custom_call.1} parent=11 // pred_region
          _
        $region24: #{tpu_custom_call.1} parent=11 // pred_fallthru
          _
        // Predicated region
        $region25: #{tpu_custom_call.1} parent=11 // pred_check
          %p281 = pneg %p164
        $region26: #{tpu_custom_call.1} parent=11 // pred_check_branch
          %283 = sbr.rel (%p281) target = $region28
        $region27: #{tpu_custom_call.1} parent=11 // pred_region
          %s285 = ssub.s32 1024, 1024
          %286 = vsyncadd [#allocation9], %s285
          %s287 = sshll.u32 [#allocation10], 4
          %s288 = int_to_ptr.vmem [resolvable:$true] %s287
          %293 = dma.hbm_to_vmem [thread:$0]  %s5, 1024, %s288, [#allocation9], 64, 64, 4
        $region28: #{tpu_custom_call.1} parent=11 // pred_fallthru
          _
        // Predicated region
        $region29: #{tpu_custom_call.1} parent=11 // pred_check
          %p294 = pneg %p185
        $region30: #{tpu_custom_call.1} parent=11 // pred_check_branch
          %296 = sbr.rel (%p294) target = $region32
        $region31: #{tpu_custom_call.1} parent=11 // pred_region
          _
        $region32: #{tpu_custom_call.1} parent=11 // pred_fallthru
          _
      $region12: #{tpu_custom_call.1} parent=5 // pred_fallthru
        _
      %p297 = scmp.lt.s32.totalorder %s28, 2
      // Predicated region
      $region33: #{tpu_custom_call.1} parent=5 // pred_check
        %p298 = pneg %p297
      $region34: #{tpu_custom_call.1} parent=5 // pred_check_branch
        %300 = sbr.rel (%p298) target = $region36
      $region35: #{tpu_custom_call.1} parent=5 // pred_region
        // Predicated region
        $region37: #{tpu_custom_call.1} parent=35 // pred_check
          %p301 = pneg %p48
        $region38: #{tpu_custom_call.1} parent=35 // pred_check_branch
          %303 = sbr.rel (%p301) target = $region40
        $region39: #{tpu_custom_call.1} parent=35 // pred_region
          %s304 = sand.u32 %s38, 1
          %s305 = scalar_lea.sflag [#allocation3], %s304
          %s306 = sand.u32 %s38, 1
          %s307 = smul.addr %s306, 32
          %s308 = scalar_lea.vmem [#allocation2], %s307
          %s309 = smul.u32 8, %s28
          %s311 = ssub.s32 512, 512
          %312 = vsyncadd %s305, %s311
          %s313 = smul.addr %s309, 64
          %s314 = scalar_lea.hbm %s0, %s313
          %s315 = sshll.u32 %s308, 4
          %s316 = int_to_ptr.vmem [resolvable:$true] %s315
          %321 = dma.hbm_to_vmem [thread:$0]  %s314, 512, %s316, %s305, 64, 64, 4
        $region40: #{tpu_custom_call.1} parent=35 // pred_fallthru
          _
        // Predicated region
        $region41: #{tpu_custom_call.1} parent=35 // pred_check
          %p322 = pneg %p74
        $region42: #{tpu_custom_call.1} parent=35 // pred_check_branch
          %324 = sbr.rel (%p322) target = $region44
        $region43: #{tpu_custom_call.1} parent=35 // pred_region
          %s325 = sand.u32 %s28, 1
          %s326 = scalar_lea.sflag [#allocation6], %s325
          %s327 = sand.u32 %s64, 1
          %s328 = smul.addr %s327, 512
          %s329 = scalar_lea.vmem [#allocation5], %s328
          %s330 = smul.u32 8, %s28
          %s332 = ssub.s32 8192, 8192
          %333 = vsyncadd %s326, %s332
          %s334 = smul.addr %s330, 16
          %s335 = smul.addr %s334, 64
          %s336 = scalar_lea.hbm %s1, %s335
          %s337 = sshll.u32 %s329, 4
          %s338 = int_to_ptr.vmem [resolvable:$true] %s337
          %343 = dma.hbm_to_vmem [thread:$0]  %s336, 8192, %s338, %s326, 64, 64, 4
        $region44: #{tpu_custom_call.1} parent=35 // pred_fallthru
          _
      $region36: #{tpu_custom_call.1} parent=5 // pred_fallthru
        _
      %p344 = scmp.le.s32.totalorder 1, %s28
      %p345 = scmp.lt.s32.totalorder %s28, 3
      %p346 = pnand %p344, %p345
      %p347 = pneg %p346
      // Predicated region
      $region45: #{tpu_custom_call.1} parent=5 // pred_check
        _
      $region46: #{tpu_custom_call.1} parent=5 // pred_check_branch
        %349 = sbr.rel (%p346) target = $region48
      $region47: #{tpu_custom_call.1} parent=5 // pred_region
        %s350 = ssub.s32 %s28, 1
        %s351 = sand.u32 %s41, 1
        %s352 = scalar_lea.sflag [#allocation3], %s351
        %s353 = sand.u32 %s41, 1
        %s354 = smul.addr %s353, 32
        %s355 = scalar_lea.vmem [#allocation2], %s354
        // Predicated region
        $region49: #{tpu_custom_call.1} parent=47 // pred_check
          %p356 = pneg %p54
        $region50: #{tpu_custom_call.1} parent=47 // pred_check_branch
          %358 = sbr.rel (%p356) target = $region52
        $region51: #{tpu_custom_call.1} parent=47 // pred_region
          %359 = dma.done %s352, 512
        $region52: #{tpu_custom_call.1} parent=47 // pred_fallthru
          _
        %s360 = sand.u32 %s33, 1
        %s361 = scalar_lea.sflag [#allocation6], %s360
        %s362 = sand.u32 %s67, 1
        %s363 = smul.addr %s362, 512
        %s364 = scalar_lea.vmem [#allocation5], %s363
        // Predicated region
        $region53: #{tpu_custom_call.1} parent=47 // pred_check
          %p365 = pneg %p80
        $region54: #{tpu_custom_call.1} parent=47 // pred_check_branch
          %367 = sbr.rel (%p365) target = $region56
        $region55: #{tpu_custom_call.1} parent=47 // pred_region
          %368 = dma.done %s361, 8192
        $region56: #{tpu_custom_call.1} parent=47 // pred_fallthru
          _
        // Predicated region
        $region57: #{tpu_custom_call.1} parent=47 // pred_check
          %p369 = pneg %p101
        $region58: #{tpu_custom_call.1} parent=47 // pred_check_branch
          %371 = sbr.rel (%p369) target = $region60
        $region59: #{tpu_custom_call.1} parent=47 // pred_region
          %372 = dma.done [#allocation6], 2048
        $region60: #{tpu_custom_call.1} parent=47 // pred_fallthru
          _
        // Predicated region
        $region61: #{tpu_custom_call.1} parent=47 // pred_check
          %p373 = pneg %p122
        $region62: #{tpu_custom_call.1} parent=47 // pred_check_branch
          %375 = sbr.rel (%p373) target = $region64
        $region63: #{tpu_custom_call.1} parent=47 // pred_region
          %376 = dma.done [#allocation9], 1024
        $region64: #{tpu_custom_call.1} parent=47 // pred_fallthru
          _
        // Predicated region
        $region65: #{tpu_custom_call.1} parent=47 // pred_check
          %p377 = pneg %p164
        $region66: #{tpu_custom_call.1} parent=47 // pred_check_branch
          %379 = sbr.rel (%p377) target = $region68
        $region67: #{tpu_custom_call.1} parent=47 // pred_region
          %380 = dma.done [#allocation9], 1024
        $region68: #{tpu_custom_call.1} parent=47 // pred_fallthru
          _
        %s381 = sand.u32 %s41, 1
        %s382 = scalar_lea.sflag [#allocation3], %s381
        %s383 = sand.u32 %s41, 1
        %s384 = smul.addr %s383, 32
        %s385 = scalar_lea.vmem [#allocation2], %s384
        %p386 = pneg %p54
        %p387 = pneg %p51
        %s388 = sand.u32 %s33, 1
        %s389 = scalar_lea.sflag [#allocation6], %s388
        %s390 = sand.u32 %s67, 1
        %s391 = smul.addr %s390, 512
        %s392 = scalar_lea.vmem [#allocation5], %s391
        %p393 = pneg %p80
        %p394 = pneg %p77
        %p395 = pneg %p101
        %p396 = pneg %p98
        %p397 = pneg %p122
        %p398 = pneg %p119
        %p399 = pneg %p143
        %p400 = pneg %p140
        %p401 = pneg %p164
        %p402 = pneg %p161
        %p403 = pneg %p185
        %p404 = pneg %p182
        %p405 = pneg %p211
        %p406 = pneg %p208
        %s407 = sand.u32 %s198, 1
        %s408 = scalar_lea.sflag [#allocation4], %s407
        %s409 = sand.u32 %s198, 1
        %s410 = smul.addr %s409, 8
        %s411 = scalar_lea.vmem [#allocation11], %s410
        %p412 = pneg %p237
        %p413 = pneg %p234
        %s414 = sand.u32 %s224, 1
        %s415 = scalar_lea.sflag [#allocation13], %s414
        %s416 = sand.u32 %s224, 1
        %s417 = smul.addr %s416, 8
        %s418 = scalar_lea.vmem [#allocation12], %s417
        %s419 = smul.u32 8, %s33
        %s420 = smul.u32 8, %s33
        %v422 = vld [vmem:[%s355] sm:$0xf]
        %v423 = vld [vmem:[%s355 + $0x4] sm:$0xf]
        %v424 = vld [vmem:[%s355 + $0x8] sm:$0xf]
        %v425 = vld [vmem:[%s355 + $0xc] sm:$0xf]
        %v426 = vld [vmem:[%s355 + $0x10] sm:$0xf]
        %v427 = vld [vmem:[%s355 + $0x14] sm:$0xf]
        %v428 = vld [vmem:[%s355 + $0x18] sm:$0xf]
        %v429 = vld [vmem:[%s355 + $0x1c] sm:$0xf]
        %v430 = vld [vmem:[%s364] sm:$0xf]
        %v431 = vld [vmem:[%s364 + $0x4] sm:$0xf]
        %v432 = vld [vmem:[%s364 + $0x8] sm:$0xf]
        %v433 = vld [vmem:[%s364 + $0xc] sm:$0xf]
        %v434 = vld [vmem:[%s364 + $0x10] sm:$0xf]
        %v435 = vld [vmem:[%s364 + $0x14] sm:$0xf]
        %v436 = vld [vmem:[%s364 + $0x18] sm:$0xf]
        %v437 = vld [vmem:[%s364 + $0x1c] sm:$0xf]
        %v438 = vld [vmem:[%s364 + $0x20] sm:$0xf]
        %v439 = vld [vmem:[%s364 + $0x24] sm:$0xf]
        %v440 = vld [vmem:[%s364 + $0x28] sm:$0xf]
        %v441 = vld [vmem:[%s364 + $0x2c] sm:$0xf]
        %v442 = vld [vmem:[%s364 + $0x30] sm:$0xf]
        %v443 = vld [vmem:[%s364 + $0x34] sm:$0xf]
        %v444 = vld [vmem:[%s364 + $0x38] sm:$0xf]
        %v445 = vld [vmem:[%s364 + $0x3c] sm:$0xf]
        %v446 = vld [vmem:[%s364 + $0x40] sm:$0xf]
        %v447 = vld [vmem:[%s364 + $0x44] sm:$0xf]
        %v448 = vld [vmem:[%s364 + $0x48] sm:$0xf]
        %v449 = vld [vmem:[%s364 + $0x4c] sm:$0xf]
        %v450 = vld [vmem:[%s364 + $0x50] sm:$0xf]
        %v451 = vld [vmem:[%s364 + $0x54] sm:$0xf]
        %v452 = vld [vmem:[%s364 + $0x58] sm:$0xf]
        %v453 = vld [vmem:[%s364 + $0x5c] sm:$0xf]
        %v454 = vld [vmem:[%s364 + $0x60] sm:$0xf]
        %v455 = vld [vmem:[%s364 + $0x64] sm:$0xf]
        %v456 = vld [vmem:[%s364 + $0x68] sm:$0xf]
        %v457 = vld [vmem:[%s364 + $0x6c] sm:$0xf]
        %v458 = vld [vmem:[%s364 + $0x70] sm:$0xf]
        %v459 = vld [vmem:[%s364 + $0x74] sm:$0xf]
        %v460 = vld [vmem:[%s364 + $0x78] sm:$0xf]
        %v461 = vld [vmem:[%s364 + $0x7c] sm:$0xf]
        %v462 = vld [vmem:[%s364 + $0x80] sm:$0xf]
        %v463 = vld [vmem:[%s364 + $0x84] sm:$0xf]
        %v464 = vld [vmem:[%s364 + $0x88] sm:$0xf]
        %v465 = vld [vmem:[%s364 + $0x8c] sm:$0xf]
        %v466 = vld [vmem:[%s364 + $0x90] sm:$0xf]
        %v467 = vld [vmem:[%s364 + $0x94] sm:$0xf]
        %v468 = vld [vmem:[%s364 + $0x98] sm:$0xf]
        %v469 = vld [vmem:[%s364 + $0x9c] sm:$0xf]
        %v470 = vld [vmem:[%s364 + $0xa0] sm:$0xf]
        %v471 = vld [vmem:[%s364 + $0xa4] sm:$0xf]
        %v472 = vld [vmem:[%s364 + $0xa8] sm:$0xf]
        %v473 = vld [vmem:[%s364 + $0xac] sm:$0xf]
        %v474 = vld [vmem:[%s364 + $0xb0] sm:$0xf]
        %v475 = vld [vmem:[%s364 + $0xb4] sm:$0xf]
        %v476 = vld [vmem:[%s364 + $0xb8] sm:$0xf]
        %v477 = vld [vmem:[%s364 + $0xbc] sm:$0xf]
        %v478 = vld [vmem:[%s364 + $0xc0] sm:$0xf]
        %v479 = vld [vmem:[%s364 + $0xc4] sm:$0xf]
        %v480 = vld [vmem:[%s364 + $0xc8] sm:$0xf]
        %v481 = vld [vmem:[%s364 + $0xcc] sm:$0xf]
        %v482 = vld [vmem:[%s364 + $0xd0] sm:$0xf]
        %v483 = vld [vmem:[%s364 + $0xd4] sm:$0xf]
        %v484 = vld [vmem:[%s364 + $0xd8] sm:$0xf]
        %v485 = vld [vmem:[%s364 + $0xdc] sm:$0xf]
        %v486 = vld [vmem:[%s364 + $0xe0] sm:$0xf]
        %v487 = vld [vmem:[%s364 + $0xe4] sm:$0xf]
        %v488 = vld [vmem:[%s364 + $0xe8] sm:$0xf]
        %v489 = vld [vmem:[%s364 + $0xec] sm:$0xf]
        %v490 = vld [vmem:[%s364 + $0xf0] sm:$0xf]
        %v491 = vld [vmem:[%s364 + $0xf4] sm:$0xf]
        %v492 = vld [vmem:[%s364 + $0xf8] sm:$0xf]
        %v493 = vld [vmem:[%s364 + $0xfc] sm:$0xf]
        %v494 = vld [vmem:[%s364 + $0x100] sm:$0xf]
        %v495 = vld [vmem:[%s364 + $0x104] sm:$0xf]
        %v496 = vld [vmem:[%s364 + $0x108] sm:$0xf]
        %v497 = vld [vmem:[%s364 + $0x10c] sm:$0xf]
        %v498 = vld [vmem:[%s364 + $0x110] sm:$0xf]
        %v499 = vld [vmem:[%s364 + $0x114] sm:$0xf]
        %v500 = vld [vmem:[%s364 + $0x118] sm:$0xf]
        %v501 = vld [vmem:[%s364 + $0x11c] sm:$0xf]
        %v502 = vld [vmem:[%s364 + $0x120] sm:$0xf]
        %v503 = vld [vmem:[%s364 + $0x124] sm:$0xf]
        %v504 = vld [vmem:[%s364 + $0x128] sm:$0xf]
        %v505 = vld [vmem:[%s364 + $0x12c] sm:$0xf]
        %v506 = vld [vmem:[%s364 + $0x130] sm:$0xf]
        %v507 = vld [vmem:[%s364 + $0x134] sm:$0xf]
        %v508 = vld [vmem:[%s364 + $0x138] sm:$0xf]
        %v509 = vld [vmem:[%s364 + $0x13c] sm:$0xf]
        %v510 = vld [vmem:[%s364 + $0x140] sm:$0xf]
        %v511 = vld [vmem:[%s364 + $0x144] sm:$0xf]
        %v512 = vld [vmem:[%s364 + $0x148] sm:$0xf]
        %v513 = vld [vmem:[%s364 + $0x14c] sm:$0xf]
        %v514 = vld [vmem:[%s364 + $0x150] sm:$0xf]
        %v515 = vld [vmem:[%s364 + $0x154] sm:$0xf]
        %v516 = vld [vmem:[%s364 + $0x158] sm:$0xf]
        %v517 = vld [vmem:[%s364 + $0x15c] sm:$0xf]
        %v518 = vld [vmem:[%s364 + $0x160] sm:$0xf]
        %v519 = vld [vmem:[%s364 + $0x164] sm:$0xf]
        %v520 = vld [vmem:[%s364 + $0x168] sm:$0xf]
        %v521 = vld [vmem:[%s364 + $0x16c] sm:$0xf]
        %v522 = vld [vmem:[%s364 + $0x170] sm:$0xf]
        %v523 = vld [vmem:[%s364 + $0x174] sm:$0xf]
        %v524 = vld [vmem:[%s364 + $0x178] sm:$0xf]
        %v525 = vld [vmem:[%s364 + $0x17c] sm:$0xf]
        %v526 = vld [vmem:[%s364 + $0x180] sm:$0xf]
        %v527 = vld [vmem:[%s364 + $0x184] sm:$0xf]
        %v528 = vld [vmem:[%s364 + $0x188] sm:$0xf]
        %v529 = vld [vmem:[%s364 + $0x18c] sm:$0xf]
        %v530 = vld [vmem:[%s364 + $0x190] sm:$0xf]
        %v531 = vld [vmem:[%s364 + $0x194] sm:$0xf]
        %v532 = vld [vmem:[%s364 + $0x198] sm:$0xf]
        %v533 = vld [vmem:[%s364 + $0x19c] sm:$0xf]
        %v534 = vld [vmem:[%s364 + $0x1a0] sm:$0xf]
        %v535 = vld [vmem:[%s364 + $0x1a4] sm:$0xf]
        %v536 = vld [vmem:[%s364 + $0x1a8] sm:$0xf]
        %v537 = vld [vmem:[%s364 + $0x1ac] sm:$0xf]
        %v538 = vld [vmem:[%s364 + $0x1b0] sm:$0xf]
        %v539 = vld [vmem:[%s364 + $0x1b4] sm:$0xf]
        %v540 = vld [vmem:[%s364 + $0x1b8] sm:$0xf]
        %v541 = vld [vmem:[%s364 + $0x1bc] sm:$0xf]
        %v542 = vld [vmem:[%s364 + $0x1c0] sm:$0xf]
        %v543 = vld [vmem:[%s364 + $0x1c4] sm:$0xf]
        %v544 = vld [vmem:[%s364 + $0x1c8] sm:$0xf]
        %v545 = vld [vmem:[%s364 + $0x1cc] sm:$0xf]
        %v546 = vld [vmem:[%s364 + $0x1d0] sm:$0xf]
        %v547 = vld [vmem:[%s364 + $0x1d4] sm:$0xf]
        %v548 = vld [vmem:[%s364 + $0x1d8] sm:$0xf]
        %v549 = vld [vmem:[%s364 + $0x1dc] sm:$0xf]
        %v550 = vld [vmem:[%s364 + $0x1e0] sm:$0xf]
        %v551 = vld [vmem:[%s364 + $0x1e4] sm:$0xf]
        %v552 = vld [vmem:[%s364 + $0x1e8] sm:$0xf]
        %v553 = vld [vmem:[%s364 + $0x1ec] sm:$0xf]
        %v554 = vld [vmem:[%s364 + $0x1f0] sm:$0xf]
        %v555 = vld [vmem:[%s364 + $0x1f4] sm:$0xf]
        %v556 = vld [vmem:[%s364 + $0x1f8] sm:$0xf]
        %v557 = vld [vmem:[%s364 + $0x1fc] sm:$0xf]
        %v558 = vld [vmem:[#allocation7] sm:$0xff]
        %v559 = vld [vmem:[#allocation7 + $0x8] sm:$0xff]
        %v560 = vld [vmem:[#allocation7 + $0x10] sm:$0xff]
        %v561 = vld [vmem:[#allocation7 + $0x18] sm:$0xff]
        %v562 = vld [vmem:[#allocation7 + $0x20] sm:$0xff]
        %v563 = vld [vmem:[#allocation7 + $0x28] sm:$0xff]
        %v564 = vld [vmem:[#allocation7 + $0x30] sm:$0xff]
        %v565 = vld [vmem:[#allocation7 + $0x38] sm:$0xff]
        %v566 = vld [vmem:[#allocation7 + $0x40] sm:$0xff]
        %v567 = vld [vmem:[#allocation7 + $0x48] sm:$0xff]
        %v568 = vld [vmem:[#allocation7 + $0x50] sm:$0xff]
        %v569 = vld [vmem:[#allocation7 + $0x58] sm:$0xff]
        %v570 = vld [vmem:[#allocation7 + $0x60] sm:$0xff]
        %v571 = vld [vmem:[#allocation7 + $0x68] sm:$0xff]
        %v572 = vld [vmem:[#allocation7 + $0x70] sm:$0xff]
        %v573 = vld [vmem:[#allocation7 + $0x78] sm:$0xff]
        %v574 = vld [vmem:[#allocation8] sm:$0xf]
        %v575 = vld [vmem:[#allocation8 + $0x4] sm:$0xf]
        %v576 = vld [vmem:[#allocation8 + $0x8] sm:$0xf]
        %v577 = vld [vmem:[#allocation8 + $0xc] sm:$0xf]
        %v578 = vld [vmem:[#allocation8 + $0x10] sm:$0xf]
        %v579 = vld [vmem:[#allocation8 + $0x14] sm:$0xf]
        %v580 = vld [vmem:[#allocation8 + $0x18] sm:$0xf]
        %v581 = vld [vmem:[#allocation8 + $0x1c] sm:$0xf]
        %v582 = vld [vmem:[#allocation8 + $0x20] sm:$0xf]
        %v583 = vld [vmem:[#allocation8 + $0x24] sm:$0xf]
        %v584 = vld [vmem:[#allocation8 + $0x28] sm:$0xf]
        %v585 = vld [vmem:[#allocation8 + $0x2c] sm:$0xf]
        %v586 = vld [vmem:[#allocation8 + $0x30] sm:$0xf]
        %v587 = vld [vmem:[#allocation8 + $0x34] sm:$0xf]
        %v588 = vld [vmem:[#allocation8 + $0x38] sm:$0xf]
        %v589 = vld [vmem:[#allocation8 + $0x3c] sm:$0xf]
        %v590 = vld [vmem:[%s4] sm:$0x3]
        %v591 = vld [vmem:[#allocation10] sm:$0xf]
        %v592 = vld [vmem:[#allocation10 + $0x4] sm:$0xf]
        %v593 = vld [vmem:[#allocation10 + $0x8] sm:$0xf]
        %v594 = vld [vmem:[#allocation10 + $0xc] sm:$0xf]
        %v595 = vld [vmem:[#allocation10 + $0x10] sm:$0xf]
        %v596 = vld [vmem:[#allocation10 + $0x14] sm:$0xf]
        %v597 = vld [vmem:[#allocation10 + $0x18] sm:$0xf]
        %v598 = vld [vmem:[#allocation10 + $0x1c] sm:$0xf]
        %v599 = vld [vmem:[#allocation10 + $0x20] sm:$0xf]
        %v600 = vld [vmem:[#allocation10 + $0x24] sm:$0xf]
        %v601 = vld [vmem:[#allocation10 + $0x28] sm:$0xf]
        %v602 = vld [vmem:[#allocation10 + $0x2c] sm:$0xf]
        %v603 = vld [vmem:[#allocation10 + $0x30] sm:$0xf]
        %v604 = vld [vmem:[#allocation10 + $0x34] sm:$0xf]
        %v605 = vld [vmem:[#allocation10 + $0x38] sm:$0xf]
        %v606 = vld [vmem:[#allocation10 + $0x3c] sm:$0xf]
        %v607 = vld [vmem:[%s6] sm:$0x1]
        %v736 = vunpack.c.l.b16 %v430
        %v737 = vunpack.c.l.b16 %v431
        %v738 = vunpack.c.l.b16 %v432
        %v739 = vunpack.c.l.b16 %v433
        %v740 = vunpack.c.l.b16 %v434
        %v741 = vunpack.c.l.b16 %v435
        %v742 = vunpack.c.l.b16 %v436
        %v743 = vunpack.c.l.b16 %v437
        %v744 = vunpack.c.l.b16 %v438
        %v745 = vunpack.c.l.b16 %v439
        %v746 = vunpack.c.l.b16 %v440
        %v747 = vunpack.c.l.b16 %v441
        %v748 = vunpack.c.l.b16 %v442
        %v749 = vunpack.c.l.b16 %v443
        %v750 = vunpack.c.l.b16 %v444
        %v751 = vunpack.c.l.b16 %v445
        %v752 = vunpack.c.l.b16 %v446
        %v753 = vunpack.c.l.b16 %v447
        %v754 = vunpack.c.l.b16 %v448
        %v755 = vunpack.c.l.b16 %v449
        %v756 = vunpack.c.l.b16 %v450
        %v757 = vunpack.c.l.b16 %v451
        %v758 = vunpack.c.l.b16 %v452
        %v759 = vunpack.c.l.b16 %v453
        %v760 = vunpack.c.l.b16 %v454
        %v761 = vunpack.c.l.b16 %v455
        %v762 = vunpack.c.l.b16 %v456
        %v763 = vunpack.c.l.b16 %v457
        %v764 = vunpack.c.l.b16 %v458
        %v765 = vunpack.c.l.b16 %v459
        %v766 = vunpack.c.l.b16 %v460
        %v767 = vunpack.c.l.b16 %v461
        %v768 = vunpack.c.l.b16 %v462
        %v769 = vunpack.c.l.b16 %v463
        %v770 = vunpack.c.l.b16 %v464
        %v771 = vunpack.c.l.b16 %v465
        %v772 = vunpack.c.l.b16 %v466
        %v773 = vunpack.c.l.b16 %v467
        %v774 = vunpack.c.l.b16 %v468
        %v775 = vunpack.c.l.b16 %v469
        %v776 = vunpack.c.l.b16 %v470
        %v777 = vunpack.c.l.b16 %v471
        %v778 = vunpack.c.l.b16 %v472
        %v779 = vunpack.c.l.b16 %v473
        %v780 = vunpack.c.l.b16 %v474
        %v781 = vunpack.c.l.b16 %v475
        %v782 = vunpack.c.l.b16 %v476
        %v783 = vunpack.c.l.b16 %v477
        %v784 = vunpack.c.l.b16 %v478
        %v785 = vunpack.c.l.b16 %v479
        %v786 = vunpack.c.l.b16 %v480
        %v787 = vunpack.c.l.b16 %v481
        %v788 = vunpack.c.l.b16 %v482
        %v789 = vunpack.c.l.b16 %v483
        %v790 = vunpack.c.l.b16 %v484
        %v791 = vunpack.c.l.b16 %v485
        %v792 = vunpack.c.l.b16 %v486
        %v793 = vunpack.c.l.b16 %v487
        %v794 = vunpack.c.l.b16 %v488
        %v795 = vunpack.c.l.b16 %v489
        %v796 = vunpack.c.l.b16 %v490
        %v797 = vunpack.c.l.b16 %v491
        %v798 = vunpack.c.l.b16 %v492
        %v799 = vunpack.c.l.b16 %v493
        %v800 = vunpack.c.l.b16 %v494
        %v801 = vunpack.c.l.b16 %v495
        %v802 = vunpack.c.l.b16 %v496
        %v803 = vunpack.c.l.b16 %v497
        %v804 = vunpack.c.l.b16 %v498
        %v805 = vunpack.c.l.b16 %v499
        %v806 = vunpack.c.l.b16 %v500
        %v807 = vunpack.c.l.b16 %v501
        %v808 = vunpack.c.l.b16 %v502
        %v809 = vunpack.c.l.b16 %v503
        %v810 = vunpack.c.l.b16 %v504
        %v811 = vunpack.c.l.b16 %v505
        %v812 = vunpack.c.l.b16 %v506
        %v813 = vunpack.c.l.b16 %v507
        %v814 = vunpack.c.l.b16 %v508
        %v815 = vunpack.c.l.b16 %v509
        %v816 = vunpack.c.l.b16 %v510
        %v817 = vunpack.c.l.b16 %v511
        %v818 = vunpack.c.l.b16 %v512
        %v819 = vunpack.c.l.b16 %v513
        %v820 = vunpack.c.l.b16 %v514
        %v821 = vunpack.c.l.b16 %v515
        %v822 = vunpack.c.l.b16 %v516
        %v823 = vunpack.c.l.b16 %v517
        %v824 = vunpack.c.l.b16 %v518
        %v825 = vunpack.c.l.b16 %v519
        %v826 = vunpack.c.l.b16 %v520
        %v827 = vunpack.c.l.b16 %v521
        %v828 = vunpack.c.l.b16 %v522
        %v829 = vunpack.c.l.b16 %v523
        %v830 = vunpack.c.l.b16 %v524
        %v831 = vunpack.c.l.b16 %v525
        %v832 = vunpack.c.l.b16 %v526
        %v833 = vunpack.c.l.b16 %v527
        %v834 = vunpack.c.l.b16 %v528
        %v835 = vunpack.c.l.b16 %v529
        %v836 = vunpack.c.l.b16 %v530
        %v837 = vunpack.c.l.b16 %v531
        %v838 = vunpack.c.l.b16 %v532
        %v839 = vunpack.c.l.b16 %v533
        %v840 = vunpack.c.l.b16 %v534
        %v841 = vunpack.c.l.b16 %v535
        %v842 = vunpack.c.l.b16 %v536
        %v843 = vunpack.c.l.b16 %v537
        %v844 = vunpack.c.l.b16 %v538
        %v845 = vunpack.c.l.b16 %v539
        %v846 = vunpack.c.l.b16 %v540
        %v847 = vunpack.c.l.b16 %v541
        %v848 = vunpack.c.l.b16 %v542
        %v849 = vunpack.c.l.b16 %v543
        %v850 = vunpack.c.l.b16 %v544
        %v851 = vunpack.c.l.b16 %v545
        %v852 = vunpack.c.l.b16 %v546
        %v853 = vunpack.c.l.b16 %v547
        %v854 = vunpack.c.l.b16 %v548
        %v855 = vunpack.c.l.b16 %v549
        %v856 = vunpack.c.l.b16 %v550
        %v857 = vunpack.c.l.b16 %v551
        %v858 = vunpack.c.l.b16 %v552
        %v859 = vunpack.c.l.b16 %v553
        %v860 = vunpack.c.l.b16 %v554
        %v861 = vunpack.c.l.b16 %v555
        %v862 = vunpack.c.l.b16 %v556
        %v863 = vunpack.c.l.b16 %v557
        %v864 = vpack.c.b16 %v737, %v736
        %v865 = vpack.c.b16 %v739, %v738
        %v866 = vpack.c.b16 %v741, %v740
        %v867 = vpack.c.b16 %v743, %v742
        %v868 = vpack.c.b16 %v745, %v744
        %v869 = vpack.c.b16 %v747, %v746
        %v870 = vpack.c.b16 %v749, %v748
        %v871 = vpack.c.b16 %v751, %v750
        %v872 = vpack.c.b16 %v753, %v752
        %v873 = vpack.c.b16 %v755, %v754
        %v874 = vpack.c.b16 %v757, %v756
        %v875 = vpack.c.b16 %v759, %v758
        %v876 = vpack.c.b16 %v761, %v760
        %v877 = vpack.c.b16 %v763, %v762
        %v878 = vpack.c.b16 %v765, %v764
        %v879 = vpack.c.b16 %v767, %v766
        %v880 = vpack.c.b16 %v769, %v768
        %v881 = vpack.c.b16 %v771, %v770
        %v882 = vpack.c.b16 %v773, %v772
        %v883 = vpack.c.b16 %v775, %v774
        %v884 = vpack.c.b16 %v777, %v776
        %v885 = vpack.c.b16 %v779, %v778
        %v886 = vpack.c.b16 %v781, %v780
        %v887 = vpack.c.b16 %v783, %v782
        %v888 = vpack.c.b16 %v785, %v784
        %v889 = vpack.c.b16 %v787, %v786
        %v890 = vpack.c.b16 %v789, %v788
        %v891 = vpack.c.b16 %v791, %v790
        %v892 = vpack.c.b16 %v793, %v792
        %v893 = vpack.c.b16 %v795, %v794
        %v894 = vpack.c.b16 %v797, %v796
        %v895 = vpack.c.b16 %v799, %v798
        %v896 = vpack.c.b16 %v801, %v800
        %v897 = vpack.c.b16 %v803, %v802
        %v898 = vpack.c.b16 %v805, %v804
        %v899 = vpack.c.b16 %v807, %v806
        %v900 = vpack.c.b16 %v809, %v808
        %v901 = vpack.c.b16 %v811, %v810
        %v902 = vpack.c.b16 %v813, %v812
        %v903 = vpack.c.b16 %v815, %v814
        %v904 = vpack.c.b16 %v817, %v816
        %v905 = vpack.c.b16 %v819, %v818
        %v906 = vpack.c.b16 %v821, %v820
        %v907 = vpack.c.b16 %v823, %v822
        %v908 = vpack.c.b16 %v825, %v824
        %v909 = vpack.c.b16 %v827, %v826
        %v910 = vpack.c.b16 %v829, %v828
        %v911 = vpack.c.b16 %v831, %v830
        %v912 = vpack.c.b16 %v833, %v832
        %v913 = vpack.c.b16 %v835, %v834
        %v914 = vpack.c.b16 %v837, %v836
        %v915 = vpack.c.b16 %v839, %v838
        %v916 = vpack.c.b16 %v841, %v840
        %v917 = vpack.c.b16 %v843, %v842
        %v918 = vpack.c.b16 %v845, %v844
        %v919 = vpack.c.b16 %v847, %v846
        %v920 = vpack.c.b16 %v849, %v848
        %v921 = vpack.c.b16 %v851, %v850
        %v922 = vpack.c.b16 %v853, %v852
        %v923 = vpack.c.b16 %v855, %v854
        %v924 = vpack.c.b16 %v857, %v856
        %v925 = vpack.c.b16 %v859, %v858
        %v926 = vpack.c.b16 %v861, %v860
        %v927 = vpack.c.b16 %v863, %v862
        %v1008 = vunpack.c.l.b16 %v558
        %v1009 = vunpack.c.h.b16 %v558
        %v1010 = vunpack.c.l.b16 %v559
        %v1011 = vunpack.c.h.b16 %v559
        %v1012 = vunpack.c.l.b16 %v560
        %v1013 = vunpack.c.h.b16 %v560
        %v1014 = vunpack.c.l.b16 %v561
        %v1015 = vunpack.c.h.b16 %v561
        %v1016 = vunpack.c.l.b16 %v562
        %v1017 = vunpack.c.h.b16 %v562
        %v1018 = vunpack.c.l.b16 %v563
        %v1019 = vunpack.c.h.b16 %v563
        %v1020 = vunpack.c.l.b16 %v564
        %v1021 = vunpack.c.h.b16 %v564
        %v1022 = vunpack.c.l.b16 %v565
        %v1023 = vunpack.c.h.b16 %v565
        %v1024 = vunpack.c.l.b16 %v566
        %v1025 = vunpack.c.h.b16 %v566
        %v1026 = vunpack.c.l.b16 %v567
        %v1027 = vunpack.c.h.b16 %v567
        %v1028 = vunpack.c.l.b16 %v568
        %v1029 = vunpack.c.h.b16 %v568
        %v1030 = vunpack.c.l.b16 %v569
        %v1031 = vunpack.c.h.b16 %v569
        %v1032 = vunpack.c.l.b16 %v570
        %v1033 = vunpack.c.h.b16 %v570
        %v1034 = vunpack.c.l.b16 %v571
        %v1035 = vunpack.c.h.b16 %v571
        %v1036 = vunpack.c.l.b16 %v572
        %v1037 = vunpack.c.h.b16 %v572
        %v1038 = vunpack.c.l.b16 %v573
        %v1039 = vunpack.c.h.b16 %v573
        %v1040 = vpack.c.b16 %v1010, %v1008
        %v1041 = vpack.c.b16 %v1011, %v1009
        %v1042 = vpack.c.b16 %v1014, %v1012
        %v1043 = vpack.c.b16 %v1015, %v1013
        %v1044 = vpack.c.b16 %v1018, %v1016
        %v1045 = vpack.c.b16 %v1019, %v1017
        %v1046 = vpack.c.b16 %v1022, %v1020
        %v1047 = vpack.c.b16 %v1023, %v1021
        %v1048 = vpack.c.b16 %v1026, %v1024
        %v1049 = vpack.c.b16 %v1027, %v1025
        %v1050 = vpack.c.b16 %v1030, %v1028
        %v1051 = vpack.c.b16 %v1031, %v1029
        %v1052 = vpack.c.b16 %v1034, %v1032
        %v1053 = vpack.c.b16 %v1035, %v1033
        %v1054 = vpack.c.b16 %v1038, %v1036
        %v1055 = vpack.c.b16 %v1039, %v1037
        %1072 = vmatprep.subr.bf16.mxu0 %v1041
        %1073 = vmatpush1.bf16.msra.mxu0 %v1040
        %1074 = vmatprep.subr.bf16.mxu0 %v1043
        %1075 = vmatpush1.bf16.msra.mxu0 %v1042
        %1076 = vmatprep.subr.bf16.mxu0 %v1045
        %1077 = vmatpush1.bf16.msra.mxu0 %v1044
        %1078 = vmatprep.subr.bf16.mxu0 %v1047
        %1079 = vmatpush1.bf16.msra.mxu0 %v1046
        %1080 = vmatprep.subr.bf16.mxu0 %v1049
        %1081 = vmatpush1.bf16.msra.mxu0 %v1048
        %1082 = vmatprep.subr.bf16.mxu0 %v1051
        %1083 = vmatpush1.bf16.msra.mxu0 %v1050
        %1084 = vmatprep.subr.bf16.mxu0 %v1053
        %1085 = vmatpush1.bf16.msra.mxu0 %v1052
        %1086 = vmatprep.subr.bf16.mxu0 %v1055
        %1087 = vmatpush1.bf16.msra.mxu0 %v1054
        %1088 = vmatprep.subr.bf16.mxu0 0
        %1089 = vmatpush1.bf16.msra.mxu0 0
        %1090 = vmatprep.subr.bf16.mxu0 0
        %1091 = vmatpush1.bf16.msra.mxu0 0
        %1092 = vmatprep.subr.bf16.mxu0 0
        %1093 = vmatpush1.bf16.msra.mxu0 0
        %1094 = vmatprep.subr.bf16.mxu0 0
        %1095 = vmatpush1.bf16.msra.mxu0 0
        %1096 = vmatprep.subr.bf16.mxu0 0
        %1097 = vmatpush1.bf16.msra.mxu0 0
        %1098 = vmatprep.subr.bf16.mxu0 0
        %1099 = vmatpush1.bf16.msra.mxu0 0
        %1100 = vmatprep.subr.bf16.mxu0 0
        %1101 = vmatpush1.bf16.msra.mxu0 0
        %1102 = vmatprep.subr.bf16.mxu0 0
        %1103 = vmatpush1.bf16.msra.mxu0 0
        %1104 = vmatprep.mubr.bf16.mxu0 0
        %1105 = vmatmul.mubr.bf16.gmra.mrb[0].mxu0 %v864
        %v1106 = vpop.f32.mrb[0].mxu0
        %v1107 = vadd.f32 0.0, %v1106
        %v1108 = vpop.f32.mrb[0].mxu0
        %v1109 = vadd.f32 0.0, %v1108
        %v1110 = vpop.f32.mrb[0].mxu0
        %v1111 = vadd.f32 0.0, %v1110
        %v1112 = vpop.f32.mrb[0].mxu0
        %v1113 = vadd.f32 0.0, %v1112
        %1114 = vmatprep.mubr.bf16.mxu0 0
        %1115 = vmatmul.mubr.bf16.gmra.mrb[0].mxu0 %v865
        %v1116 = vpop.f32.mrb[0].mxu0
        %v1117 = vadd.f32 0.0, %v1116
        %v1118 = vpop.f32.mrb[0].mxu0
        %v1119 = vadd.f32 0.0, %v1118
        %v1120 = vpop.f32.mrb[0].mxu0
        %v1121 = vadd.f32 0.0, %v1120
        %v1122 = vpop.f32.mrb[0].mxu0
        %v1123 = vadd.f32 0.0, %v1122
        %1124 = vmatprep.mubr.bf16.mxu0 0
        %1125 = vmatmul.mubr.bf16.gmra.mrb[0].mxu0 %v866
        %v1126 = vpop.f32.mrb[0].mxu0
        %v1127 = vadd.f32 0.0, %v1126
        %v1128 = vpop.f32.mrb[0].mxu0
        %v1129 = vadd.f32 0.0, %v1128
        %v1130 = vpop.f32.mrb[0].mxu0
        %v1131 = vadd.f32 0.0, %v1130
        %v1132 = vpop.f32.mrb[0].mxu0
        %v1133 = vadd.f32 0.0, %v1132
        %1134 = vmatprep.mubr.bf16.mxu0 0
        %1135 = vmatmul.mubr.bf16.gmra.mrb[0].mxu0 %v867
        %v1136 = vpop.f32.mrb[0].mxu0
        %v1137 = vadd.f32 0.0, %v1136
        %v1138 = vpop.f32.mrb[0].mxu0
        %v1139 = vadd.f32 0.0, %v1138
        %v1140 = vpop.f32.mrb[0].mxu0
        %v1141 = vadd.f32 0.0, %v1140
        %v1142 = vpop.f32.mrb[0].mxu0
        %v1143 = vadd.f32 0.0, %v1142
        %1144 = vmatprep.mubr.bf16.mxu0 0
        %1145 = vmatmul.mubr.bf16.gmra.mrb[0].mxu0 %v868
        %v1146 = vpop.f32.mrb[0].mxu0
        %v1147 = vadd.f32 0.0, %v1146
        %v1148 = vpop.f32.mrb[0].mxu0
        %v1149 = vadd.f32 0.0, %v1148
        %v1150 = vpop.f32.mrb[0].mxu0
        %v1151 = vadd.f32 0.0, %v1150
        %v1152 = vpop.f32.mrb[0].mxu0
        %v1153 = vadd.f32 0.0, %v1152
        %1154 = vmatprep.mubr.bf16.mxu0 0
        %1155 = vmatmul.mubr.bf16.gmra.mrb[0].mxu0 %v869
        %v1156 = vpop.f32.mrb[0].mxu0
        %v1157 = vadd.f32 0.0, %v1156
        %v1158 = vpop.f32.mrb[0].mxu0
        %v1159 = vadd.f32 0.0, %v1158
        %v1160 = vpop.f32.mrb[0].mxu0
        %v1161 = vadd.f32 0.0, %v1160
        %v1162 = vpop.f32.mrb[0].mxu0
        %v1163 = vadd.f32 0.0, %v1162
        %1164 = vmatprep.mubr.bf16.mxu0 0
        %1165 = vmatmul.mubr.bf16.gmra.mrb[0].mxu0 %v870
        %v1166 = vpop.f32.mrb[0].mxu0
        %v1167 = vadd.f32 0.0, %v1166
        %v1168 = vpop.f32.mrb[0].mxu0
        %v1169 = vadd.f32 0.0, %v1168
        %v1170 = vpop.f32.mrb[0].mxu0
        %v1171 = vadd.f32 0.0, %v1170
        %v1172 = vpop.f32.mrb[0].mxu0
        %v1173 = vadd.f32 0.0, %v1172
        %1174 = vmatprep.mubr.bf16.mxu0 0
        %1175 = vmatmul.mubr.bf16.gmra.mrb[0].mxu0 %v871
        %v1176 = vpop.f32.mrb[0].mxu0
        %v1177 = vadd.f32 0.0, %v1176
        %v1178 = vpop.f32.mrb[0].mxu0
        %v1179 = vadd.f32 0.0, %v1178
        %v1180 = vpop.f32.mrb[0].mxu0
        %v1181 = vadd.f32 0.0, %v1180
        %v1182 = vpop.f32.mrb[0].mxu0
        %v1183 = vadd.f32 0.0, %v1182
        %1184 = vmatprep.mubr.bf16.mxu0 0
        %1185 = vmatmul.mubr.bf16.gmra.mrb[0].mxu0 %v872
        %v1186 = vpop.f32.mrb[0].mxu0
        %v1187 = vadd.f32 0.0, %v1186
        %v1188 = vpop.f32.mrb[0].mxu0
        %v1189 = vadd.f32 0.0, %v1188
        %v1190 = vpop.f32.mrb[0].mxu0
        %v1191 = vadd.f32 0.0, %v1190
        %v1192 = vpop.f32.mrb[0].mxu0
        %v1193 = vadd.f32 0.0, %v1192
        %1194 = vmatprep.mubr.bf16.mxu0 0
        %1195 = vmatmul.mubr.bf16.gmra.mrb[0].mxu0 %v873
        %v1196 = vpop.f32.mrb[0].mxu0
        %v1197 = vadd.f32 0.0, %v1196
        %v1198 = vpop.f32.mrb[0].mxu0
        %v1199 = vadd.f32 0.0, %v1198
        %v1200 = vpop.f32.mrb[0].mxu0
        %v1201 = vadd.f32 0.0, %v1200
        %v1202 = vpop.f32.mrb[0].mxu0
        %v1203 = vadd.f32 0.0, %v1202
        %1204 = vmatprep.mubr.bf16.mxu0 0
        %1205 = vmatmul.mubr.bf16.gmra.mrb[0].mxu0 %v874
        %v1206 = vpop.f32.mrb[0].mxu0
        %v1207 = vadd.f32 0.0, %v1206
        %v1208 = vpop.f32.mrb[0].mxu0
        %v1209 = vadd.f32 0.0, %v1208
        %v1210 = vpop.f32.mrb[0].mxu0
        %v1211 = vadd.f32 0.0, %v1210
        %v1212 = vpop.f32.mrb[0].mxu0
        %v1213 = vadd.f32 0.0, %v1212
        %1214 = vmatprep.mubr.bf16.mxu0 0
        %1215 = vmatmul.mubr.bf16.gmra.mrb[0].mxu0 %v875
        %v1216 = vpop.f32.mrb[0].mxu0
        %v1217 = vadd.f32 0.0, %v1216
        %v1218 = vpop.f32.mrb[0].mxu0
        %v1219 = vadd.f32 0.0, %v1218
        %v1220 = vpop.f32.mrb[0].mxu0
        %v1221 = vadd.f32 0.0, %v1220
        %v1222 = vpop.f32.mrb[0].mxu0
        %v1223 = vadd.f32 0.0, %v1222
        %1224 = vmatprep.mubr.bf16.mxu0 0
        %1225 = vmatmul.mubr.bf16.gmra.mrb[0].mxu0 %v876
        %v1226 = vpop.f32.mrb[0].mxu0
        %v1227 = vadd.f32 0.0, %v1226
        %v1228 = vpop.f32.mrb[0].mxu0
        %v1229 = vadd.f32 0.0, %v1228
        %v1230 = vpop.f32.mrb[0].mxu0
        %v1231 = vadd.f32 0.0, %v1230
        %v1232 = vpop.f32.mrb[0].mxu0
        %v1233 = vadd.f32 0.0, %v1232
        %1234 = vmatprep.mubr.bf16.mxu0 0
        %1235 = vmatmul.mubr.bf16.gmra.mrb[0].mxu0 %v877
        %v1236 = vpop.f32.mrb[0].mxu0
        %v1237 = vadd.f32 0.0, %v1236
        %v1238 = vpop.f32.mrb[0].mxu0
        %v1239 = vadd.f32 0.0, %v1238
        %v1240 = vpop.f32.mrb[0].mxu0
        %v1241 = vadd.f32 0.0, %v1240
        %v1242 = vpop.f32.mrb[0].mxu0
        %v1243 = vadd.f32 0.0, %v1242
        %1244 = vmatprep.mubr.bf16.mxu0 0
        %1245 = vmatmul.mubr.bf16.gmra.mrb[0].mxu0 %v878
        %v1246 = vpop.f32.mrb[0].mxu0
        %v1247 = vadd.f32 0.0, %v1246
        %v1248 = vpop.f32.mrb[0].mxu0
        %v1249 = vadd.f32 0.0, %v1248
        %v1250 = vpop.f32.mrb[0].mxu0
        %v1251 = vadd.f32 0.0, %v1250
        %v1252 = vpop.f32.mrb[0].mxu0
        %v1253 = vadd.f32 0.0, %v1252
        %1254 = vmatprep.mubr.bf16.mxu0 0
        %1255 = vmatmul.mubr.bf16.gmra.mrb[0].mxu0 %v879
        %v1256 = vpop.f32.mrb[0].mxu0
        %v1257 = vadd.f32 0.0, %v1256
        %v1258 = vpop.f32.mrb[0].mxu0
        %v1259 = vadd.f32 0.0, %v1258
        %v1260 = vpop.f32.mrb[0].mxu0
        %v1261 = vadd.f32 0.0, %v1260
        %v1262 = vpop.f32.mrb[0].mxu0
        %v1263 = vadd.f32 0.0, %v1262
        %1264 = vmatprep.mubr.bf16.mxu0 0
        %1265 = vmatmul.mubr.bf16.gmra.mrb[0].mxu0 %v880
        %v1266 = vpop.f32.mrb[0].mxu0
        %v1267 = vadd.f32 0.0, %v1266
        %v1268 = vpop.f32.mrb[0].mxu0
        %v1269 = vadd.f32 0.0, %v1268
        %v1270 = vpop.f32.mrb[0].mxu0
        %v1271 = vadd.f32 0.0, %v1270
        %v1272 = vpop.f32.mrb[0].mxu0
        %v1273 = vadd.f32 0.0, %v1272
        %1274 = vmatprep.mubr.bf16.mxu0 0
        %1275 = vmatmul.mubr.bf16.gmra.mrb[0].mxu0 %v881
        %v1276 = vpop.f32.mrb[0].mxu0
        %v1277 = vadd.f32 0.0, %v1276
        %v1278 = vpop.f32.mrb[0].mxu0
        %v1279 = vadd.f32 0.0, %v1278
        %v1280 = vpop.f32.mrb[0].mxu0
        %v1281 = vadd.f32 0.0, %v1280
        %v1282 = vpop.f32.mrb[0].mxu0
        %v1283 = vadd.f32 0.0, %v1282
        %1284 = vmatprep.mubr.bf16.mxu0 0
        %1285 = vmatmul.mubr.bf16.gmra.mrb[0].mxu0 %v882
        %v1286 = vpop.f32.mrb[0].mxu0
        %v1287 = vadd.f32 0.0, %v1286
        %v1288 = vpop.f32.mrb[0].mxu0
        %v1289 = vadd.f32 0.0, %v1288
        %v1290 = vpop.f32.mrb[0].mxu0
        %v1291 = vadd.f32 0.0, %v1290
        %v1292 = vpop.f32.mrb[0].mxu0
        %v1293 = vadd.f32 0.0, %v1292
        %1294 = vmatprep.mubr.bf16.mxu0 0
        %1295 = vmatmul.mubr.bf16.gmra.mrb[0].mxu0 %v883
        %v1296 = vpop.f32.mrb[0].mxu0
        %v1297 = vadd.f32 0.0, %v1296
        %v1298 = vpop.f32.mrb[0].mxu0
        %v1299 = vadd.f32 0.0, %v1298
        %v1300 = vpop.f32.mrb[0].mxu0
        %v1301 = vadd.f32 0.0, %v1300
        %v1302 = vpop.f32.mrb[0].mxu0
        %v1303 = vadd.f32 0.0, %v1302
        %1304 = vmatprep.mubr.bf16.mxu0 0
        %1305 = vmatmul.mubr.bf16.gmra.mrb[0].mxu0 %v884
        %v1306 = vpop.f32.mrb[0].mxu0
        %v1307 = vadd.f32 0.0, %v1306
        %v1308 = vpop.f32.mrb[0].mxu0
        %v1309 = vadd.f32 0.0, %v1308
        %v1310 = vpop.f32.mrb[0].mxu0
        %v1311 = vadd.f32 0.0, %v1310
        %v1312 = vpop.f32.mrb[0].mxu0
        %v1313 = vadd.f32 0.0, %v1312
        %1314 = vmatprep.mubr.bf16.mxu0 0
        %1315 = vmatmul.mubr.bf16.gmra.mrb[0].mxu0 %v885
        %v1316 = vpop.f32.mrb[0].mxu0
        %v1317 = vadd.f32 0.0, %v1316
        %v1318 = vpop.f32.mrb[0].mxu0
        %v1319 = vadd.f32 0.0, %v1318
        %v1320 = vpop.f32.mrb[0].mxu0
        %v1321 = vadd.f32 0.0, %v1320
        %v1322 = vpop.f32.mrb[0].mxu0
        %v1323 = vadd.f32 0.0, %v1322
        %1324 = vmatprep.mubr.bf16.mxu0 0
        %1325 = vmatmul.mubr.bf16.gmra.mrb[0].mxu0 %v886
        %v1326 = vpop.f32.mrb[0].mxu0
        %v1327 = vadd.f32 0.0, %v1326
        %v1328 = vpop.f32.mrb[0].mxu0
        %v1329 = vadd.f32 0.0, %v1328
        %v1330 = vpop.f32.mrb[0].mxu0
        %v1331 = vadd.f32 0.0, %v1330
        %v1332 = vpop.f32.mrb[0].mxu0
        %v1333 = vadd.f32 0.0, %v1332
        %1334 = vmatprep.mubr.bf16.mxu0 0
        %1335 = vmatmul.mubr.bf16.gmra.mrb[0].mxu0 %v887
        %v1336 = vpop.f32.mrb[0].mxu0
        %v1337 = vadd.f32 0.0, %v1336
        %v1338 = vpop.f32.mrb[0].mxu0
        %v1339 = vadd.f32 0.0, %v1338
        %v1340 = vpop.f32.mrb[0].mxu0
        %v1341 = vadd.f32 0.0, %v1340
        %v1342 = vpop.f32.mrb[0].mxu0
        %v1343 = vadd.f32 0.0, %v1342
        %1344 = vmatprep.mubr.bf16.mxu0 0
        %1345 = vmatmul.mubr.bf16.gmra.mrb[0].mxu0 %v888
        %v1346 = vpop.f32.mrb[0].mxu0
        %v1347 = vadd.f32 0.0, %v1346
        %v1348 = vpop.f32.mrb[0].mxu0
        %v1349 = vadd.f32 0.0, %v1348
        %v1350 = vpop.f32.mrb[0].mxu0
        %v1351 = vadd.f32 0.0, %v1350
        %v1352 = vpop.f32.mrb[0].mxu0
        %v1353 = vadd.f32 0.0, %v1352
        %1354 = vmatprep.mubr.bf16.mxu0 0
        %1355 = vmatmul.mubr.bf16.gmra.mrb[0].mxu0 %v889
        %v1356 = vpop.f32.mrb[0].mxu0
        %v1357 = vadd.f32 0.0, %v1356
        %v1358 = vpop.f32.mrb[0].mxu0
        %v1359 = vadd.f32 0.0, %v1358
        %v1360 = vpop.f32.mrb[0].mxu0
        %v1361 = vadd.f32 0.0, %v1360
        %v1362 = vpop.f32.mrb[0].mxu0
        %v1363 = vadd.f32 0.0, %v1362
        %1364 = vmatprep.mubr.bf16.mxu0 0
        %1365 = vmatmul.mubr.bf16.gmra.mrb[0].mxu0 %v890
        %v1366 = vpop.f32.mrb[0].mxu0
        %v1367 = vadd.f32 0.0, %v1366
        %v1368 = vpop.f32.mrb[0].mxu0
        %v1369 = vadd.f32 0.0, %v1368
        %v1370 = vpop.f32.mrb[0].mxu0
        %v1371 = vadd.f32 0.0, %v1370
        %v1372 = vpop.f32.mrb[0].mxu0
        %v1373 = vadd.f32 0.0, %v1372
        %1374 = vmatprep.mubr.bf16.mxu0 0
        %1375 = vmatmul.mubr.bf16.gmra.mrb[0].mxu0 %v891
        %v1376 = vpop.f32.mrb[0].mxu0
        %v1377 = vadd.f32 0.0, %v1376
        %v1378 = vpop.f32.mrb[0].mxu0
        %v1379 = vadd.f32 0.0, %v1378
        %v1380 = vpop.f32.mrb[0].mxu0
        %v1381 = vadd.f32 0.0, %v1380
        %v1382 = vpop.f32.mrb[0].mxu0
        %v1383 = vadd.f32 0.0, %v1382
        %1384 = vmatprep.mubr.bf16.mxu0 0
        %1385 = vmatmul.mubr.bf16.gmra.mrb[0].mxu0 %v892
        %v1386 = vpop.f32.mrb[0].mxu0
        %v1387 = vadd.f32 0.0, %v1386
        %v1388 = vpop.f32.mrb[0].mxu0
        %v1389 = vadd.f32 0.0, %v1388
        %v1390 = vpop.f32.mrb[0].mxu0
        %v1391 = vadd.f32 0.0, %v1390
        %v1392 = vpop.f32.mrb[0].mxu0
        %v1393 = vadd.f32 0.0, %v1392
        %1394 = vmatprep.mubr.bf16.mxu0 0
        %1395 = vmatmul.mubr.bf16.gmra.mrb[0].mxu0 %v893
        %v1396 = vpop.f32.mrb[0].mxu0
        %v1397 = vadd.f32 0.0, %v1396
        %v1398 = vpop.f32.mrb[0].mxu0
        %v1399 = vadd.f32 0.0, %v1398
        %v1400 = vpop.f32.mrb[0].mxu0
        %v1401 = vadd.f32 0.0, %v1400
        %v1402 = vpop.f32.mrb[0].mxu0
        %v1403 = vadd.f32 0.0, %v1402
        %1404 = vmatprep.mubr.bf16.mxu0 0
        %1405 = vmatmul.mubr.bf16.gmra.mrb[0].mxu0 %v894
        %v1406 = vpop.f32.mrb[0].mxu0
        %v1407 = vadd.f32 0.0, %v1406
        %v1408 = vpop.f32.mrb[0].mxu0
        %v1409 = vadd.f32 0.0, %v1408
        %v1410 = vpop.f32.mrb[0].mxu0
        %v1411 = vadd.f32 0.0, %v1410
        %v1412 = vpop.f32.mrb[0].mxu0
        %v1413 = vadd.f32 0.0, %v1412
        %1414 = vmatprep.mubr.bf16.mxu0 0
        %1415 = vmatmul.mubr.bf16.gmra.mrb[0].mxu0 %v895
        %v1416 = vpop.f32.mrb[0].mxu0
        %v1417 = vadd.f32 0.0, %v1416
        %v1418 = vpop.f32.mrb[0].mxu0
        %v1419 = vadd.f32 0.0, %v1418
        %v1420 = vpop.f32.mrb[0].mxu0
        %v1421 = vadd.f32 0.0, %v1420
        %v1422 = vpop.f32.mrb[0].mxu0
        %v1423 = vadd.f32 0.0, %v1422
        %1424 = vmatprep.mubr.bf16.mxu0 0
        %1425 = vmatmul.mubr.bf16.gmra.mrb[0].mxu0 %v896
        %v1426 = vpop.f32.mrb[0].mxu0
        %v1427 = vadd.f32 0.0, %v1426
        %v1428 = vpop.f32.mrb[0].mxu0
        %v1429 = vadd.f32 0.0, %v1428
        %v1430 = vpop.f32.mrb[0].mxu0
        %v1431 = vadd.f32 0.0, %v1430
        %v1432 = vpop.f32.mrb[0].mxu0
        %v1433 = vadd.f32 0.0, %v1432
        %1434 = vmatprep.mubr.bf16.mxu0 0
        %1435 = vmatmul.mubr.bf16.gmra.mrb[0].mxu0 %v897
        %v1436 = vpop.f32.mrb[0].mxu0
        %v1437 = vadd.f32 0.0, %v1436
        %v1438 = vpop.f32.mrb[0].mxu0
        %v1439 = vadd.f32 0.0, %v1438
        %v1440 = vpop.f32.mrb[0].mxu0
        %v1441 = vadd.f32 0.0, %v1440
        %v1442 = vpop.f32.mrb[0].mxu0
        %v1443 = vadd.f32 0.0, %v1442
        %1444 = vmatprep.mubr.bf16.mxu0 0
        %1445 = vmatmul.mubr.bf16.gmra.mrb[0].mxu0 %v898
        %v1446 = vpop.f32.mrb[0].mxu0
        %v1447 = vadd.f32 0.0, %v1446
        %v1448 = vpop.f32.mrb[0].mxu0
        %v1449 = vadd.f32 0.0, %v1448
        %v1450 = vpop.f32.mrb[0].mxu0
        %v1451 = vadd.f32 0.0, %v1450
        %v1452 = vpop.f32.mrb[0].mxu0
        %v1453 = vadd.f32 0.0, %v1452
        %1454 = vmatprep.mubr.bf16.mxu0 0
        %1455 = vmatmul.mubr.bf16.gmra.mrb[0].mxu0 %v899
        %v1456 = vpop.f32.mrb[0].mxu0
        %v1457 = vadd.f32 0.0, %v1456
        %v1458 = vpop.f32.mrb[0].mxu0
        %v1459 = vadd.f32 0.0, %v1458
        %v1460 = vpop.f32.mrb[0].mxu0
        %v1461 = vadd.f32 0.0, %v1460
        %v1462 = vpop.f32.mrb[0].mxu0
        %v1463 = vadd.f32 0.0, %v1462
        %1464 = vmatprep.mubr.bf16.mxu0 0
        %1465 = vmatmul.mubr.bf16.gmra.mrb[0].mxu0 %v900
        %v1466 = vpop.f32.mrb[0].mxu0
        %v1467 = vadd.f32 0.0, %v1466
        %v1468 = vpop.f32.mrb[0].mxu0
        %v1469 = vadd.f32 0.0, %v1468
        %v1470 = vpop.f32.mrb[0].mxu0
        %v1471 = vadd.f32 0.0, %v1470
        %v1472 = vpop.f32.mrb[0].mxu0
        %v1473 = vadd.f32 0.0, %v1472
        %1474 = vmatprep.mubr.bf16.mxu0 0
        %1475 = vmatmul.mubr.bf16.gmra.mrb[0].mxu0 %v901
        %v1476 = vpop.f32.mrb[0].mxu0
        %v1477 = vadd.f32 0.0, %v1476
        %v1478 = vpop.f32.mrb[0].mxu0
        %v1479 = vadd.f32 0.0, %v1478
        %v1480 = vpop.f32.mrb[0].mxu0
        %v1481 = vadd.f32 0.0, %v1480
        %v1482 = vpop.f32.mrb[0].mxu0
        %v1483 = vadd.f32 0.0, %v1482
        %1484 = vmatprep.mubr.bf16.mxu0 0
        %1485 = vmatmul.mubr.bf16.gmra.mrb[0].mxu0 %v902
        %v1486 = vpop.f32.mrb[0].mxu0
        %v1487 = vadd.f32 0.0, %v1486
        %v1488 = vpop.f32.mrb[0].mxu0
        %v1489 = vadd.f32 0.0, %v1488
        %v1490 = vpop.f32.mrb[0].mxu0
        %v1491 = vadd.f32 0.0, %v1490
        %v1492 = vpop.f32.mrb[0].mxu0
        %v1493 = vadd.f32 0.0, %v1492
        %1494 = vmatprep.mubr.bf16.mxu0 0
        %1495 = vmatmul.mubr.bf16.gmra.mrb[0].mxu0 %v903
        %v1496 = vpop.f32.mrb[0].mxu0
        %v1497 = vadd.f32 0.0, %v1496
        %v1498 = vpop.f32.mrb[0].mxu0
        %v1499 = vadd.f32 0.0, %v1498
        %v1500 = vpop.f32.mrb[0].mxu0
        %v1501 = vadd.f32 0.0, %v1500
        %v1502 = vpop.f32.mrb[0].mxu0
        %v1503 = vadd.f32 0.0, %v1502
        %1504 = vmatprep.mubr.bf16.mxu0 0
        %1505 = vmatmul.mubr.bf16.gmra.mrb[0].mxu0 %v904
        %v1506 = vpop.f32.mrb[0].mxu0
        %v1507 = vadd.f32 0.0, %v1506
        %v1508 = vpop.f32.mrb[0].mxu0
        %v1509 = vadd.f32 0.0, %v1508
        %v1510 = vpop.f32.mrb[0].mxu0
        %v1511 = vadd.f32 0.0, %v1510
        %v1512 = vpop.f32.mrb[0].mxu0
        %v1513 = vadd.f32 0.0, %v1512
        %1514 = vmatprep.mubr.bf16.mxu0 0
        %1515 = vmatmul.mubr.bf16.gmra.mrb[0].mxu0 %v905
        %v1516 = vpop.f32.mrb[0].mxu0
        %v1517 = vadd.f32 0.0, %v1516
        %v1518 = vpop.f32.mrb[0].mxu0
        %v1519 = vadd.f32 0.0, %v1518
        %v1520 = vpop.f32.mrb[0].mxu0
        %v1521 = vadd.f32 0.0, %v1520
        %v1522 = vpop.f32.mrb[0].mxu0
        %v1523 = vadd.f32 0.0, %v1522
        %1524 = vmatprep.mubr.bf16.mxu0 0
        %1525 = vmatmul.mubr.bf16.gmra.mrb[0].mxu0 %v906
        %v1526 = vpop.f32.mrb[0].mxu0
        %v1527 = vadd.f32 0.0, %v1526
        %v1528 = vpop.f32.mrb[0].mxu0
        %v1529 = vadd.f32 0.0, %v1528
        %v1530 = vpop.f32.mrb[0].mxu0
        %v1531 = vadd.f32 0.0, %v1530
        %v1532 = vpop.f32.mrb[0].mxu0
        %v1533 = vadd.f32 0.0, %v1532
        %1534 = vmatprep.mubr.bf16.mxu0 0
        %1535 = vmatmul.mubr.bf16.gmra.mrb[0].mxu0 %v907
        %v1536 = vpop.f32.mrb[0].mxu0
        %v1537 = vadd.f32 0.0, %v1536
        %v1538 = vpop.f32.mrb[0].mxu0
        %v1539 = vadd.f32 0.0, %v1538
        %v1540 = vpop.f32.mrb[0].mxu0
        %v1541 = vadd.f32 0.0, %v1540
        %v1542 = vpop.f32.mrb[0].mxu0
        %v1543 = vadd.f32 0.0, %v1542
        %1544 = vmatprep.mubr.bf16.mxu0 0
        %1545 = vmatmul.mubr.bf16.gmra.mrb[0].mxu0 %v908
        %v1546 = vpop.f32.mrb[0].mxu0
        %v1547 = vadd.f32 0.0, %v1546
        %v1548 = vpop.f32.mrb[0].mxu0
        %v1549 = vadd.f32 0.0, %v1548
        %v1550 = vpop.f32.mrb[0].mxu0
        %v1551 = vadd.f32 0.0, %v1550
        %v1552 = vpop.f32.mrb[0].mxu0
        %v1553 = vadd.f32 0.0, %v1552
        %1554 = vmatprep.mubr.bf16.mxu0 0
        %1555 = vmatmul.mubr.bf16.gmra.mrb[0].mxu0 %v909
        %v1556 = vpop.f32.mrb[0].mxu0
        %v1557 = vadd.f32 0.0, %v1556
        %v1558 = vpop.f32.mrb[0].mxu0
        %v1559 = vadd.f32 0.0, %v1558
        %v1560 = vpop.f32.mrb[0].mxu0
        %v1561 = vadd.f32 0.0, %v1560
        %v1562 = vpop.f32.mrb[0].mxu0
        %v1563 = vadd.f32 0.0, %v1562
        %1564 = vmatprep.mubr.bf16.mxu0 0
        %1565 = vmatmul.mubr.bf16.gmra.mrb[0].mxu0 %v910
        %v1566 = vpop.f32.mrb[0].mxu0
        %v1567 = vadd.f32 0.0, %v1566
        %v1568 = vpop.f32.mrb[0].mxu0
        %v1569 = vadd.f32 0.0, %v1568
        %v1570 = vpop.f32.mrb[0].mxu0
        %v1571 = vadd.f32 0.0, %v1570
        %v1572 = vpop.f32.mrb[0].mxu0
        %v1573 = vadd.f32 0.0, %v1572
        %1574 = vmatprep.mubr.bf16.mxu0 0
        %1575 = vmatmul.mubr.bf16.gmra.mrb[0].mxu0 %v911
        %v1576 = vpop.f32.mrb[0].mxu0
        %v1577 = vadd.f32 0.0, %v1576
        %v1578 = vpop.f32.mrb[0].mxu0
        %v1579 = vadd.f32 0.0, %v1578
        %v1580 = vpop.f32.mrb[0].mxu0
        %v1581 = vadd.f32 0.0, %v1580
        %v1582 = vpop.f32.mrb[0].mxu0
        %v1583 = vadd.f32 0.0, %v1582
        %1584 = vmatprep.mubr.bf16.mxu0 0
        %1585 = vmatmul.mubr.bf16.gmra.mrb[0].mxu0 %v912
        %v1586 = vpop.f32.mrb[0].mxu0
        %v1587 = vadd.f32 0.0, %v1586
        %v1588 = vpop.f32.mrb[0].mxu0
        %v1589 = vadd.f32 0.0, %v1588
        %v1590 = vpop.f32.mrb[0].mxu0
        %v1591 = vadd.f32 0.0, %v1590
        %v1592 = vpop.f32.mrb[0].mxu0
        %v1593 = vadd.f32 0.0, %v1592
        %1594 = vmatprep.mubr.bf16.mxu0 0
        %1595 = vmatmul.mubr.bf16.gmra.mrb[0].mxu0 %v913
        %v1596 = vpop.f32.mrb[0].mxu0
        %v1597 = vadd.f32 0.0, %v1596
        %v1598 = vpop.f32.mrb[0].mxu0
        %v1599 = vadd.f32 0.0, %v1598
        %v1600 = vpop.f32.mrb[0].mxu0
        %v1601 = vadd.f32 0.0, %v1600
        %v1602 = vpop.f32.mrb[0].mxu0
        %v1603 = vadd.f32 0.0, %v1602
        %1604 = vmatprep.mubr.bf16.mxu0 0
        %1605 = vmatmul.mubr.bf16.gmra.mrb[0].mxu0 %v914
        %v1606 = vpop.f32.mrb[0].mxu0
        %v1607 = vadd.f32 0.0, %v1606
        %v1608 = vpop.f32.mrb[0].mxu0
        %v1609 = vadd.f32 0.0, %v1608
        %v1610 = vpop.f32.mrb[0].mxu0
        %v1611 = vadd.f32 0.0, %v1610
        %v1612 = vpop.f32.mrb[0].mxu0
        %v1613 = vadd.f32 0.0, %v1612
        %1614 = vmatprep.mubr.bf16.mxu0 0
        %1615 = vmatmul.mubr.bf16.gmra.mrb[0].mxu0 %v915
        %v1616 = vpop.f32.mrb[0].mxu0
        %v1617 = vadd.f32 0.0, %v1616
        %v1618 = vpop.f32.mrb[0].mxu0
        %v1619 = vadd.f32 0.0, %v1618
        %v1620 = vpop.f32.mrb[0].mxu0
        %v1621 = vadd.f32 0.0, %v1620
        %v1622 = vpop.f32.mrb[0].mxu0
        %v1623 = vadd.f32 0.0, %v1622
        %1624 = vmatprep.mubr.bf16.mxu0 0
        %1625 = vmatmul.mubr.bf16.gmra.mrb[0].mxu0 %v916
        %v1626 = vpop.f32.mrb[0].mxu0
        %v1627 = vadd.f32 0.0, %v1626
        %v1628 = vpop.f32.mrb[0].mxu0
        %v1629 = vadd.f32 0.0, %v1628
        %v1630 = vpop.f32.mrb[0].mxu0
        %v1631 = vadd.f32 0.0, %v1630
        %v1632 = vpop.f32.mrb[0].mxu0
        %v1633 = vadd.f32 0.0, %v1632
        %1634 = vmatprep.mubr.bf16.mxu0 0
        %1635 = vmatmul.mubr.bf16.gmra.mrb[0].mxu0 %v917
        %v1636 = vpop.f32.mrb[0].mxu0
        %v1637 = vadd.f32 0.0, %v1636
        %v1638 = vpop.f32.mrb[0].mxu0
        %v1639 = vadd.f32 0.0, %v1638
        %v1640 = vpop.f32.mrb[0].mxu0
        %v1641 = vadd.f32 0.0, %v1640
        %v1642 = vpop.f32.mrb[0].mxu0
        %v1643 = vadd.f32 0.0, %v1642
        %1644 = vmatprep.mubr.bf16.mxu0 0
        %1645 = vmatmul.mubr.bf16.gmra.mrb[0].mxu0 %v918
        %v1646 = vpop.f32.mrb[0].mxu0
        %v1647 = vadd.f32 0.0, %v1646
        %v1648 = vpop.f32.mrb[0].mxu0
        %v1649 = vadd.f32 0.0, %v1648
        %v1650 = vpop.f32.mrb[0].mxu0
        %v1651 = vadd.f32 0.0, %v1650
        %v1652 = vpop.f32.mrb[0].mxu0
        %v1653 = vadd.f32 0.0, %v1652
        %1654 = vmatprep.mubr.bf16.mxu0 0
        %1655 = vmatmul.mubr.bf16.gmra.mrb[0].mxu0 %v919
        %v1656 = vpop.f32.mrb[0].mxu0
        %v1657 = vadd.f32 0.0, %v1656
        %v1658 = vpop.f32.mrb[0].mxu0
        %v1659 = vadd.f32 0.0, %v1658
        %v1660 = vpop.f32.mrb[0].mxu0
        %v1661 = vadd.f32 0.0, %v1660
        %v1662 = vpop.f32.mrb[0].mxu0
        %v1663 = vadd.f32 0.0, %v1662
        %1664 = vmatprep.mubr.bf16.mxu0 0
        %1665 = vmatmul.mubr.bf16.gmra.mrb[0].mxu0 %v920
        %v1666 = vpop.f32.mrb[0].mxu0
        %v1667 = vadd.f32 0.0, %v1666
        %v1668 = vpop.f32.mrb[0].mxu0
        %v1669 = vadd.f32 0.0, %v1668
        %v1670 = vpop.f32.mrb[0].mxu0
        %v1671 = vadd.f32 0.0, %v1670
        %v1672 = vpop.f32.mrb[0].mxu0
        %v1673 = vadd.f32 0.0, %v1672
        %1674 = vmatprep.mubr.bf16.mxu0 0
        %1675 = vmatmul.mubr.bf16.gmra.mrb[0].mxu0 %v921
        %v1676 = vpop.f32.mrb[0].mxu0
        %v1677 = vadd.f32 0.0, %v1676
        %v1678 = vpop.f32.mrb[0].mxu0
        %v1679 = vadd.f32 0.0, %v1678
        %v1680 = vpop.f32.mrb[0].mxu0
        %v1681 = vadd.f32 0.0, %v1680
        %v1682 = vpop.f32.mrb[0].mxu0
        %v1683 = vadd.f32 0.0, %v1682
        %1684 = vmatprep.mubr.bf16.mxu0 0
        %1685 = vmatmul.mubr.bf16.gmra.mrb[0].mxu0 %v922
        %v1686 = vpop.f32.mrb[0].mxu0
        %v1687 = vadd.f32 0.0, %v1686
        %v1688 = vpop.f32.mrb[0].mxu0
        %v1689 = vadd.f32 0.0, %v1688
        %v1690 = vpop.f32.mrb[0].mxu0
        %v1691 = vadd.f32 0.0, %v1690
        %v1692 = vpop.f32.mrb[0].mxu0
        %v1693 = vadd.f32 0.0, %v1692
        %1694 = vmatprep.mubr.bf16.mxu0 0
        %1695 = vmatmul.mubr.bf16.gmra.mrb[0].mxu0 %v923
        %v1696 = vpop.f32.mrb[0].mxu0
        %v1697 = vadd.f32 0.0, %v1696
        %v1698 = vpop.f32.mrb[0].mxu0
        %v1699 = vadd.f32 0.0, %v1698
        %v1700 = vpop.f32.mrb[0].mxu0
        %v1701 = vadd.f32 0.0, %v1700
        %v1702 = vpop.f32.mrb[0].mxu0
        %v1703 = vadd.f32 0.0, %v1702
        %1704 = vmatprep.mubr.bf16.mxu0 0
        %1705 = vmatmul.mubr.bf16.gmra.mrb[0].mxu0 %v924
        %v1706 = vpop.f32.mrb[0].mxu0
        %v1707 = vadd.f32 0.0, %v1706
        %v1708 = vpop.f32.mrb[0].mxu0
        %v1709 = vadd.f32 0.0, %v1708
        %v1710 = vpop.f32.mrb[0].mxu0
        %v1711 = vadd.f32 0.0, %v1710
        %v1712 = vpop.f32.mrb[0].mxu0
        %v1713 = vadd.f32 0.0, %v1712
        %1714 = vmatprep.mubr.bf16.mxu0 0
        %1715 = vmatmul.mubr.bf16.gmra.mrb[0].mxu0 %v925
        %v1716 = vpop.f32.mrb[0].mxu0
        %v1717 = vadd.f32 0.0, %v1716
        %v1718 = vpop.f32.mrb[0].mxu0
        %v1719 = vadd.f32 0.0, %v1718
        %v1720 = vpop.f32.mrb[0].mxu0
        %v1721 = vadd.f32 0.0, %v1720
        %v1722 = vpop.f32.mrb[0].mxu0
        %v1723 = vadd.f32 0.0, %v1722
        %1724 = vmatprep.mubr.bf16.mxu0 0
        %1725 = vmatmul.mubr.bf16.gmra.mrb[0].mxu0 %v926
        %v1726 = vpop.f32.mrb[0].mxu0
        %v1727 = vadd.f32 0.0, %v1726
        %v1728 = vpop.f32.mrb[0].mxu0
        %v1729 = vadd.f32 0.0, %v1728
        %v1730 = vpop.f32.mrb[0].mxu0
        %v1731 = vadd.f32 0.0, %v1730
        %v1732 = vpop.f32.mrb[0].mxu0
        %v1733 = vadd.f32 0.0, %v1732
        %1734 = vmatprep.mubr.bf16.mxu0 0
        %1735 = vmatmul.mubr.bf16.gmra.mrb[0].mxu0 %v927
        %v1736 = vpop.f32.mrb[0].mxu0
        %v1737 = vadd.f32 0.0, %v1736
        %v1738 = vpop.f32.mrb[0].mxu0
        %v1739 = vadd.f32 0.0, %v1738
        %v1740 = vpop.f32.mrb[0].mxu0
        %v1741 = vadd.f32 0.0, %v1740
        %v1742 = vpop.f32.mrb[0].mxu0
        %v1743 = vadd.f32 0.0, %v1742
        %1744 = vdwg.mxu0
        %v1745 = vpack.c.bf16 %v1111, %v1107
        %v1746 = vpack.c.bf16 %v1113, %v1109
        %v1747 = vpack.c.bf16 %v1121, %v1117
        %v1748 = vpack.c.bf16 %v1123, %v1119
        %v1749 = vpack.c.bf16 %v1131, %v1127
        %v1750 = vpack.c.bf16 %v1133, %v1129
        %v1751 = vpack.c.bf16 %v1141, %v1137
        %v1752 = vpack.c.bf16 %v1143, %v1139
        %v1753 = vpack.c.bf16 %v1151, %v1147
        %v1754 = vpack.c.bf16 %v1153, %v1149
        %v1755 = vpack.c.bf16 %v1161, %v1157
        %v1756 = vpack.c.bf16 %v1163, %v1159
        %v1757 = vpack.c.bf16 %v1171, %v1167
        %v1758 = vpack.c.bf16 %v1173, %v1169
        %v1759 = vpack.c.bf16 %v1181, %v1177
        %v1760 = vpack.c.bf16 %v1183, %v1179
        %v1761 = vpack.c.bf16 %v1191, %v1187
        %v1762 = vpack.c.bf16 %v1193, %v1189
        %v1763 = vpack.c.bf16 %v1201, %v1197
        %v1764 = vpack.c.bf16 %v1203, %v1199
        %v1765 = vpack.c.bf16 %v1211, %v1207
        %v1766 = vpack.c.bf16 %v1213, %v1209
        %v1767 = vpack.c.bf16 %v1221, %v1217
        %v1768 = vpack.c.bf16 %v1223, %v1219
        %v1769 = vpack.c.bf16 %v1231, %v1227
        %v1770 = vpack.c.bf16 %v1233, %v1229
        %v1771 = vpack.c.bf16 %v1241, %v1237
        %v1772 = vpack.c.bf16 %v1243, %v1239
        %v1773 = vpack.c.bf16 %v1251, %v1247
        %v1774 = vpack.c.bf16 %v1253, %v1249
        %v1775 = vpack.c.bf16 %v1261, %v1257
        %v1776 = vpack.c.bf16 %v1263, %v1259
        %v1777 = vpack.c.bf16 %v1271, %v1267
        %v1778 = vpack.c.bf16 %v1273, %v1269
        %v1779 = vpack.c.bf16 %v1281, %v1277
        %v1780 = vpack.c.bf16 %v1283, %v1279
        %v1781 = vpack.c.bf16 %v1291, %v1287
        %v1782 = vpack.c.bf16 %v1293, %v1289
        %v1783 = vpack.c.bf16 %v1301, %v1297
        %v1784 = vpack.c.bf16 %v1303, %v1299
        %v1785 = vpack.c.bf16 %v1311, %v1307
        %v1786 = vpack.c.bf16 %v1313, %v1309
        %v1787 = vpack.c.bf16 %v1321, %v1317
        %v1788 = vpack.c.bf16 %v1323, %v1319
        %v1789 = vpack.c.bf16 %v1331, %v1327
        %v1790 = vpack.c.bf16 %v1333, %v1329
        %v1791 = vpack.c.bf16 %v1341, %v1337
        %v1792 = vpack.c.bf16 %v1343, %v1339
        %v1793 = vpack.c.bf16 %v1351, %v1347
        %v1794 = vpack.c.bf16 %v1353, %v1349
        %v1795 = vpack.c.bf16 %v1361, %v1357
        %v1796 = vpack.c.bf16 %v1363, %v1359
        %v1797 = vpack.c.bf16 %v1371, %v1367
        %v1798 = vpack.c.bf16 %v1373, %v1369
        %v1799 = vpack.c.bf16 %v1381, %v1377
        %v1800 = vpack.c.bf16 %v1383, %v1379
        %v1801 = vpack.c.bf16 %v1391, %v1387
        %v1802 = vpack.c.bf16 %v1393, %v1389
        %v1803 = vpack.c.bf16 %v1401, %v1397
        %v1804 = vpack.c.bf16 %v1403, %v1399
        %v1805 = vpack.c.bf16 %v1411, %v1407
        %v1806 = vpack.c.bf16 %v1413, %v1409
        %v1807 = vpack.c.bf16 %v1421, %v1417
        %v1808 = vpack.c.bf16 %v1423, %v1419
        %v1809 = vpack.c.bf16 %v1431, %v1427
        %v1810 = vpack.c.bf16 %v1433, %v1429
        %v1811 = vpack.c.bf16 %v1441, %v1437
        %v1812 = vpack.c.bf16 %v1443, %v1439
        %v1813 = vpack.c.bf16 %v1451, %v1447
        %v1814 = vpack.c.bf16 %v1453, %v1449
        %v1815 = vpack.c.bf16 %v1461, %v1457
        %v1816 = vpack.c.bf16 %v1463, %v1459
        %v1817 = vpack.c.bf16 %v1471, %v1467
        %v1818 = vpack.c.bf16 %v1473, %v1469
        %v1819 = vpack.c.bf16 %v1481, %v1477
        %v1820 = vpack.c.bf16 %v1483, %v1479
        %v1821 = vpack.c.bf16 %v1491, %v1487
        %v1822 = vpack.c.bf16 %v1493, %v1489
        %v1823 = vpack.c.bf16 %v1501, %v1497
        %v1824 = vpack.c.bf16 %v1503, %v1499
        %v1825 = vpack.c.bf16 %v1511, %v1507
        %v1826 = vpack.c.bf16 %v1513, %v1509
        %v1827 = vpack.c.bf16 %v1521, %v1517
        %v1828 = vpack.c.bf16 %v1523, %v1519
        %v1829 = vpack.c.bf16 %v1531, %v1527
        %v1830 = vpack.c.bf16 %v1533, %v1529
        %v1831 = vpack.c.bf16 %v1541, %v1537
        %v1832 = vpack.c.bf16 %v1543, %v1539
        %v1833 = vpack.c.bf16 %v1551, %v1547
        %v1834 = vpack.c.bf16 %v1553, %v1549
        %v1835 = vpack.c.bf16 %v1561, %v1557
        %v1836 = vpack.c.bf16 %v1563, %v1559
        %v1837 = vpack.c.bf16 %v1571, %v1567
        %v1838 = vpack.c.bf16 %v1573, %v1569
        %v1839 = vpack.c.bf16 %v1581, %v1577
        %v1840 = vpack.c.bf16 %v1583, %v1579
        %v1841 = vpack.c.bf16 %v1591, %v1587
        %v1842 = vpack.c.bf16 %v1593, %v1589
        %v1843 = vpack.c.bf16 %v1601, %v1597
        %v1844 = vpack.c.bf16 %v1603, %v1599
        %v1845 = vpack.c.bf16 %v1611, %v1607
        %v1846 = vpack.c.bf16 %v1613, %v1609
        %v1847 = vpack.c.bf16 %v1621, %v1617
        %v1848 = vpack.c.bf16 %v1623, %v1619
        %v1849 = vpack.c.bf16 %v1631, %v1627
        %v1850 = vpack.c.bf16 %v1633, %v1629
        %v1851 = vpack.c.bf16 %v1641, %v1637
        %v1852 = vpack.c.bf16 %v1643, %v1639
        %v1853 = vpack.c.bf16 %v1651, %v1647
        %v1854 = vpack.c.bf16 %v1653, %v1649
        %v1855 = vpack.c.bf16 %v1661, %v1657
        %v1856 = vpack.c.bf16 %v1663, %v1659
        %v1857 = vpack.c.bf16 %v1671, %v1667
        %v1858 = vpack.c.bf16 %v1673, %v1669
        %v1859 = vpack.c.bf16 %v1681, %v1677
        %v1860 = vpack.c.bf16 %v1683, %v1679
        %v1861 = vpack.c.bf16 %v1691, %v1687
        %v1862 = vpack.c.bf16 %v1693, %v1689
        %v1863 = vpack.c.bf16 %v1701, %v1697
        %v1864 = vpack.c.bf16 %v1703, %v1699
        %v1865 = vpack.c.bf16 %v1711, %v1707
        %v1866 = vpack.c.bf16 %v1713, %v1709
        %v1867 = vpack.c.bf16 %v1721, %v1717
        %v1868 = vpack.c.bf16 %v1723, %v1719
        %v1869 = vpack.c.bf16 %v1731, %v1727
        %v1870 = vpack.c.bf16 %v1733, %v1729
        %v1871 = vpack.c.bf16 %v1741, %v1737
        %v1872 = vpack.c.bf16 %v1743, %v1739
        %1873 = vmatprep.subr.bf16.mxu0 0
        %1874 = vmatpush1.bf16.xpose.msra.mxu0 %v1745
        %1875 = vmatprep.subr.bf16.mxu0 0
        %1876 = vmatpush1.bf16.xpose.msra.mxu0 %v1747
        %1877 = vmatprep.subr.bf16.mxu0 0
        %1878 = vmatpush1.bf16.xpose.msra.mxu0 %v1749
        %1879 = vmatprep.subr.bf16.mxu0 0
        %1880 = vmatpush1.bf16.xpose.msra.mxu0 %v1751
        %1881 = vmatprep.subr.bf16.mxu0 0
        %1882 = vmatpush1.bf16.xpose.msra.mxu0 %v1753
        %1883 = vmatprep.subr.bf16.mxu0 0
        %1884 = vmatpush1.bf16.xpose.msra.mxu0 %v1755
        %1885 = vmatprep.subr.bf16.mxu0 0
        %1886 = vmatpush1.bf16.xpose.msra.mxu0 %v1757
        %1887 = vmatprep.subr.bf16.mxu0 0
        %1888 = vmatpush1.bf16.xpose.msra.mxu0 %v1759
        %1889 = vmatprep.subr.bf16.mxu0 0
        %1890 = vmatpush1.bf16.xpose.msra.mxu0 0
        %1891 = vmatprep.subr.bf16.mxu0 0
        %1892 = vmatpush1.bf16.xpose.msra.mxu0 0
        %1893 = vmatprep.subr.bf16.mxu0 0
        %1894 = vmatpush1.bf16.xpose.msra.mxu0 0
        %1895 = vmatprep.subr.bf16.mxu0 0
        %1896 = vmatpush1.bf16.xpose.msra.mxu0 0
        %1897 = vmatprep.subr.bf16.mxu0 0
        %1898 = vmatpush1.bf16.xpose.msra.mxu0 0
        %1899 = vmatprep.subr.bf16.mxu0 0
        %1900 = vmatpush1.bf16.xpose.msra.mxu0 0
        %1901 = vmatprep.subr.bf16.mxu0 0
        %1902 = vmatpush1.bf16.xpose.msra.mxu0 0
        %1903 = vmatprep.subr.bf16.mxu0 0
        %1904 = vmatpush1.bf16.xpose.msra.mxu0 0
        %1905 = vmatprep.mubr.bf16.mxu0 0
        %1906 = vmatmul.mubr.bf16.gmra.mrb[0].mxu0 %v422
        %v1907 = vpop.f32.mrb[0].mxu0
        %v1908 = vadd.f32 0.0, %v1907
        %v1909 = vpop.f32.mrb[0].mxu0
        %v1910 = vpop.f32.mrb[0].mxu0
        %v1911 = vpop.f32.mrb[0].mxu0
        %1912 = vdwg.mxu0
        %1913 = vmatprep.subr.bf16.mxu0 0
        %1914 = vmatpush1.bf16.xpose.msra.mxu0 %v1761
        %1915 = vmatprep.subr.bf16.mxu0 0
        %1916 = vmatpush1.bf16.xpose.msra.mxu0 %v1763
        %1917 = vmatprep.subr.bf16.mxu0 0
        %1918 = vmatpush1.bf16.xpose.msra.mxu0 %v1765
        %1919 = vmatprep.subr.bf16.mxu0 0
        %1920 = vmatpush1.bf16.xpose.msra.mxu0 %v1767
        %1921 = vmatprep.subr.bf16.mxu0 0
        %1922 = vmatpush1.bf16.xpose.msra.mxu0 %v1769
        %1923 = vmatprep.subr.bf16.mxu0 0
        %1924 = vmatpush1.bf16.xpose.msra.mxu0 %v1771
        %1925 = vmatprep.subr.bf16.mxu0 0
        %1926 = vmatpush1.bf16.xpose.msra.mxu0 %v1773
        %1927 = vmatprep.subr.bf16.mxu0 0
        %1928 = vmatpush1.bf16.xpose.msra.mxu0 %v1775
        %1929 = vmatprep.subr.bf16.mxu0 0
        %1930 = vmatpush1.bf16.xpose.msra.mxu0 0
        %1931 = vmatprep.subr.bf16.mxu0 0
        %1932 = vmatpush1.bf16.xpose.msra.mxu0 0
        %1933 = vmatprep.subr.bf16.mxu0 0
        %1934 = vmatpush1.bf16.xpose.msra.mxu0 0
        %1935 = vmatprep.subr.bf16.mxu0 0
        %1936 = vmatpush1.bf16.xpose.msra.mxu0 0
        %1937 = vmatprep.subr.bf16.mxu0 0
        %1938 = vmatpush1.bf16.xpose.msra.mxu0 0
        %1939 = vmatprep.subr.bf16.mxu0 0
        %1940 = vmatpush1.bf16.xpose.msra.mxu0 0
        %1941 = vmatprep.subr.bf16.mxu0 0
        %1942 = vmatpush1.bf16.xpose.msra.mxu0 0
        %1943 = vmatprep.subr.bf16.mxu0 0
        %1944 = vmatpush1.bf16.xpose.msra.mxu0 0
        %1945 = vmatprep.mubr.bf16.mxu0 0
        %1946 = vmatmul.mubr.bf16.gmra.mrb[0].mxu0 %v423
        %v1947 = vpop.f32.mrb[0].mxu0
        %v1948 = vadd.f32 0.0, %v1947
        %v1949 = vpop.f32.mrb[0].mxu0
        %v1950 = vpop.f32.mrb[0].mxu0
        %v1951 = vpop.f32.mrb[0].mxu0
        %1952 = vdwg.mxu0
        %1953 = vmatprep.subr.bf16.mxu0 0
        %1954 = vmatpush1.bf16.xpose.msra.mxu0 %v1777
        %1955 = vmatprep.subr.bf16.mxu0 0
        %1956 = vmatpush1.bf16.xpose.msra.mxu0 %v1779
        %1957 = vmatprep.subr.bf16.mxu0 0
        %1958 = vmatpush1.bf16.xpose.msra.mxu0 %v1781
        %1959 = vmatprep.subr.bf16.mxu0 0
        %1960 = vmatpush1.bf16.xpose.msra.mxu0 %v1783
        %1961 = vmatprep.subr.bf16.mxu0 0
        %1962 = vmatpush1.bf16.xpose.msra.mxu0 %v1785
        %1963 = vmatprep.subr.bf16.mxu0 0
        %1964 = vmatpush1.bf16.xpose.msra.mxu0 %v1787
        %1965 = vmatprep.subr.bf16.mxu0 0
        %1966 = vmatpush1.bf16.xpose.msra.mxu0 %v1789
        %1967 = vmatprep.subr.bf16.mxu0 0
        %1968 = vmatpush1.bf16.xpose.msra.mxu0 %v1791
        %1969 = vmatprep.subr.bf16.mxu0 0
        %1970 = vmatpush1.bf16.xpose.msra.mxu0 0
        %1971 = vmatprep.subr.bf16.mxu0 0
        %1972 = vmatpush1.bf16.xpose.msra.mxu0 0
        %1973 = vmatprep.subr.bf16.mxu0 0
        %1974 = vmatpush1.bf16.xpose.msra.mxu0 0
        %1975 = vmatprep.subr.bf16.mxu0 0
        %1976 = vmatpush1.bf16.xpose.msra.mxu0 0
        %1977 = vmatprep.subr.bf16.mxu0 0
        %1978 = vmatpush1.bf16.xpose.msra.mxu0 0
        %1979 = vmatprep.subr.bf16.mxu0 0
        %1980 = vmatpush1.bf16.xpose.msra.mxu0 0
        %1981 = vmatprep.subr.bf16.mxu0 0
        %1982 = vmatpush1.bf16.xpose.msra.mxu0 0
        %1983 = vmatprep.subr.bf16.mxu0 0
        %1984 = vmatpush1.bf16.xpose.msra.mxu0 0
        %1985 = vmatprep.mubr.bf16.mxu0 0
        %1986 = vmatmul.mubr.bf16.gmra.mrb[0].mxu0 %v424
        %v1987 = vpop.f32.mrb[0].mxu0
        %v1988 = vadd.f32 0.0, %v1987
        %v1989 = vpop.f32.mrb[0].mxu0
        %v1990 = vpop.f32.mrb[0].mxu0
        %v1991 = vpop.f32.mrb[0].mxu0
        %1992 = vdwg.mxu0
        %1993 = vmatprep.subr.bf16.mxu0 0
        %1994 = vmatpush1.bf16.xpose.msra.mxu0 %v1793
        %1995 = vmatprep.subr.bf16.mxu0 0
        %1996 = vmatpush1.bf16.xpose.msra.mxu0 %v1795
        %1997 = vmatprep.subr.bf16.mxu0 0
        %1998 = vmatpush1.bf16.xpose.msra.mxu0 %v1797
        %1999 = vmatprep.subr.bf16.mxu0 0
        %2000 = vmatpush1.bf16.xpose.msra.mxu0 %v1799
        %2001 = vmatprep.subr.bf16.mxu0 0
        %2002 = vmatpush1.bf16.xpose.msra.mxu0 %v1801
        %2003 = vmatprep.subr.bf16.mxu0 0
        %2004 = vmatpush1.bf16.xpose.msra.mxu0 %v1803
        %2005 = vmatprep.subr.bf16.mxu0 0
        %2006 = vmatpush1.bf16.xpose.msra.mxu0 %v1805
        %2007 = vmatprep.subr.bf16.mxu0 0
        %2008 = vmatpush1.bf16.xpose.msra.mxu0 %v1807
        %2009 = vmatprep.subr.bf16.mxu0 0
        %2010 = vmatpush1.bf16.xpose.msra.mxu0 0
        %2011 = vmatprep.subr.bf16.mxu0 0
        %2012 = vmatpush1.bf16.xpose.msra.mxu0 0
        %2013 = vmatprep.subr.bf16.mxu0 0
        %2014 = vmatpush1.bf16.xpose.msra.mxu0 0
        %2015 = vmatprep.subr.bf16.mxu0 0
        %2016 = vmatpush1.bf16.xpose.msra.mxu0 0
        %2017 = vmatprep.subr.bf16.mxu0 0
        %2018 = vmatpush1.bf16.xpose.msra.mxu0 0
        %2019 = vmatprep.subr.bf16.mxu0 0
        %2020 = vmatpush1.bf16.xpose.msra.mxu0 0
        %2021 = vmatprep.subr.bf16.mxu0 0
        %2022 = vmatpush1.bf16.xpose.msra.mxu0 0
        %2023 = vmatprep.subr.bf16.mxu0 0
        %2024 = vmatpush1.bf16.xpose.msra.mxu0 0
        %2025 = vmatprep.mubr.bf16.mxu0 0
        %2026 = vmatmul.mubr.bf16.gmra.mrb[0].mxu0 %v425
        %v2027 = vpop.f32.mrb[0].mxu0
        %v2028 = vadd.f32 0.0, %v2027
        %v2029 = vpop.f32.mrb[0].mxu0
        %v2030 = vpop.f32.mrb[0].mxu0
        %v2031 = vpop.f32.mrb[0].mxu0
        %2032 = vdwg.mxu0
        %2033 = vmatprep.subr.bf16.mxu0 0
        %2034 = vmatpush1.bf16.xpose.msra.mxu0 %v1809
        %2035 = vmatprep.subr.bf16.mxu0 0
        %2036 = vmatpush1.bf16.xpose.msra.mxu0 %v1811
        %2037 = vmatprep.subr.bf16.mxu0 0
        %2038 = vmatpush1.bf16.xpose.msra.mxu0 %v1813
        %2039 = vmatprep.subr.bf16.mxu0 0
        %2040 = vmatpush1.bf16.xpose.msra.mxu0 %v1815
        %2041 = vmatprep.subr.bf16.mxu0 0
        %2042 = vmatpush1.bf16.xpose.msra.mxu0 %v1817
        %2043 = vmatprep.subr.bf16.mxu0 0
        %2044 = vmatpush1.bf16.xpose.msra.mxu0 %v1819
        %2045 = vmatprep.subr.bf16.mxu0 0
        %2046 = vmatpush1.bf16.xpose.msra.mxu0 %v1821
        %2047 = vmatprep.subr.bf16.mxu0 0
        %2048 = vmatpush1.bf16.xpose.msra.mxu0 %v1823
        %2049 = vmatprep.subr.bf16.mxu0 0
        %2050 = vmatpush1.bf16.xpose.msra.mxu0 0
        %2051 = vmatprep.subr.bf16.mxu0 0
        %2052 = vmatpush1.bf16.xpose.msra.mxu0 0
        %2053 = vmatprep.subr.bf16.mxu0 0
        %2054 = vmatpush1.bf16.xpose.msra.mxu0 0
        %2055 = vmatprep.subr.bf16.mxu0 0
        %2056 = vmatpush1.bf16.xpose.msra.mxu0 0
        %2057 = vmatprep.subr.bf16.mxu0 0
        %2058 = vmatpush1.bf16.xpose.msra.mxu0 0
        %2059 = vmatprep.subr.bf16.mxu0 0
        %2060 = vmatpush1.bf16.xpose.msra.mxu0 0
        %2061 = vmatprep.subr.bf16.mxu0 0
        %2062 = vmatpush1.bf16.xpose.msra.mxu0 0
        %2063 = vmatprep.subr.bf16.mxu0 0
        %2064 = vmatpush1.bf16.xpose.msra.mxu0 0
        %2065 = vmatprep.mubr.bf16.mxu0 0
        %2066 = vmatmul.mubr.bf16.gmra.mrb[0].mxu0 %v426
        %v2067 = vpop.f32.mrb[0].mxu0
        %v2068 = vadd.f32 0.0, %v2067
        %v2069 = vpop.f32.mrb[0].mxu0
        %v2070 = vpop.f32.mrb[0].mxu0
        %v2071 = vpop.f32.mrb[0].mxu0
        %2072 = vdwg.mxu0
        %2073 = vmatprep.subr.bf16.mxu0 0
        %2074 = vmatpush1.bf16.xpose.msra.mxu0 %v1825
        %2075 = vmatprep.subr.bf16.mxu0 0
        %2076 = vmatpush1.bf16.xpose.msra.mxu0 %v1827
        %2077 = vmatprep.subr.bf16.mxu0 0
        %2078 = vmatpush1.bf16.xpose.msra.mxu0 %v1829
        %2079 = vmatprep.subr.bf16.mxu0 0
        %2080 = vmatpush1.bf16.xpose.msra.mxu0 %v1831
        %2081 = vmatprep.subr.bf16.mxu0 0
        %2082 = vmatpush1.bf16.xpose.msra.mxu0 %v1833
        %2083 = vmatprep.subr.bf16.mxu0 0
        %2084 = vmatpush1.bf16.xpose.msra.mxu0 %v1835
        %2085 = vmatprep.subr.bf16.mxu0 0
        %2086 = vmatpush1.bf16.xpose.msra.mxu0 %v1837
        %2087 = vmatprep.subr.bf16.mxu0 0
        %2088 = vmatpush1.bf16.xpose.msra.mxu0 %v1839
        %2089 = vmatprep.subr.bf16.mxu0 0
        %2090 = vmatpush1.bf16.xpose.msra.mxu0 0
        %2091 = vmatprep.subr.bf16.mxu0 0
        %2092 = vmatpush1.bf16.xpose.msra.mxu0 0
        %2093 = vmatprep.subr.bf16.mxu0 0
        %2094 = vmatpush1.bf16.xpose.msra.mxu0 0
        %2095 = vmatprep.subr.bf16.mxu0 0
        %2096 = vmatpush1.bf16.xpose.msra.mxu0 0
        %2097 = vmatprep.subr.bf16.mxu0 0
        %2098 = vmatpush1.bf16.xpose.msra.mxu0 0
        %2099 = vmatprep.subr.bf16.mxu0 0
        %2100 = vmatpush1.bf16.xpose.msra.mxu0 0
        %2101 = vmatprep.subr.bf16.mxu0 0
        %2102 = vmatpush1.bf16.xpose.msra.mxu0 0
        %2103 = vmatprep.subr.bf16.mxu0 0
        %2104 = vmatpush1.bf16.xpose.msra.mxu0 0
        %2105 = vmatprep.mubr.bf16.mxu0 0
        %2106 = vmatmul.mubr.bf16.gmra.mrb[0].mxu0 %v427
        %v2107 = vpop.f32.mrb[0].mxu0
        %v2108 = vadd.f32 0.0, %v2107
        %v2109 = vpop.f32.mrb[0].mxu0
        %v2110 = vpop.f32.mrb[0].mxu0
        %v2111 = vpop.f32.mrb[0].mxu0
        %2112 = vdwg.mxu0
        %2113 = vmatprep.subr.bf16.mxu0 0
        %2114 = vmatpush1.bf16.xpose.msra.mxu0 %v1841
        %2115 = vmatprep.subr.bf16.mxu0 0
        %2116 = vmatpush1.bf16.xpose.msra.mxu0 %v1843
        %2117 = vmatprep.subr.bf16.mxu0 0
        %2118 = vmatpush1.bf16.xpose.msra.mxu0 %v1845
        %2119 = vmatprep.subr.bf16.mxu0 0
        %2120 = vmatpush1.bf16.xpose.msra.mxu0 %v1847
        %2121 = vmatprep.subr.bf16.mxu0 0
        %2122 = vmatpush1.bf16.xpose.msra.mxu0 %v1849
        %2123 = vmatprep.subr.bf16.mxu0 0
        %2124 = vmatpush1.bf16.xpose.msra.mxu0 %v1851
        %2125 = vmatprep.subr.bf16.mxu0 0
        %2126 = vmatpush1.bf16.xpose.msra.mxu0 %v1853
        %2127 = vmatprep.subr.bf16.mxu0 0
        %2128 = vmatpush1.bf16.xpose.msra.mxu0 %v1855
        %2129 = vmatprep.subr.bf16.mxu0 0
        %2130 = vmatpush1.bf16.xpose.msra.mxu0 0
        %2131 = vmatprep.subr.bf16.mxu0 0
        %2132 = vmatpush1.bf16.xpose.msra.mxu0 0
        %2133 = vmatprep.subr.bf16.mxu0 0
        %2134 = vmatpush1.bf16.xpose.msra.mxu0 0
        %2135 = vmatprep.subr.bf16.mxu0 0
        %2136 = vmatpush1.bf16.xpose.msra.mxu0 0
        %2137 = vmatprep.subr.bf16.mxu0 0
        %2138 = vmatpush1.bf16.xpose.msra.mxu0 0
        %2139 = vmatprep.subr.bf16.mxu0 0
        %2140 = vmatpush1.bf16.xpose.msra.mxu0 0
        %2141 = vmatprep.subr.bf16.mxu0 0
        %2142 = vmatpush1.bf16.xpose.msra.mxu0 0
        %2143 = vmatprep.subr.bf16.mxu0 0
        %2144 = vmatpush1.bf16.xpose.msra.mxu0 0
        %2145 = vmatprep.mubr.bf16.mxu0 0
        %2146 = vmatmul.mubr.bf16.gmra.mrb[0].mxu0 %v428
        %v2147 = vpop.f32.mrb[0].mxu0
        %v2148 = vadd.f32 0.0, %v2147
        %v2149 = vpop.f32.mrb[0].mxu0
        %v2150 = vpop.f32.mrb[0].mxu0
        %v2151 = vpop.f32.mrb[0].mxu0
        %2152 = vdwg.mxu0
        %2153 = vmatprep.subr.bf16.mxu0 0
        %2154 = vmatpush1.bf16.xpose.msra.mxu0 %v1857
        %2155 = vmatprep.subr.bf16.mxu0 0
        %2156 = vmatpush1.bf16.xpose.msra.mxu0 %v1859
        %2157 = vmatprep.subr.bf16.mxu0 0
        %2158 = vmatpush1.bf16.xpose.msra.mxu0 %v1861
        %2159 = vmatprep.subr.bf16.mxu0 0
        %2160 = vmatpush1.bf16.xpose.msra.mxu0 %v1863
        %2161 = vmatprep.subr.bf16.mxu0 0
        %2162 = vmatpush1.bf16.xpose.msra.mxu0 %v1865
        %2163 = vmatprep.subr.bf16.mxu0 0
        %2164 = vmatpush1.bf16.xpose.msra.mxu0 %v1867
        %2165 = vmatprep.subr.bf16.mxu0 0
        %2166 = vmatpush1.bf16.xpose.msra.mxu0 %v1869
        %2167 = vmatprep.subr.bf16.mxu0 0
        %2168 = vmatpush1.bf16.xpose.msra.mxu0 %v1871
        %2169 = vmatprep.subr.bf16.mxu0 0
        %2170 = vmatpush1.bf16.xpose.msra.mxu0 0
        %2171 = vmatprep.subr.bf16.mxu0 0
        %2172 = vmatpush1.bf16.xpose.msra.mxu0 0
        %2173 = vmatprep.subr.bf16.mxu0 0
        %2174 = vmatpush1.bf16.xpose.msra.mxu0 0
        %2175 = vmatprep.subr.bf16.mxu0 0
        %2176 = vmatpush1.bf16.xpose.msra.mxu0 0
        %2177 = vmatprep.subr.bf16.mxu0 0
        %2178 = vmatpush1.bf16.xpose.msra.mxu0 0
        %2179 = vmatprep.subr.bf16.mxu0 0
        %2180 = vmatpush1.bf16.xpose.msra.mxu0 0
        %2181 = vmatprep.subr.bf16.mxu0 0
        %2182 = vmatpush1.bf16.xpose.msra.mxu0 0
        %2183 = vmatprep.subr.bf16.mxu0 0
        %2184 = vmatpush1.bf16.xpose.msra.mxu0 0
        %2185 = vmatprep.mubr.bf16.mxu0 0
        %2186 = vmatmul.mubr.bf16.gmra.mrb[0].mxu0 %v429
        %v2187 = vpop.f32.mrb[0].mxu0
        %v2188 = vadd.f32 0.0, %v2187
        %v2189 = vpop.f32.mrb[0].mxu0
        %v2190 = vpop.f32.mrb[0].mxu0
        %v2191 = vpop.f32.mrb[0].mxu0
        %2192 = vdwg.mxu0
        %v2193 = vpack.c.bf16 %v1908, %v1908
        %v2194 = vpack.c.bf16 %v1948, %v1948
        %v2195 = vpack.c.bf16 %v1988, %v1988
        %v2196 = vpack.c.bf16 %v2028, %v2028
        %v2197 = vpack.c.bf16 %v2068, %v2068
        %v2198 = vpack.c.bf16 %v2108, %v2108
        %v2199 = vpack.c.bf16 %v2148, %v2148
        %v2200 = vpack.c.bf16 %v2188, %v2188
        %v2209 = vunpack.c.l.b16 %v422
        %v2210 = vunpack.c.l.b16 %v423
        %v2211 = vunpack.c.l.b16 %v424
        %v2212 = vunpack.c.l.b16 %v425
        %v2213 = vunpack.c.l.b16 %v426
        %v2214 = vunpack.c.l.b16 %v427
        %v2215 = vunpack.c.l.b16 %v428
        %v2216 = vunpack.c.l.b16 %v429
        %v2217 = vpack.c.b16 %v2210, %v2209
        %v2218 = vpack.c.b16 %v2212, %v2211
        %v2219 = vpack.c.b16 %v2214, %v2213
        %v2220 = vpack.c.b16 %v2216, %v2215
        %v2241 = vunpack.c.l.b16 %v574
        %v2242 = vunpack.c.l.b16 %v575
        %v2243 = vunpack.c.l.b16 %v576
        %v2244 = vunpack.c.l.b16 %v577
        %v2245 = vunpack.c.l.b16 %v578
        %v2246 = vunpack.c.l.b16 %v579
        %v2247 = vunpack.c.l.b16 %v580
        %v2248 = vunpack.c.l.b16 %v581
        %v2249 = vunpack.c.l.b16 %v582
        %v2250 = vunpack.c.l.b16 %v583
        %v2251 = vunpack.c.l.b16 %v584
        %v2252 = vunpack.c.l.b16 %v585
        %v2253 = vunpack.c.l.b16 %v586
        %v2254 = vunpack.c.l.b16 %v587
        %v2255 = vunpack.c.l.b16 %v588
        %v2256 = vunpack.c.l.b16 %v589
        %v2257 = vpack.c.b16 %v2242, %v2241
        %v2258 = vpack.c.b16 %v2244, %v2243
        %v2259 = vpack.c.b16 %v2246, %v2245
        %v2260 = vpack.c.b16 %v2248, %v2247
        %v2261 = vpack.c.b16 %v2250, %v2249
        %v2262 = vpack.c.b16 %v2252, %v2251
        %v2263 = vpack.c.b16 %v2254, %v2253
        %v2264 = vpack.c.b16 %v2256, %v2255
        %2273 = vmatprep.subr.bf16.mxu0 0
        %2274 = vmatpush1.bf16.msra.mxu0 %v2257
        %2275 = vmatprep.subr.bf16.mxu0 0
        %2276 = vmatpush1.bf16.msra.mxu0 %v2258
        %2277 = vmatprep.subr.bf16.mxu0 0
        %2278 = vmatpush1.bf16.msra.mxu0 %v2259
        %2279 = vmatprep.subr.bf16.mxu0 0
        %2280 = vmatpush1.bf16.msra.mxu0 %v2260
        %2281 = vmatprep.subr.bf16.mxu0 0
        %2282 = vmatpush1.bf16.msra.mxu0 %v2261
        %2283 = vmatprep.subr.bf16.mxu0 0
        %2284 = vmatpush1.bf16.msra.mxu0 %v2262
        %2285 = vmatprep.subr.bf16.mxu0 0
        %2286 = vmatpush1.bf16.msra.mxu0 %v2263
        %2287 = vmatprep.subr.bf16.mxu0 0
        %2288 = vmatpush1.bf16.msra.mxu0 %v2264
        %2289 = vmatprep.subr.bf16.mxu0 0
        %2290 = vmatpush1.bf16.msra.mxu0 0
        %2291 = vmatprep.subr.bf16.mxu0 0
        %2292 = vmatpush1.bf16.msra.mxu0 0
        %2293 = vmatprep.subr.bf16.mxu0 0
        %2294 = vmatpush1.bf16.msra.mxu0 0
        %2295 = vmatprep.subr.bf16.mxu0 0
        %2296 = vmatpush1.bf16.msra.mxu0 0
        %2297 = vmatprep.subr.bf16.mxu0 0
        %2298 = vmatpush1.bf16.msra.mxu0 0
        %2299 = vmatprep.subr.bf16.mxu0 0
        %2300 = vmatpush1.bf16.msra.mxu0 0
        %2301 = vmatprep.subr.bf16.mxu0 0
        %2302 = vmatpush1.bf16.msra.mxu0 0
        %2303 = vmatprep.subr.bf16.mxu0 0
        %2304 = vmatpush1.bf16.msra.mxu0 0
        %2305 = vmatprep.mubr.bf16.mxu0 0
        %2306 = vmatmul.mubr.bf16.gmra.mrb[0].mxu0 %v2217
        %v2307 = vpop.f32.mrb[0].mxu0
        %v2308 = vadd.f32 0.0, %v2307
        %v2309 = vpop.f32.mrb[0].mxu0
        %v2310 = vpop.f32.mrb[0].mxu0
        %v2311 = vadd.f32 0.0, %v2310
        %v2312 = vpop.f32.mrb[0].mxu0
        %2313 = vmatprep.mubr.bf16.mxu0 0
        %2314 = vmatmul.mubr.bf16.gmra.mrb[0].mxu0 %v2218
        %v2315 = vpop.f32.mrb[0].mxu0
        %v2316 = vadd.f32 0.0, %v2315
        %v2317 = vpop.f32.mrb[0].mxu0
        %v2318 = vpop.f32.mrb[0].mxu0
        %v2319 = vadd.f32 0.0, %v2318
        %v2320 = vpop.f32.mrb[0].mxu0
        %2321 = vmatprep.mubr.bf16.mxu0 0
        %2322 = vmatmul.mubr.bf16.gmra.mrb[0].mxu0 %v2219
        %v2323 = vpop.f32.mrb[0].mxu0
        %v2324 = vadd.f32 0.0, %v2323
        %v2325 = vpop.f32.mrb[0].mxu0
        %v2326 = vpop.f32.mrb[0].mxu0
        %v2327 = vadd.f32 0.0, %v2326
        %v2328 = vpop.f32.mrb[0].mxu0
        %2329 = vmatprep.mubr.bf16.mxu0 0
        %2330 = vmatmul.mubr.bf16.gmra.mrb[0].mxu0 %v2220
        %v2331 = vpop.f32.mrb[0].mxu0
        %v2332 = vadd.f32 0.0, %v2331
        %v2333 = vpop.f32.mrb[0].mxu0
        %v2334 = vpop.f32.mrb[0].mxu0
        %v2335 = vadd.f32 0.0, %v2334
        %v2336 = vpop.f32.mrb[0].mxu0
        %2337 = vdwg.mxu0
        %v2338 = vpack.c.bf16 %v2308, %v2308
        %v2339 = vpack.c.bf16 %v2311, %v2311
        %v2340 = vpack.c.bf16 %v2316, %v2316
        %v2341 = vpack.c.bf16 %v2319, %v2319
        %v2342 = vpack.c.bf16 %v2324, %v2324
        %v2343 = vpack.c.bf16 %v2327, %v2327
        %v2344 = vpack.c.bf16 %v2332, %v2332
        %v2345 = vpack.c.bf16 %v2335, %v2335
        %2346 = vxpose.xlu0.c.b16.start [1/8] %v2193, 128
        %2347 = vxpose.xlu0.c.b16.cont [2/8] 0, 128
        %2348 = vxpose.xlu0.c.b16.cont [3/8] 0, 128
        %2349 = vxpose.xlu0.c.b16.cont [4/8] 0, 128
        %2350 = vxpose.xlu0.c.b16.cont [5/8] 0, 128
        %2351 = vxpose.xlu0.c.b16.cont [6/8] 0, 128
        %2352 = vxpose.xlu0.c.b16.cont [7/8] 0, 128
        %2353 = vxpose.xlu0.c.b16.end [8/8] 0, 128
        %v2354 = vpop.trf.xlu0
        %v2355 = vpop.trf.xlu0
        %v2356 = vpop.trf.xlu0
        %v2357 = vpop.trf.xlu0
        %v2358 = vpop.trf.xlu0
        %v2359 = vpop.trf.xlu0
        %v2360 = vpop.trf.xlu0
        %v2361 = vpop.trf.xlu0
        %vm2362 = vcmask 64512
        %v2364 = vsel %vm2362, %v2354, 0
        %v2367 = vsel %vm2362, %v2355, 0
        %v2370 = vsel %vm2362, %v2356, 0
        %v2373 = vsel %vm2362, %v2357, 0
        %v2376 = vsel %vm2362, %v2358, 0
        %v2379 = vsel %vm2362, %v2359, 0
        %v2382 = vsel %vm2362, %v2360, 0
        %v2385 = vsel %vm2362, %v2361, 0
        %vm2387 = vcmask 1043456
        %v2389 = vsel %vm2387, %v2338, 0
        %2391 = vmatprep.subr.bf16.mxu0 0
        %2392 = vmatpush1.bf16.msra.mxu0 %v2389
        %2393 = vmatprep.subr.bf16.mxu0 0
        %2394 = vmatpush1.bf16.msra.mxu0 0
        %2395 = vmatprep.subr.bf16.mxu0 0
        %2396 = vmatpush1.bf16.msra.mxu0 0
        %2397 = vmatprep.subr.bf16.mxu0 0
        %2398 = vmatpush1.bf16.msra.mxu0 0
        %2399 = vmatprep.subr.bf16.mxu0 0
        %2400 = vmatpush1.bf16.msra.mxu0 0
        %2401 = vmatprep.subr.bf16.mxu0 0
        %2402 = vmatpush1.bf16.msra.mxu0 0
        %2403 = vmatprep.subr.bf16.mxu0 0
        %2404 = vmatpush1.bf16.msra.mxu0 0
        %2405 = vmatprep.subr.bf16.mxu0 0
        %2406 = vmatpush1.bf16.msra.mxu0 0
        %2407 = vmatprep.subr.bf16.mxu0 0
        %2408 = vmatpush1.bf16.msra.mxu0 0
        %2409 = vmatprep.subr.bf16.mxu0 0
        %2410 = vmatpush1.bf16.msra.mxu0 0
        %2411 = vmatprep.subr.bf16.mxu0 0
        %2412 = vmatpush1.bf16.msra.mxu0 0
        %2413 = vmatprep.subr.bf16.mxu0 0
        %2414 = vmatpush1.bf16.msra.mxu0 0
        %2415 = vmatprep.subr.bf16.mxu0 0
        %2416 = vmatpush1.bf16.msra.mxu0 0
        %2417 = vmatprep.subr.bf16.mxu0 0
        %2418 = vmatpush1.bf16.msra.mxu0 0
        %2419 = vmatprep.subr.bf16.mxu0 0
        %2420 = vmatpush1.bf16.msra.mxu0 0
        %2421 = vmatprep.subr.bf16.mxu0 0
        %2422 = vmatpush1.bf16.msra.mxu0 0
        %2423 = vmatprep.mubr.bf16.mxu0 0
        %2424 = vmatmul.mubr.bf16.gmra.mrb[0].mxu0 %v2364
        %v2425 = vpop.f32.mrb[0].mxu0
        %v2426 = vadd.f32 0.0, %v2425
        %v2427 = vpop.f32.mrb[0].mxu0
        %v2428 = vpop.f32.mrb[0].mxu0
        %v2429 = vadd.f32 0.0, %v2428
        %v2430 = vpop.f32.mrb[0].mxu0
        %2431 = vmatprep.mubr.bf16.mxu0 0
        %2432 = vmatmul.mubr.bf16.gmra.mrb[0].mxu0 %v2367
        %v2433 = vpop.f32.mrb[0].mxu0
        %v2434 = vadd.f32 0.0, %v2433
        %v2435 = vpop.f32.mrb[0].mxu0
        %v2436 = vpop.f32.mrb[0].mxu0
        %v2437 = vadd.f32 0.0, %v2436
        %v2438 = vpop.f32.mrb[0].mxu0
        %2439 = vmatprep.mubr.bf16.mxu0 0
        %2440 = vmatmul.mubr.bf16.gmra.mrb[0].mxu0 %v2370
        %v2441 = vpop.f32.mrb[0].mxu0
        %v2442 = vadd.f32 0.0, %v2441
        %v2443 = vpop.f32.mrb[0].mxu0
        %v2444 = vpop.f32.mrb[0].mxu0
        %v2445 = vadd.f32 0.0, %v2444
        %v2446 = vpop.f32.mrb[0].mxu0
        %2447 = vmatprep.mubr.bf16.mxu0 0
        %2448 = vmatmul.mubr.bf16.gmra.mrb[0].mxu0 %v2373
        %v2449 = vpop.f32.mrb[0].mxu0
        %v2450 = vadd.f32 0.0, %v2449
        %v2451 = vpop.f32.mrb[0].mxu0
        %v2452 = vpop.f32.mrb[0].mxu0
        %v2453 = vadd.f32 0.0, %v2452
        %v2454 = vpop.f32.mrb[0].mxu0
        %2455 = vmatprep.mubr.bf16.mxu0 0
        %2456 = vmatmul.mubr.bf16.gmra.mrb[0].mxu0 %v2376
        %v2457 = vpop.f32.mrb[0].mxu0
        %v2458 = vadd.f32 0.0, %v2457
        %v2459 = vpop.f32.mrb[0].mxu0
        %v2460 = vpop.f32.mrb[0].mxu0
        %v2461 = vadd.f32 0.0, %v2460
        %v2462 = vpop.f32.mrb[0].mxu0
        %2463 = vmatprep.mubr.bf16.mxu0 0
        %2464 = vmatmul.mubr.bf16.gmra.mrb[0].mxu0 %v2379
        %v2465 = vpop.f32.mrb[0].mxu0
        %v2466 = vadd.f32 0.0, %v2465
        %v2467 = vpop.f32.mrb[0].mxu0
        %v2468 = vpop.f32.mrb[0].mxu0
        %v2469 = vadd.f32 0.0, %v2468
        %v2470 = vpop.f32.mrb[0].mxu0
        %2471 = vmatprep.mubr.bf16.mxu0 0
        %2472 = vmatmul.mubr.bf16.gmra.mrb[0].mxu0 %v2382
        %v2473 = vpop.f32.mrb[0].mxu0
        %v2474 = vadd.f32 0.0, %v2473
        %v2475 = vpop.f32.mrb[0].mxu0
        %v2476 = vpop.f32.mrb[0].mxu0
        %v2477 = vadd.f32 0.0, %v2476
        %v2478 = vpop.f32.mrb[0].mxu0
        %2479 = vmatprep.mubr.bf16.mxu0 0
        %2480 = vmatmul.mubr.bf16.gmra.mrb[0].mxu0 %v2385
        %v2481 = vpop.f32.mrb[0].mxu0
        %v2482 = vadd.f32 0.0, %v2481
        %v2483 = vpop.f32.mrb[0].mxu0
        %v2484 = vpop.f32.mrb[0].mxu0
        %v2485 = vadd.f32 0.0, %v2484
        %v2486 = vpop.f32.mrb[0].mxu0
        %2487 = vdwg.mxu0
        %2488 = vxpose.xlu0.c.b16.start [1/8] %v2194, 128
        %2489 = vxpose.xlu0.c.b16.cont [2/8] 0, 128
        %2490 = vxpose.xlu0.c.b16.cont [3/8] 0, 128
        %2491 = vxpose.xlu0.c.b16.cont [4/8] 0, 128
        %2492 = vxpose.xlu0.c.b16.cont [5/8] 0, 128
        %2493 = vxpose.xlu0.c.b16.cont [6/8] 0, 128
        %2494 = vxpose.xlu0.c.b16.cont [7/8] 0, 128
        %2495 = vxpose.xlu0.c.b16.end [8/8] 0, 128
        %v2496 = vpop.trf.xlu0
        %v2497 = vpop.trf.xlu0
        %v2498 = vpop.trf.xlu0
        %v2499 = vpop.trf.xlu0
        %v2500 = vpop.trf.xlu0
        %v2501 = vpop.trf.xlu0
        %v2502 = vpop.trf.xlu0
        %v2503 = vpop.trf.xlu0
        %v2505 = vsel %vm2362, %v2496, 0
        %v2508 = vsel %vm2362, %v2497, 0
        %v2511 = vsel %vm2362, %v2498, 0
        %v2514 = vsel %vm2362, %v2499, 0
        %v2517 = vsel %vm2362, %v2500, 0
        %v2520 = vsel %vm2362, %v2501, 0
        %v2523 = vsel %vm2362, %v2502, 0
        %v2526 = vsel %vm2362, %v2503, 0
        %v2529 = vsel %vm2387, %v2339, 0
        %2531 = vmatprep.subr.bf16.mxu0 0
        %2532 = vmatpush1.bf16.msra.mxu0 %v2529
        %2533 = vmatprep.subr.bf16.mxu0 0
        %2534 = vmatpush1.bf16.msra.mxu0 0
        %2535 = vmatprep.subr.bf16.mxu0 0
        %2536 = vmatpush1.bf16.msra.mxu0 0
        %2537 = vmatprep.subr.bf16.mxu0 0
        %2538 = vmatpush1.bf16.msra.mxu0 0
        %2539 = vmatprep.subr.bf16.mxu0 0
        %2540 = vmatpush1.bf16.msra.mxu0 0
        %2541 = vmatprep.subr.bf16.mxu0 0
        %2542 = vmatpush1.bf16.msra.mxu0 0
        %2543 = vmatprep.subr.bf16.mxu0 0
        %2544 = vmatpush1.bf16.msra.mxu0 0
        %2545 = vmatprep.subr.bf16.mxu0 0
        %2546 = vmatpush1.bf16.msra.mxu0 0
        %2547 = vmatprep.subr.bf16.mxu0 0
        %2548 = vmatpush1.bf16.msra.mxu0 0
        %2549 = vmatprep.subr.bf16.mxu0 0
        %2550 = vmatpush1.bf16.msra.mxu0 0
        %2551 = vmatprep.subr.bf16.mxu0 0
        %2552 = vmatpush1.bf16.msra.mxu0 0
        %2553 = vmatprep.subr.bf16.mxu0 0
        %2554 = vmatpush1.bf16.msra.mxu0 0
        %2555 = vmatprep.subr.bf16.mxu0 0
        %2556 = vmatpush1.bf16.msra.mxu0 0
        %2557 = vmatprep.subr.bf16.mxu0 0
        %2558 = vmatpush1.bf16.msra.mxu0 0
        %2559 = vmatprep.subr.bf16.mxu0 0
        %2560 = vmatpush1.bf16.msra.mxu0 0
        %2561 = vmatprep.subr.bf16.mxu0 0
        %2562 = vmatpush1.bf16.msra.mxu0 0
        %2563 = vmatprep.mubr.bf16.mxu0 0
        %2564 = vmatmul.mubr.bf16.gmra.mrb[0].mxu0 %v2505
        %v2565 = vpop.f32.mrb[0].mxu0
        %v2566 = vadd.f32 0.0, %v2565
        %v2567 = vpop.f32.mrb[0].mxu0
        %v2568 = vpop.f32.mrb[0].mxu0
        %v2569 = vadd.f32 0.0, %v2568
        %v2570 = vpop.f32.mrb[0].mxu0
        %2571 = vmatprep.mubr.bf16.mxu0 0
        %2572 = vmatmul.mubr.bf16.gmra.mrb[0].mxu0 %v2508
        %v2573 = vpop.f32.mrb[0].mxu0
        %v2574 = vadd.f32 0.0, %v2573
        %v2575 = vpop.f32.mrb[0].mxu0
        %v2576 = vpop.f32.mrb[0].mxu0
        %v2577 = vadd.f32 0.0, %v2576
        %v2578 = vpop.f32.mrb[0].mxu0
        %2579 = vmatprep.mubr.bf16.mxu0 0
        %2580 = vmatmul.mubr.bf16.gmra.mrb[0].mxu0 %v2511
        %v2581 = vpop.f32.mrb[0].mxu0
        %v2582 = vadd.f32 0.0, %v2581
        %v2583 = vpop.f32.mrb[0].mxu0
        %v2584 = vpop.f32.mrb[0].mxu0
        %v2585 = vadd.f32 0.0, %v2584
        %v2586 = vpop.f32.mrb[0].mxu0
        %2587 = vmatprep.mubr.bf16.mxu0 0
        %2588 = vmatmul.mubr.bf16.gmra.mrb[0].mxu0 %v2514
        %v2589 = vpop.f32.mrb[0].mxu0
        %v2590 = vadd.f32 0.0, %v2589
        %v2591 = vpop.f32.mrb[0].mxu0
        %v2592 = vpop.f32.mrb[0].mxu0
        %v2593 = vadd.f32 0.0, %v2592
        %v2594 = vpop.f32.mrb[0].mxu0
        %2595 = vmatprep.mubr.bf16.mxu0 0
        %2596 = vmatmul.mubr.bf16.gmra.mrb[0].mxu0 %v2517
        %v2597 = vpop.f32.mrb[0].mxu0
        %v2598 = vadd.f32 0.0, %v2597
        %v2599 = vpop.f32.mrb[0].mxu0
        %v2600 = vpop.f32.mrb[0].mxu0
        %v2601 = vadd.f32 0.0, %v2600
        %v2602 = vpop.f32.mrb[0].mxu0
        %2603 = vmatprep.mubr.bf16.mxu0 0
        %2604 = vmatmul.mubr.bf16.gmra.mrb[0].mxu0 %v2520
        %v2605 = vpop.f32.mrb[0].mxu0
        %v2606 = vadd.f32 0.0, %v2605
        %v2607 = vpop.f32.mrb[0].mxu0
        %v2608 = vpop.f32.mrb[0].mxu0
        %v2609 = vadd.f32 0.0, %v2608
        %v2610 = vpop.f32.mrb[0].mxu0
        %2611 = vmatprep.mubr.bf16.mxu0 0
        %2612 = vmatmul.mubr.bf16.gmra.mrb[0].mxu0 %v2523
        %v2613 = vpop.f32.mrb[0].mxu0
        %v2614 = vadd.f32 0.0, %v2613
        %v2615 = vpop.f32.mrb[0].mxu0
        %v2616 = vpop.f32.mrb[0].mxu0
        %v2617 = vadd.f32 0.0, %v2616
        %v2618 = vpop.f32.mrb[0].mxu0
        %2619 = vmatprep.mubr.bf16.mxu0 0
        %2620 = vmatmul.mubr.bf16.gmra.mrb[0].mxu0 %v2526
        %v2621 = vpop.f32.mrb[0].mxu0
        %v2622 = vadd.f32 0.0, %v2621
        %v2623 = vpop.f32.mrb[0].mxu0
        %v2624 = vpop.f32.mrb[0].mxu0
        %v2625 = vadd.f32 0.0, %v2624
        %v2626 = vpop.f32.mrb[0].mxu0
        %2627 = vdwg.mxu0
        %2628 = vxpose.xlu0.c.b16.start [1/8] %v2195, 128
        %2629 = vxpose.xlu0.c.b16.cont [2/8] 0, 128
        %2630 = vxpose.xlu0.c.b16.cont [3/8] 0, 128
        %2631 = vxpose.xlu0.c.b16.cont [4/8] 0, 128
        %2632 = vxpose.xlu0.c.b16.cont [5/8] 0, 128
        %2633 = vxpose.xlu0.c.b16.cont [6/8] 0, 128
        %2634 = vxpose.xlu0.c.b16.cont [7/8] 0, 128
        %2635 = vxpose.xlu0.c.b16.end [8/8] 0, 128
        %v2636 = vpop.trf.xlu0
        %v2637 = vpop.trf.xlu0
        %v2638 = vpop.trf.xlu0
        %v2639 = vpop.trf.xlu0
        %v2640 = vpop.trf.xlu0
        %v2641 = vpop.trf.xlu0
        %v2642 = vpop.trf.xlu0
        %v2643 = vpop.trf.xlu0
        %v2645 = vsel %vm2362, %v2636, 0
        %v2648 = vsel %vm2362, %v2637, 0
        %v2651 = vsel %vm2362, %v2638, 0
        %v2654 = vsel %vm2362, %v2639, 0
        %v2657 = vsel %vm2362, %v2640, 0
        %v2660 = vsel %vm2362, %v2641, 0
        %v2663 = vsel %vm2362, %v2642, 0
        %v2666 = vsel %vm2362, %v2643, 0
        %v2669 = vsel %vm2387, %v2340, 0
        %2671 = vmatprep.subr.bf16.mxu0 0
        %2672 = vmatpush1.bf16.msra.mxu0 %v2669
        %2673 = vmatprep.subr.bf16.mxu0 0
        %2674 = vmatpush1.bf16.msra.mxu0 0
        %2675 = vmatprep.subr.bf16.mxu0 0
        %2676 = vmatpush1.bf16.msra.mxu0 0
        %2677 = vmatprep.subr.bf16.mxu0 0
        %2678 = vmatpush1.bf16.msra.mxu0 0
        %2679 = vmatprep.subr.bf16.mxu0 0
        %2680 = vmatpush1.bf16.msra.mxu0 0
        %2681 = vmatprep.subr.bf16.mxu0 0
        %2682 = vmatpush1.bf16.msra.mxu0 0
        %2683 = vmatprep.subr.bf16.mxu0 0
        %2684 = vmatpush1.bf16.msra.mxu0 0
        %2685 = vmatprep.subr.bf16.mxu0 0
        %2686 = vmatpush1.bf16.msra.mxu0 0
        %2687 = vmatprep.subr.bf16.mxu0 0
        %2688 = vmatpush1.bf16.msra.mxu0 0
        %2689 = vmatprep.subr.bf16.mxu0 0
        %2690 = vmatpush1.bf16.msra.mxu0 0
        %2691 = vmatprep.subr.bf16.mxu0 0
        %2692 = vmatpush1.bf16.msra.mxu0 0
        %2693 = vmatprep.subr.bf16.mxu0 0
        %2694 = vmatpush1.bf16.msra.mxu0 0
        %2695 = vmatprep.subr.bf16.mxu0 0
        %2696 = vmatpush1.bf16.msra.mxu0 0
        %2697 = vmatprep.subr.bf16.mxu0 0
        %2698 = vmatpush1.bf16.msra.mxu0 0
        %2699 = vmatprep.subr.bf16.mxu0 0
        %2700 = vmatpush1.bf16.msra.mxu0 0
        %2701 = vmatprep.subr.bf16.mxu0 0
        %2702 = vmatpush1.bf16.msra.mxu0 0
        %2703 = vmatprep.mubr.bf16.mxu0 0
        %2704 = vmatmul.mubr.bf16.gmra.mrb[0].mxu0 %v2645
        %v2705 = vpop.f32.mrb[0].mxu0
        %v2706 = vadd.f32 0.0, %v2705
        %v2707 = vpop.f32.mrb[0].mxu0
        %v2708 = vpop.f32.mrb[0].mxu0
        %v2709 = vadd.f32 0.0, %v2708
        %v2710 = vpop.f32.mrb[0].mxu0
        %2711 = vmatprep.mubr.bf16.mxu0 0
        %2712 = vmatmul.mubr.bf16.gmra.mrb[0].mxu0 %v2648
        %v2713 = vpop.f32.mrb[0].mxu0
        %v2714 = vadd.f32 0.0, %v2713
        %v2715 = vpop.f32.mrb[0].mxu0
        %v2716 = vpop.f32.mrb[0].mxu0
        %v2717 = vadd.f32 0.0, %v2716
        %v2718 = vpop.f32.mrb[0].mxu0
        %2719 = vmatprep.mubr.bf16.mxu0 0
        %2720 = vmatmul.mubr.bf16.gmra.mrb[0].mxu0 %v2651
        %v2721 = vpop.f32.mrb[0].mxu0
        %v2722 = vadd.f32 0.0, %v2721
        %v2723 = vpop.f32.mrb[0].mxu0
        %v2724 = vpop.f32.mrb[0].mxu0
        %v2725 = vadd.f32 0.0, %v2724
        %v2726 = vpop.f32.mrb[0].mxu0
        %2727 = vmatprep.mubr.bf16.mxu0 0
        %2728 = vmatmul.mubr.bf16.gmra.mrb[0].mxu0 %v2654
        %v2729 = vpop.f32.mrb[0].mxu0
        %v2730 = vadd.f32 0.0, %v2729
        %v2731 = vpop.f32.mrb[0].mxu0
        %v2732 = vpop.f32.mrb[0].mxu0
        %v2733 = vadd.f32 0.0, %v2732
        %v2734 = vpop.f32.mrb[0].mxu0
        %2735 = vmatprep.mubr.bf16.mxu0 0
        %2736 = vmatmul.mubr.bf16.gmra.mrb[0].mxu0 %v2657
        %v2737 = vpop.f32.mrb[0].mxu0
        %v2738 = vadd.f32 0.0, %v2737
        %v2739 = vpop.f32.mrb[0].mxu0
        %v2740 = vpop.f32.mrb[0].mxu0
        %v2741 = vadd.f32 0.0, %v2740
        %v2742 = vpop.f32.mrb[0].mxu0
        %2743 = vmatprep.mubr.bf16.mxu0 0
        %2744 = vmatmul.mubr.bf16.gmra.mrb[0].mxu0 %v2660
        %v2745 = vpop.f32.mrb[0].mxu0
        %v2746 = vadd.f32 0.0, %v2745
        %v2747 = vpop.f32.mrb[0].mxu0
        %v2748 = vpop.f32.mrb[0].mxu0
        %v2749 = vadd.f32 0.0, %v2748
        %v2750 = vpop.f32.mrb[0].mxu0
        %2751 = vmatprep.mubr.bf16.mxu0 0
        %2752 = vmatmul.mubr.bf16.gmra.mrb[0].mxu0 %v2663
        %v2753 = vpop.f32.mrb[0].mxu0
        %v2754 = vadd.f32 0.0, %v2753
        %v2755 = vpop.f32.mrb[0].mxu0
        %v2756 = vpop.f32.mrb[0].mxu0
        %v2757 = vadd.f32 0.0, %v2756
        %v2758 = vpop.f32.mrb[0].mxu0
        %2759 = vmatprep.mubr.bf16.mxu0 0
        %2760 = vmatmul.mubr.bf16.gmra.mrb[0].mxu0 %v2666
        %v2761 = vpop.f32.mrb[0].mxu0
        %v2762 = vadd.f32 0.0, %v2761
        %v2763 = vpop.f32.mrb[0].mxu0
        %v2764 = vpop.f32.mrb[0].mxu0
        %v2765 = vadd.f32 0.0, %v2764
        %v2766 = vpop.f32.mrb[0].mxu0
        %2767 = vdwg.mxu0
        %2768 = vxpose.xlu0.c.b16.start [1/8] %v2196, 128
        %2769 = vxpose.xlu0.c.b16.cont [2/8] 0, 128
        %2770 = vxpose.xlu0.c.b16.cont [3/8] 0, 128
        %2771 = vxpose.xlu0.c.b16.cont [4/8] 0, 128
        %2772 = vxpose.xlu0.c.b16.cont [5/8] 0, 128
        %2773 = vxpose.xlu0.c.b16.cont [6/8] 0, 128
        %2774 = vxpose.xlu0.c.b16.cont [7/8] 0, 128
        %2775 = vxpose.xlu0.c.b16.end [8/8] 0, 128
        %v2776 = vpop.trf.xlu0
        %v2777 = vpop.trf.xlu0
        %v2778 = vpop.trf.xlu0
        %v2779 = vpop.trf.xlu0
        %v2780 = vpop.trf.xlu0
        %v2781 = vpop.trf.xlu0
        %v2782 = vpop.trf.xlu0
        %v2783 = vpop.trf.xlu0
        %v2785 = vsel %vm2362, %v2776, 0
        %v2788 = vsel %vm2362, %v2777, 0
        %v2791 = vsel %vm2362, %v2778, 0
        %v2794 = vsel %vm2362, %v2779, 0
        %v2797 = vsel %vm2362, %v2780, 0
        %v2800 = vsel %vm2362, %v2781, 0
        %v2803 = vsel %vm2362, %v2782, 0
        %v2806 = vsel %vm2362, %v2783, 0
        %v2809 = vsel %vm2387, %v2341, 0
        %2811 = vmatprep.subr.bf16.mxu0 0
        %2812 = vmatpush1.bf16.msra.mxu0 %v2809
        %2813 = vmatprep.subr.bf16.mxu0 0
        %2814 = vmatpush1.bf16.msra.mxu0 0
        %2815 = vmatprep.subr.bf16.mxu0 0
        %2816 = vmatpush1.bf16.msra.mxu0 0
        %2817 = vmatprep.subr.bf16.mxu0 0
        %2818 = vmatpush1.bf16.msra.mxu0 0
        %2819 = vmatprep.subr.bf16.mxu0 0
        %2820 = vmatpush1.bf16.msra.mxu0 0
        %2821 = vmatprep.subr.bf16.mxu0 0
        %2822 = vmatpush1.bf16.msra.mxu0 0
        %2823 = vmatprep.subr.bf16.mxu0 0
        %2824 = vmatpush1.bf16.msra.mxu0 0
        %2825 = vmatprep.subr.bf16.mxu0 0
        %2826 = vmatpush1.bf16.msra.mxu0 0
        %2827 = vmatprep.subr.bf16.mxu0 0
        %2828 = vmatpush1.bf16.msra.mxu0 0
        %2829 = vmatprep.subr.bf16.mxu0 0
        %2830 = vmatpush1.bf16.msra.mxu0 0
        %2831 = vmatprep.subr.bf16.mxu0 0
        %2832 = vmatpush1.bf16.msra.mxu0 0
        %2833 = vmatprep.subr.bf16.mxu0 0
        %2834 = vmatpush1.bf16.msra.mxu0 0
        %2835 = vmatprep.subr.bf16.mxu0 0
        %2836 = vmatpush1.bf16.msra.mxu0 0
        %2837 = vmatprep.subr.bf16.mxu0 0
        %2838 = vmatpush1.bf16.msra.mxu0 0
        %2839 = vmatprep.subr.bf16.mxu0 0
        %2840 = vmatpush1.bf16.msra.mxu0 0
        %2841 = vmatprep.subr.bf16.mxu0 0
        %2842 = vmatpush1.bf16.msra.mxu0 0
        %2843 = vmatprep.mubr.bf16.mxu0 0
        %2844 = vmatmul.mubr.bf16.gmra.mrb[0].mxu0 %v2785
        %v2845 = vpop.f32.mrb[0].mxu0
        %v2846 = vadd.f32 0.0, %v2845
        %v2847 = vpop.f32.mrb[0].mxu0
        %v2848 = vpop.f32.mrb[0].mxu0
        %v2849 = vadd.f32 0.0, %v2848
        %v2850 = vpop.f32.mrb[0].mxu0
        %2851 = vmatprep.mubr.bf16.mxu0 0
        %2852 = vmatmul.mubr.bf16.gmra.mrb[0].mxu0 %v2788
        %v2853 = vpop.f32.mrb[0].mxu0
        %v2854 = vadd.f32 0.0, %v2853
        %v2855 = vpop.f32.mrb[0].mxu0
        %v2856 = vpop.f32.mrb[0].mxu0
        %v2857 = vadd.f32 0.0, %v2856
        %v2858 = vpop.f32.mrb[0].mxu0
        %2859 = vmatprep.mubr.bf16.mxu0 0
        %2860 = vmatmul.mubr.bf16.gmra.mrb[0].mxu0 %v2791
        %v2861 = vpop.f32.mrb[0].mxu0
        %v2862 = vadd.f32 0.0, %v2861
        %v2863 = vpop.f32.mrb[0].mxu0
        %v2864 = vpop.f32.mrb[0].mxu0
        %v2865 = vadd.f32 0.0, %v2864
        %v2866 = vpop.f32.mrb[0].mxu0
        %2867 = vmatprep.mubr.bf16.mxu0 0
        %2868 = vmatmul.mubr.bf16.gmra.mrb[0].mxu0 %v2794
        %v2869 = vpop.f32.mrb[0].mxu0
        %v2870 = vadd.f32 0.0, %v2869
        %v2871 = vpop.f32.mrb[0].mxu0
        %v2872 = vpop.f32.mrb[0].mxu0
        %v2873 = vadd.f32 0.0, %v2872
        %v2874 = vpop.f32.mrb[0].mxu0
        %2875 = vmatprep.mubr.bf16.mxu0 0
        %2876 = vmatmul.mubr.bf16.gmra.mrb[0].mxu0 %v2797
        %v2877 = vpop.f32.mrb[0].mxu0
        %v2878 = vadd.f32 0.0, %v2877
        %v2879 = vpop.f32.mrb[0].mxu0
        %v2880 = vpop.f32.mrb[0].mxu0
        %v2881 = vadd.f32 0.0, %v2880
        %v2882 = vpop.f32.mrb[0].mxu0
        %2883 = vmatprep.mubr.bf16.mxu0 0
        %2884 = vmatmul.mubr.bf16.gmra.mrb[0].mxu0 %v2800
        %v2885 = vpop.f32.mrb[0].mxu0
        %v2886 = vadd.f32 0.0, %v2885
        %v2887 = vpop.f32.mrb[0].mxu0
        %v2888 = vpop.f32.mrb[0].mxu0
        %v2889 = vadd.f32 0.0, %v2888
        %v2890 = vpop.f32.mrb[0].mxu0
        %2891 = vmatprep.mubr.bf16.mxu0 0
        %2892 = vmatmul.mubr.bf16.gmra.mrb[0].mxu0 %v2803
        %v2893 = vpop.f32.mrb[0].mxu0
        %v2894 = vadd.f32 0.0, %v2893
        %v2895 = vpop.f32.mrb[0].mxu0
        %v2896 = vpop.f32.mrb[0].mxu0
        %v2897 = vadd.f32 0.0, %v2896
        %v2898 = vpop.f32.mrb[0].mxu0
        %2899 = vmatprep.mubr.bf16.mxu0 0
        %2900 = vmatmul.mubr.bf16.gmra.mrb[0].mxu0 %v2806
        %v2901 = vpop.f32.mrb[0].mxu0
        %v2902 = vadd.f32 0.0, %v2901
        %v2903 = vpop.f32.mrb[0].mxu0
        %v2904 = vpop.f32.mrb[0].mxu0
        %v2905 = vadd.f32 0.0, %v2904
        %v2906 = vpop.f32.mrb[0].mxu0
        %2907 = vdwg.mxu0
        %2908 = vxpose.xlu0.c.b16.start [1/8] %v2197, 128
        %2909 = vxpose.xlu0.c.b16.cont [2/8] 0, 128
        %2910 = vxpose.xlu0.c.b16.cont [3/8] 0, 128
        %2911 = vxpose.xlu0.c.b16.cont [4/8] 0, 128
        %2912 = vxpose.xlu0.c.b16.cont [5/8] 0, 128
        %2913 = vxpose.xlu0.c.b16.cont [6/8] 0, 128
        %2914 = vxpose.xlu0.c.b16.cont [7/8] 0, 128
        %2915 = vxpose.xlu0.c.b16.end [8/8] 0, 128
        %v2916 = vpop.trf.xlu0
        %v2917 = vpop.trf.xlu0
        %v2918 = vpop.trf.xlu0
        %v2919 = vpop.trf.xlu0
        %v2920 = vpop.trf.xlu0
        %v2921 = vpop.trf.xlu0
        %v2922 = vpop.trf.xlu0
        %v2923 = vpop.trf.xlu0
        %v2925 = vsel %vm2362, %v2916, 0
        %v2928 = vsel %vm2362, %v2917, 0
        %v2931 = vsel %vm2362, %v2918, 0
        %v2934 = vsel %vm2362, %v2919, 0
        %v2937 = vsel %vm2362, %v2920, 0
        %v2940 = vsel %vm2362, %v2921, 0
        %v2943 = vsel %vm2362, %v2922, 0
        %v2946 = vsel %vm2362, %v2923, 0
        %v2949 = vsel %vm2387, %v2342, 0
        %2951 = vmatprep.subr.bf16.mxu0 0
        %2952 = vmatpush1.bf16.msra.mxu0 %v2949
        %2953 = vmatprep.subr.bf16.mxu0 0
        %2954 = vmatpush1.bf16.msra.mxu0 0
        %2955 = vmatprep.subr.bf16.mxu0 0
        %2956 = vmatpush1.bf16.msra.mxu0 0
        %2957 = vmatprep.subr.bf16.mxu0 0
        %2958 = vmatpush1.bf16.msra.mxu0 0
        %2959 = vmatprep.subr.bf16.mxu0 0
        %2960 = vmatpush1.bf16.msra.mxu0 0
        %2961 = vmatprep.subr.bf16.mxu0 0
        %2962 = vmatpush1.bf16.msra.mxu0 0
        %2963 = vmatprep.subr.bf16.mxu0 0
        %2964 = vmatpush1.bf16.msra.mxu0 0
        %2965 = vmatprep.subr.bf16.mxu0 0
        %2966 = vmatpush1.bf16.msra.mxu0 0
        %2967 = vmatprep.subr.bf16.mxu0 0
        %2968 = vmatpush1.bf16.msra.mxu0 0
        %2969 = vmatprep.subr.bf16.mxu0 0
        %2970 = vmatpush1.bf16.msra.mxu0 0
        %2971 = vmatprep.subr.bf16.mxu0 0
        %2972 = vmatpush1.bf16.msra.mxu0 0
        %2973 = vmatprep.subr.bf16.mxu0 0
        %2974 = vmatpush1.bf16.msra.mxu0 0
        %2975 = vmatprep.subr.bf16.mxu0 0
        %2976 = vmatpush1.bf16.msra.mxu0 0
        %2977 = vmatprep.subr.bf16.mxu0 0
        %2978 = vmatpush1.bf16.msra.mxu0 0
        %2979 = vmatprep.subr.bf16.mxu0 0
        %2980 = vmatpush1.bf16.msra.mxu0 0
        %2981 = vmatprep.subr.bf16.mxu0 0
        %2982 = vmatpush1.bf16.msra.mxu0 0
        %2983 = vmatprep.mubr.bf16.mxu0 0
        %2984 = vmatmul.mubr.bf16.gmra.mrb[0].mxu0 %v2925
        %v2985 = vpop.f32.mrb[0].mxu0
        %v2986 = vadd.f32 0.0, %v2985
        %v2987 = vpop.f32.mrb[0].mxu0
        %v2988 = vpop.f32.mrb[0].mxu0
        %v2989 = vadd.f32 0.0, %v2988
        %v2990 = vpop.f32.mrb[0].mxu0
        %2991 = vmatprep.mubr.bf16.mxu0 0
        %2992 = vmatmul.mubr.bf16.gmra.mrb[0].mxu0 %v2928
        %v2993 = vpop.f32.mrb[0].mxu0
        %v2994 = vadd.f32 0.0, %v2993
        %v2995 = vpop.f32.mrb[0].mxu0
        %v2996 = vpop.f32.mrb[0].mxu0
        %v2997 = vadd.f32 0.0, %v2996
        %v2998 = vpop.f32.mrb[0].mxu0
        %2999 = vmatprep.mubr.bf16.mxu0 0
        %3000 = vmatmul.mubr.bf16.gmra.mrb[0].mxu0 %v2931
        %v3001 = vpop.f32.mrb[0].mxu0
        %v3002 = vadd.f32 0.0, %v3001
        %v3003 = vpop.f32.mrb[0].mxu0
        %v3004 = vpop.f32.mrb[0].mxu0
        %v3005 = vadd.f32 0.0, %v3004
        %v3006 = vpop.f32.mrb[0].mxu0
        %3007 = vmatprep.mubr.bf16.mxu0 0
        %3008 = vmatmul.mubr.bf16.gmra.mrb[0].mxu0 %v2934
        %v3009 = vpop.f32.mrb[0].mxu0
        %v3010 = vadd.f32 0.0, %v3009
        %v3011 = vpop.f32.mrb[0].mxu0
        %v3012 = vpop.f32.mrb[0].mxu0
        %v3013 = vadd.f32 0.0, %v3012
        %v3014 = vpop.f32.mrb[0].mxu0
        %3015 = vmatprep.mubr.bf16.mxu0 0
        %3016 = vmatmul.mubr.bf16.gmra.mrb[0].mxu0 %v2937
        %v3017 = vpop.f32.mrb[0].mxu0
        %v3018 = vadd.f32 0.0, %v3017
        %v3019 = vpop.f32.mrb[0].mxu0
        %v3020 = vpop.f32.mrb[0].mxu0
        %v3021 = vadd.f32 0.0, %v3020
        %v3022 = vpop.f32.mrb[0].mxu0
        %3023 = vmatprep.mubr.bf16.mxu0 0
        %3024 = vmatmul.mubr.bf16.gmra.mrb[0].mxu0 %v2940
        %v3025 = vpop.f32.mrb[0].mxu0
        %v3026 = vadd.f32 0.0, %v3025
        %v3027 = vpop.f32.mrb[0].mxu0
        %v3028 = vpop.f32.mrb[0].mxu0
        %v3029 = vadd.f32 0.0, %v3028
        %v3030 = vpop.f32.mrb[0].mxu0
        %3031 = vmatprep.mubr.bf16.mxu0 0
        %3032 = vmatmul.mubr.bf16.gmra.mrb[0].mxu0 %v2943
        %v3033 = vpop.f32.mrb[0].mxu0
        %v3034 = vadd.f32 0.0, %v3033
        %v3035 = vpop.f32.mrb[0].mxu0
        %v3036 = vpop.f32.mrb[0].mxu0
        %v3037 = vadd.f32 0.0, %v3036
        %v3038 = vpop.f32.mrb[0].mxu0
        %3039 = vmatprep.mubr.bf16.mxu0 0
        %3040 = vmatmul.mubr.bf16.gmra.mrb[0].mxu0 %v2946
        %v3041 = vpop.f32.mrb[0].mxu0
        %v3042 = vadd.f32 0.0, %v3041
        %v3043 = vpop.f32.mrb[0].mxu0
        %v3044 = vpop.f32.mrb[0].mxu0
        %v3045 = vadd.f32 0.0, %v3044
        %v3046 = vpop.f32.mrb[0].mxu0
        %3047 = vdwg.mxu0
        %3048 = vxpose.xlu0.c.b16.start [1/8] %v2198, 128
        %3049 = vxpose.xlu0.c.b16.cont [2/8] 0, 128
        %3050 = vxpose.xlu0.c.b16.cont [3/8] 0, 128
        %3051 = vxpose.xlu0.c.b16.cont [4/8] 0, 128
        %3052 = vxpose.xlu0.c.b16.cont [5/8] 0, 128
        %3053 = vxpose.xlu0.c.b16.cont [6/8] 0, 128
        %3054 = vxpose.xlu0.c.b16.cont [7/8] 0, 128
        %3055 = vxpose.xlu0.c.b16.end [8/8] 0, 128
        %v3056 = vpop.trf.xlu0
        %v3057 = vpop.trf.xlu0
        %v3058 = vpop.trf.xlu0
        %v3059 = vpop.trf.xlu0
        %v3060 = vpop.trf.xlu0
        %v3061 = vpop.trf.xlu0
        %v3062 = vpop.trf.xlu0
        %v3063 = vpop.trf.xlu0
        %v3065 = vsel %vm2362, %v3056, 0
        %v3068 = vsel %vm2362, %v3057, 0
        %v3071 = vsel %vm2362, %v3058, 0
        %v3074 = vsel %vm2362, %v3059, 0
        %v3077 = vsel %vm2362, %v3060, 0
        %v3080 = vsel %vm2362, %v3061, 0
        %v3083 = vsel %vm2362, %v3062, 0
        %v3086 = vsel %vm2362, %v3063, 0
        %v3089 = vsel %vm2387, %v2343, 0
        %3091 = vmatprep.subr.bf16.mxu0 0
        %3092 = vmatpush1.bf16.msra.mxu0 %v3089
        %3093 = vmatprep.subr.bf16.mxu0 0
        %3094 = vmatpush1.bf16.msra.mxu0 0
        %3095 = vmatprep.subr.bf16.mxu0 0
        %3096 = vmatpush1.bf16.msra.mxu0 0
        %3097 = vmatprep.subr.bf16.mxu0 0
        %3098 = vmatpush1.bf16.msra.mxu0 0
        %3099 = vmatprep.subr.bf16.mxu0 0
        %3100 = vmatpush1.bf16.msra.mxu0 0
        %3101 = vmatprep.subr.bf16.mxu0 0
        %3102 = vmatpush1.bf16.msra.mxu0 0
        %3103 = vmatprep.subr.bf16.mxu0 0
        %3104 = vmatpush1.bf16.msra.mxu0 0
        %3105 = vmatprep.subr.bf16.mxu0 0
        %3106 = vmatpush1.bf16.msra.mxu0 0
        %3107 = vmatprep.subr.bf16.mxu0 0
        %3108 = vmatpush1.bf16.msra.mxu0 0
        %3109 = vmatprep.subr.bf16.mxu0 0
        %3110 = vmatpush1.bf16.msra.mxu0 0
        %3111 = vmatprep.subr.bf16.mxu0 0
        %3112 = vmatpush1.bf16.msra.mxu0 0
        %3113 = vmatprep.subr.bf16.mxu0 0
        %3114 = vmatpush1.bf16.msra.mxu0 0
        %3115 = vmatprep.subr.bf16.mxu0 0
        %3116 = vmatpush1.bf16.msra.mxu0 0
        %3117 = vmatprep.subr.bf16.mxu0 0
        %3118 = vmatpush1.bf16.msra.mxu0 0
        %3119 = vmatprep.subr.bf16.mxu0 0
        %3120 = vmatpush1.bf16.msra.mxu0 0
        %3121 = vmatprep.subr.bf16.mxu0 0
        %3122 = vmatpush1.bf16.msra.mxu0 0
        %3123 = vmatprep.mubr.bf16.mxu0 0
        %3124 = vmatmul.mubr.bf16.gmra.mrb[0].mxu0 %v3065
        %v3125 = vpop.f32.mrb[0].mxu0
        %v3126 = vadd.f32 0.0, %v3125
        %v3127 = vpop.f32.mrb[0].mxu0
        %v3128 = vpop.f32.mrb[0].mxu0
        %v3129 = vadd.f32 0.0, %v3128
        %v3130 = vpop.f32.mrb[0].mxu0
        %3131 = vmatprep.mubr.bf16.mxu0 0
        %3132 = vmatmul.mubr.bf16.gmra.mrb[0].mxu0 %v3068
        %v3133 = vpop.f32.mrb[0].mxu0
        %v3134 = vadd.f32 0.0, %v3133
        %v3135 = vpop.f32.mrb[0].mxu0
        %v3136 = vpop.f32.mrb[0].mxu0
        %v3137 = vadd.f32 0.0, %v3136
        %v3138 = vpop.f32.mrb[0].mxu0
        %3139 = vmatprep.mubr.bf16.mxu0 0
        %3140 = vmatmul.mubr.bf16.gmra.mrb[0].mxu0 %v3071
        %v3141 = vpop.f32.mrb[0].mxu0
        %v3142 = vadd.f32 0.0, %v3141
        %v3143 = vpop.f32.mrb[0].mxu0
        %v3144 = vpop.f32.mrb[0].mxu0
        %v3145 = vadd.f32 0.0, %v3144
        %v3146 = vpop.f32.mrb[0].mxu0
        %3147 = vmatprep.mubr.bf16.mxu0 0
        %3148 = vmatmul.mubr.bf16.gmra.mrb[0].mxu0 %v3074
        %v3149 = vpop.f32.mrb[0].mxu0
        %v3150 = vadd.f32 0.0, %v3149
        %v3151 = vpop.f32.mrb[0].mxu0
        %v3152 = vpop.f32.mrb[0].mxu0
        %v3153 = vadd.f32 0.0, %v3152
        %v3154 = vpop.f32.mrb[0].mxu0
        %3155 = vmatprep.mubr.bf16.mxu0 0
        %3156 = vmatmul.mubr.bf16.gmra.mrb[0].mxu0 %v3077
        %v3157 = vpop.f32.mrb[0].mxu0
        %v3158 = vadd.f32 0.0, %v3157
        %v3159 = vpop.f32.mrb[0].mxu0
        %v3160 = vpop.f32.mrb[0].mxu0
        %v3161 = vadd.f32 0.0, %v3160
        %v3162 = vpop.f32.mrb[0].mxu0
        %3163 = vmatprep.mubr.bf16.mxu0 0
        %3164 = vmatmul.mubr.bf16.gmra.mrb[0].mxu0 %v3080
        %v3165 = vpop.f32.mrb[0].mxu0
        %v3166 = vadd.f32 0.0, %v3165
        %v3167 = vpop.f32.mrb[0].mxu0
        %v3168 = vpop.f32.mrb[0].mxu0
        %v3169 = vadd.f32 0.0, %v3168
        %v3170 = vpop.f32.mrb[0].mxu0
        %3171 = vmatprep.mubr.bf16.mxu0 0
        %3172 = vmatmul.mubr.bf16.gmra.mrb[0].mxu0 %v3083
        %v3173 = vpop.f32.mrb[0].mxu0
        %v3174 = vadd.f32 0.0, %v3173
        %v3175 = vpop.f32.mrb[0].mxu0
        %v3176 = vpop.f32.mrb[0].mxu0
        %v3177 = vadd.f32 0.0, %v3176
        %v3178 = vpop.f32.mrb[0].mxu0
        %3179 = vmatprep.mubr.bf16.mxu0 0
        %3180 = vmatmul.mubr.bf16.gmra.mrb[0].mxu0 %v3086
        %v3181 = vpop.f32.mrb[0].mxu0
        %v3182 = vadd.f32 0.0, %v3181
        %v3183 = vpop.f32.mrb[0].mxu0
        %v3184 = vpop.f32.mrb[0].mxu0
        %v3185 = vadd.f32 0.0, %v3184
        %v3186 = vpop.f32.mrb[0].mxu0
        %3187 = vdwg.mxu0
        %3188 = vxpose.xlu0.c.b16.start [1/8] %v2199, 128
        %3189 = vxpose.xlu0.c.b16.cont [2/8] 0, 128
        %3190 = vxpose.xlu0.c.b16.cont [3/8] 0, 128
        %3191 = vxpose.xlu0.c.b16.cont [4/8] 0, 128
        %3192 = vxpose.xlu0.c.b16.cont [5/8] 0, 128
        %3193 = vxpose.xlu0.c.b16.cont [6/8] 0, 128
        %3194 = vxpose.xlu0.c.b16.cont [7/8] 0, 128
        %3195 = vxpose.xlu0.c.b16.end [8/8] 0, 128
        %v3196 = vpop.trf.xlu0
        %v3197 = vpop.trf.xlu0
        %v3198 = vpop.trf.xlu0
        %v3199 = vpop.trf.xlu0
        %v3200 = vpop.trf.xlu0
        %v3201 = vpop.trf.xlu0
        %v3202 = vpop.trf.xlu0
        %v3203 = vpop.trf.xlu0
        %v3205 = vsel %vm2362, %v3196, 0
        %v3208 = vsel %vm2362, %v3197, 0
        %v3211 = vsel %vm2362, %v3198, 0
        %v3214 = vsel %vm2362, %v3199, 0
        %v3217 = vsel %vm2362, %v3200, 0
        %v3220 = vsel %vm2362, %v3201, 0
        %v3223 = vsel %vm2362, %v3202, 0
        %v3226 = vsel %vm2362, %v3203, 0
        %v3229 = vsel %vm2387, %v2344, 0
        %3231 = vmatprep.subr.bf16.mxu0 0
        %3232 = vmatpush1.bf16.msra.mxu0 %v3229
        %3233 = vmatprep.subr.bf16.mxu0 0
        %3234 = vmatpush1.bf16.msra.mxu0 0
        %3235 = vmatprep.subr.bf16.mxu0 0
        %3236 = vmatpush1.bf16.msra.mxu0 0
        %3237 = vmatprep.subr.bf16.mxu0 0
        %3238 = vmatpush1.bf16.msra.mxu0 0
        %3239 = vmatprep.subr.bf16.mxu0 0
        %3240 = vmatpush1.bf16.msra.mxu0 0
        %3241 = vmatprep.subr.bf16.mxu0 0
        %3242 = vmatpush1.bf16.msra.mxu0 0
        %3243 = vmatprep.subr.bf16.mxu0 0
        %3244 = vmatpush1.bf16.msra.mxu0 0
        %3245 = vmatprep.subr.bf16.mxu0 0
        %3246 = vmatpush1.bf16.msra.mxu0 0
        %3247 = vmatprep.subr.bf16.mxu0 0
        %3248 = vmatpush1.bf16.msra.mxu0 0
        %3249 = vmatprep.subr.bf16.mxu0 0
        %3250 = vmatpush1.bf16.msra.mxu0 0
        %3251 = vmatprep.subr.bf16.mxu0 0
        %3252 = vmatpush1.bf16.msra.mxu0 0
        %3253 = vmatprep.subr.bf16.mxu0 0
        %3254 = vmatpush1.bf16.msra.mxu0 0
        %3255 = vmatprep.subr.bf16.mxu0 0
        %3256 = vmatpush1.bf16.msra.mxu0 0
        %3257 = vmatprep.subr.bf16.mxu0 0
        %3258 = vmatpush1.bf16.msra.mxu0 0
        %3259 = vmatprep.subr.bf16.mxu0 0
        %3260 = vmatpush1.bf16.msra.mxu0 0
        %3261 = vmatprep.subr.bf16.mxu0 0
        %3262 = vmatpush1.bf16.msra.mxu0 0
        %3263 = vmatprep.mubr.bf16.mxu0 0
        %3264 = vmatmul.mubr.bf16.gmra.mrb[0].mxu0 %v3205
        %v3265 = vpop.f32.mrb[0].mxu0
        %v3266 = vadd.f32 0.0, %v3265
        %v3267 = vpop.f32.mrb[0].mxu0
        %v3268 = vpop.f32.mrb[0].mxu0
        %v3269 = vadd.f32 0.0, %v3268
        %v3270 = vpop.f32.mrb[0].mxu0
        %3271 = vmatprep.mubr.bf16.mxu0 0
        %3272 = vmatmul.mubr.bf16.gmra.mrb[0].mxu0 %v3208
        %v3273 = vpop.f32.mrb[0].mxu0
        %v3274 = vadd.f32 0.0, %v3273
        %v3275 = vpop.f32.mrb[0].mxu0
        %v3276 = vpop.f32.mrb[0].mxu0
        %v3277 = vadd.f32 0.0, %v3276
        %v3278 = vpop.f32.mrb[0].mxu0
        %3279 = vmatprep.mubr.bf16.mxu0 0
        %3280 = vmatmul.mubr.bf16.gmra.mrb[0].mxu0 %v3211
        %v3281 = vpop.f32.mrb[0].mxu0
        %v3282 = vadd.f32 0.0, %v3281
        %v3283 = vpop.f32.mrb[0].mxu0
        %v3284 = vpop.f32.mrb[0].mxu0
        %v3285 = vadd.f32 0.0, %v3284
        %v3286 = vpop.f32.mrb[0].mxu0
        %3287 = vmatprep.mubr.bf16.mxu0 0
        %3288 = vmatmul.mubr.bf16.gmra.mrb[0].mxu0 %v3214
        %v3289 = vpop.f32.mrb[0].mxu0
        %v3290 = vadd.f32 0.0, %v3289
        %v3291 = vpop.f32.mrb[0].mxu0
        %v3292 = vpop.f32.mrb[0].mxu0
        %v3293 = vadd.f32 0.0, %v3292
        %v3294 = vpop.f32.mrb[0].mxu0
        %3295 = vmatprep.mubr.bf16.mxu0 0
        %3296 = vmatmul.mubr.bf16.gmra.mrb[0].mxu0 %v3217
        %v3297 = vpop.f32.mrb[0].mxu0
        %v3298 = vadd.f32 0.0, %v3297
        %v3299 = vpop.f32.mrb[0].mxu0
        %v3300 = vpop.f32.mrb[0].mxu0
        %v3301 = vadd.f32 0.0, %v3300
        %v3302 = vpop.f32.mrb[0].mxu0
        %3303 = vmatprep.mubr.bf16.mxu0 0
        %3304 = vmatmul.mubr.bf16.gmra.mrb[0].mxu0 %v3220
        %v3305 = vpop.f32.mrb[0].mxu0
        %v3306 = vadd.f32 0.0, %v3305
        %v3307 = vpop.f32.mrb[0].mxu0
        %v3308 = vpop.f32.mrb[0].mxu0
        %v3309 = vadd.f32 0.0, %v3308
        %v3310 = vpop.f32.mrb[0].mxu0
        %3311 = vmatprep.mubr.bf16.mxu0 0
        %3312 = vmatmul.mubr.bf16.gmra.mrb[0].mxu0 %v3223
        %v3313 = vpop.f32.mrb[0].mxu0
        %v3314 = vadd.f32 0.0, %v3313
        %v3315 = vpop.f32.mrb[0].mxu0
        %v3316 = vpop.f32.mrb[0].mxu0
        %v3317 = vadd.f32 0.0, %v3316
        %v3318 = vpop.f32.mrb[0].mxu0
        %3319 = vmatprep.mubr.bf16.mxu0 0
        %3320 = vmatmul.mubr.bf16.gmra.mrb[0].mxu0 %v3226
        %v3321 = vpop.f32.mrb[0].mxu0
        %v3322 = vadd.f32 0.0, %v3321
        %v3323 = vpop.f32.mrb[0].mxu0
        %v3324 = vpop.f32.mrb[0].mxu0
        %v3325 = vadd.f32 0.0, %v3324
        %v3326 = vpop.f32.mrb[0].mxu0
        %3327 = vdwg.mxu0
        %3328 = vxpose.xlu0.c.b16.start [1/8] %v2200, 128
        %3329 = vxpose.xlu0.c.b16.cont [2/8] 0, 128
        %3330 = vxpose.xlu0.c.b16.cont [3/8] 0, 128
        %3331 = vxpose.xlu0.c.b16.cont [4/8] 0, 128
        %3332 = vxpose.xlu0.c.b16.cont [5/8] 0, 128
        %3333 = vxpose.xlu0.c.b16.cont [6/8] 0, 128
        %3334 = vxpose.xlu0.c.b16.cont [7/8] 0, 128
        %3335 = vxpose.xlu0.c.b16.end [8/8] 0, 128
        %v3336 = vpop.trf.xlu0
        %v3337 = vpop.trf.xlu0
        %v3338 = vpop.trf.xlu0
        %v3339 = vpop.trf.xlu0
        %v3340 = vpop.trf.xlu0
        %v3341 = vpop.trf.xlu0
        %v3342 = vpop.trf.xlu0
        %v3343 = vpop.trf.xlu0
        %v3345 = vsel %vm2362, %v3336, 0
        %v3348 = vsel %vm2362, %v3337, 0
        %v3351 = vsel %vm2362, %v3338, 0
        %v3354 = vsel %vm2362, %v3339, 0
        %v3357 = vsel %vm2362, %v3340, 0
        %v3360 = vsel %vm2362, %v3341, 0
        %v3363 = vsel %vm2362, %v3342, 0
        %v3366 = vsel %vm2362, %v3343, 0
        %v3369 = vsel %vm2387, %v2345, 0
        %3371 = vmatprep.subr.bf16.mxu0 0
        %3372 = vmatpush1.bf16.msra.mxu0 %v3369
        %3373 = vmatprep.subr.bf16.mxu0 0
        %3374 = vmatpush1.bf16.msra.mxu0 0
        %3375 = vmatprep.subr.bf16.mxu0 0
        %3376 = vmatpush1.bf16.msra.mxu0 0
        %3377 = vmatprep.subr.bf16.mxu0 0
        %3378 = vmatpush1.bf16.msra.mxu0 0
        %3379 = vmatprep.subr.bf16.mxu0 0
        %3380 = vmatpush1.bf16.msra.mxu0 0
        %3381 = vmatprep.subr.bf16.mxu0 0
        %3382 = vmatpush1.bf16.msra.mxu0 0
        %3383 = vmatprep.subr.bf16.mxu0 0
        %3384 = vmatpush1.bf16.msra.mxu0 0
        %3385 = vmatprep.subr.bf16.mxu0 0
        %3386 = vmatpush1.bf16.msra.mxu0 0
        %3387 = vmatprep.subr.bf16.mxu0 0
        %3388 = vmatpush1.bf16.msra.mxu0 0
        %3389 = vmatprep.subr.bf16.mxu0 0
        %3390 = vmatpush1.bf16.msra.mxu0 0
        %3391 = vmatprep.subr.bf16.mxu0 0
        %3392 = vmatpush1.bf16.msra.mxu0 0
        %3393 = vmatprep.subr.bf16.mxu0 0
        %3394 = vmatpush1.bf16.msra.mxu0 0
        %3395 = vmatprep.subr.bf16.mxu0 0
        %3396 = vmatpush1.bf16.msra.mxu0 0
        %3397 = vmatprep.subr.bf16.mxu0 0
        %3398 = vmatpush1.bf16.msra.mxu0 0
        %3399 = vmatprep.subr.bf16.mxu0 0
        %3400 = vmatpush1.bf16.msra.mxu0 0
        %3401 = vmatprep.subr.bf16.mxu0 0
        %3402 = vmatpush1.bf16.msra.mxu0 0
        %3403 = vmatprep.mubr.bf16.mxu0 0
        %3404 = vmatmul.mubr.bf16.gmra.mrb[0].mxu0 %v3345
        %v3405 = vpop.f32.mrb[0].mxu0
        %v3406 = vadd.f32 0.0, %v3405
        %v3407 = vpop.f32.mrb[0].mxu0
        %v3408 = vpop.f32.mrb[0].mxu0
        %v3409 = vadd.f32 0.0, %v3408
        %v3410 = vpop.f32.mrb[0].mxu0
        %3411 = vmatprep.mubr.bf16.mxu0 0
        %3412 = vmatmul.mubr.bf16.gmra.mrb[0].mxu0 %v3348
        %v3413 = vpop.f32.mrb[0].mxu0
        %v3414 = vadd.f32 0.0, %v3413
        %v3415 = vpop.f32.mrb[0].mxu0
        %v3416 = vpop.f32.mrb[0].mxu0
        %v3417 = vadd.f32 0.0, %v3416
        %v3418 = vpop.f32.mrb[0].mxu0
        %3419 = vmatprep.mubr.bf16.mxu0 0
        %3420 = vmatmul.mubr.bf16.gmra.mrb[0].mxu0 %v3351
        %v3421 = vpop.f32.mrb[0].mxu0
        %v3422 = vadd.f32 0.0, %v3421
        %v3423 = vpop.f32.mrb[0].mxu0
        %v3424 = vpop.f32.mrb[0].mxu0
        %v3425 = vadd.f32 0.0, %v3424
        %v3426 = vpop.f32.mrb[0].mxu0
        %3427 = vmatprep.mubr.bf16.mxu0 0
        %3428 = vmatmul.mubr.bf16.gmra.mrb[0].mxu0 %v3354
        %v3429 = vpop.f32.mrb[0].mxu0
        %v3430 = vadd.f32 0.0, %v3429
        %v3431 = vpop.f32.mrb[0].mxu0
        %v3432 = vpop.f32.mrb[0].mxu0
        %v3433 = vadd.f32 0.0, %v3432
        %v3434 = vpop.f32.mrb[0].mxu0
        %3435 = vmatprep.mubr.bf16.mxu0 0
        %3436 = vmatmul.mubr.bf16.gmra.mrb[0].mxu0 %v3357
        %v3437 = vpop.f32.mrb[0].mxu0
        %v3438 = vadd.f32 0.0, %v3437
        %v3439 = vpop.f32.mrb[0].mxu0
        %v3440 = vpop.f32.mrb[0].mxu0
        %v3441 = vadd.f32 0.0, %v3440
        %v3442 = vpop.f32.mrb[0].mxu0
        %3443 = vmatprep.mubr.bf16.mxu0 0
        %3444 = vmatmul.mubr.bf16.gmra.mrb[0].mxu0 %v3360
        %v3445 = vpop.f32.mrb[0].mxu0
        %v3446 = vadd.f32 0.0, %v3445
        %v3447 = vpop.f32.mrb[0].mxu0
        %v3448 = vpop.f32.mrb[0].mxu0
        %v3449 = vadd.f32 0.0, %v3448
        %v3450 = vpop.f32.mrb[0].mxu0
        %3451 = vmatprep.mubr.bf16.mxu0 0
        %3452 = vmatmul.mubr.bf16.gmra.mrb[0].mxu0 %v3363
        %v3453 = vpop.f32.mrb[0].mxu0
        %v3454 = vadd.f32 0.0, %v3453
        %v3455 = vpop.f32.mrb[0].mxu0
        %v3456 = vpop.f32.mrb[0].mxu0
        %v3457 = vadd.f32 0.0, %v3456
        %v3458 = vpop.f32.mrb[0].mxu0
        %3459 = vmatprep.mubr.bf16.mxu0 0
        %3460 = vmatmul.mubr.bf16.gmra.mrb[0].mxu0 %v3366
        %v3461 = vpop.f32.mrb[0].mxu0
        %v3462 = vadd.f32 0.0, %v3461
        %v3463 = vpop.f32.mrb[0].mxu0
        %v3464 = vpop.f32.mrb[0].mxu0
        %v3465 = vadd.f32 0.0, %v3464
        %v3466 = vpop.f32.mrb[0].mxu0
        %3467 = vdwg.mxu0
        %v3468 = vadd.f32 %v1109, %v2426
        %v3469 = vadd.f32 %v1113, %v2429
        %v3470 = vadd.f32 %v1119, %v2434
        %v3471 = vadd.f32 %v1123, %v2437
        %v3472 = vadd.f32 %v1129, %v2442
        %v3473 = vadd.f32 %v1133, %v2445
        %v3474 = vadd.f32 %v1139, %v2450
        %v3475 = vadd.f32 %v1143, %v2453
        %v3476 = vadd.f32 %v1149, %v2458
        %v3477 = vadd.f32 %v1153, %v2461
        %v3478 = vadd.f32 %v1159, %v2466
        %v3479 = vadd.f32 %v1163, %v2469
        %v3480 = vadd.f32 %v1169, %v2474
        %v3481 = vadd.f32 %v1173, %v2477
        %v3482 = vadd.f32 %v1179, %v2482
        %v3483 = vadd.f32 %v1183, %v2485
        %v3484 = vadd.f32 %v1189, %v2566
        %v3485 = vadd.f32 %v1193, %v2569
        %v3486 = vadd.f32 %v1199, %v2574
        %v3487 = vadd.f32 %v1203, %v2577
        %v3488 = vadd.f32 %v1209, %v2582
        %v3489 = vadd.f32 %v1213, %v2585
        %v3490 = vadd.f32 %v1219, %v2590
        %v3491 = vadd.f32 %v1223, %v2593
        %v3492 = vadd.f32 %v1229, %v2598
        %v3493 = vadd.f32 %v1233, %v2601
        %v3494 = vadd.f32 %v1239, %v2606
        %v3495 = vadd.f32 %v1243, %v2609
        %v3496 = vadd.f32 %v1249, %v2614
        %v3497 = vadd.f32 %v1253, %v2617
        %v3498 = vadd.f32 %v1259, %v2622
        %v3499 = vadd.f32 %v1263, %v2625
        %v3500 = vadd.f32 %v1269, %v2706
        %v3501 = vadd.f32 %v1273, %v2709
        %v3502 = vadd.f32 %v1279, %v2714
        %v3503 = vadd.f32 %v1283, %v2717
        %v3504 = vadd.f32 %v1289, %v2722
        %v3505 = vadd.f32 %v1293, %v2725
        %v3506 = vadd.f32 %v1299, %v2730
        %v3507 = vadd.f32 %v1303, %v2733
        %v3508 = vadd.f32 %v1309, %v2738
        %v3509 = vadd.f32 %v1313, %v2741
        %v3510 = vadd.f32 %v1319, %v2746
        %v3511 = vadd.f32 %v1323, %v2749
        %v3512 = vadd.f32 %v1329, %v2754
        %v3513 = vadd.f32 %v1333, %v2757
        %v3514 = vadd.f32 %v1339, %v2762
        %v3515 = vadd.f32 %v1343, %v2765
        %v3516 = vadd.f32 %v1349, %v2846
        %v3517 = vadd.f32 %v1353, %v2849
        %v3518 = vadd.f32 %v1359, %v2854
        %v3519 = vadd.f32 %v1363, %v2857
        %v3520 = vadd.f32 %v1369, %v2862
        %v3521 = vadd.f32 %v1373, %v2865
        %v3522 = vadd.f32 %v1379, %v2870
        %v3523 = vadd.f32 %v1383, %v2873
        %v3524 = vadd.f32 %v1389, %v2878
        %v3525 = vadd.f32 %v1393, %v2881
        %v3526 = vadd.f32 %v1399, %v2886
        %v3527 = vadd.f32 %v1403, %v2889
        %v3528 = vadd.f32 %v1409, %v2894
        %v3529 = vadd.f32 %v1413, %v2897
        %v3530 = vadd.f32 %v1419, %v2902
        %v3531 = vadd.f32 %v1423, %v2905
        %v3532 = vadd.f32 %v1429, %v2986
        %v3533 = vadd.f32 %v1433, %v2989
        %v3534 = vadd.f32 %v1439, %v2994
        %v3535 = vadd.f32 %v1443, %v2997
        %v3536 = vadd.f32 %v1449, %v3002
        %v3537 = vadd.f32 %v1453, %v3005
        %v3538 = vadd.f32 %v1459, %v3010
        %v3539 = vadd.f32 %v1463, %v3013
        %v3540 = vadd.f32 %v1469, %v3018
        %v3541 = vadd.f32 %v1473, %v3021
        %v3542 = vadd.f32 %v1479, %v3026
        %v3543 = vadd.f32 %v1483, %v3029
        %v3544 = vadd.f32 %v1489, %v3034
        %v3545 = vadd.f32 %v1493, %v3037
        %v3546 = vadd.f32 %v1499, %v3042
        %v3547 = vadd.f32 %v1503, %v3045
        %v3548 = vadd.f32 %v1509, %v3126
        %v3549 = vadd.f32 %v1513, %v3129
        %v3550 = vadd.f32 %v1519, %v3134
        %v3551 = vadd.f32 %v1523, %v3137
        %v3552 = vadd.f32 %v1529, %v3142
        %v3553 = vadd.f32 %v1533, %v3145
        %v3554 = vadd.f32 %v1539, %v3150
        %v3555 = vadd.f32 %v1543, %v3153
        %v3556 = vadd.f32 %v1549, %v3158
        %v3557 = vadd.f32 %v1553, %v3161
        %v3558 = vadd.f32 %v1559, %v3166
        %v3559 = vadd.f32 %v1563, %v3169
        %v3560 = vadd.f32 %v1569, %v3174
        %v3561 = vadd.f32 %v1573, %v3177
        %v3562 = vadd.f32 %v1579, %v3182
        %v3563 = vadd.f32 %v1583, %v3185
        %v3564 = vadd.f32 %v1589, %v3266
        %v3565 = vadd.f32 %v1593, %v3269
        %v3566 = vadd.f32 %v1599, %v3274
        %v3567 = vadd.f32 %v1603, %v3277
        %v3568 = vadd.f32 %v1609, %v3282
        %v3569 = vadd.f32 %v1613, %v3285
        %v3570 = vadd.f32 %v1619, %v3290
        %v3571 = vadd.f32 %v1623, %v3293
        %v3572 = vadd.f32 %v1629, %v3298
        %v3573 = vadd.f32 %v1633, %v3301
        %v3574 = vadd.f32 %v1639, %v3306
        %v3575 = vadd.f32 %v1643, %v3309
        %v3576 = vadd.f32 %v1649, %v3314
        %v3577 = vadd.f32 %v1653, %v3317
        %v3578 = vadd.f32 %v1659, %v3322
        %v3579 = vadd.f32 %v1663, %v3325
        %v3580 = vadd.f32 %v1669, %v3406
        %v3581 = vadd.f32 %v1673, %v3409
        %v3582 = vadd.f32 %v1679, %v3414
        %v3583 = vadd.f32 %v1683, %v3417
        %v3584 = vadd.f32 %v1689, %v3422
        %v3585 = vadd.f32 %v1693, %v3425
        %v3586 = vadd.f32 %v1699, %v3430
        %v3587 = vadd.f32 %v1703, %v3433
        %v3588 = vadd.f32 %v1709, %v3438
        %v3589 = vadd.f32 %v1713, %v3441
        %v3590 = vadd.f32 %v1719, %v3446
        %v3591 = vadd.f32 %v1723, %v3449
        %v3592 = vadd.f32 %v1729, %v3454
        %v3593 = vadd.f32 %v1733, %v3457
        %v3594 = vadd.f32 %v1739, %v3462
        %v3595 = vadd.f32 %v1743, %v3465
        %v3596 = vtanh.pop %v3468
        %v3597 = vtanh.pop %v3469
        %v3598 = vtanh.pop %v3470
        %v3599 = vtanh.pop %v3471
        %v3600 = vtanh.pop %v3472
        %v3601 = vtanh.pop %v3473
        %v3602 = vtanh.pop %v3474
        %v3603 = vtanh.pop %v3475
        %v3604 = vtanh.pop %v3476
        %v3605 = vtanh.pop %v3477
        %v3606 = vtanh.pop %v3478
        %v3607 = vtanh.pop %v3479
        %v3608 = vtanh.pop %v3480
        %v3609 = vtanh.pop %v3481
        %v3610 = vtanh.pop %v3482
        %v3611 = vtanh.pop %v3483
        %v3612 = vtanh.pop %v3484
        %v3613 = vtanh.pop %v3485
        %v3614 = vtanh.pop %v3486
        %v3615 = vtanh.pop %v3487
        %v3616 = vtanh.pop %v3488
        %v3617 = vtanh.pop %v3489
        %v3618 = vtanh.pop %v3490
        %v3619 = vtanh.pop %v3491
        %v3620 = vtanh.pop %v3492
        %v3621 = vtanh.pop %v3493
        %v3622 = vtanh.pop %v3494
        %v3623 = vtanh.pop %v3495
        %v3624 = vtanh.pop %v3496
        %v3625 = vtanh.pop %v3497
        %v3626 = vtanh.pop %v3498
        %v3627 = vtanh.pop %v3499
        %v3628 = vtanh.pop %v3500
        %v3629 = vtanh.pop %v3501
        %v3630 = vtanh.pop %v3502
        %v3631 = vtanh.pop %v3503
        %v3632 = vtanh.pop %v3504
        %v3633 = vtanh.pop %v3505
        %v3634 = vtanh.pop %v3506
        %v3635 = vtanh.pop %v3507
        %v3636 = vtanh.pop %v3508
        %v3637 = vtanh.pop %v3509
        %v3638 = vtanh.pop %v3510
        %v3639 = vtanh.pop %v3511
        %v3640 = vtanh.pop %v3512
        %v3641 = vtanh.pop %v3513
        %v3642 = vtanh.pop %v3514
        %v3643 = vtanh.pop %v3515
        %v3644 = vtanh.pop %v3516
        %v3645 = vtanh.pop %v3517
        %v3646 = vtanh.pop %v3518
        %v3647 = vtanh.pop %v3519
        %v3648 = vtanh.pop %v3520
        %v3649 = vtanh.pop %v3521
        %v3650 = vtanh.pop %v3522
        %v3651 = vtanh.pop %v3523
        %v3652 = vtanh.pop %v3524
        %v3653 = vtanh.pop %v3525
        %v3654 = vtanh.pop %v3526
        %v3655 = vtanh.pop %v3527
        %v3656 = vtanh.pop %v3528
        %v3657 = vtanh.pop %v3529
        %v3658 = vtanh.pop %v3530
        %v3659 = vtanh.pop %v3531
        %v3660 = vtanh.pop %v3532
        %v3661 = vtanh.pop %v3533
        %v3662 = vtanh.pop %v3534
        %v3663 = vtanh.pop %v3535
        %v3664 = vtanh.pop %v3536
        %v3665 = vtanh.pop %v3537
        %v3666 = vtanh.pop %v3538
        %v3667 = vtanh.pop %v3539
        %v3668 = vtanh.pop %v3540
        %v3669 = vtanh.pop %v3541
        %v3670 = vtanh.pop %v3542
        %v3671 = vtanh.pop %v3543
        %v3672 = vtanh.pop %v3544
        %v3673 = vtanh.pop %v3545
        %v3674 = vtanh.pop %v3546
        %v3675 = vtanh.pop %v3547
        %v3676 = vtanh.pop %v3548
        %v3677 = vtanh.pop %v3549
        %v3678 = vtanh.pop %v3550
        %v3679 = vtanh.pop %v3551
        %v3680 = vtanh.pop %v3552
        %v3681 = vtanh.pop %v3553
        %v3682 = vtanh.pop %v3554
        %v3683 = vtanh.pop %v3555
        %v3684 = vtanh.pop %v3556
        %v3685 = vtanh.pop %v3557
        %v3686 = vtanh.pop %v3558
        %v3687 = vtanh.pop %v3559
        %v3688 = vtanh.pop %v3560
        %v3689 = vtanh.pop %v3561
        %v3690 = vtanh.pop %v3562
        %v3691 = vtanh.pop %v3563
        %v3692 = vtanh.pop %v3564
        %v3693 = vtanh.pop %v3565
        %v3694 = vtanh.pop %v3566
        %v3695 = vtanh.pop %v3567
        %v3696 = vtanh.pop %v3568
        %v3697 = vtanh.pop %v3569
        %v3698 = vtanh.pop %v3570
        %v3699 = vtanh.pop %v3571
        %v3700 = vtanh.pop %v3572
        %v3701 = vtanh.pop %v3573
        %v3702 = vtanh.pop %v3574
        %v3703 = vtanh.pop %v3575
        %v3704 = vtanh.pop %v3576
        %v3705 = vtanh.pop %v3577
        %v3706 = vtanh.pop %v3578
        %v3707 = vtanh.pop %v3579
        %v3708 = vtanh.pop %v3580
        %v3709 = vtanh.pop %v3581
        %v3710 = vtanh.pop %v3582
        %v3711 = vtanh.pop %v3583
        %v3712 = vtanh.pop %v3584
        %v3713 = vtanh.pop %v3585
        %v3714 = vtanh.pop %v3586
        %v3715 = vtanh.pop %v3587
        %v3716 = vtanh.pop %v3588
        %v3717 = vtanh.pop %v3589
        %v3718 = vtanh.pop %v3590
        %v3719 = vtanh.pop %v3591
        %v3720 = vtanh.pop %v3592
        %v3721 = vtanh.pop %v3593
        %v3722 = vtanh.pop %v3594
        %v3723 = vtanh.pop %v3595
        %3724 = vmatprep.subr.bf16.mxu0 0
        %3725 = vmatpush1.bf16.msra.mxu0 %v1746
        %3726 = vmatprep.subr.bf16.mxu0 0
        %3727 = vmatpush1.bf16.msra.mxu0 %v1748
        %3728 = vmatprep.subr.bf16.mxu0 0
        %3729 = vmatpush1.bf16.msra.mxu0 %v1750
        %3730 = vmatprep.subr.bf16.mxu0 0
        %3731 = vmatpush1.bf16.msra.mxu0 %v1752
        %3732 = vmatprep.subr.bf16.mxu0 0
        %3733 = vmatpush1.bf16.msra.mxu0 %v1754
        %3734 = vmatprep.subr.bf16.mxu0 0
        %3735 = vmatpush1.bf16.msra.mxu0 %v1756
        %3736 = vmatprep.subr.bf16.mxu0 0
        %3737 = vmatpush1.bf16.msra.mxu0 %v1758
        %3738 = vmatprep.subr.bf16.mxu0 0
        %3739 = vmatpush1.bf16.msra.mxu0 %v1760
        %3740 = vmatprep.subr.bf16.mxu0 0
        %3741 = vmatpush1.bf16.msra.mxu0 0
        %3742 = vmatprep.subr.bf16.mxu0 0
        %3743 = vmatpush1.bf16.msra.mxu0 0
        %3744 = vmatprep.subr.bf16.mxu0 0
        %3745 = vmatpush1.bf16.msra.mxu0 0
        %3746 = vmatprep.subr.bf16.mxu0 0
        %3747 = vmatpush1.bf16.msra.mxu0 0
        %3748 = vmatprep.subr.bf16.mxu0 0
        %3749 = vmatpush1.bf16.msra.mxu0 0
        %3750 = vmatprep.subr.bf16.mxu0 0
        %3751 = vmatpush1.bf16.msra.mxu0 0
        %3752 = vmatprep.subr.bf16.mxu0 0
        %3753 = vmatpush1.bf16.msra.mxu0 0
        %3754 = vmatprep.subr.bf16.mxu0 0
        %3755 = vmatpush1.bf16.msra.mxu0 0
        %3756 = vmatprep.mubr.bf16.mxu0 0
        %3757 = vmatmul.mubr.bf16.gmra.mrb[0].mxu0 %v2193
        %v3758 = vpop.f32.mrb[0].mxu0
        %v3759 = vadd.f32 0.0, %v3758
        %v3760 = vpop.f32.mrb[0].mxu0
        %v3761 = vpop.f32.mrb[0].mxu0
        %v3762 = vpop.f32.mrb[0].mxu0
        %3763 = vdwg.mxu0
        %3764 = vmatprep.subr.bf16.mxu0 0
        %3765 = vmatpush1.bf16.msra.mxu0 %v1762
        %3766 = vmatprep.subr.bf16.mxu0 0
        %3767 = vmatpush1.bf16.msra.mxu0 %v1764
        %3768 = vmatprep.subr.bf16.mxu0 0
        %3769 = vmatpush1.bf16.msra.mxu0 %v1766
        %3770 = vmatprep.subr.bf16.mxu0 0
        %3771 = vmatpush1.bf16.msra.mxu0 %v1768
        %3772 = vmatprep.subr.bf16.mxu0 0
        %3773 = vmatpush1.bf16.msra.mxu0 %v1770
        %3774 = vmatprep.subr.bf16.mxu0 0
        %3775 = vmatpush1.bf16.msra.mxu0 %v1772
        %3776 = vmatprep.subr.bf16.mxu0 0
        %3777 = vmatpush1.bf16.msra.mxu0 %v1774
        %3778 = vmatprep.subr.bf16.mxu0 0
        %3779 = vmatpush1.bf16.msra.mxu0 %v1776
        %3780 = vmatprep.subr.bf16.mxu0 0
        %3781 = vmatpush1.bf16.msra.mxu0 0
        %3782 = vmatprep.subr.bf16.mxu0 0
        %3783 = vmatpush1.bf16.msra.mxu0 0
        %3784 = vmatprep.subr.bf16.mxu0 0
        %3785 = vmatpush1.bf16.msra.mxu0 0
        %3786 = vmatprep.subr.bf16.mxu0 0
        %3787 = vmatpush1.bf16.msra.mxu0 0
        %3788 = vmatprep.subr.bf16.mxu0 0
        %3789 = vmatpush1.bf16.msra.mxu0 0
        %3790 = vmatprep.subr.bf16.mxu0 0
        %3791 = vmatpush1.bf16.msra.mxu0 0
        %3792 = vmatprep.subr.bf16.mxu0 0
        %3793 = vmatpush1.bf16.msra.mxu0 0
        %3794 = vmatprep.subr.bf16.mxu0 0
        %3795 = vmatpush1.bf16.msra.mxu0 0
        %3796 = vmatprep.mubr.bf16.mxu0 0
        %3797 = vmatmul.mubr.bf16.gmra.mrb[0].mxu0 %v2194
        %v3798 = vpop.f32.mrb[0].mxu0
        %v3799 = vadd.f32 0.0, %v3798
        %v3800 = vpop.f32.mrb[0].mxu0
        %v3801 = vpop.f32.mrb[0].mxu0
        %v3802 = vpop.f32.mrb[0].mxu0
        %3803 = vdwg.mxu0
        %3804 = vmatprep.subr.bf16.mxu0 0
        %3805 = vmatpush1.bf16.msra.mxu0 %v1778
        %3806 = vmatprep.subr.bf16.mxu0 0
        %3807 = vmatpush1.bf16.msra.mxu0 %v1780
        %3808 = vmatprep.subr.bf16.mxu0 0
        %3809 = vmatpush1.bf16.msra.mxu0 %v1782
        %3810 = vmatprep.subr.bf16.mxu0 0
        %3811 = vmatpush1.bf16.msra.mxu0 %v1784
        %3812 = vmatprep.subr.bf16.mxu0 0
        %3813 = vmatpush1.bf16.msra.mxu0 %v1786
        %3814 = vmatprep.subr.bf16.mxu0 0
        %3815 = vmatpush1.bf16.msra.mxu0 %v1788
        %3816 = vmatprep.subr.bf16.mxu0 0
        %3817 = vmatpush1.bf16.msra.mxu0 %v1790
        %3818 = vmatprep.subr.bf16.mxu0 0
        %3819 = vmatpush1.bf16.msra.mxu0 %v1792
        %3820 = vmatprep.subr.bf16.mxu0 0
        %3821 = vmatpush1.bf16.msra.mxu0 0
        %3822 = vmatprep.subr.bf16.mxu0 0
        %3823 = vmatpush1.bf16.msra.mxu0 0
        %3824 = vmatprep.subr.bf16.mxu0 0
        %3825 = vmatpush1.bf16.msra.mxu0 0
        %3826 = vmatprep.subr.bf16.mxu0 0
        %3827 = vmatpush1.bf16.msra.mxu0 0
        %3828 = vmatprep.subr.bf16.mxu0 0
        %3829 = vmatpush1.bf16.msra.mxu0 0
        %3830 = vmatprep.subr.bf16.mxu0 0
        %3831 = vmatpush1.bf16.msra.mxu0 0
        %3832 = vmatprep.subr.bf16.mxu0 0
        %3833 = vmatpush1.bf16.msra.mxu0 0
        %3834 = vmatprep.subr.bf16.mxu0 0
        %3835 = vmatpush1.bf16.msra.mxu0 0
        %3836 = vmatprep.mubr.bf16.mxu0 0
        %3837 = vmatmul.mubr.bf16.gmra.mrb[0].mxu0 %v2195
        %v3838 = vpop.f32.mrb[0].mxu0
        %v3839 = vadd.f32 0.0, %v3838
        %v3840 = vpop.f32.mrb[0].mxu0
        %v3841 = vpop.f32.mrb[0].mxu0
        %v3842 = vpop.f32.mrb[0].mxu0
        %3843 = vdwg.mxu0
        %3844 = vmatprep.subr.bf16.mxu0 0
        %3845 = vmatpush1.bf16.msra.mxu0 %v1794
        %3846 = vmatprep.subr.bf16.mxu0 0
        %3847 = vmatpush1.bf16.msra.mxu0 %v1796
        %3848 = vmatprep.subr.bf16.mxu0 0
        %3849 = vmatpush1.bf16.msra.mxu0 %v1798
        %3850 = vmatprep.subr.bf16.mxu0 0
        %3851 = vmatpush1.bf16.msra.mxu0 %v1800
        %3852 = vmatprep.subr.bf16.mxu0 0
        %3853 = vmatpush1.bf16.msra.mxu0 %v1802
        %3854 = vmatprep.subr.bf16.mxu0 0
        %3855 = vmatpush1.bf16.msra.mxu0 %v1804
        %3856 = vmatprep.subr.bf16.mxu0 0
        %3857 = vmatpush1.bf16.msra.mxu0 %v1806
        %3858 = vmatprep.subr.bf16.mxu0 0
        %3859 = vmatpush1.bf16.msra.mxu0 %v1808
        %3860 = vmatprep.subr.bf16.mxu0 0
        %3861 = vmatpush1.bf16.msra.mxu0 0
        %3862 = vmatprep.subr.bf16.mxu0 0
        %3863 = vmatpush1.bf16.msra.mxu0 0
        %3864 = vmatprep.subr.bf16.mxu0 0
        %3865 = vmatpush1.bf16.msra.mxu0 0
        %3866 = vmatprep.subr.bf16.mxu0 0
        %3867 = vmatpush1.bf16.msra.mxu0 0
        %3868 = vmatprep.subr.bf16.mxu0 0
        %3869 = vmatpush1.bf16.msra.mxu0 0
        %3870 = vmatprep.subr.bf16.mxu0 0
        %3871 = vmatpush1.bf16.msra.mxu0 0
        %3872 = vmatprep.subr.bf16.mxu0 0
        %3873 = vmatpush1.bf16.msra.mxu0 0
        %3874 = vmatprep.subr.bf16.mxu0 0
        %3875 = vmatpush1.bf16.msra.mxu0 0
        %3876 = vmatprep.mubr.bf16.mxu0 0
        %3877 = vmatmul.mubr.bf16.gmra.mrb[0].mxu0 %v2196
        %v3878 = vpop.f32.mrb[0].mxu0
        %v3879 = vadd.f32 0.0, %v3878
        %v3880 = vpop.f32.mrb[0].mxu0
        %v3881 = vpop.f32.mrb[0].mxu0
        %v3882 = vpop.f32.mrb[0].mxu0
        %3883 = vdwg.mxu0
        %3884 = vmatprep.subr.bf16.mxu0 0
        %3885 = vmatpush1.bf16.msra.mxu0 %v1810
        %3886 = vmatprep.subr.bf16.mxu0 0
        %3887 = vmatpush1.bf16.msra.mxu0 %v1812
        %3888 = vmatprep.subr.bf16.mxu0 0
        %3889 = vmatpush1.bf16.msra.mxu0 %v1814
        %3890 = vmatprep.subr.bf16.mxu0 0
        %3891 = vmatpush1.bf16.msra.mxu0 %v1816
        %3892 = vmatprep.subr.bf16.mxu0 0
        %3893 = vmatpush1.bf16.msra.mxu0 %v1818
        %3894 = vmatprep.subr.bf16.mxu0 0
        %3895 = vmatpush1.bf16.msra.mxu0 %v1820
        %3896 = vmatprep.subr.bf16.mxu0 0
        %3897 = vmatpush1.bf16.msra.mxu0 %v1822
        %3898 = vmatprep.subr.bf16.mxu0 0
        %3899 = vmatpush1.bf16.msra.mxu0 %v1824
        %3900 = vmatprep.subr.bf16.mxu0 0
        %3901 = vmatpush1.bf16.msra.mxu0 0
        %3902 = vmatprep.subr.bf16.mxu0 0
        %3903 = vmatpush1.bf16.msra.mxu0 0
        %3904 = vmatprep.subr.bf16.mxu0 0
        %3905 = vmatpush1.bf16.msra.mxu0 0
        %3906 = vmatprep.subr.bf16.mxu0 0
        %3907 = vmatpush1.bf16.msra.mxu0 0
        %3908 = vmatprep.subr.bf16.mxu0 0
        %3909 = vmatpush1.bf16.msra.mxu0 0
        %3910 = vmatprep.subr.bf16.mxu0 0
        %3911 = vmatpush1.bf16.msra.mxu0 0
        %3912 = vmatprep.subr.bf16.mxu0 0
        %3913 = vmatpush1.bf16.msra.mxu0 0
        %3914 = vmatprep.subr.bf16.mxu0 0
        %3915 = vmatpush1.bf16.msra.mxu0 0
        %3916 = vmatprep.mubr.bf16.mxu0 0
        %3917 = vmatmul.mubr.bf16.gmra.mrb[0].mxu0 %v2197
        %v3918 = vpop.f32.mrb[0].mxu0
        %v3919 = vadd.f32 0.0, %v3918
        %v3920 = vpop.f32.mrb[0].mxu0
        %v3921 = vpop.f32.mrb[0].mxu0
        %v3922 = vpop.f32.mrb[0].mxu0
        %3923 = vdwg.mxu0
        %3924 = vmatprep.subr.bf16.mxu0 0
        %3925 = vmatpush1.bf16.msra.mxu0 %v1826
        %3926 = vmatprep.subr.bf16.mxu0 0
        %3927 = vmatpush1.bf16.msra.mxu0 %v1828
        %3928 = vmatprep.subr.bf16.mxu0 0
        %3929 = vmatpush1.bf16.msra.mxu0 %v1830
        %3930 = vmatprep.subr.bf16.mxu0 0
        %3931 = vmatpush1.bf16.msra.mxu0 %v1832
        %3932 = vmatprep.subr.bf16.mxu0 0
        %3933 = vmatpush1.bf16.msra.mxu0 %v1834
        %3934 = vmatprep.subr.bf16.mxu0 0
        %3935 = vmatpush1.bf16.msra.mxu0 %v1836
        %3936 = vmatprep.subr.bf16.mxu0 0
        %3937 = vmatpush1.bf16.msra.mxu0 %v1838
        %3938 = vmatprep.subr.bf16.mxu0 0
        %3939 = vmatpush1.bf16.msra.mxu0 %v1840
        %3940 = vmatprep.subr.bf16.mxu0 0
        %3941 = vmatpush1.bf16.msra.mxu0 0
        %3942 = vmatprep.subr.bf16.mxu0 0
        %3943 = vmatpush1.bf16.msra.mxu0 0
        %3944 = vmatprep.subr.bf16.mxu0 0
        %3945 = vmatpush1.bf16.msra.mxu0 0
        %3946 = vmatprep.subr.bf16.mxu0 0
        %3947 = vmatpush1.bf16.msra.mxu0 0
        %3948 = vmatprep.subr.bf16.mxu0 0
        %3949 = vmatpush1.bf16.msra.mxu0 0
        %3950 = vmatprep.subr.bf16.mxu0 0
        %3951 = vmatpush1.bf16.msra.mxu0 0
        %3952 = vmatprep.subr.bf16.mxu0 0
        %3953 = vmatpush1.bf16.msra.mxu0 0
        %3954 = vmatprep.subr.bf16.mxu0 0
        %3955 = vmatpush1.bf16.msra.mxu0 0
        %3956 = vmatprep.mubr.bf16.mxu0 0
        %3957 = vmatmul.mubr.bf16.gmra.mrb[0].mxu0 %v2198
        %v3958 = vpop.f32.mrb[0].mxu0
        %v3959 = vadd.f32 0.0, %v3958
        %v3960 = vpop.f32.mrb[0].mxu0
        %v3961 = vpop.f32.mrb[0].mxu0
        %v3962 = vpop.f32.mrb[0].mxu0
        %3963 = vdwg.mxu0
        %3964 = vmatprep.subr.bf16.mxu0 0
        %3965 = vmatpush1.bf16.msra.mxu0 %v1842
        %3966 = vmatprep.subr.bf16.mxu0 0
        %3967 = vmatpush1.bf16.msra.mxu0 %v1844
        %3968 = vmatprep.subr.bf16.mxu0 0
        %3969 = vmatpush1.bf16.msra.mxu0 %v1846
        %3970 = vmatprep.subr.bf16.mxu0 0
        %3971 = vmatpush1.bf16.msra.mxu0 %v1848
        %3972 = vmatprep.subr.bf16.mxu0 0
        %3973 = vmatpush1.bf16.msra.mxu0 %v1850
        %3974 = vmatprep.subr.bf16.mxu0 0
        %3975 = vmatpush1.bf16.msra.mxu0 %v1852
        %3976 = vmatprep.subr.bf16.mxu0 0
        %3977 = vmatpush1.bf16.msra.mxu0 %v1854
        %3978 = vmatprep.subr.bf16.mxu0 0
        %3979 = vmatpush1.bf16.msra.mxu0 %v1856
        %3980 = vmatprep.subr.bf16.mxu0 0
        %3981 = vmatpush1.bf16.msra.mxu0 0
        %3982 = vmatprep.subr.bf16.mxu0 0
        %3983 = vmatpush1.bf16.msra.mxu0 0
        %3984 = vmatprep.subr.bf16.mxu0 0
        %3985 = vmatpush1.bf16.msra.mxu0 0
        %3986 = vmatprep.subr.bf16.mxu0 0
        %3987 = vmatpush1.bf16.msra.mxu0 0
        %3988 = vmatprep.subr.bf16.mxu0 0
        %3989 = vmatpush1.bf16.msra.mxu0 0
        %3990 = vmatprep.subr.bf16.mxu0 0
        %3991 = vmatpush1.bf16.msra.mxu0 0
        %3992 = vmatprep.subr.bf16.mxu0 0
        %3993 = vmatpush1.bf16.msra.mxu0 0
        %3994 = vmatprep.subr.bf16.mxu0 0
        %3995 = vmatpush1.bf16.msra.mxu0 0
        %3996 = vmatprep.mubr.bf16.mxu0 0
        %3997 = vmatmul.mubr.bf16.gmra.mrb[0].mxu0 %v2199
        %v3998 = vpop.f32.mrb[0].mxu0
        %v3999 = vadd.f32 0.0, %v3998
        %v4000 = vpop.f32.mrb[0].mxu0
        %v4001 = vpop.f32.mrb[0].mxu0
        %v4002 = vpop.f32.mrb[0].mxu0
        %4003 = vdwg.mxu0
        %4004 = vmatprep.subr.bf16.mxu0 0
        %4005 = vmatpush1.bf16.msra.mxu0 %v1858
        %4006 = vmatprep.subr.bf16.mxu0 0
        %4007 = vmatpush1.bf16.msra.mxu0 %v1860
        %4008 = vmatprep.subr.bf16.mxu0 0
        %4009 = vmatpush1.bf16.msra.mxu0 %v1862
        %4010 = vmatprep.subr.bf16.mxu0 0
        %4011 = vmatpush1.bf16.msra.mxu0 %v1864
        %4012 = vmatprep.subr.bf16.mxu0 0
        %4013 = vmatpush1.bf16.msra.mxu0 %v1866
        %4014 = vmatprep.subr.bf16.mxu0 0
        %4015 = vmatpush1.bf16.msra.mxu0 %v1868
        %4016 = vmatprep.subr.bf16.mxu0 0
        %4017 = vmatpush1.bf16.msra.mxu0 %v1870
        %4018 = vmatprep.subr.bf16.mxu0 0
        %4019 = vmatpush1.bf16.msra.mxu0 %v1872
        %4020 = vmatprep.subr.bf16.mxu0 0
        %4021 = vmatpush1.bf16.msra.mxu0 0
        %4022 = vmatprep.subr.bf16.mxu0 0
        %4023 = vmatpush1.bf16.msra.mxu0 0
        %4024 = vmatprep.subr.bf16.mxu0 0
        %4025 = vmatpush1.bf16.msra.mxu0 0
        %4026 = vmatprep.subr.bf16.mxu0 0
        %4027 = vmatpush1.bf16.msra.mxu0 0
        %4028 = vmatprep.subr.bf16.mxu0 0
        %4029 = vmatpush1.bf16.msra.mxu0 0
        %4030 = vmatprep.subr.bf16.mxu0 0
        %4031 = vmatpush1.bf16.msra.mxu0 0
        %4032 = vmatprep.subr.bf16.mxu0 0
        %4033 = vmatpush1.bf16.msra.mxu0 0
        %4034 = vmatprep.subr.bf16.mxu0 0
        %4035 = vmatpush1.bf16.msra.mxu0 0
        %4036 = vmatprep.mubr.bf16.mxu0 0
        %4037 = vmatmul.mubr.bf16.gmra.mrb[0].mxu0 %v2200
        %v4038 = vpop.f32.mrb[0].mxu0
        %v4039 = vadd.f32 0.0, %v4038
        %v4040 = vpop.f32.mrb[0].mxu0
        %v4041 = vpop.f32.mrb[0].mxu0
        %v4042 = vpop.f32.mrb[0].mxu0
        %4043 = vdwg.mxu0
        %v4044 = vadd.f32 %v2308, %v3759
        %v4045 = vadd.f32 %v2311, %v3799
        %v4046 = vadd.f32 %v2316, %v3839
        %v4047 = vadd.f32 %v2319, %v3879
        %v4048 = vadd.f32 %v2324, %v3919
        %v4049 = vadd.f32 %v2327, %v3959
        %v4050 = vadd.f32 %v2332, %v3999
        %v4051 = vadd.f32 %v2335, %v4039
        %v4052 = vtanh.pop %v4044
        %v4053 = vtanh.pop %v4045
        %v4054 = vtanh.pop %v4046
        %v4055 = vtanh.pop %v4047
        %v4056 = vtanh.pop %v4048
        %v4057 = vtanh.pop %v4049
        %v4058 = vtanh.pop %v4050
        %v4059 = vtanh.pop %v4051
        %v4060 = vlaneseq
        %v4061 = vshrl.u32 %v4060, 7
        %v4062 = vsub.s32 0, %v4061
        %v4063 = vrot.slane %v590, %v4062
        %v4064 = vmul.f32 %v3596, %v4063
        %v4065 = vmul.f32 %v3597, %v4063
        %v4066 = vmul.f32 %v3598, %v4063
        %v4067 = vmul.f32 %v3599, %v4063
        %v4068 = vmul.f32 %v3600, %v4063
        %v4069 = vmul.f32 %v3601, %v4063
        %v4070 = vmul.f32 %v3602, %v4063
        %v4071 = vmul.f32 %v3603, %v4063
        %v4072 = vmul.f32 %v3604, %v4063
        %v4073 = vmul.f32 %v3605, %v4063
        %v4074 = vmul.f32 %v3606, %v4063
        %v4075 = vmul.f32 %v3607, %v4063
        %v4076 = vmul.f32 %v3608, %v4063
        %v4077 = vmul.f32 %v3609, %v4063
        %v4078 = vmul.f32 %v3610, %v4063
        %v4079 = vmul.f32 %v3611, %v4063
        %v4080 = vmul.f32 %v3612, %v4063
        %v4081 = vmul.f32 %v3613, %v4063
        %v4082 = vmul.f32 %v3614, %v4063
        %v4083 = vmul.f32 %v3615, %v4063
        %v4084 = vmul.f32 %v3616, %v4063
        %v4085 = vmul.f32 %v3617, %v4063
        %v4086 = vmul.f32 %v3618, %v4063
        %v4087 = vmul.f32 %v3619, %v4063
        %v4088 = vmul.f32 %v3620, %v4063
        %v4089 = vmul.f32 %v3621, %v4063
        %v4090 = vmul.f32 %v3622, %v4063
        %v4091 = vmul.f32 %v3623, %v4063
        %v4092 = vmul.f32 %v3624, %v4063
        %v4093 = vmul.f32 %v3625, %v4063
        %v4094 = vmul.f32 %v3626, %v4063
        %v4095 = vmul.f32 %v3627, %v4063
        %v4096 = vmul.f32 %v3628, %v4063
        %v4097 = vmul.f32 %v3629, %v4063
        %v4098 = vmul.f32 %v3630, %v4063
        %v4099 = vmul.f32 %v3631, %v4063
        %v4100 = vmul.f32 %v3632, %v4063
        %v4101 = vmul.f32 %v3633, %v4063
        %v4102 = vmul.f32 %v3634, %v4063
        %v4103 = vmul.f32 %v3635, %v4063
        %v4104 = vmul.f32 %v3636, %v4063
        %v4105 = vmul.f32 %v3637, %v4063
        %v4106 = vmul.f32 %v3638, %v4063
        %v4107 = vmul.f32 %v3639, %v4063
        %v4108 = vmul.f32 %v3640, %v4063
        %v4109 = vmul.f32 %v3641, %v4063
        %v4110 = vmul.f32 %v3642, %v4063
        %v4111 = vmul.f32 %v3643, %v4063
        %v4112 = vmul.f32 %v3644, %v4063
        %v4113 = vmul.f32 %v3645, %v4063
        %v4114 = vmul.f32 %v3646, %v4063
        %v4115 = vmul.f32 %v3647, %v4063
        %v4116 = vmul.f32 %v3648, %v4063
        %v4117 = vmul.f32 %v3649, %v4063
        %v4118 = vmul.f32 %v3650, %v4063
        %v4119 = vmul.f32 %v3651, %v4063
        %v4120 = vmul.f32 %v3652, %v4063
        %v4121 = vmul.f32 %v3653, %v4063
        %v4122 = vmul.f32 %v3654, %v4063
        %v4123 = vmul.f32 %v3655, %v4063
        %v4124 = vmul.f32 %v3656, %v4063
        %v4125 = vmul.f32 %v3657, %v4063
        %v4126 = vmul.f32 %v3658, %v4063
        %v4127 = vmul.f32 %v3659, %v4063
        %v4128 = vmul.f32 %v3660, %v4063
        %v4129 = vmul.f32 %v3661, %v4063
        %v4130 = vmul.f32 %v3662, %v4063
        %v4131 = vmul.f32 %v3663, %v4063
        %v4132 = vmul.f32 %v3664, %v4063
        %v4133 = vmul.f32 %v3665, %v4063
        %v4134 = vmul.f32 %v3666, %v4063
        %v4135 = vmul.f32 %v3667, %v4063
        %v4136 = vmul.f32 %v3668, %v4063
        %v4137 = vmul.f32 %v3669, %v4063
        %v4138 = vmul.f32 %v3670, %v4063
        %v4139 = vmul.f32 %v3671, %v4063
        %v4140 = vmul.f32 %v3672, %v4063
        %v4141 = vmul.f32 %v3673, %v4063
        %v4142 = vmul.f32 %v3674, %v4063
        %v4143 = vmul.f32 %v3675, %v4063
        %v4144 = vmul.f32 %v3676, %v4063
        %v4145 = vmul.f32 %v3677, %v4063
        %v4146 = vmul.f32 %v3678, %v4063
        %v4147 = vmul.f32 %v3679, %v4063
        %v4148 = vmul.f32 %v3680, %v4063
        %v4149 = vmul.f32 %v3681, %v4063
        %v4150 = vmul.f32 %v3682, %v4063
        %v4151 = vmul.f32 %v3683, %v4063
        %v4152 = vmul.f32 %v3684, %v4063
        %v4153 = vmul.f32 %v3685, %v4063
        %v4154 = vmul.f32 %v3686, %v4063
        %v4155 = vmul.f32 %v3687, %v4063
        %v4156 = vmul.f32 %v3688, %v4063
        %v4157 = vmul.f32 %v3689, %v4063
        %v4158 = vmul.f32 %v3690, %v4063
        %v4159 = vmul.f32 %v3691, %v4063
        %v4160 = vmul.f32 %v3692, %v4063
        %v4161 = vmul.f32 %v3693, %v4063
        %v4162 = vmul.f32 %v3694, %v4063
        %v4163 = vmul.f32 %v3695, %v4063
        %v4164 = vmul.f32 %v3696, %v4063
        %v4165 = vmul.f32 %v3697, %v4063
        %v4166 = vmul.f32 %v3698, %v4063
        %v4167 = vmul.f32 %v3699, %v4063
        %v4168 = vmul.f32 %v3700, %v4063
        %v4169 = vmul.f32 %v3701, %v4063
        %v4170 = vmul.f32 %v3702, %v4063
        %v4171 = vmul.f32 %v3703, %v4063
        %v4172 = vmul.f32 %v3704, %v4063
        %v4173 = vmul.f32 %v3705, %v4063
        %v4174 = vmul.f32 %v3706, %v4063
        %v4175 = vmul.f32 %v3707, %v4063
        %v4176 = vmul.f32 %v3708, %v4063
        %v4177 = vmul.f32 %v3709, %v4063
        %v4178 = vmul.f32 %v3710, %v4063
        %v4179 = vmul.f32 %v3711, %v4063
        %v4180 = vmul.f32 %v3712, %v4063
        %v4181 = vmul.f32 %v3713, %v4063
        %v4182 = vmul.f32 %v3714, %v4063
        %v4183 = vmul.f32 %v3715, %v4063
        %v4184 = vmul.f32 %v3716, %v4063
        %v4185 = vmul.f32 %v3717, %v4063
        %v4186 = vmul.f32 %v3718, %v4063
        %v4187 = vmul.f32 %v3719, %v4063
        %v4188 = vmul.f32 %v3720, %v4063
        %v4189 = vmul.f32 %v3721, %v4063
        %v4190 = vmul.f32 %v3722, %v4063
        %v4191 = vmul.f32 %v3723, %v4063
        %4192 = vadd.xlane.f32.xlu0 %v4064
        %v4193 = vpop.xlane.xlu0 %4192
        %4194 = vadd.xlane.f32.xlu0 %v4065
        %v4195 = vpop.xlane.xlu0 %4194
        %4196 = vadd.xlane.f32.xlu0 %v4066
        %v4197 = vpop.xlane.xlu0 %4196
        %4198 = vadd.xlane.f32.xlu0 %v4067
        %v4199 = vpop.xlane.xlu0 %4198
        %4200 = vadd.xlane.f32.xlu0 %v4068
        %v4201 = vpop.xlane.xlu0 %4200
        %4202 = vadd.xlane.f32.xlu0 %v4069
        %v4203 = vpop.xlane.xlu0 %4202
        %4204 = vadd.xlane.f32.xlu0 %v4070
        %v4205 = vpop.xlane.xlu0 %4204
        %4206 = vadd.xlane.f32.xlu0 %v4071
        %v4207 = vpop.xlane.xlu0 %4206
        %4208 = vadd.xlane.f32.xlu0 %v4072
        %v4209 = vpop.xlane.xlu0 %4208
        %4210 = vadd.xlane.f32.xlu0 %v4073
        %v4211 = vpop.xlane.xlu0 %4210
        %4212 = vadd.xlane.f32.xlu0 %v4074
        %v4213 = vpop.xlane.xlu0 %4212
        %4214 = vadd.xlane.f32.xlu0 %v4075
        %v4215 = vpop.xlane.xlu0 %4214
        %4216 = vadd.xlane.f32.xlu0 %v4076
        %v4217 = vpop.xlane.xlu0 %4216
        %4218 = vadd.xlane.f32.xlu0 %v4077
        %v4219 = vpop.xlane.xlu0 %4218
        %4220 = vadd.xlane.f32.xlu0 %v4078
        %v4221 = vpop.xlane.xlu0 %4220
        %4222 = vadd.xlane.f32.xlu0 %v4079
        %v4223 = vpop.xlane.xlu0 %4222
        %4224 = vadd.xlane.f32.xlu0 %v4080
        %v4225 = vpop.xlane.xlu0 %4224
        %4226 = vadd.xlane.f32.xlu0 %v4081
        %v4227 = vpop.xlane.xlu0 %4226
        %4228 = vadd.xlane.f32.xlu0 %v4082
        %v4229 = vpop.xlane.xlu0 %4228
        %4230 = vadd.xlane.f32.xlu0 %v4083
        %v4231 = vpop.xlane.xlu0 %4230
        %4232 = vadd.xlane.f32.xlu0 %v4084
        %v4233 = vpop.xlane.xlu0 %4232
        %4234 = vadd.xlane.f32.xlu0 %v4085
        %v4235 = vpop.xlane.xlu0 %4234
        %4236 = vadd.xlane.f32.xlu0 %v4086
        %v4237 = vpop.xlane.xlu0 %4236
        %4238 = vadd.xlane.f32.xlu0 %v4087
        %v4239 = vpop.xlane.xlu0 %4238
        %4240 = vadd.xlane.f32.xlu0 %v4088
        %v4241 = vpop.xlane.xlu0 %4240
        %4242 = vadd.xlane.f32.xlu0 %v4089
        %v4243 = vpop.xlane.xlu0 %4242
        %4244 = vadd.xlane.f32.xlu0 %v4090
        %v4245 = vpop.xlane.xlu0 %4244
        %4246 = vadd.xlane.f32.xlu0 %v4091
        %v4247 = vpop.xlane.xlu0 %4246
        %4248 = vadd.xlane.f32.xlu0 %v4092
        %v4249 = vpop.xlane.xlu0 %4248
        %4250 = vadd.xlane.f32.xlu0 %v4093
        %v4251 = vpop.xlane.xlu0 %4250
        %4252 = vadd.xlane.f32.xlu0 %v4094
        %v4253 = vpop.xlane.xlu0 %4252
        %4254 = vadd.xlane.f32.xlu0 %v4095
        %v4255 = vpop.xlane.xlu0 %4254
        %4256 = vadd.xlane.f32.xlu0 %v4096
        %v4257 = vpop.xlane.xlu0 %4256
        %4258 = vadd.xlane.f32.xlu0 %v4097
        %v4259 = vpop.xlane.xlu0 %4258
        %4260 = vadd.xlane.f32.xlu0 %v4098
        %v4261 = vpop.xlane.xlu0 %4260
        %4262 = vadd.xlane.f32.xlu0 %v4099
        %v4263 = vpop.xlane.xlu0 %4262
        %4264 = vadd.xlane.f32.xlu0 %v4100
        %v4265 = vpop.xlane.xlu0 %4264
        %4266 = vadd.xlane.f32.xlu0 %v4101
        %v4267 = vpop.xlane.xlu0 %4266
        %4268 = vadd.xlane.f32.xlu0 %v4102
        %v4269 = vpop.xlane.xlu0 %4268
        %4270 = vadd.xlane.f32.xlu0 %v4103
        %v4271 = vpop.xlane.xlu0 %4270
        %4272 = vadd.xlane.f32.xlu0 %v4104
        %v4273 = vpop.xlane.xlu0 %4272
        %4274 = vadd.xlane.f32.xlu0 %v4105
        %v4275 = vpop.xlane.xlu0 %4274
        %4276 = vadd.xlane.f32.xlu0 %v4106
        %v4277 = vpop.xlane.xlu0 %4276
        %4278 = vadd.xlane.f32.xlu0 %v4107
        %v4279 = vpop.xlane.xlu0 %4278
        %4280 = vadd.xlane.f32.xlu0 %v4108
        %v4281 = vpop.xlane.xlu0 %4280
        %4282 = vadd.xlane.f32.xlu0 %v4109
        %v4283 = vpop.xlane.xlu0 %4282
        %4284 = vadd.xlane.f32.xlu0 %v4110
        %v4285 = vpop.xlane.xlu0 %4284
        %4286 = vadd.xlane.f32.xlu0 %v4111
        %v4287 = vpop.xlane.xlu0 %4286
        %4288 = vadd.xlane.f32.xlu0 %v4112
        %v4289 = vpop.xlane.xlu0 %4288
        %4290 = vadd.xlane.f32.xlu0 %v4113
        %v4291 = vpop.xlane.xlu0 %4290
        %4292 = vadd.xlane.f32.xlu0 %v4114
        %v4293 = vpop.xlane.xlu0 %4292
        %4294 = vadd.xlane.f32.xlu0 %v4115
        %v4295 = vpop.xlane.xlu0 %4294
        %4296 = vadd.xlane.f32.xlu0 %v4116
        %v4297 = vpop.xlane.xlu0 %4296
        %4298 = vadd.xlane.f32.xlu0 %v4117
        %v4299 = vpop.xlane.xlu0 %4298
        %4300 = vadd.xlane.f32.xlu0 %v4118
        %v4301 = vpop.xlane.xlu0 %4300
        %4302 = vadd.xlane.f32.xlu0 %v4119
        %v4303 = vpop.xlane.xlu0 %4302
        %4304 = vadd.xlane.f32.xlu0 %v4120
        %v4305 = vpop.xlane.xlu0 %4304
        %4306 = vadd.xlane.f32.xlu0 %v4121
        %v4307 = vpop.xlane.xlu0 %4306
        %4308 = vadd.xlane.f32.xlu0 %v4122
        %v4309 = vpop.xlane.xlu0 %4308
        %4310 = vadd.xlane.f32.xlu0 %v4123
        %v4311 = vpop.xlane.xlu0 %4310
        %4312 = vadd.xlane.f32.xlu0 %v4124
        %v4313 = vpop.xlane.xlu0 %4312
        %4314 = vadd.xlane.f32.xlu0 %v4125
        %v4315 = vpop.xlane.xlu0 %4314
        %4316 = vadd.xlane.f32.xlu0 %v4126
        %v4317 = vpop.xlane.xlu0 %4316
        %4318 = vadd.xlane.f32.xlu0 %v4127
        %v4319 = vpop.xlane.xlu0 %4318
        %4320 = vadd.xlane.f32.xlu0 %v4128
        %v4321 = vpop.xlane.xlu0 %4320
        %4322 = vadd.xlane.f32.xlu0 %v4129
        %v4323 = vpop.xlane.xlu0 %4322
        %4324 = vadd.xlane.f32.xlu0 %v4130
        %v4325 = vpop.xlane.xlu0 %4324
        %4326 = vadd.xlane.f32.xlu0 %v4131
        %v4327 = vpop.xlane.xlu0 %4326
        %4328 = vadd.xlane.f32.xlu0 %v4132
        %v4329 = vpop.xlane.xlu0 %4328
        %4330 = vadd.xlane.f32.xlu0 %v4133
        %v4331 = vpop.xlane.xlu0 %4330
        %4332 = vadd.xlane.f32.xlu0 %v4134
        %v4333 = vpop.xlane.xlu0 %4332
        %4334 = vadd.xlane.f32.xlu0 %v4135
        %v4335 = vpop.xlane.xlu0 %4334
        %4336 = vadd.xlane.f32.xlu0 %v4136
        %v4337 = vpop.xlane.xlu0 %4336
        %4338 = vadd.xlane.f32.xlu0 %v4137
        %v4339 = vpop.xlane.xlu0 %4338
        %4340 = vadd.xlane.f32.xlu0 %v4138
        %v4341 = vpop.xlane.xlu0 %4340
        %4342 = vadd.xlane.f32.xlu0 %v4139
        %v4343 = vpop.xlane.xlu0 %4342
        %4344 = vadd.xlane.f32.xlu0 %v4140
        %v4345 = vpop.xlane.xlu0 %4344
        %4346 = vadd.xlane.f32.xlu0 %v4141
        %v4347 = vpop.xlane.xlu0 %4346
        %4348 = vadd.xlane.f32.xlu0 %v4142
        %v4349 = vpop.xlane.xlu0 %4348
        %4350 = vadd.xlane.f32.xlu0 %v4143
        %v4351 = vpop.xlane.xlu0 %4350
        %4352 = vadd.xlane.f32.xlu0 %v4144
        %v4353 = vpop.xlane.xlu0 %4352
        %4354 = vadd.xlane.f32.xlu0 %v4145
        %v4355 = vpop.xlane.xlu0 %4354
        %4356 = vadd.xlane.f32.xlu0 %v4146
        %v4357 = vpop.xlane.xlu0 %4356
        %4358 = vadd.xlane.f32.xlu0 %v4147
        %v4359 = vpop.xlane.xlu0 %4358
        %4360 = vadd.xlane.f32.xlu0 %v4148
        %v4361 = vpop.xlane.xlu0 %4360
        %4362 = vadd.xlane.f32.xlu0 %v4149
        %v4363 = vpop.xlane.xlu0 %4362
        %4364 = vadd.xlane.f32.xlu0 %v4150
        %v4365 = vpop.xlane.xlu0 %4364
        %4366 = vadd.xlane.f32.xlu0 %v4151
        %v4367 = vpop.xlane.xlu0 %4366
        %4368 = vadd.xlane.f32.xlu0 %v4152
        %v4369 = vpop.xlane.xlu0 %4368
        %4370 = vadd.xlane.f32.xlu0 %v4153
        %v4371 = vpop.xlane.xlu0 %4370
        %4372 = vadd.xlane.f32.xlu0 %v4154
        %v4373 = vpop.xlane.xlu0 %4372
        %4374 = vadd.xlane.f32.xlu0 %v4155
        %v4375 = vpop.xlane.xlu0 %4374
        %4376 = vadd.xlane.f32.xlu0 %v4156
        %v4377 = vpop.xlane.xlu0 %4376
        %4378 = vadd.xlane.f32.xlu0 %v4157
        %v4379 = vpop.xlane.xlu0 %4378
        %4380 = vadd.xlane.f32.xlu0 %v4158
        %v4381 = vpop.xlane.xlu0 %4380
        %4382 = vadd.xlane.f32.xlu0 %v4159
        %v4383 = vpop.xlane.xlu0 %4382
        %4384 = vadd.xlane.f32.xlu0 %v4160
        %v4385 = vpop.xlane.xlu0 %4384
        %4386 = vadd.xlane.f32.xlu0 %v4161
        %v4387 = vpop.xlane.xlu0 %4386
        %4388 = vadd.xlane.f32.xlu0 %v4162
        %v4389 = vpop.xlane.xlu0 %4388
        %4390 = vadd.xlane.f32.xlu0 %v4163
        %v4391 = vpop.xlane.xlu0 %4390
        %4392 = vadd.xlane.f32.xlu0 %v4164
        %v4393 = vpop.xlane.xlu0 %4392
        %4394 = vadd.xlane.f32.xlu0 %v4165
        %v4395 = vpop.xlane.xlu0 %4394
        %4396 = vadd.xlane.f32.xlu0 %v4166
        %v4397 = vpop.xlane.xlu0 %4396
        %4398 = vadd.xlane.f32.xlu0 %v4167
        %v4399 = vpop.xlane.xlu0 %4398
        %4400 = vadd.xlane.f32.xlu0 %v4168
        %v4401 = vpop.xlane.xlu0 %4400
        %4402 = vadd.xlane.f32.xlu0 %v4169
        %v4403 = vpop.xlane.xlu0 %4402
        %4404 = vadd.xlane.f32.xlu0 %v4170
        %v4405 = vpop.xlane.xlu0 %4404
        %4406 = vadd.xlane.f32.xlu0 %v4171
        %v4407 = vpop.xlane.xlu0 %4406
        %4408 = vadd.xlane.f32.xlu0 %v4172
        %v4409 = vpop.xlane.xlu0 %4408
        %4410 = vadd.xlane.f32.xlu0 %v4173
        %v4411 = vpop.xlane.xlu0 %4410
        %4412 = vadd.xlane.f32.xlu0 %v4174
        %v4413 = vpop.xlane.xlu0 %4412
        %4414 = vadd.xlane.f32.xlu0 %v4175
        %v4415 = vpop.xlane.xlu0 %4414
        %4416 = vadd.xlane.f32.xlu0 %v4176
        %v4417 = vpop.xlane.xlu0 %4416
        %4418 = vadd.xlane.f32.xlu0 %v4177
        %v4419 = vpop.xlane.xlu0 %4418
        %4420 = vadd.xlane.f32.xlu0 %v4178
        %v4421 = vpop.xlane.xlu0 %4420
        %4422 = vadd.xlane.f32.xlu0 %v4179
        %v4423 = vpop.xlane.xlu0 %4422
        %4424 = vadd.xlane.f32.xlu0 %v4180
        %v4425 = vpop.xlane.xlu0 %4424
        %4426 = vadd.xlane.f32.xlu0 %v4181
        %v4427 = vpop.xlane.xlu0 %4426
        %4428 = vadd.xlane.f32.xlu0 %v4182
        %v4429 = vpop.xlane.xlu0 %4428
        %4430 = vadd.xlane.f32.xlu0 %v4183
        %v4431 = vpop.xlane.xlu0 %4430
        %4432 = vadd.xlane.f32.xlu0 %v4184
        %v4433 = vpop.xlane.xlu0 %4432
        %4434 = vadd.xlane.f32.xlu0 %v4185
        %v4435 = vpop.xlane.xlu0 %4434
        %4436 = vadd.xlane.f32.xlu0 %v4186
        %v4437 = vpop.xlane.xlu0 %4436
        %4438 = vadd.xlane.f32.xlu0 %v4187
        %v4439 = vpop.xlane.xlu0 %4438
        %4440 = vadd.xlane.f32.xlu0 %v4188
        %v4441 = vpop.xlane.xlu0 %4440
        %4442 = vadd.xlane.f32.xlu0 %v4189
        %v4443 = vpop.xlane.xlu0 %4442
        %4444 = vadd.xlane.f32.xlu0 %v4190
        %v4445 = vpop.xlane.xlu0 %4444
        %4446 = vadd.xlane.f32.xlu0 %v4191
        %v4447 = vpop.xlane.xlu0 %4446
        %v4448 = vlaneseq
        %v4449 = vshrl.u32 %v4448, 7
        %v4450 = vsub.s32 1, %v4449
        %v4451 = vrot.slane %v590, %v4450
        %v4452 = vmul.f32 %v4052, %v4451
        %v4453 = vmul.f32 %v4053, %v4451
        %v4454 = vmul.f32 %v4054, %v4451
        %v4455 = vmul.f32 %v4055, %v4451
        %v4456 = vmul.f32 %v4056, %v4451
        %v4457 = vmul.f32 %v4057, %v4451
        %v4458 = vmul.f32 %v4058, %v4451
        %v4459 = vmul.f32 %v4059, %v4451
        %4460 = vadd.xlane.f32.xlu0 %v4452
        %v4461 = vpop.xlane.xlu0 %4460
        %4462 = vadd.xlane.f32.xlu0 %v4453
        %v4463 = vpop.xlane.xlu0 %4462
        %4464 = vadd.xlane.f32.xlu0 %v4454
        %v4465 = vpop.xlane.xlu0 %4464
        %4466 = vadd.xlane.f32.xlu0 %v4455
        %v4467 = vpop.xlane.xlu0 %4466
        %4468 = vadd.xlane.f32.xlu0 %v4456
        %v4469 = vpop.xlane.xlu0 %4468
        %4470 = vadd.xlane.f32.xlu0 %v4457
        %v4471 = vpop.xlane.xlu0 %4470
        %4472 = vadd.xlane.f32.xlu0 %v4458
        %v4473 = vpop.xlane.xlu0 %4472
        %4474 = vadd.xlane.f32.xlu0 %v4459
        %v4475 = vpop.xlane.xlu0 %4474
        %v4604 = vlaneseq
        %v4605 = vand.u32 %v4604, 127
        %v4606 = vlaneseq
        %v4607 = vshrl.u32 %v4606, 7
        %v4608 = vsub.s32 %v4605, %v4607
        %v4609 = vrot.slane %v4193, %v4608
        %v4610 = vadd.s32 %v4605, 4294967288
        %v4611 = vlaneseq
        %v4612 = vshrl.u32 %v4611, 7
        %v4613 = vsub.s32 %v4610, %v4612
        %v4614 = vrot.slane %v4195, %v4613
        %vm4615 = vcmask 130112
        %v4616 = vsel %vm4615, %v4614, %v4609
        %v4617 = vadd.s32 %v4605, 4294967280
        %v4618 = vlaneseq
        %v4619 = vshrl.u32 %v4618, 7
        %v4620 = vsub.s32 %v4617, %v4619
        %v4621 = vrot.slane %v4197, %v4620
        %vm4622 = vcmask 195712
        %v4623 = vsel %vm4622, %v4621, %v4616
        %v4624 = vadd.s32 %v4605, 4294967272
        %v4625 = vlaneseq
        %v4626 = vshrl.u32 %v4625, 7
        %v4627 = vsub.s32 %v4624, %v4626
        %v4628 = vrot.slane %v4199, %v4627
        %vm4629 = vcmask 261312
        %v4630 = vsel %vm4629, %v4628, %v4623
        %v4631 = vadd.s32 %v4605, 4294967264
        %v4632 = vlaneseq
        %v4633 = vshrl.u32 %v4632, 7
        %v4634 = vsub.s32 %v4631, %v4633
        %v4635 = vrot.slane %v4201, %v4634
        %vm4636 = vcmask 326912
        %v4637 = vsel %vm4636, %v4635, %v4630
        %v4638 = vadd.s32 %v4605, 4294967256
        %v4639 = vlaneseq
        %v4640 = vshrl.u32 %v4639, 7
        %v4641 = vsub.s32 %v4638, %v4640
        %v4642 = vrot.slane %v4203, %v4641
        %vm4643 = vcmask 392512
        %v4644 = vsel %vm4643, %v4642, %v4637
        %v4645 = vadd.s32 %v4605, 4294967248
        %v4646 = vlaneseq
        %v4647 = vshrl.u32 %v4646, 7
        %v4648 = vsub.s32 %v4645, %v4647
        %v4649 = vrot.slane %v4205, %v4648
        %vm4650 = vcmask 458112
        %v4651 = vsel %vm4650, %v4649, %v4644
        %v4652 = vadd.s32 %v4605, 4294967240
        %v4653 = vlaneseq
        %v4654 = vshrl.u32 %v4653, 7
        %v4655 = vsub.s32 %v4652, %v4654
        %v4656 = vrot.slane %v4207, %v4655
        %vm4657 = vcmask 523712
        %v4658 = vsel %vm4657, %v4656, %v4651
        %v4659 = vadd.s32 %v4605, 4294967232
        %v4660 = vlaneseq
        %v4661 = vshrl.u32 %v4660, 7
        %v4662 = vsub.s32 %v4659, %v4661
        %v4663 = vrot.slane %v4209, %v4662
        %vm4664 = vcmask 589312
        %v4665 = vsel %vm4664, %v4663, %v4658
        %v4666 = vadd.s32 %v4605, 4294967224
        %v4667 = vlaneseq
        %v4668 = vshrl.u32 %v4667, 7
        %v4669 = vsub.s32 %v4666, %v4668
        %v4670 = vrot.slane %v4211, %v4669
        %vm4671 = vcmask 654912
        %v4672 = vsel %vm4671, %v4670, %v4665
        %v4673 = vadd.s32 %v4605, 4294967216
        %v4674 = vlaneseq
        %v4675 = vshrl.u32 %v4674, 7
        %v4676 = vsub.s32 %v4673, %v4675
        %v4677 = vrot.slane %v4213, %v4676
        %vm4678 = vcmask 720512
        %v4679 = vsel %vm4678, %v4677, %v4672
        %v4680 = vadd.s32 %v4605, 4294967208
        %v4681 = vlaneseq
        %v4682 = vshrl.u32 %v4681, 7
        %v4683 = vsub.s32 %v4680, %v4682
        %v4684 = vrot.slane %v4215, %v4683
        %vm4685 = vcmask 786112
        %v4686 = vsel %vm4685, %v4684, %v4679
        %v4687 = vadd.s32 %v4605, 4294967200
        %v4688 = vlaneseq
        %v4689 = vshrl.u32 %v4688, 7
        %v4690 = vsub.s32 %v4687, %v4689
        %v4691 = vrot.slane %v4217, %v4690
        %vm4692 = vcmask 851712
        %v4693 = vsel %vm4692, %v4691, %v4686
        %v4694 = vadd.s32 %v4605, 4294967192
        %v4695 = vlaneseq
        %v4696 = vshrl.u32 %v4695, 7
        %v4697 = vsub.s32 %v4694, %v4696
        %v4698 = vrot.slane %v4219, %v4697
        %vm4699 = vcmask 917312
        %v4700 = vsel %vm4699, %v4698, %v4693
        %v4701 = vadd.s32 %v4605, 4294967184
        %v4702 = vlaneseq
        %v4703 = vshrl.u32 %v4702, 7
        %v4704 = vsub.s32 %v4701, %v4703
        %v4705 = vrot.slane %v4221, %v4704
        %vm4706 = vcmask 982912
        %v4707 = vsel %vm4706, %v4705, %v4700
        %v4708 = vadd.s32 %v4605, 4294967176
        %v4709 = vlaneseq
        %v4710 = vshrl.u32 %v4709, 7
        %v4711 = vsub.s32 %v4708, %v4710
        %v4712 = vrot.slane %v4223, %v4711
        %vm4713 = vcmask 1048512
        %v4714 = vsel %vm4713, %v4712, %v4707
        %v4715 = vlaneseq
        %v4716 = vshrl.u32 %v4715, 7
        %v4717 = vsub.s32 %v4605, %v4716
        %v4718 = vrot.slane %v4225, %v4717
        %v4719 = vlaneseq
        %v4720 = vshrl.u32 %v4719, 7
        %v4721 = vsub.s32 %v4610, %v4720
        %v4722 = vrot.slane %v4227, %v4721
        %v4723 = vsel %vm4615, %v4722, %v4718
        %v4724 = vlaneseq
        %v4725 = vshrl.u32 %v4724, 7
        %v4726 = vsub.s32 %v4617, %v4725
        %v4727 = vrot.slane %v4229, %v4726
        %v4728 = vsel %vm4622, %v4727, %v4723
        %v4729 = vlaneseq
        %v4730 = vshrl.u32 %v4729, 7
        %v4731 = vsub.s32 %v4624, %v4730
        %v4732 = vrot.slane %v4231, %v4731
        %v4733 = vsel %vm4629, %v4732, %v4728
        %v4734 = vlaneseq
        %v4735 = vshrl.u32 %v4734, 7
        %v4736 = vsub.s32 %v4631, %v4735
        %v4737 = vrot.slane %v4233, %v4736
        %v4738 = vsel %vm4636, %v4737, %v4733
        %v4739 = vlaneseq
        %v4740 = vshrl.u32 %v4739, 7
        %v4741 = vsub.s32 %v4638, %v4740
        %v4742 = vrot.slane %v4235, %v4741
        %v4743 = vsel %vm4643, %v4742, %v4738
        %v4744 = vlaneseq
        %v4745 = vshrl.u32 %v4744, 7
        %v4746 = vsub.s32 %v4645, %v4745
        %v4747 = vrot.slane %v4237, %v4746
        %v4748 = vsel %vm4650, %v4747, %v4743
        %v4749 = vlaneseq
        %v4750 = vshrl.u32 %v4749, 7
        %v4751 = vsub.s32 %v4652, %v4750
        %v4752 = vrot.slane %v4239, %v4751
        %v4753 = vsel %vm4657, %v4752, %v4748
        %v4754 = vlaneseq
        %v4755 = vshrl.u32 %v4754, 7
        %v4756 = vsub.s32 %v4659, %v4755
        %v4757 = vrot.slane %v4241, %v4756
        %v4758 = vsel %vm4664, %v4757, %v4753
        %v4759 = vlaneseq
        %v4760 = vshrl.u32 %v4759, 7
        %v4761 = vsub.s32 %v4666, %v4760
        %v4762 = vrot.slane %v4243, %v4761
        %v4763 = vsel %vm4671, %v4762, %v4758
        %v4764 = vlaneseq
        %v4765 = vshrl.u32 %v4764, 7
        %v4766 = vsub.s32 %v4673, %v4765
        %v4767 = vrot.slane %v4245, %v4766
        %v4768 = vsel %vm4678, %v4767, %v4763
        %v4769 = vlaneseq
        %v4770 = vshrl.u32 %v4769, 7
        %v4771 = vsub.s32 %v4680, %v4770
        %v4772 = vrot.slane %v4247, %v4771
        %v4773 = vsel %vm4685, %v4772, %v4768
        %v4774 = vlaneseq
        %v4775 = vshrl.u32 %v4774, 7
        %v4776 = vsub.s32 %v4687, %v4775
        %v4777 = vrot.slane %v4249, %v4776
        %v4778 = vsel %vm4692, %v4777, %v4773
        %v4779 = vlaneseq
        %v4780 = vshrl.u32 %v4779, 7
        %v4781 = vsub.s32 %v4694, %v4780
        %v4782 = vrot.slane %v4251, %v4781
        %v4783 = vsel %vm4699, %v4782, %v4778
        %v4784 = vlaneseq
        %v4785 = vshrl.u32 %v4784, 7
        %v4786 = vsub.s32 %v4701, %v4785
        %v4787 = vrot.slane %v4253, %v4786
        %v4788 = vsel %vm4706, %v4787, %v4783
        %v4789 = vlaneseq
        %v4790 = vshrl.u32 %v4789, 7
        %v4791 = vsub.s32 %v4708, %v4790
        %v4792 = vrot.slane %v4255, %v4791
        %v4793 = vsel %vm4713, %v4792, %v4788
        %v4794 = vlaneseq
        %v4795 = vshrl.u32 %v4794, 7
        %v4796 = vsub.s32 %v4605, %v4795
        %v4797 = vrot.slane %v4257, %v4796
        %v4798 = vlaneseq
        %v4799 = vshrl.u32 %v4798, 7
        %v4800 = vsub.s32 %v4610, %v4799
        %v4801 = vrot.slane %v4259, %v4800
        %v4802 = vsel %vm4615, %v4801, %v4797
        %v4803 = vlaneseq
        %v4804 = vshrl.u32 %v4803, 7
        %v4805 = vsub.s32 %v4617, %v4804
        %v4806 = vrot.slane %v4261, %v4805
        %v4807 = vsel %vm4622, %v4806, %v4802
        %v4808 = vlaneseq
        %v4809 = vshrl.u32 %v4808, 7
        %v4810 = vsub.s32 %v4624, %v4809
        %v4811 = vrot.slane %v4263, %v4810
        %v4812 = vsel %vm4629, %v4811, %v4807
        %v4813 = vlaneseq
        %v4814 = vshrl.u32 %v4813, 7
        %v4815 = vsub.s32 %v4631, %v4814
        %v4816 = vrot.slane %v4265, %v4815
        %v4817 = vsel %vm4636, %v4816, %v4812
        %v4818 = vlaneseq
        %v4819 = vshrl.u32 %v4818, 7
        %v4820 = vsub.s32 %v4638, %v4819
        %v4821 = vrot.slane %v4267, %v4820
        %v4822 = vsel %vm4643, %v4821, %v4817
        %v4823 = vlaneseq
        %v4824 = vshrl.u32 %v4823, 7
        %v4825 = vsub.s32 %v4645, %v4824
        %v4826 = vrot.slane %v4269, %v4825
        %v4827 = vsel %vm4650, %v4826, %v4822
        %v4828 = vlaneseq
        %v4829 = vshrl.u32 %v4828, 7
        %v4830 = vsub.s32 %v4652, %v4829
        %v4831 = vrot.slane %v4271, %v4830
        %v4832 = vsel %vm4657, %v4831, %v4827
        %v4833 = vlaneseq
        %v4834 = vshrl.u32 %v4833, 7
        %v4835 = vsub.s32 %v4659, %v4834
        %v4836 = vrot.slane %v4273, %v4835
        %v4837 = vsel %vm4664, %v4836, %v4832
        %v4838 = vlaneseq
        %v4839 = vshrl.u32 %v4838, 7
        %v4840 = vsub.s32 %v4666, %v4839
        %v4841 = vrot.slane %v4275, %v4840
        %v4842 = vsel %vm4671, %v4841, %v4837
        %v4843 = vlaneseq
        %v4844 = vshrl.u32 %v4843, 7
        %v4845 = vsub.s32 %v4673, %v4844
        %v4846 = vrot.slane %v4277, %v4845
        %v4847 = vsel %vm4678, %v4846, %v4842
        %v4848 = vlaneseq
        %v4849 = vshrl.u32 %v4848, 7
        %v4850 = vsub.s32 %v4680, %v4849
        %v4851 = vrot.slane %v4279, %v4850
        %v4852 = vsel %vm4685, %v4851, %v4847
        %v4853 = vlaneseq
        %v4854 = vshrl.u32 %v4853, 7
        %v4855 = vsub.s32 %v4687, %v4854
        %v4856 = vrot.slane %v4281, %v4855
        %v4857 = vsel %vm4692, %v4856, %v4852
        %v4858 = vlaneseq
        %v4859 = vshrl.u32 %v4858, 7
        %v4860 = vsub.s32 %v4694, %v4859
        %v4861 = vrot.slane %v4283, %v4860
        %v4862 = vsel %vm4699, %v4861, %v4857
        %v4863 = vlaneseq
        %v4864 = vshrl.u32 %v4863, 7
        %v4865 = vsub.s32 %v4701, %v4864
        %v4866 = vrot.slane %v4285, %v4865
        %v4867 = vsel %vm4706, %v4866, %v4862
        %v4868 = vlaneseq
        %v4869 = vshrl.u32 %v4868, 7
        %v4870 = vsub.s32 %v4708, %v4869
        %v4871 = vrot.slane %v4287, %v4870
        %v4872 = vsel %vm4713, %v4871, %v4867
        %v4873 = vlaneseq
        %v4874 = vshrl.u32 %v4873, 7
        %v4875 = vsub.s32 %v4605, %v4874
        %v4876 = vrot.slane %v4289, %v4875
        %v4877 = vlaneseq
        %v4878 = vshrl.u32 %v4877, 7
        %v4879 = vsub.s32 %v4610, %v4878
        %v4880 = vrot.slane %v4291, %v4879
        %v4881 = vsel %vm4615, %v4880, %v4876
        %v4882 = vlaneseq
        %v4883 = vshrl.u32 %v4882, 7
        %v4884 = vsub.s32 %v4617, %v4883
        %v4885 = vrot.slane %v4293, %v4884
        %v4886 = vsel %vm4622, %v4885, %v4881
        %v4887 = vlaneseq
        %v4888 = vshrl.u32 %v4887, 7
        %v4889 = vsub.s32 %v4624, %v4888
        %v4890 = vrot.slane %v4295, %v4889
        %v4891 = vsel %vm4629, %v4890, %v4886
        %v4892 = vlaneseq
        %v4893 = vshrl.u32 %v4892, 7
        %v4894 = vsub.s32 %v4631, %v4893
        %v4895 = vrot.slane %v4297, %v4894
        %v4896 = vsel %vm4636, %v4895, %v4891
        %v4897 = vlaneseq
        %v4898 = vshrl.u32 %v4897, 7
        %v4899 = vsub.s32 %v4638, %v4898
        %v4900 = vrot.slane %v4299, %v4899
        %v4901 = vsel %vm4643, %v4900, %v4896
        %v4902 = vlaneseq
        %v4903 = vshrl.u32 %v4902, 7
        %v4904 = vsub.s32 %v4645, %v4903
        %v4905 = vrot.slane %v4301, %v4904
        %v4906 = vsel %vm4650, %v4905, %v4901
        %v4907 = vlaneseq
        %v4908 = vshrl.u32 %v4907, 7
        %v4909 = vsub.s32 %v4652, %v4908
        %v4910 = vrot.slane %v4303, %v4909
        %v4911 = vsel %vm4657, %v4910, %v4906
        %v4912 = vlaneseq
        %v4913 = vshrl.u32 %v4912, 7
        %v4914 = vsub.s32 %v4659, %v4913
        %v4915 = vrot.slane %v4305, %v4914
        %v4916 = vsel %vm4664, %v4915, %v4911
        %v4917 = vlaneseq
        %v4918 = vshrl.u32 %v4917, 7
        %v4919 = vsub.s32 %v4666, %v4918
        %v4920 = vrot.slane %v4307, %v4919
        %v4921 = vsel %vm4671, %v4920, %v4916
        %v4922 = vlaneseq
        %v4923 = vshrl.u32 %v4922, 7
        %v4924 = vsub.s32 %v4673, %v4923
        %v4925 = vrot.slane %v4309, %v4924
        %v4926 = vsel %vm4678, %v4925, %v4921
        %v4927 = vlaneseq
        %v4928 = vshrl.u32 %v4927, 7
        %v4929 = vsub.s32 %v4680, %v4928
        %v4930 = vrot.slane %v4311, %v4929
        %v4931 = vsel %vm4685, %v4930, %v4926
        %v4932 = vlaneseq
        %v4933 = vshrl.u32 %v4932, 7
        %v4934 = vsub.s32 %v4687, %v4933
        %v4935 = vrot.slane %v4313, %v4934
        %v4936 = vsel %vm4692, %v4935, %v4931
        %v4937 = vlaneseq
        %v4938 = vshrl.u32 %v4937, 7
        %v4939 = vsub.s32 %v4694, %v4938
        %v4940 = vrot.slane %v4315, %v4939
        %v4941 = vsel %vm4699, %v4940, %v4936
        %v4942 = vlaneseq
        %v4943 = vshrl.u32 %v4942, 7
        %v4944 = vsub.s32 %v4701, %v4943
        %v4945 = vrot.slane %v4317, %v4944
        %v4946 = vsel %vm4706, %v4945, %v4941
        %v4947 = vlaneseq
        %v4948 = vshrl.u32 %v4947, 7
        %v4949 = vsub.s32 %v4708, %v4948
        %v4950 = vrot.slane %v4319, %v4949
        %v4951 = vsel %vm4713, %v4950, %v4946
        %v4952 = vlaneseq
        %v4953 = vshrl.u32 %v4952, 7
        %v4954 = vsub.s32 %v4605, %v4953
        %v4955 = vrot.slane %v4321, %v4954
        %v4956 = vlaneseq
        %v4957 = vshrl.u32 %v4956, 7
        %v4958 = vsub.s32 %v4610, %v4957
        %v4959 = vrot.slane %v4323, %v4958
        %v4960 = vsel %vm4615, %v4959, %v4955
        %v4961 = vlaneseq
        %v4962 = vshrl.u32 %v4961, 7
        %v4963 = vsub.s32 %v4617, %v4962
        %v4964 = vrot.slane %v4325, %v4963
        %v4965 = vsel %vm4622, %v4964, %v4960
        %v4966 = vlaneseq
        %v4967 = vshrl.u32 %v4966, 7
        %v4968 = vsub.s32 %v4624, %v4967
        %v4969 = vrot.slane %v4327, %v4968
        %v4970 = vsel %vm4629, %v4969, %v4965
        %v4971 = vlaneseq
        %v4972 = vshrl.u32 %v4971, 7
        %v4973 = vsub.s32 %v4631, %v4972
        %v4974 = vrot.slane %v4329, %v4973
        %v4975 = vsel %vm4636, %v4974, %v4970
        %v4976 = vlaneseq
        %v4977 = vshrl.u32 %v4976, 7
        %v4978 = vsub.s32 %v4638, %v4977
        %v4979 = vrot.slane %v4331, %v4978
        %v4980 = vsel %vm4643, %v4979, %v4975
        %v4981 = vlaneseq
        %v4982 = vshrl.u32 %v4981, 7
        %v4983 = vsub.s32 %v4645, %v4982
        %v4984 = vrot.slane %v4333, %v4983
        %v4985 = vsel %vm4650, %v4984, %v4980
        %v4986 = vlaneseq
        %v4987 = vshrl.u32 %v4986, 7
        %v4988 = vsub.s32 %v4652, %v4987
        %v4989 = vrot.slane %v4335, %v4988
        %v4990 = vsel %vm4657, %v4989, %v4985
        %v4991 = vlaneseq
        %v4992 = vshrl.u32 %v4991, 7
        %v4993 = vsub.s32 %v4659, %v4992
        %v4994 = vrot.slane %v4337, %v4993
        %v4995 = vsel %vm4664, %v4994, %v4990
        %v4996 = vlaneseq
        %v4997 = vshrl.u32 %v4996, 7
        %v4998 = vsub.s32 %v4666, %v4997
        %v4999 = vrot.slane %v4339, %v4998
        %v5000 = vsel %vm4671, %v4999, %v4995
        %v5001 = vlaneseq
        %v5002 = vshrl.u32 %v5001, 7
        %v5003 = vsub.s32 %v4673, %v5002
        %v5004 = vrot.slane %v4341, %v5003
        %v5005 = vsel %vm4678, %v5004, %v5000
        %v5006 = vlaneseq
        %v5007 = vshrl.u32 %v5006, 7
        %v5008 = vsub.s32 %v4680, %v5007
        %v5009 = vrot.slane %v4343, %v5008
        %v5010 = vsel %vm4685, %v5009, %v5005
        %v5011 = vlaneseq
        %v5012 = vshrl.u32 %v5011, 7
        %v5013 = vsub.s32 %v4687, %v5012
        %v5014 = vrot.slane %v4345, %v5013
        %v5015 = vsel %vm4692, %v5014, %v5010
        %v5016 = vlaneseq
        %v5017 = vshrl.u32 %v5016, 7
        %v5018 = vsub.s32 %v4694, %v5017
        %v5019 = vrot.slane %v4347, %v5018
        %v5020 = vsel %vm4699, %v5019, %v5015
        %v5021 = vlaneseq
        %v5022 = vshrl.u32 %v5021, 7
        %v5023 = vsub.s32 %v4701, %v5022
        %v5024 = vrot.slane %v4349, %v5023
        %v5025 = vsel %vm4706, %v5024, %v5020
        %v5026 = vlaneseq
        %v5027 = vshrl.u32 %v5026, 7
        %v5028 = vsub.s32 %v4708, %v5027
        %v5029 = vrot.slane %v4351, %v5028
        %v5030 = vsel %vm4713, %v5029, %v5025
        %v5031 = vlaneseq
        %v5032 = vshrl.u32 %v5031, 7
        %v5033 = vsub.s32 %v4605, %v5032
        %v5034 = vrot.slane %v4353, %v5033
        %v5035 = vlaneseq
        %v5036 = vshrl.u32 %v5035, 7
        %v5037 = vsub.s32 %v4610, %v5036
        %v5038 = vrot.slane %v4355, %v5037
        %v5039 = vsel %vm4615, %v5038, %v5034
        %v5040 = vlaneseq
        %v5041 = vshrl.u32 %v5040, 7
        %v5042 = vsub.s32 %v4617, %v5041
        %v5043 = vrot.slane %v4357, %v5042
        %v5044 = vsel %vm4622, %v5043, %v5039
        %v5045 = vlaneseq
        %v5046 = vshrl.u32 %v5045, 7
        %v5047 = vsub.s32 %v4624, %v5046
        %v5048 = vrot.slane %v4359, %v5047
        %v5049 = vsel %vm4629, %v5048, %v5044
        %v5050 = vlaneseq
        %v5051 = vshrl.u32 %v5050, 7
        %v5052 = vsub.s32 %v4631, %v5051
        %v5053 = vrot.slane %v4361, %v5052
        %v5054 = vsel %vm4636, %v5053, %v5049
        %v5055 = vlaneseq
        %v5056 = vshrl.u32 %v5055, 7
        %v5057 = vsub.s32 %v4638, %v5056
        %v5058 = vrot.slane %v4363, %v5057
        %v5059 = vsel %vm4643, %v5058, %v5054
        %v5060 = vlaneseq
        %v5061 = vshrl.u32 %v5060, 7
        %v5062 = vsub.s32 %v4645, %v5061
        %v5063 = vrot.slane %v4365, %v5062
        %v5064 = vsel %vm4650, %v5063, %v5059
        %v5065 = vlaneseq
        %v5066 = vshrl.u32 %v5065, 7
        %v5067 = vsub.s32 %v4652, %v5066
        %v5068 = vrot.slane %v4367, %v5067
        %v5069 = vsel %vm4657, %v5068, %v5064
        %v5070 = vlaneseq
        %v5071 = vshrl.u32 %v5070, 7
        %v5072 = vsub.s32 %v4659, %v5071
        %v5073 = vrot.slane %v4369, %v5072
        %v5074 = vsel %vm4664, %v5073, %v5069
        %v5075 = vlaneseq
        %v5076 = vshrl.u32 %v5075, 7
        %v5077 = vsub.s32 %v4666, %v5076
        %v5078 = vrot.slane %v4371, %v5077
        %v5079 = vsel %vm4671, %v5078, %v5074
        %v5080 = vlaneseq
        %v5081 = vshrl.u32 %v5080, 7
        %v5082 = vsub.s32 %v4673, %v5081
        %v5083 = vrot.slane %v4373, %v5082
        %v5084 = vsel %vm4678, %v5083, %v5079
        %v5085 = vlaneseq
        %v5086 = vshrl.u32 %v5085, 7
        %v5087 = vsub.s32 %v4680, %v5086
        %v5088 = vrot.slane %v4375, %v5087
        %v5089 = vsel %vm4685, %v5088, %v5084
        %v5090 = vlaneseq
        %v5091 = vshrl.u32 %v5090, 7
        %v5092 = vsub.s32 %v4687, %v5091
        %v5093 = vrot.slane %v4377, %v5092
        %v5094 = vsel %vm4692, %v5093, %v5089
        %v5095 = vlaneseq
        %v5096 = vshrl.u32 %v5095, 7
        %v5097 = vsub.s32 %v4694, %v5096
        %v5098 = vrot.slane %v4379, %v5097
        %v5099 = vsel %vm4699, %v5098, %v5094
        %v5100 = vlaneseq
        %v5101 = vshrl.u32 %v5100, 7
        %v5102 = vsub.s32 %v4701, %v5101
        %v5103 = vrot.slane %v4381, %v5102
        %v5104 = vsel %vm4706, %v5103, %v5099
        %v5105 = vlaneseq
        %v5106 = vshrl.u32 %v5105, 7
        %v5107 = vsub.s32 %v4708, %v5106
        %v5108 = vrot.slane %v4383, %v5107
        %v5109 = vsel %vm4713, %v5108, %v5104
        %v5110 = vlaneseq
        %v5111 = vshrl.u32 %v5110, 7
        %v5112 = vsub.s32 %v4605, %v5111
        %v5113 = vrot.slane %v4385, %v5112
        %v5114 = vlaneseq
        %v5115 = vshrl.u32 %v5114, 7
        %v5116 = vsub.s32 %v4610, %v5115
        %v5117 = vrot.slane %v4387, %v5116
        %v5118 = vsel %vm4615, %v5117, %v5113
        %v5119 = vlaneseq
        %v5120 = vshrl.u32 %v5119, 7
        %v5121 = vsub.s32 %v4617, %v5120
        %v5122 = vrot.slane %v4389, %v5121
        %v5123 = vsel %vm4622, %v5122, %v5118
        %v5124 = vlaneseq
        %v5125 = vshrl.u32 %v5124, 7
        %v5126 = vsub.s32 %v4624, %v5125
        %v5127 = vrot.slane %v4391, %v5126
        %v5128 = vsel %vm4629, %v5127, %v5123
        %v5129 = vlaneseq
        %v5130 = vshrl.u32 %v5129, 7
        %v5131 = vsub.s32 %v4631, %v5130
        %v5132 = vrot.slane %v4393, %v5131
        %v5133 = vsel %vm4636, %v5132, %v5128
        %v5134 = vlaneseq
        %v5135 = vshrl.u32 %v5134, 7
        %v5136 = vsub.s32 %v4638, %v5135
        %v5137 = vrot.slane %v4395, %v5136
        %v5138 = vsel %vm4643, %v5137, %v5133
        %v5139 = vlaneseq
        %v5140 = vshrl.u32 %v5139, 7
        %v5141 = vsub.s32 %v4645, %v5140
        %v5142 = vrot.slane %v4397, %v5141
        %v5143 = vsel %vm4650, %v5142, %v5138
        %v5144 = vlaneseq
        %v5145 = vshrl.u32 %v5144, 7
        %v5146 = vsub.s32 %v4652, %v5145
        %v5147 = vrot.slane %v4399, %v5146
        %v5148 = vsel %vm4657, %v5147, %v5143
        %v5149 = vlaneseq
        %v5150 = vshrl.u32 %v5149, 7
        %v5151 = vsub.s32 %v4659, %v5150
        %v5152 = vrot.slane %v4401, %v5151
        %v5153 = vsel %vm4664, %v5152, %v5148
        %v5154 = vlaneseq
        %v5155 = vshrl.u32 %v5154, 7
        %v5156 = vsub.s32 %v4666, %v5155
        %v5157 = vrot.slane %v4403, %v5156
        %v5158 = vsel %vm4671, %v5157, %v5153
        %v5159 = vlaneseq
        %v5160 = vshrl.u32 %v5159, 7
        %v5161 = vsub.s32 %v4673, %v5160
        %v5162 = vrot.slane %v4405, %v5161
        %v5163 = vsel %vm4678, %v5162, %v5158
        %v5164 = vlaneseq
        %v5165 = vshrl.u32 %v5164, 7
        %v5166 = vsub.s32 %v4680, %v5165
        %v5167 = vrot.slane %v4407, %v5166
        %v5168 = vsel %vm4685, %v5167, %v5163
        %v5169 = vlaneseq
        %v5170 = vshrl.u32 %v5169, 7
        %v5171 = vsub.s32 %v4687, %v5170
        %v5172 = vrot.slane %v4409, %v5171
        %v5173 = vsel %vm4692, %v5172, %v5168
        %v5174 = vlaneseq
        %v5175 = vshrl.u32 %v5174, 7
        %v5176 = vsub.s32 %v4694, %v5175
        %v5177 = vrot.slane %v4411, %v5176
        %v5178 = vsel %vm4699, %v5177, %v5173
        %v5179 = vlaneseq
        %v5180 = vshrl.u32 %v5179, 7
        %v5181 = vsub.s32 %v4701, %v5180
        %v5182 = vrot.slane %v4413, %v5181
        %v5183 = vsel %vm4706, %v5182, %v5178
        %v5184 = vlaneseq
        %v5185 = vshrl.u32 %v5184, 7
        %v5186 = vsub.s32 %v4708, %v5185
        %v5187 = vrot.slane %v4415, %v5186
        %v5188 = vsel %vm4713, %v5187, %v5183
        %v5189 = vlaneseq
        %v5190 = vshrl.u32 %v5189, 7
        %v5191 = vsub.s32 %v4605, %v5190
        %v5192 = vrot.slane %v4417, %v5191
        %v5193 = vlaneseq
        %v5194 = vshrl.u32 %v5193, 7
        %v5195 = vsub.s32 %v4610, %v5194
        %v5196 = vrot.slane %v4419, %v5195
        %v5197 = vsel %vm4615, %v5196, %v5192
        %v5198 = vlaneseq
        %v5199 = vshrl.u32 %v5198, 7
        %v5200 = vsub.s32 %v4617, %v5199
        %v5201 = vrot.slane %v4421, %v5200
        %v5202 = vsel %vm4622, %v5201, %v5197
        %v5203 = vlaneseq
        %v5204 = vshrl.u32 %v5203, 7
        %v5205 = vsub.s32 %v4624, %v5204
        %v5206 = vrot.slane %v4423, %v5205
        %v5207 = vsel %vm4629, %v5206, %v5202
        %v5208 = vlaneseq
        %v5209 = vshrl.u32 %v5208, 7
        %v5210 = vsub.s32 %v4631, %v5209
        %v5211 = vrot.slane %v4425, %v5210
        %v5212 = vsel %vm4636, %v5211, %v5207
        %v5213 = vlaneseq
        %v5214 = vshrl.u32 %v5213, 7
        %v5215 = vsub.s32 %v4638, %v5214
        %v5216 = vrot.slane %v4427, %v5215
        %v5217 = vsel %vm4643, %v5216, %v5212
        %v5218 = vlaneseq
        %v5219 = vshrl.u32 %v5218, 7
        %v5220 = vsub.s32 %v4645, %v5219
        %v5221 = vrot.slane %v4429, %v5220
        %v5222 = vsel %vm4650, %v5221, %v5217
        %v5223 = vlaneseq
        %v5224 = vshrl.u32 %v5223, 7
        %v5225 = vsub.s32 %v4652, %v5224
        %v5226 = vrot.slane %v4431, %v5225
        %v5227 = vsel %vm4657, %v5226, %v5222
        %v5228 = vlaneseq
        %v5229 = vshrl.u32 %v5228, 7
        %v5230 = vsub.s32 %v4659, %v5229
        %v5231 = vrot.slane %v4433, %v5230
        %v5232 = vsel %vm4664, %v5231, %v5227
        %v5233 = vlaneseq
        %v5234 = vshrl.u32 %v5233, 7
        %v5235 = vsub.s32 %v4666, %v5234
        %v5236 = vrot.slane %v4435, %v5235
        %v5237 = vsel %vm4671, %v5236, %v5232
        %v5238 = vlaneseq
        %v5239 = vshrl.u32 %v5238, 7
        %v5240 = vsub.s32 %v4673, %v5239
        %v5241 = vrot.slane %v4437, %v5240
        %v5242 = vsel %vm4678, %v5241, %v5237
        %v5243 = vlaneseq
        %v5244 = vshrl.u32 %v5243, 7
        %v5245 = vsub.s32 %v4680, %v5244
        %v5246 = vrot.slane %v4439, %v5245
        %v5247 = vsel %vm4685, %v5246, %v5242
        %v5248 = vlaneseq
        %v5249 = vshrl.u32 %v5248, 7
        %v5250 = vsub.s32 %v4687, %v5249
        %v5251 = vrot.slane %v4441, %v5250
        %v5252 = vsel %vm4692, %v5251, %v5247
        %v5253 = vlaneseq
        %v5254 = vshrl.u32 %v5253, 7
        %v5255 = vsub.s32 %v4694, %v5254
        %v5256 = vrot.slane %v4443, %v5255
        %v5257 = vsel %vm4699, %v5256, %v5252
        %v5258 = vlaneseq
        %v5259 = vshrl.u32 %v5258, 7
        %v5260 = vsub.s32 %v4701, %v5259
        %v5261 = vrot.slane %v4445, %v5260
        %v5262 = vsel %vm4706, %v5261, %v5257
        %v5263 = vlaneseq
        %v5264 = vshrl.u32 %v5263, 7
        %v5265 = vsub.s32 %v4708, %v5264
        %v5266 = vrot.slane %v4447, %v5265
        %v5267 = vsel %vm4713, %v5266, %v5262
        %vm5268 = vcmask 1041409
        %v5269 = vsel %vm5268, %v4793, %v4714
        %vm5270 = vcmask 1042434
        %v5271 = vsel %vm5270, %v4872, %v5269
        %vm5272 = vcmask 1043459
        %v5273 = vsel %vm5272, %v4951, %v5271
        %vm5274 = vcmask 1044484
        %v5275 = vsel %vm5274, %v5030, %v5273
        %vm5276 = vcmask 1045509
        %v5277 = vsel %vm5276, %v5109, %v5275
        %vm5278 = vcmask 1046534
        %v5279 = vsel %vm5278, %v5188, %v5277
        %vm5280 = vcmask 1047559
        %v5281 = vsel %vm5280, %v5267, %v5279
        %5283 = vmax.xlane.f32.xlu0 %v5281
        %v5284 = vpop.xlane.xlu0 %5283
        %v5286 = vlaneseq
        %v5287 = vshrl.u32 %v5286, 7
        %v5288 = vsub.s32 0, %v5287
        %v5289 = vrot.slane %v5284, %v5288
        %v5290 = vlaneseq
        %v5291 = vshrl.u32 %v5290, 7
        %v5292 = vsub.s32 1, %v5291
        %v5293 = vrot.slane %v5284, %v5292
        %v5294 = vlaneseq
        %v5295 = vshrl.u32 %v5294, 7
        %v5296 = vsub.s32 2, %v5295
        %v5297 = vrot.slane %v5284, %v5296
        %v5298 = vlaneseq
        %v5299 = vshrl.u32 %v5298, 7
        %v5300 = vsub.s32 3, %v5299
        %v5301 = vrot.slane %v5284, %v5300
        %v5302 = vlaneseq
        %v5303 = vshrl.u32 %v5302, 7
        %v5304 = vsub.s32 4, %v5303
        %v5305 = vrot.slane %v5284, %v5304
        %v5306 = vlaneseq
        %v5307 = vshrl.u32 %v5306, 7
        %v5308 = vsub.s32 5, %v5307
        %v5309 = vrot.slane %v5284, %v5308
        %v5310 = vlaneseq
        %v5311 = vshrl.u32 %v5310, 7
        %v5312 = vsub.s32 6, %v5311
        %v5313 = vrot.slane %v5284, %v5312
        %v5314 = vlaneseq
        %v5315 = vshrl.u32 %v5314, 7
        %v5316 = vsub.s32 7, %v5315
        %v5317 = vrot.slane %v5284, %v5316
        %v5326 = vsub.f32 %v4193, %v5289
        %v5327 = vsub.f32 %v4195, %v5289
        %v5328 = vsub.f32 %v4197, %v5289
        %v5329 = vsub.f32 %v4199, %v5289
        %v5330 = vsub.f32 %v4201, %v5289
        %v5331 = vsub.f32 %v4203, %v5289
        %v5332 = vsub.f32 %v4205, %v5289
        %v5333 = vsub.f32 %v4207, %v5289
        %v5334 = vsub.f32 %v4209, %v5289
        %v5335 = vsub.f32 %v4211, %v5289
        %v5336 = vsub.f32 %v4213, %v5289
        %v5337 = vsub.f32 %v4215, %v5289
        %v5338 = vsub.f32 %v4217, %v5289
        %v5339 = vsub.f32 %v4219, %v5289
        %v5340 = vsub.f32 %v4221, %v5289
        %v5341 = vsub.f32 %v4223, %v5289
        %v5342 = vsub.f32 %v4225, %v5293
        %v5343 = vsub.f32 %v4227, %v5293
        %v5344 = vsub.f32 %v4229, %v5293
        %v5345 = vsub.f32 %v4231, %v5293
        %v5346 = vsub.f32 %v4233, %v5293
        %v5347 = vsub.f32 %v4235, %v5293
        %v5348 = vsub.f32 %v4237, %v5293
        %v5349 = vsub.f32 %v4239, %v5293
        %v5350 = vsub.f32 %v4241, %v5293
        %v5351 = vsub.f32 %v4243, %v5293
        %v5352 = vsub.f32 %v4245, %v5293
        %v5353 = vsub.f32 %v4247, %v5293
        %v5354 = vsub.f32 %v4249, %v5293
        %v5355 = vsub.f32 %v4251, %v5293
        %v5356 = vsub.f32 %v4253, %v5293
        %v5357 = vsub.f32 %v4255, %v5293
        %v5358 = vsub.f32 %v4257, %v5297
        %v5359 = vsub.f32 %v4259, %v5297
        %v5360 = vsub.f32 %v4261, %v5297
        %v5361 = vsub.f32 %v4263, %v5297
        %v5362 = vsub.f32 %v4265, %v5297
        %v5363 = vsub.f32 %v4267, %v5297
        %v5364 = vsub.f32 %v4269, %v5297
        %v5365 = vsub.f32 %v4271, %v5297
        %v5366 = vsub.f32 %v4273, %v5297
        %v5367 = vsub.f32 %v4275, %v5297
        %v5368 = vsub.f32 %v4277, %v5297
        %v5369 = vsub.f32 %v4279, %v5297
        %v5370 = vsub.f32 %v4281, %v5297
        %v5371 = vsub.f32 %v4283, %v5297
        %v5372 = vsub.f32 %v4285, %v5297
        %v5373 = vsub.f32 %v4287, %v5297
        %v5374 = vsub.f32 %v4289, %v5301
        %v5375 = vsub.f32 %v4291, %v5301
        %v5376 = vsub.f32 %v4293, %v5301
        %v5377 = vsub.f32 %v4295, %v5301
        %v5378 = vsub.f32 %v4297, %v5301
        %v5379 = vsub.f32 %v4299, %v5301
        %v5380 = vsub.f32 %v4301, %v5301
        %v5381 = vsub.f32 %v4303, %v5301
        %v5382 = vsub.f32 %v4305, %v5301
        %v5383 = vsub.f32 %v4307, %v5301
        %v5384 = vsub.f32 %v4309, %v5301
        %v5385 = vsub.f32 %v4311, %v5301
        %v5386 = vsub.f32 %v4313, %v5301
        %v5387 = vsub.f32 %v4315, %v5301
        %v5388 = vsub.f32 %v4317, %v5301
        %v5389 = vsub.f32 %v4319, %v5301
        %v5390 = vsub.f32 %v4321, %v5305
        %v5391 = vsub.f32 %v4323, %v5305
        %v5392 = vsub.f32 %v4325, %v5305
        %v5393 = vsub.f32 %v4327, %v5305
        %v5394 = vsub.f32 %v4329, %v5305
        %v5395 = vsub.f32 %v4331, %v5305
        %v5396 = vsub.f32 %v4333, %v5305
        %v5397 = vsub.f32 %v4335, %v5305
        %v5398 = vsub.f32 %v4337, %v5305
        %v5399 = vsub.f32 %v4339, %v5305
        %v5400 = vsub.f32 %v4341, %v5305
        %v5401 = vsub.f32 %v4343, %v5305
        %v5402 = vsub.f32 %v4345, %v5305
        %v5403 = vsub.f32 %v4347, %v5305
        %v5404 = vsub.f32 %v4349, %v5305
        %v5405 = vsub.f32 %v4351, %v5305
        %v5406 = vsub.f32 %v4353, %v5309
        %v5407 = vsub.f32 %v4355, %v5309
        %v5408 = vsub.f32 %v4357, %v5309
        %v5409 = vsub.f32 %v4359, %v5309
        %v5410 = vsub.f32 %v4361, %v5309
        %v5411 = vsub.f32 %v4363, %v5309
        %v5412 = vsub.f32 %v4365, %v5309
        %v5413 = vsub.f32 %v4367, %v5309
        %v5414 = vsub.f32 %v4369, %v5309
        %v5415 = vsub.f32 %v4371, %v5309
        %v5416 = vsub.f32 %v4373, %v5309
        %v5417 = vsub.f32 %v4375, %v5309
        %v5418 = vsub.f32 %v4377, %v5309
        %v5419 = vsub.f32 %v4379, %v5309
        %v5420 = vsub.f32 %v4381, %v5309
        %v5421 = vsub.f32 %v4383, %v5309
        %v5422 = vsub.f32 %v4385, %v5313
        %v5423 = vsub.f32 %v4387, %v5313
        %v5424 = vsub.f32 %v4389, %v5313
        %v5425 = vsub.f32 %v4391, %v5313
        %v5426 = vsub.f32 %v4393, %v5313
        %v5427 = vsub.f32 %v4395, %v5313
        %v5428 = vsub.f32 %v4397, %v5313
        %v5429 = vsub.f32 %v4399, %v5313
        %v5430 = vsub.f32 %v4401, %v5313
        %v5431 = vsub.f32 %v4403, %v5313
        %v5432 = vsub.f32 %v4405, %v5313
        %v5433 = vsub.f32 %v4407, %v5313
        %v5434 = vsub.f32 %v4409, %v5313
        %v5435 = vsub.f32 %v4411, %v5313
        %v5436 = vsub.f32 %v4413, %v5313
        %v5437 = vsub.f32 %v4415, %v5313
        %v5438 = vsub.f32 %v4417, %v5317
        %v5439 = vsub.f32 %v4419, %v5317
        %v5440 = vsub.f32 %v4421, %v5317
        %v5441 = vsub.f32 %v4423, %v5317
        %v5442 = vsub.f32 %v4425, %v5317
        %v5443 = vsub.f32 %v4427, %v5317
        %v5444 = vsub.f32 %v4429, %v5317
        %v5445 = vsub.f32 %v4431, %v5317
        %v5446 = vsub.f32 %v4433, %v5317
        %v5447 = vsub.f32 %v4435, %v5317
        %v5448 = vsub.f32 %v4437, %v5317
        %v5449 = vsub.f32 %v4439, %v5317
        %v5450 = vsub.f32 %v4441, %v5317
        %v5451 = vsub.f32 %v4443, %v5317
        %v5452 = vsub.f32 %v4445, %v5317
        %v5453 = vsub.f32 %v4447, %v5317
        %v5454 = vmul.f32 %v5326, 1.442695
        %v5455 = vpow.pop %v5454
        %v5456 = vmul.f32 %v5327, 1.442695
        %v5457 = vpow.pop %v5456
        %v5458 = vmul.f32 %v5328, 1.442695
        %v5459 = vpow.pop %v5458
        %v5460 = vmul.f32 %v5329, 1.442695
        %v5461 = vpow.pop %v5460
        %v5462 = vmul.f32 %v5330, 1.442695
        %v5463 = vpow.pop %v5462
        %v5464 = vmul.f32 %v5331, 1.442695
        %v5465 = vpow.pop %v5464
        %v5466 = vmul.f32 %v5332, 1.442695
        %v5467 = vpow.pop %v5466
        %v5468 = vmul.f32 %v5333, 1.442695
        %v5469 = vpow.pop %v5468
        %v5470 = vmul.f32 %v5334, 1.442695
        %v5471 = vpow.pop %v5470
        %v5472 = vmul.f32 %v5335, 1.442695
        %v5473 = vpow.pop %v5472
        %v5474 = vmul.f32 %v5336, 1.442695
        %v5475 = vpow.pop %v5474
        %v5476 = vmul.f32 %v5337, 1.442695
        %v5477 = vpow.pop %v5476
        %v5478 = vmul.f32 %v5338, 1.442695
        %v5479 = vpow.pop %v5478
        %v5480 = vmul.f32 %v5339, 1.442695
        %v5481 = vpow.pop %v5480
        %v5482 = vmul.f32 %v5340, 1.442695
        %v5483 = vpow.pop %v5482
        %v5484 = vmul.f32 %v5341, 1.442695
        %v5485 = vpow.pop %v5484
        %v5486 = vmul.f32 %v5342, 1.442695
        %v5487 = vpow.pop %v5486
        %v5488 = vmul.f32 %v5343, 1.442695
        %v5489 = vpow.pop %v5488
        %v5490 = vmul.f32 %v5344, 1.442695
        %v5491 = vpow.pop %v5490
        %v5492 = vmul.f32 %v5345, 1.442695
        %v5493 = vpow.pop %v5492
        %v5494 = vmul.f32 %v5346, 1.442695
        %v5495 = vpow.pop %v5494
        %v5496 = vmul.f32 %v5347, 1.442695
        %v5497 = vpow.pop %v5496
        %v5498 = vmul.f32 %v5348, 1.442695
        %v5499 = vpow.pop %v5498
        %v5500 = vmul.f32 %v5349, 1.442695
        %v5501 = vpow.pop %v5500
        %v5502 = vmul.f32 %v5350, 1.442695
        %v5503 = vpow.pop %v5502
        %v5504 = vmul.f32 %v5351, 1.442695
        %v5505 = vpow.pop %v5504
        %v5506 = vmul.f32 %v5352, 1.442695
        %v5507 = vpow.pop %v5506
        %v5508 = vmul.f32 %v5353, 1.442695
        %v5509 = vpow.pop %v5508
        %v5510 = vmul.f32 %v5354, 1.442695
        %v5511 = vpow.pop %v5510
        %v5512 = vmul.f32 %v5355, 1.442695
        %v5513 = vpow.pop %v5512
        %v5514 = vmul.f32 %v5356, 1.442695
        %v5515 = vpow.pop %v5514
        %v5516 = vmul.f32 %v5357, 1.442695
        %v5517 = vpow.pop %v5516
        %v5518 = vmul.f32 %v5358, 1.442695
        %v5519 = vpow.pop %v5518
        %v5520 = vmul.f32 %v5359, 1.442695
        %v5521 = vpow.pop %v5520
        %v5522 = vmul.f32 %v5360, 1.442695
        %v5523 = vpow.pop %v5522
        %v5524 = vmul.f32 %v5361, 1.442695
        %v5525 = vpow.pop %v5524
        %v5526 = vmul.f32 %v5362, 1.442695
        %v5527 = vpow.pop %v5526
        %v5528 = vmul.f32 %v5363, 1.442695
        %v5529 = vpow.pop %v5528
        %v5530 = vmul.f32 %v5364, 1.442695
        %v5531 = vpow.pop %v5530
        %v5532 = vmul.f32 %v5365, 1.442695
        %v5533 = vpow.pop %v5532
        %v5534 = vmul.f32 %v5366, 1.442695
        %v5535 = vpow.pop %v5534
        %v5536 = vmul.f32 %v5367, 1.442695
        %v5537 = vpow.pop %v5536
        %v5538 = vmul.f32 %v5368, 1.442695
        %v5539 = vpow.pop %v5538
        %v5540 = vmul.f32 %v5369, 1.442695
        %v5541 = vpow.pop %v5540
        %v5542 = vmul.f32 %v5370, 1.442695
        %v5543 = vpow.pop %v5542
        %v5544 = vmul.f32 %v5371, 1.442695
        %v5545 = vpow.pop %v5544
        %v5546 = vmul.f32 %v5372, 1.442695
        %v5547 = vpow.pop %v5546
        %v5548 = vmul.f32 %v5373, 1.442695
        %v5549 = vpow.pop %v5548
        %v5550 = vmul.f32 %v5374, 1.442695
        %v5551 = vpow.pop %v5550
        %v5552 = vmul.f32 %v5375, 1.442695
        %v5553 = vpow.pop %v5552
        %v5554 = vmul.f32 %v5376, 1.442695
        %v5555 = vpow.pop %v5554
        %v5556 = vmul.f32 %v5377, 1.442695
        %v5557 = vpow.pop %v5556
        %v5558 = vmul.f32 %v5378, 1.442695
        %v5559 = vpow.pop %v5558
        %v5560 = vmul.f32 %v5379, 1.442695
        %v5561 = vpow.pop %v5560
        %v5562 = vmul.f32 %v5380, 1.442695
        %v5563 = vpow.pop %v5562
        %v5564 = vmul.f32 %v5381, 1.442695
        %v5565 = vpow.pop %v5564
        %v5566 = vmul.f32 %v5382, 1.442695
        %v5567 = vpow.pop %v5566
        %v5568 = vmul.f32 %v5383, 1.442695
        %v5569 = vpow.pop %v5568
        %v5570 = vmul.f32 %v5384, 1.442695
        %v5571 = vpow.pop %v5570
        %v5572 = vmul.f32 %v5385, 1.442695
        %v5573 = vpow.pop %v5572
        %v5574 = vmul.f32 %v5386, 1.442695
        %v5575 = vpow.pop %v5574
        %v5576 = vmul.f32 %v5387, 1.442695
        %v5577 = vpow.pop %v5576
        %v5578 = vmul.f32 %v5388, 1.442695
        %v5579 = vpow.pop %v5578
        %v5580 = vmul.f32 %v5389, 1.442695
        %v5581 = vpow.pop %v5580
        %v5582 = vmul.f32 %v5390, 1.442695
        %v5583 = vpow.pop %v5582
        %v5584 = vmul.f32 %v5391, 1.442695
        %v5585 = vpow.pop %v5584
        %v5586 = vmul.f32 %v5392, 1.442695
        %v5587 = vpow.pop %v5586
        %v5588 = vmul.f32 %v5393, 1.442695
        %v5589 = vpow.pop %v5588
        %v5590 = vmul.f32 %v5394, 1.442695
        %v5591 = vpow.pop %v5590
        %v5592 = vmul.f32 %v5395, 1.442695
        %v5593 = vpow.pop %v5592
        %v5594 = vmul.f32 %v5396, 1.442695
        %v5595 = vpow.pop %v5594
        %v5596 = vmul.f32 %v5397, 1.442695
        %v5597 = vpow.pop %v5596
        %v5598 = vmul.f32 %v5398, 1.442695
        %v5599 = vpow.pop %v5598
        %v5600 = vmul.f32 %v5399, 1.442695
        %v5601 = vpow.pop %v5600
        %v5602 = vmul.f32 %v5400, 1.442695
        %v5603 = vpow.pop %v5602
        %v5604 = vmul.f32 %v5401, 1.442695
        %v5605 = vpow.pop %v5604
        %v5606 = vmul.f32 %v5402, 1.442695
        %v5607 = vpow.pop %v5606
        %v5608 = vmul.f32 %v5403, 1.442695
        %v5609 = vpow.pop %v5608
        %v5610 = vmul.f32 %v5404, 1.442695
        %v5611 = vpow.pop %v5610
        %v5612 = vmul.f32 %v5405, 1.442695
        %v5613 = vpow.pop %v5612
        %v5614 = vmul.f32 %v5406, 1.442695
        %v5615 = vpow.pop %v5614
        %v5616 = vmul.f32 %v5407, 1.442695
        %v5617 = vpow.pop %v5616
        %v5618 = vmul.f32 %v5408, 1.442695
        %v5619 = vpow.pop %v5618
        %v5620 = vmul.f32 %v5409, 1.442695
        %v5621 = vpow.pop %v5620
        %v5622 = vmul.f32 %v5410, 1.442695
        %v5623 = vpow.pop %v5622
        %v5624 = vmul.f32 %v5411, 1.442695
        %v5625 = vpow.pop %v5624
        %v5626 = vmul.f32 %v5412, 1.442695
        %v5627 = vpow.pop %v5626
        %v5628 = vmul.f32 %v5413, 1.442695
        %v5629 = vpow.pop %v5628
        %v5630 = vmul.f32 %v5414, 1.442695
        %v5631 = vpow.pop %v5630
        %v5632 = vmul.f32 %v5415, 1.442695
        %v5633 = vpow.pop %v5632
        %v5634 = vmul.f32 %v5416, 1.442695
        %v5635 = vpow.pop %v5634
        %v5636 = vmul.f32 %v5417, 1.442695
        %v5637 = vpow.pop %v5636
        %v5638 = vmul.f32 %v5418, 1.442695
        %v5639 = vpow.pop %v5638
        %v5640 = vmul.f32 %v5419, 1.442695
        %v5641 = vpow.pop %v5640
        %v5642 = vmul.f32 %v5420, 1.442695
        %v5643 = vpow.pop %v5642
        %v5644 = vmul.f32 %v5421, 1.442695
        %v5645 = vpow.pop %v5644
        %v5646 = vmul.f32 %v5422, 1.442695
        %v5647 = vpow.pop %v5646
        %v5648 = vmul.f32 %v5423, 1.442695
        %v5649 = vpow.pop %v5648
        %v5650 = vmul.f32 %v5424, 1.442695
        %v5651 = vpow.pop %v5650
        %v5652 = vmul.f32 %v5425, 1.442695
        %v5653 = vpow.pop %v5652
        %v5654 = vmul.f32 %v5426, 1.442695
        %v5655 = vpow.pop %v5654
        %v5656 = vmul.f32 %v5427, 1.442695
        %v5657 = vpow.pop %v5656
        %v5658 = vmul.f32 %v5428, 1.442695
        %v5659 = vpow.pop %v5658
        %v5660 = vmul.f32 %v5429, 1.442695
        %v5661 = vpow.pop %v5660
        %v5662 = vmul.f32 %v5430, 1.442695
        %v5663 = vpow.pop %v5662
        %v5664 = vmul.f32 %v5431, 1.442695
        %v5665 = vpow.pop %v5664
        %v5666 = vmul.f32 %v5432, 1.442695
        %v5667 = vpow.pop %v5666
        %v5668 = vmul.f32 %v5433, 1.442695
        %v5669 = vpow.pop %v5668
        %v5670 = vmul.f32 %v5434, 1.442695
        %v5671 = vpow.pop %v5670
        %v5672 = vmul.f32 %v5435, 1.442695
        %v5673 = vpow.pop %v5672
        %v5674 = vmul.f32 %v5436, 1.442695
        %v5675 = vpow.pop %v5674
        %v5676 = vmul.f32 %v5437, 1.442695
        %v5677 = vpow.pop %v5676
        %v5678 = vmul.f32 %v5438, 1.442695
        %v5679 = vpow.pop %v5678
        %v5680 = vmul.f32 %v5439, 1.442695
        %v5681 = vpow.pop %v5680
        %v5682 = vmul.f32 %v5440, 1.442695
        %v5683 = vpow.pop %v5682
        %v5684 = vmul.f32 %v5441, 1.442695
        %v5685 = vpow.pop %v5684
        %v5686 = vmul.f32 %v5442, 1.442695
        %v5687 = vpow.pop %v5686
        %v5688 = vmul.f32 %v5443, 1.442695
        %v5689 = vpow.pop %v5688
        %v5690 = vmul.f32 %v5444, 1.442695
        %v5691 = vpow.pop %v5690
        %v5692 = vmul.f32 %v5445, 1.442695
        %v5693 = vpow.pop %v5692
        %v5694 = vmul.f32 %v5446, 1.442695
        %v5695 = vpow.pop %v5694
        %v5696 = vmul.f32 %v5447, 1.442695
        %v5697 = vpow.pop %v5696
        %v5698 = vmul.f32 %v5448, 1.442695
        %v5699 = vpow.pop %v5698
        %v5700 = vmul.f32 %v5449, 1.442695
        %v5701 = vpow.pop %v5700
        %v5702 = vmul.f32 %v5450, 1.442695
        %v5703 = vpow.pop %v5702
        %v5704 = vmul.f32 %v5451, 1.442695
        %v5705 = vpow.pop %v5704
        %v5706 = vmul.f32 %v5452, 1.442695
        %v5707 = vpow.pop %v5706
        %v5708 = vmul.f32 %v5453, 1.442695
        %v5709 = vpow.pop %v5708
        %5838 = vset.pattern.permute.xlu0 0
        %5839 = vperm.xlu0 %5838, %v5455
        %v5840 = vpop.permute.xlu0 %5839
        %5841 = vset.pattern.permute.xlu0 0
        %5842 = vperm.xlu0 %5841, %v5457
        %v5843 = vpop.permute.xlu0 %5842
        %5844 = vset.pattern.permute.xlu0 0
        %5845 = vperm.xlu0 %5844, %v5459
        %v5846 = vpop.permute.xlu0 %5845
        %5847 = vset.pattern.permute.xlu0 0
        %5848 = vperm.xlu0 %5847, %v5461
        %v5849 = vpop.permute.xlu0 %5848
        %5850 = vset.pattern.permute.xlu0 0
        %5851 = vperm.xlu0 %5850, %v5463
        %v5852 = vpop.permute.xlu0 %5851
        %5853 = vset.pattern.permute.xlu0 0
        %5854 = vperm.xlu0 %5853, %v5465
        %v5855 = vpop.permute.xlu0 %5854
        %5856 = vset.pattern.permute.xlu0 0
        %5857 = vperm.xlu0 %5856, %v5467
        %v5858 = vpop.permute.xlu0 %5857
        %5859 = vset.pattern.permute.xlu0 0
        %5860 = vperm.xlu0 %5859, %v5469
        %v5861 = vpop.permute.xlu0 %5860
        %5862 = vset.pattern.permute.xlu0 0
        %5863 = vperm.xlu0 %5862, %v5471
        %v5864 = vpop.permute.xlu0 %5863
        %5865 = vset.pattern.permute.xlu0 0
        %5866 = vperm.xlu0 %5865, %v5473
        %v5867 = vpop.permute.xlu0 %5866
        %5868 = vset.pattern.permute.xlu0 0
        %5869 = vperm.xlu0 %5868, %v5475
        %v5870 = vpop.permute.xlu0 %5869
        %5871 = vset.pattern.permute.xlu0 0
        %5872 = vperm.xlu0 %5871, %v5477
        %v5873 = vpop.permute.xlu0 %5872
        %5874 = vset.pattern.permute.xlu0 0
        %5875 = vperm.xlu0 %5874, %v5479
        %v5876 = vpop.permute.xlu0 %5875
        %5877 = vset.pattern.permute.xlu0 0
        %5878 = vperm.xlu0 %5877, %v5481
        %v5879 = vpop.permute.xlu0 %5878
        %5880 = vset.pattern.permute.xlu0 0
        %5881 = vperm.xlu0 %5880, %v5483
        %v5882 = vpop.permute.xlu0 %5881
        %5883 = vset.pattern.permute.xlu0 0
        %5884 = vperm.xlu0 %5883, %v5485
        %v5885 = vpop.permute.xlu0 %5884
        %5886 = vset.pattern.permute.xlu0 0
        %5887 = vperm.xlu0 %5886, %v5487
        %v5888 = vpop.permute.xlu0 %5887
        %5889 = vset.pattern.permute.xlu0 0
        %5890 = vperm.xlu0 %5889, %v5489
        %v5891 = vpop.permute.xlu0 %5890
        %5892 = vset.pattern.permute.xlu0 0
        %5893 = vperm.xlu0 %5892, %v5491
        %v5894 = vpop.permute.xlu0 %5893
        %5895 = vset.pattern.permute.xlu0 0
        %5896 = vperm.xlu0 %5895, %v5493
        %v5897 = vpop.permute.xlu0 %5896
        %5898 = vset.pattern.permute.xlu0 0
        %5899 = vperm.xlu0 %5898, %v5495
        %v5900 = vpop.permute.xlu0 %5899
        %5901 = vset.pattern.permute.xlu0 0
        %5902 = vperm.xlu0 %5901, %v5497
        %v5903 = vpop.permute.xlu0 %5902
        %5904 = vset.pattern.permute.xlu0 0
        %5905 = vperm.xlu0 %5904, %v5499
        %v5906 = vpop.permute.xlu0 %5905
        %5907 = vset.pattern.permute.xlu0 0
        %5908 = vperm.xlu0 %5907, %v5501
        %v5909 = vpop.permute.xlu0 %5908
        %5910 = vset.pattern.permute.xlu0 0
        %5911 = vperm.xlu0 %5910, %v5503
        %v5912 = vpop.permute.xlu0 %5911
        %5913 = vset.pattern.permute.xlu0 0
        %5914 = vperm.xlu0 %5913, %v5505
        %v5915 = vpop.permute.xlu0 %5914
        %5916 = vset.pattern.permute.xlu0 0
        %5917 = vperm.xlu0 %5916, %v5507
        %v5918 = vpop.permute.xlu0 %5917
        %5919 = vset.pattern.permute.xlu0 0
        %5920 = vperm.xlu0 %5919, %v5509
        %v5921 = vpop.permute.xlu0 %5920
        %5922 = vset.pattern.permute.xlu0 0
        %5923 = vperm.xlu0 %5922, %v5511
        %v5924 = vpop.permute.xlu0 %5923
        %5925 = vset.pattern.permute.xlu0 0
        %5926 = vperm.xlu0 %5925, %v5513
        %v5927 = vpop.permute.xlu0 %5926
        %5928 = vset.pattern.permute.xlu0 0
        %5929 = vperm.xlu0 %5928, %v5515
        %v5930 = vpop.permute.xlu0 %5929
        %5931 = vset.pattern.permute.xlu0 0
        %5932 = vperm.xlu0 %5931, %v5517
        %v5933 = vpop.permute.xlu0 %5932
        %5934 = vset.pattern.permute.xlu0 0
        %5935 = vperm.xlu0 %5934, %v5519
        %v5936 = vpop.permute.xlu0 %5935
        %5937 = vset.pattern.permute.xlu0 0
        %5938 = vperm.xlu0 %5937, %v5521
        %v5939 = vpop.permute.xlu0 %5938
        %5940 = vset.pattern.permute.xlu0 0
        %5941 = vperm.xlu0 %5940, %v5523
        %v5942 = vpop.permute.xlu0 %5941
        %5943 = vset.pattern.permute.xlu0 0
        %5944 = vperm.xlu0 %5943, %v5525
        %v5945 = vpop.permute.xlu0 %5944
        %5946 = vset.pattern.permute.xlu0 0
        %5947 = vperm.xlu0 %5946, %v5527
        %v5948 = vpop.permute.xlu0 %5947
        %5949 = vset.pattern.permute.xlu0 0
        %5950 = vperm.xlu0 %5949, %v5529
        %v5951 = vpop.permute.xlu0 %5950
        %5952 = vset.pattern.permute.xlu0 0
        %5953 = vperm.xlu0 %5952, %v5531
        %v5954 = vpop.permute.xlu0 %5953
        %5955 = vset.pattern.permute.xlu0 0
        %5956 = vperm.xlu0 %5955, %v5533
        %v5957 = vpop.permute.xlu0 %5956
        %5958 = vset.pattern.permute.xlu0 0
        %5959 = vperm.xlu0 %5958, %v5535
        %v5960 = vpop.permute.xlu0 %5959
        %5961 = vset.pattern.permute.xlu0 0
        %5962 = vperm.xlu0 %5961, %v5537
        %v5963 = vpop.permute.xlu0 %5962
        %5964 = vset.pattern.permute.xlu0 0
        %5965 = vperm.xlu0 %5964, %v5539
        %v5966 = vpop.permute.xlu0 %5965
        %5967 = vset.pattern.permute.xlu0 0
        %5968 = vperm.xlu0 %5967, %v5541
        %v5969 = vpop.permute.xlu0 %5968
        %5970 = vset.pattern.permute.xlu0 0
        %5971 = vperm.xlu0 %5970, %v5543
        %v5972 = vpop.permute.xlu0 %5971
        %5973 = vset.pattern.permute.xlu0 0
        %5974 = vperm.xlu0 %5973, %v5545
        %v5975 = vpop.permute.xlu0 %5974
        %5976 = vset.pattern.permute.xlu0 0
        %5977 = vperm.xlu0 %5976, %v5547
        %v5978 = vpop.permute.xlu0 %5977
        %5979 = vset.pattern.permute.xlu0 0
        %5980 = vperm.xlu0 %5979, %v5549
        %v5981 = vpop.permute.xlu0 %5980
        %5982 = vset.pattern.permute.xlu0 0
        %5983 = vperm.xlu0 %5982, %v5551
        %v5984 = vpop.permute.xlu0 %5983
        %5985 = vset.pattern.permute.xlu0 0
        %5986 = vperm.xlu0 %5985, %v5553
        %v5987 = vpop.permute.xlu0 %5986
        %5988 = vset.pattern.permute.xlu0 0
        %5989 = vperm.xlu0 %5988, %v5555
        %v5990 = vpop.permute.xlu0 %5989
        %5991 = vset.pattern.permute.xlu0 0
        %5992 = vperm.xlu0 %5991, %v5557
        %v5993 = vpop.permute.xlu0 %5992
        %5994 = vset.pattern.permute.xlu0 0
        %5995 = vperm.xlu0 %5994, %v5559
        %v5996 = vpop.permute.xlu0 %5995
        %5997 = vset.pattern.permute.xlu0 0
        %5998 = vperm.xlu0 %5997, %v5561
        %v5999 = vpop.permute.xlu0 %5998
        %6000 = vset.pattern.permute.xlu0 0
        %6001 = vperm.xlu0 %6000, %v5563
        %v6002 = vpop.permute.xlu0 %6001
        %6003 = vset.pattern.permute.xlu0 0
        %6004 = vperm.xlu0 %6003, %v5565
        %v6005 = vpop.permute.xlu0 %6004
        %6006 = vset.pattern.permute.xlu0 0
        %6007 = vperm.xlu0 %6006, %v5567
        %v6008 = vpop.permute.xlu0 %6007
        %6009 = vset.pattern.permute.xlu0 0
        %6010 = vperm.xlu0 %6009, %v5569
        %v6011 = vpop.permute.xlu0 %6010
        %6012 = vset.pattern.permute.xlu0 0
        %6013 = vperm.xlu0 %6012, %v5571
        %v6014 = vpop.permute.xlu0 %6013
        %6015 = vset.pattern.permute.xlu0 0
        %6016 = vperm.xlu0 %6015, %v5573
        %v6017 = vpop.permute.xlu0 %6016
        %6018 = vset.pattern.permute.xlu0 0
        %6019 = vperm.xlu0 %6018, %v5575
        %v6020 = vpop.permute.xlu0 %6019
        %6021 = vset.pattern.permute.xlu0 0
        %6022 = vperm.xlu0 %6021, %v5577
        %v6023 = vpop.permute.xlu0 %6022
        %6024 = vset.pattern.permute.xlu0 0
        %6025 = vperm.xlu0 %6024, %v5579
        %v6026 = vpop.permute.xlu0 %6025
        %6027 = vset.pattern.permute.xlu0 0
        %6028 = vperm.xlu0 %6027, %v5581
        %v6029 = vpop.permute.xlu0 %6028
        %6030 = vset.pattern.permute.xlu0 0
        %6031 = vperm.xlu0 %6030, %v5583
        %v6032 = vpop.permute.xlu0 %6031
        %6033 = vset.pattern.permute.xlu0 0
        %6034 = vperm.xlu0 %6033, %v5585
        %v6035 = vpop.permute.xlu0 %6034
        %6036 = vset.pattern.permute.xlu0 0
        %6037 = vperm.xlu0 %6036, %v5587
        %v6038 = vpop.permute.xlu0 %6037
        %6039 = vset.pattern.permute.xlu0 0
        %6040 = vperm.xlu0 %6039, %v5589
        %v6041 = vpop.permute.xlu0 %6040
        %6042 = vset.pattern.permute.xlu0 0
        %6043 = vperm.xlu0 %6042, %v5591
        %v6044 = vpop.permute.xlu0 %6043
        %6045 = vset.pattern.permute.xlu0 0
        %6046 = vperm.xlu0 %6045, %v5593
        %v6047 = vpop.permute.xlu0 %6046
        %6048 = vset.pattern.permute.xlu0 0
        %6049 = vperm.xlu0 %6048, %v5595
        %v6050 = vpop.permute.xlu0 %6049
        %6051 = vset.pattern.permute.xlu0 0
        %6052 = vperm.xlu0 %6051, %v5597
        %v6053 = vpop.permute.xlu0 %6052
        %6054 = vset.pattern.permute.xlu0 0
        %6055 = vperm.xlu0 %6054, %v5599
        %v6056 = vpop.permute.xlu0 %6055
        %6057 = vset.pattern.permute.xlu0 0
        %6058 = vperm.xlu0 %6057, %v5601
        %v6059 = vpop.permute.xlu0 %6058
        %6060 = vset.pattern.permute.xlu0 0
        %6061 = vperm.xlu0 %6060, %v5603
        %v6062 = vpop.permute.xlu0 %6061
        %6063 = vset.pattern.permute.xlu0 0
        %6064 = vperm.xlu0 %6063, %v5605
        %v6065 = vpop.permute.xlu0 %6064
        %6066 = vset.pattern.permute.xlu0 0
        %6067 = vperm.xlu0 %6066, %v5607
        %v6068 = vpop.permute.xlu0 %6067
        %6069 = vset.pattern.permute.xlu0 0
        %6070 = vperm.xlu0 %6069, %v5609
        %v6071 = vpop.permute.xlu0 %6070
        %6072 = vset.pattern.permute.xlu0 0
        %6073 = vperm.xlu0 %6072, %v5611
        %v6074 = vpop.permute.xlu0 %6073
        %6075 = vset.pattern.permute.xlu0 0
        %6076 = vperm.xlu0 %6075, %v5613
        %v6077 = vpop.permute.xlu0 %6076
        %6078 = vset.pattern.permute.xlu0 0
        %6079 = vperm.xlu0 %6078, %v5615
        %v6080 = vpop.permute.xlu0 %6079
        %6081 = vset.pattern.permute.xlu0 0
        %6082 = vperm.xlu0 %6081, %v5617
        %v6083 = vpop.permute.xlu0 %6082
        %6084 = vset.pattern.permute.xlu0 0
        %6085 = vperm.xlu0 %6084, %v5619
        %v6086 = vpop.permute.xlu0 %6085
        %6087 = vset.pattern.permute.xlu0 0
        %6088 = vperm.xlu0 %6087, %v5621
        %v6089 = vpop.permute.xlu0 %6088
        %6090 = vset.pattern.permute.xlu0 0
        %6091 = vperm.xlu0 %6090, %v5623
        %v6092 = vpop.permute.xlu0 %6091
        %6093 = vset.pattern.permute.xlu0 0
        %6094 = vperm.xlu0 %6093, %v5625
        %v6095 = vpop.permute.xlu0 %6094
        %6096 = vset.pattern.permute.xlu0 0
        %6097 = vperm.xlu0 %6096, %v5627
        %v6098 = vpop.permute.xlu0 %6097
        %6099 = vset.pattern.permute.xlu0 0
        %6100 = vperm.xlu0 %6099, %v5629
        %v6101 = vpop.permute.xlu0 %6100
        %6102 = vset.pattern.permute.xlu0 0
        %6103 = vperm.xlu0 %6102, %v5631
        %v6104 = vpop.permute.xlu0 %6103
        %6105 = vset.pattern.permute.xlu0 0
        %6106 = vperm.xlu0 %6105, %v5633
        %v6107 = vpop.permute.xlu0 %6106
        %6108 = vset.pattern.permute.xlu0 0
        %6109 = vperm.xlu0 %6108, %v5635
        %v6110 = vpop.permute.xlu0 %6109
        %6111 = vset.pattern.permute.xlu0 0
        %6112 = vperm.xlu0 %6111, %v5637
        %v6113 = vpop.permute.xlu0 %6112
        %6114 = vset.pattern.permute.xlu0 0
        %6115 = vperm.xlu0 %6114, %v5639
        %v6116 = vpop.permute.xlu0 %6115
        %6117 = vset.pattern.permute.xlu0 0
        %6118 = vperm.xlu0 %6117, %v5641
        %v6119 = vpop.permute.xlu0 %6118
        %6120 = vset.pattern.permute.xlu0 0
        %6121 = vperm.xlu0 %6120, %v5643
        %v6122 = vpop.permute.xlu0 %6121
        %6123 = vset.pattern.permute.xlu0 0
        %6124 = vperm.xlu0 %6123, %v5645
        %v6125 = vpop.permute.xlu0 %6124
        %6126 = vset.pattern.permute.xlu0 0
        %6127 = vperm.xlu0 %6126, %v5647
        %v6128 = vpop.permute.xlu0 %6127
        %6129 = vset.pattern.permute.xlu0 0
        %6130 = vperm.xlu0 %6129, %v5649
        %v6131 = vpop.permute.xlu0 %6130
        %6132 = vset.pattern.permute.xlu0 0
        %6133 = vperm.xlu0 %6132, %v5651
        %v6134 = vpop.permute.xlu0 %6133
        %6135 = vset.pattern.permute.xlu0 0
        %6136 = vperm.xlu0 %6135, %v5653
        %v6137 = vpop.permute.xlu0 %6136
        %6138 = vset.pattern.permute.xlu0 0
        %6139 = vperm.xlu0 %6138, %v5655
        %v6140 = vpop.permute.xlu0 %6139
        %6141 = vset.pattern.permute.xlu0 0
        %6142 = vperm.xlu0 %6141, %v5657
        %v6143 = vpop.permute.xlu0 %6142
        %6144 = vset.pattern.permute.xlu0 0
        %6145 = vperm.xlu0 %6144, %v5659
        %v6146 = vpop.permute.xlu0 %6145
        %6147 = vset.pattern.permute.xlu0 0
        %6148 = vperm.xlu0 %6147, %v5661
        %v6149 = vpop.permute.xlu0 %6148
        %6150 = vset.pattern.permute.xlu0 0
        %6151 = vperm.xlu0 %6150, %v5663
        %v6152 = vpop.permute.xlu0 %6151
        %6153 = vset.pattern.permute.xlu0 0
        %6154 = vperm.xlu0 %6153, %v5665
        %v6155 = vpop.permute.xlu0 %6154
        %6156 = vset.pattern.permute.xlu0 0
        %6157 = vperm.xlu0 %6156, %v5667
        %v6158 = vpop.permute.xlu0 %6157
        %6159 = vset.pattern.permute.xlu0 0
        %6160 = vperm.xlu0 %6159, %v5669
        %v6161 = vpop.permute.xlu0 %6160
        %6162 = vset.pattern.permute.xlu0 0
        %6163 = vperm.xlu0 %6162, %v5671
        %v6164 = vpop.permute.xlu0 %6163
        %6165 = vset.pattern.permute.xlu0 0
        %6166 = vperm.xlu0 %6165, %v5673
        %v6167 = vpop.permute.xlu0 %6166
        %6168 = vset.pattern.permute.xlu0 0
        %6169 = vperm.xlu0 %6168, %v5675
        %v6170 = vpop.permute.xlu0 %6169
        %6171 = vset.pattern.permute.xlu0 0
        %6172 = vperm.xlu0 %6171, %v5677
        %v6173 = vpop.permute.xlu0 %6172
        %6174 = vset.pattern.permute.xlu0 0
        %6175 = vperm.xlu0 %6174, %v5679
        %v6176 = vpop.permute.xlu0 %6175
        %6177 = vset.pattern.permute.xlu0 0
        %6178 = vperm.xlu0 %6177, %v5681
        %v6179 = vpop.permute.xlu0 %6178
        %6180 = vset.pattern.permute.xlu0 0
        %6181 = vperm.xlu0 %6180, %v5683
        %v6182 = vpop.permute.xlu0 %6181
        %6183 = vset.pattern.permute.xlu0 0
        %6184 = vperm.xlu0 %6183, %v5685
        %v6185 = vpop.permute.xlu0 %6184
        %6186 = vset.pattern.permute.xlu0 0
        %6187 = vperm.xlu0 %6186, %v5687
        %v6188 = vpop.permute.xlu0 %6187
        %6189 = vset.pattern.permute.xlu0 0
        %6190 = vperm.xlu0 %6189, %v5689
        %v6191 = vpop.permute.xlu0 %6190
        %6192 = vset.pattern.permute.xlu0 0
        %6193 = vperm.xlu0 %6192, %v5691
        %v6194 = vpop.permute.xlu0 %6193
        %6195 = vset.pattern.permute.xlu0 0
        %6196 = vperm.xlu0 %6195, %v5693
        %v6197 = vpop.permute.xlu0 %6196
        %6198 = vset.pattern.permute.xlu0 0
        %6199 = vperm.xlu0 %6198, %v5695
        %v6200 = vpop.permute.xlu0 %6199
        %6201 = vset.pattern.permute.xlu0 0
        %6202 = vperm.xlu0 %6201, %v5697
        %v6203 = vpop.permute.xlu0 %6202
        %6204 = vset.pattern.permute.xlu0 0
        %6205 = vperm.xlu0 %6204, %v5699
        %v6206 = vpop.permute.xlu0 %6205
        %6207 = vset.pattern.permute.xlu0 0
        %6208 = vperm.xlu0 %6207, %v5701
        %v6209 = vpop.permute.xlu0 %6208
        %6210 = vset.pattern.permute.xlu0 0
        %6211 = vperm.xlu0 %6210, %v5703
        %v6212 = vpop.permute.xlu0 %6211
        %6213 = vset.pattern.permute.xlu0 0
        %6214 = vperm.xlu0 %6213, %v5705
        %v6215 = vpop.permute.xlu0 %6214
        %6216 = vset.pattern.permute.xlu0 0
        %6217 = vperm.xlu0 %6216, %v5707
        %v6218 = vpop.permute.xlu0 %6217
        %6219 = vset.pattern.permute.xlu0 0
        %6220 = vperm.xlu0 %6219, %v5709
        %v6221 = vpop.permute.xlu0 %6220
        %v6222 = vlaneseq
        %v6223 = vshrl.u32 %v6222, 7
        %v6224 = vsub.s32 %v4605, %v6223
        %v6225 = vrot.slane %v5840, %v6224
        %v6226 = vlaneseq
        %v6227 = vshrl.u32 %v6226, 7
        %v6228 = vsub.s32 %v4610, %v6227
        %v6229 = vrot.slane %v5843, %v6228
        %v6230 = vsel %vm4615, %v6229, %v6225
        %v6231 = vlaneseq
        %v6232 = vshrl.u32 %v6231, 7
        %v6233 = vsub.s32 %v4617, %v6232
        %v6234 = vrot.slane %v5846, %v6233
        %v6235 = vsel %vm4622, %v6234, %v6230
        %v6236 = vlaneseq
        %v6237 = vshrl.u32 %v6236, 7
        %v6238 = vsub.s32 %v4624, %v6237
        %v6239 = vrot.slane %v5849, %v6238
        %v6240 = vsel %vm4629, %v6239, %v6235
        %v6241 = vlaneseq
        %v6242 = vshrl.u32 %v6241, 7
        %v6243 = vsub.s32 %v4631, %v6242
        %v6244 = vrot.slane %v5852, %v6243
        %v6245 = vsel %vm4636, %v6244, %v6240
        %v6246 = vlaneseq
        %v6247 = vshrl.u32 %v6246, 7
        %v6248 = vsub.s32 %v4638, %v6247
        %v6249 = vrot.slane %v5855, %v6248
        %v6250 = vsel %vm4643, %v6249, %v6245
        %v6251 = vlaneseq
        %v6252 = vshrl.u32 %v6251, 7
        %v6253 = vsub.s32 %v4645, %v6252
        %v6254 = vrot.slane %v5858, %v6253
        %v6255 = vsel %vm4650, %v6254, %v6250
        %v6256 = vlaneseq
        %v6257 = vshrl.u32 %v6256, 7
        %v6258 = vsub.s32 %v4652, %v6257
        %v6259 = vrot.slane %v5861, %v6258
        %v6260 = vsel %vm4657, %v6259, %v6255
        %v6261 = vlaneseq
        %v6262 = vshrl.u32 %v6261, 7
        %v6263 = vsub.s32 %v4659, %v6262
        %v6264 = vrot.slane %v5864, %v6263
        %v6265 = vsel %vm4664, %v6264, %v6260
        %v6266 = vlaneseq
        %v6267 = vshrl.u32 %v6266, 7
        %v6268 = vsub.s32 %v4666, %v6267
        %v6269 = vrot.slane %v5867, %v6268
        %v6270 = vsel %vm4671, %v6269, %v6265
        %v6271 = vlaneseq
        %v6272 = vshrl.u32 %v6271, 7
        %v6273 = vsub.s32 %v4673, %v6272
        %v6274 = vrot.slane %v5870, %v6273
        %v6275 = vsel %vm4678, %v6274, %v6270
        %v6276 = vlaneseq
        %v6277 = vshrl.u32 %v6276, 7
        %v6278 = vsub.s32 %v4680, %v6277
        %v6279 = vrot.slane %v5873, %v6278
        %v6280 = vsel %vm4685, %v6279, %v6275
        %v6281 = vlaneseq
        %v6282 = vshrl.u32 %v6281, 7
        %v6283 = vsub.s32 %v4687, %v6282
        %v6284 = vrot.slane %v5876, %v6283
        %v6285 = vsel %vm4692, %v6284, %v6280
        %v6286 = vlaneseq
        %v6287 = vshrl.u32 %v6286, 7
        %v6288 = vsub.s32 %v4694, %v6287
        %v6289 = vrot.slane %v5879, %v6288
        %v6290 = vsel %vm4699, %v6289, %v6285
        %v6291 = vlaneseq
        %v6292 = vshrl.u32 %v6291, 7
        %v6293 = vsub.s32 %v4701, %v6292
        %v6294 = vrot.slane %v5882, %v6293
        %v6295 = vsel %vm4706, %v6294, %v6290
        %v6296 = vlaneseq
        %v6297 = vshrl.u32 %v6296, 7
        %v6298 = vsub.s32 %v4708, %v6297
        %v6299 = vrot.slane %v5885, %v6298
        %v6300 = vsel %vm4713, %v6299, %v6295
        %v6301 = vlaneseq
        %v6302 = vshrl.u32 %v6301, 7
        %v6303 = vsub.s32 %v4605, %v6302
        %v6304 = vrot.slane %v5888, %v6303
        %v6305 = vlaneseq
        %v6306 = vshrl.u32 %v6305, 7
        %v6307 = vsub.s32 %v4610, %v6306
        %v6308 = vrot.slane %v5891, %v6307
        %v6309 = vsel %vm4615, %v6308, %v6304
        %v6310 = vlaneseq
        %v6311 = vshrl.u32 %v6310, 7
        %v6312 = vsub.s32 %v4617, %v6311
        %v6313 = vrot.slane %v5894, %v6312
        %v6314 = vsel %vm4622, %v6313, %v6309
        %v6315 = vlaneseq
        %v6316 = vshrl.u32 %v6315, 7
        %v6317 = vsub.s32 %v4624, %v6316
        %v6318 = vrot.slane %v5897, %v6317
        %v6319 = vsel %vm4629, %v6318, %v6314
        %v6320 = vlaneseq
        %v6321 = vshrl.u32 %v6320, 7
        %v6322 = vsub.s32 %v4631, %v6321
        %v6323 = vrot.slane %v5900, %v6322
        %v6324 = vsel %vm4636, %v6323, %v6319
        %v6325 = vlaneseq
        %v6326 = vshrl.u32 %v6325, 7
        %v6327 = vsub.s32 %v4638, %v6326
        %v6328 = vrot.slane %v5903, %v6327
        %v6329 = vsel %vm4643, %v6328, %v6324
        %v6330 = vlaneseq
        %v6331 = vshrl.u32 %v6330, 7
        %v6332 = vsub.s32 %v4645, %v6331
        %v6333 = vrot.slane %v5906, %v6332
        %v6334 = vsel %vm4650, %v6333, %v6329
        %v6335 = vlaneseq
        %v6336 = vshrl.u32 %v6335, 7
        %v6337 = vsub.s32 %v4652, %v6336
        %v6338 = vrot.slane %v5909, %v6337
        %v6339 = vsel %vm4657, %v6338, %v6334
        %v6340 = vlaneseq
        %v6341 = vshrl.u32 %v6340, 7
        %v6342 = vsub.s32 %v4659, %v6341
        %v6343 = vrot.slane %v5912, %v6342
        %v6344 = vsel %vm4664, %v6343, %v6339
        %v6345 = vlaneseq
        %v6346 = vshrl.u32 %v6345, 7
        %v6347 = vsub.s32 %v4666, %v6346
        %v6348 = vrot.slane %v5915, %v6347
        %v6349 = vsel %vm4671, %v6348, %v6344
        %v6350 = vlaneseq
        %v6351 = vshrl.u32 %v6350, 7
        %v6352 = vsub.s32 %v4673, %v6351
        %v6353 = vrot.slane %v5918, %v6352
        %v6354 = vsel %vm4678, %v6353, %v6349
        %v6355 = vlaneseq
        %v6356 = vshrl.u32 %v6355, 7
        %v6357 = vsub.s32 %v4680, %v6356
        %v6358 = vrot.slane %v5921, %v6357
        %v6359 = vsel %vm4685, %v6358, %v6354
        %v6360 = vlaneseq
        %v6361 = vshrl.u32 %v6360, 7
        %v6362 = vsub.s32 %v4687, %v6361
        %v6363 = vrot.slane %v5924, %v6362
        %v6364 = vsel %vm4692, %v6363, %v6359
        %v6365 = vlaneseq
        %v6366 = vshrl.u32 %v6365, 7
        %v6367 = vsub.s32 %v4694, %v6366
        %v6368 = vrot.slane %v5927, %v6367
        %v6369 = vsel %vm4699, %v6368, %v6364
        %v6370 = vlaneseq
        %v6371 = vshrl.u32 %v6370, 7
        %v6372 = vsub.s32 %v4701, %v6371
        %v6373 = vrot.slane %v5930, %v6372
        %v6374 = vsel %vm4706, %v6373, %v6369
        %v6375 = vlaneseq
        %v6376 = vshrl.u32 %v6375, 7
        %v6377 = vsub.s32 %v4708, %v6376
        %v6378 = vrot.slane %v5933, %v6377
        %v6379 = vsel %vm4713, %v6378, %v6374
        %v6380 = vlaneseq
        %v6381 = vshrl.u32 %v6380, 7
        %v6382 = vsub.s32 %v4605, %v6381
        %v6383 = vrot.slane %v5936, %v6382
        %v6384 = vlaneseq
        %v6385 = vshrl.u32 %v6384, 7
        %v6386 = vsub.s32 %v4610, %v6385
        %v6387 = vrot.slane %v5939, %v6386
        %v6388 = vsel %vm4615, %v6387, %v6383
        %v6389 = vlaneseq
        %v6390 = vshrl.u32 %v6389, 7
        %v6391 = vsub.s32 %v4617, %v6390
        %v6392 = vrot.slane %v5942, %v6391
        %v6393 = vsel %vm4622, %v6392, %v6388
        %v6394 = vlaneseq
        %v6395 = vshrl.u32 %v6394, 7
        %v6396 = vsub.s32 %v4624, %v6395
        %v6397 = vrot.slane %v5945, %v6396
        %v6398 = vsel %vm4629, %v6397, %v6393
        %v6399 = vlaneseq
        %v6400 = vshrl.u32 %v6399, 7
        %v6401 = vsub.s32 %v4631, %v6400
        %v6402 = vrot.slane %v5948, %v6401
        %v6403 = vsel %vm4636, %v6402, %v6398
        %v6404 = vlaneseq
        %v6405 = vshrl.u32 %v6404, 7
        %v6406 = vsub.s32 %v4638, %v6405
        %v6407 = vrot.slane %v5951, %v6406
        %v6408 = vsel %vm4643, %v6407, %v6403
        %v6409 = vlaneseq
        %v6410 = vshrl.u32 %v6409, 7
        %v6411 = vsub.s32 %v4645, %v6410
        %v6412 = vrot.slane %v5954, %v6411
        %v6413 = vsel %vm4650, %v6412, %v6408
        %v6414 = vlaneseq
        %v6415 = vshrl.u32 %v6414, 7
        %v6416 = vsub.s32 %v4652, %v6415
        %v6417 = vrot.slane %v5957, %v6416
        %v6418 = vsel %vm4657, %v6417, %v6413
        %v6419 = vlaneseq
        %v6420 = vshrl.u32 %v6419, 7
        %v6421 = vsub.s32 %v4659, %v6420
        %v6422 = vrot.slane %v5960, %v6421
        %v6423 = vsel %vm4664, %v6422, %v6418
        %v6424 = vlaneseq
        %v6425 = vshrl.u32 %v6424, 7
        %v6426 = vsub.s32 %v4666, %v6425
        %v6427 = vrot.slane %v5963, %v6426
        %v6428 = vsel %vm4671, %v6427, %v6423
        %v6429 = vlaneseq
        %v6430 = vshrl.u32 %v6429, 7
        %v6431 = vsub.s32 %v4673, %v6430
        %v6432 = vrot.slane %v5966, %v6431
        %v6433 = vsel %vm4678, %v6432, %v6428
        %v6434 = vlaneseq
        %v6435 = vshrl.u32 %v6434, 7
        %v6436 = vsub.s32 %v4680, %v6435
        %v6437 = vrot.slane %v5969, %v6436
        %v6438 = vsel %vm4685, %v6437, %v6433
        %v6439 = vlaneseq
        %v6440 = vshrl.u32 %v6439, 7
        %v6441 = vsub.s32 %v4687, %v6440
        %v6442 = vrot.slane %v5972, %v6441
        %v6443 = vsel %vm4692, %v6442, %v6438
        %v6444 = vlaneseq
        %v6445 = vshrl.u32 %v6444, 7
        %v6446 = vsub.s32 %v4694, %v6445
        %v6447 = vrot.slane %v5975, %v6446
        %v6448 = vsel %vm4699, %v6447, %v6443
        %v6449 = vlaneseq
        %v6450 = vshrl.u32 %v6449, 7
        %v6451 = vsub.s32 %v4701, %v6450
        %v6452 = vrot.slane %v5978, %v6451
        %v6453 = vsel %vm4706, %v6452, %v6448
        %v6454 = vlaneseq
        %v6455 = vshrl.u32 %v6454, 7
        %v6456 = vsub.s32 %v4708, %v6455
        %v6457 = vrot.slane %v5981, %v6456
        %v6458 = vsel %vm4713, %v6457, %v6453
        %v6459 = vlaneseq
        %v6460 = vshrl.u32 %v6459, 7
        %v6461 = vsub.s32 %v4605, %v6460
        %v6462 = vrot.slane %v5984, %v6461
        %v6463 = vlaneseq
        %v6464 = vshrl.u32 %v6463, 7
        %v6465 = vsub.s32 %v4610, %v6464
        %v6466 = vrot.slane %v5987, %v6465
        %v6467 = vsel %vm4615, %v6466, %v6462
        %v6468 = vlaneseq
        %v6469 = vshrl.u32 %v6468, 7
        %v6470 = vsub.s32 %v4617, %v6469
        %v6471 = vrot.slane %v5990, %v6470
        %v6472 = vsel %vm4622, %v6471, %v6467
        %v6473 = vlaneseq
        %v6474 = vshrl.u32 %v6473, 7
        %v6475 = vsub.s32 %v4624, %v6474
        %v6476 = vrot.slane %v5993, %v6475
        %v6477 = vsel %vm4629, %v6476, %v6472
        %v6478 = vlaneseq
        %v6479 = vshrl.u32 %v6478, 7
        %v6480 = vsub.s32 %v4631, %v6479
        %v6481 = vrot.slane %v5996, %v6480
        %v6482 = vsel %vm4636, %v6481, %v6477
        %v6483 = vlaneseq
        %v6484 = vshrl.u32 %v6483, 7
        %v6485 = vsub.s32 %v4638, %v6484
        %v6486 = vrot.slane %v5999, %v6485
        %v6487 = vsel %vm4643, %v6486, %v6482
        %v6488 = vlaneseq
        %v6489 = vshrl.u32 %v6488, 7
        %v6490 = vsub.s32 %v4645, %v6489
        %v6491 = vrot.slane %v6002, %v6490
        %v6492 = vsel %vm4650, %v6491, %v6487
        %v6493 = vlaneseq
        %v6494 = vshrl.u32 %v6493, 7
        %v6495 = vsub.s32 %v4652, %v6494
        %v6496 = vrot.slane %v6005, %v6495
        %v6497 = vsel %vm4657, %v6496, %v6492
        %v6498 = vlaneseq
        %v6499 = vshrl.u32 %v6498, 7
        %v6500 = vsub.s32 %v4659, %v6499
        %v6501 = vrot.slane %v6008, %v6500
        %v6502 = vsel %vm4664, %v6501, %v6497
        %v6503 = vlaneseq
        %v6504 = vshrl.u32 %v6503, 7
        %v6505 = vsub.s32 %v4666, %v6504
        %v6506 = vrot.slane %v6011, %v6505
        %v6507 = vsel %vm4671, %v6506, %v6502
        %v6508 = vlaneseq
        %v6509 = vshrl.u32 %v6508, 7
        %v6510 = vsub.s32 %v4673, %v6509
        %v6511 = vrot.slane %v6014, %v6510
        %v6512 = vsel %vm4678, %v6511, %v6507
        %v6513 = vlaneseq
        %v6514 = vshrl.u32 %v6513, 7
        %v6515 = vsub.s32 %v4680, %v6514
        %v6516 = vrot.slane %v6017, %v6515
        %v6517 = vsel %vm4685, %v6516, %v6512
        %v6518 = vlaneseq
        %v6519 = vshrl.u32 %v6518, 7
        %v6520 = vsub.s32 %v4687, %v6519
        %v6521 = vrot.slane %v6020, %v6520
        %v6522 = vsel %vm4692, %v6521, %v6517
        %v6523 = vlaneseq
        %v6524 = vshrl.u32 %v6523, 7
        %v6525 = vsub.s32 %v4694, %v6524
        %v6526 = vrot.slane %v6023, %v6525
        %v6527 = vsel %vm4699, %v6526, %v6522
        %v6528 = vlaneseq
        %v6529 = vshrl.u32 %v6528, 7
        %v6530 = vsub.s32 %v4701, %v6529
        %v6531 = vrot.slane %v6026, %v6530
        %v6532 = vsel %vm4706, %v6531, %v6527
        %v6533 = vlaneseq
        %v6534 = vshrl.u32 %v6533, 7
        %v6535 = vsub.s32 %v4708, %v6534
        %v6536 = vrot.slane %v6029, %v6535
        %v6537 = vsel %vm4713, %v6536, %v6532
        %v6538 = vlaneseq
        %v6539 = vshrl.u32 %v6538, 7
        %v6540 = vsub.s32 %v4605, %v6539
        %v6541 = vrot.slane %v6032, %v6540
        %v6542 = vlaneseq
        %v6543 = vshrl.u32 %v6542, 7
        %v6544 = vsub.s32 %v4610, %v6543
        %v6545 = vrot.slane %v6035, %v6544
        %v6546 = vsel %vm4615, %v6545, %v6541
        %v6547 = vlaneseq
        %v6548 = vshrl.u32 %v6547, 7
        %v6549 = vsub.s32 %v4617, %v6548
        %v6550 = vrot.slane %v6038, %v6549
        %v6551 = vsel %vm4622, %v6550, %v6546
        %v6552 = vlaneseq
        %v6553 = vshrl.u32 %v6552, 7
        %v6554 = vsub.s32 %v4624, %v6553
        %v6555 = vrot.slane %v6041, %v6554
        %v6556 = vsel %vm4629, %v6555, %v6551
        %v6557 = vlaneseq
        %v6558 = vshrl.u32 %v6557, 7
        %v6559 = vsub.s32 %v4631, %v6558
        %v6560 = vrot.slane %v6044, %v6559
        %v6561 = vsel %vm4636, %v6560, %v6556
        %v6562 = vlaneseq
        %v6563 = vshrl.u32 %v6562, 7
        %v6564 = vsub.s32 %v4638, %v6563
        %v6565 = vrot.slane %v6047, %v6564
        %v6566 = vsel %vm4643, %v6565, %v6561
        %v6567 = vlaneseq
        %v6568 = vshrl.u32 %v6567, 7
        %v6569 = vsub.s32 %v4645, %v6568
        %v6570 = vrot.slane %v6050, %v6569
        %v6571 = vsel %vm4650, %v6570, %v6566
        %v6572 = vlaneseq
        %v6573 = vshrl.u32 %v6572, 7
        %v6574 = vsub.s32 %v4652, %v6573
        %v6575 = vrot.slane %v6053, %v6574
        %v6576 = vsel %vm4657, %v6575, %v6571
        %v6577 = vlaneseq
        %v6578 = vshrl.u32 %v6577, 7
        %v6579 = vsub.s32 %v4659, %v6578
        %v6580 = vrot.slane %v6056, %v6579
        %v6581 = vsel %vm4664, %v6580, %v6576
        %v6582 = vlaneseq
        %v6583 = vshrl.u32 %v6582, 7
        %v6584 = vsub.s32 %v4666, %v6583
        %v6585 = vrot.slane %v6059, %v6584
        %v6586 = vsel %vm4671, %v6585, %v6581
        %v6587 = vlaneseq
        %v6588 = vshrl.u32 %v6587, 7
        %v6589 = vsub.s32 %v4673, %v6588
        %v6590 = vrot.slane %v6062, %v6589
        %v6591 = vsel %vm4678, %v6590, %v6586
        %v6592 = vlaneseq
        %v6593 = vshrl.u32 %v6592, 7
        %v6594 = vsub.s32 %v4680, %v6593
        %v6595 = vrot.slane %v6065, %v6594
        %v6596 = vsel %vm4685, %v6595, %v6591
        %v6597 = vlaneseq
        %v6598 = vshrl.u32 %v6597, 7
        %v6599 = vsub.s32 %v4687, %v6598
        %v6600 = vrot.slane %v6068, %v6599
        %v6601 = vsel %vm4692, %v6600, %v6596
        %v6602 = vlaneseq
        %v6603 = vshrl.u32 %v6602, 7
        %v6604 = vsub.s32 %v4694, %v6603
        %v6605 = vrot.slane %v6071, %v6604
        %v6606 = vsel %vm4699, %v6605, %v6601
        %v6607 = vlaneseq
        %v6608 = vshrl.u32 %v6607, 7
        %v6609 = vsub.s32 %v4701, %v6608
        %v6610 = vrot.slane %v6074, %v6609
        %v6611 = vsel %vm4706, %v6610, %v6606
        %v6612 = vlaneseq
        %v6613 = vshrl.u32 %v6612, 7
        %v6614 = vsub.s32 %v4708, %v6613
        %v6615 = vrot.slane %v6077, %v6614
        %v6616 = vsel %vm4713, %v6615, %v6611
        %v6617 = vlaneseq
        %v6618 = vshrl.u32 %v6617, 7
        %v6619 = vsub.s32 %v4605, %v6618
        %v6620 = vrot.slane %v6080, %v6619
        %v6621 = vlaneseq
        %v6622 = vshrl.u32 %v6621, 7
        %v6623 = vsub.s32 %v4610, %v6622
        %v6624 = vrot.slane %v6083, %v6623
        %v6625 = vsel %vm4615, %v6624, %v6620
        %v6626 = vlaneseq
        %v6627 = vshrl.u32 %v6626, 7
        %v6628 = vsub.s32 %v4617, %v6627
        %v6629 = vrot.slane %v6086, %v6628
        %v6630 = vsel %vm4622, %v6629, %v6625
        %v6631 = vlaneseq
        %v6632 = vshrl.u32 %v6631, 7
        %v6633 = vsub.s32 %v4624, %v6632
        %v6634 = vrot.slane %v6089, %v6633
        %v6635 = vsel %vm4629, %v6634, %v6630
        %v6636 = vlaneseq
        %v6637 = vshrl.u32 %v6636, 7
        %v6638 = vsub.s32 %v4631, %v6637
        %v6639 = vrot.slane %v6092, %v6638
        %v6640 = vsel %vm4636, %v6639, %v6635
        %v6641 = vlaneseq
        %v6642 = vshrl.u32 %v6641, 7
        %v6643 = vsub.s32 %v4638, %v6642
        %v6644 = vrot.slane %v6095, %v6643
        %v6645 = vsel %vm4643, %v6644, %v6640
        %v6646 = vlaneseq
        %v6647 = vshrl.u32 %v6646, 7
        %v6648 = vsub.s32 %v4645, %v6647
        %v6649 = vrot.slane %v6098, %v6648
        %v6650 = vsel %vm4650, %v6649, %v6645
        %v6651 = vlaneseq
        %v6652 = vshrl.u32 %v6651, 7
        %v6653 = vsub.s32 %v4652, %v6652
        %v6654 = vrot.slane %v6101, %v6653
        %v6655 = vsel %vm4657, %v6654, %v6650
        %v6656 = vlaneseq
        %v6657 = vshrl.u32 %v6656, 7
        %v6658 = vsub.s32 %v4659, %v6657
        %v6659 = vrot.slane %v6104, %v6658
        %v6660 = vsel %vm4664, %v6659, %v6655
        %v6661 = vlaneseq
        %v6662 = vshrl.u32 %v6661, 7
        %v6663 = vsub.s32 %v4666, %v6662
        %v6664 = vrot.slane %v6107, %v6663
        %v6665 = vsel %vm4671, %v6664, %v6660
        %v6666 = vlaneseq
        %v6667 = vshrl.u32 %v6666, 7
        %v6668 = vsub.s32 %v4673, %v6667
        %v6669 = vrot.slane %v6110, %v6668
        %v6670 = vsel %vm4678, %v6669, %v6665
        %v6671 = vlaneseq
        %v6672 = vshrl.u32 %v6671, 7
        %v6673 = vsub.s32 %v4680, %v6672
        %v6674 = vrot.slane %v6113, %v6673
        %v6675 = vsel %vm4685, %v6674, %v6670
        %v6676 = vlaneseq
        %v6677 = vshrl.u32 %v6676, 7
        %v6678 = vsub.s32 %v4687, %v6677
        %v6679 = vrot.slane %v6116, %v6678
        %v6680 = vsel %vm4692, %v6679, %v6675
        %v6681 = vlaneseq
        %v6682 = vshrl.u32 %v6681, 7
        %v6683 = vsub.s32 %v4694, %v6682
        %v6684 = vrot.slane %v6119, %v6683
        %v6685 = vsel %vm4699, %v6684, %v6680
        %v6686 = vlaneseq
        %v6687 = vshrl.u32 %v6686, 7
        %v6688 = vsub.s32 %v4701, %v6687
        %v6689 = vrot.slane %v6122, %v6688
        %v6690 = vsel %vm4706, %v6689, %v6685
        %v6691 = vlaneseq
        %v6692 = vshrl.u32 %v6691, 7
        %v6693 = vsub.s32 %v4708, %v6692
        %v6694 = vrot.slane %v6125, %v6693
        %v6695 = vsel %vm4713, %v6694, %v6690
        %v6696 = vlaneseq
        %v6697 = vshrl.u32 %v6696, 7
        %v6698 = vsub.s32 %v4605, %v6697
        %v6699 = vrot.slane %v6128, %v6698
        %v6700 = vlaneseq
        %v6701 = vshrl.u32 %v6700, 7
        %v6702 = vsub.s32 %v4610, %v6701
        %v6703 = vrot.slane %v6131, %v6702
        %v6704 = vsel %vm4615, %v6703, %v6699
        %v6705 = vlaneseq
        %v6706 = vshrl.u32 %v6705, 7
        %v6707 = vsub.s32 %v4617, %v6706
        %v6708 = vrot.slane %v6134, %v6707
        %v6709 = vsel %vm4622, %v6708, %v6704
        %v6710 = vlaneseq
        %v6711 = vshrl.u32 %v6710, 7
        %v6712 = vsub.s32 %v4624, %v6711
        %v6713 = vrot.slane %v6137, %v6712
        %v6714 = vsel %vm4629, %v6713, %v6709
        %v6715 = vlaneseq
        %v6716 = vshrl.u32 %v6715, 7
        %v6717 = vsub.s32 %v4631, %v6716
        %v6718 = vrot.slane %v6140, %v6717
        %v6719 = vsel %vm4636, %v6718, %v6714
        %v6720 = vlaneseq
        %v6721 = vshrl.u32 %v6720, 7
        %v6722 = vsub.s32 %v4638, %v6721
        %v6723 = vrot.slane %v6143, %v6722
        %v6724 = vsel %vm4643, %v6723, %v6719
        %v6725 = vlaneseq
        %v6726 = vshrl.u32 %v6725, 7
        %v6727 = vsub.s32 %v4645, %v6726
        %v6728 = vrot.slane %v6146, %v6727
        %v6729 = vsel %vm4650, %v6728, %v6724
        %v6730 = vlaneseq
        %v6731 = vshrl.u32 %v6730, 7
        %v6732 = vsub.s32 %v4652, %v6731
        %v6733 = vrot.slane %v6149, %v6732
        %v6734 = vsel %vm4657, %v6733, %v6729
        %v6735 = vlaneseq
        %v6736 = vshrl.u32 %v6735, 7
        %v6737 = vsub.s32 %v4659, %v6736
        %v6738 = vrot.slane %v6152, %v6737
        %v6739 = vsel %vm4664, %v6738, %v6734
        %v6740 = vlaneseq
        %v6741 = vshrl.u32 %v6740, 7
        %v6742 = vsub.s32 %v4666, %v6741
        %v6743 = vrot.slane %v6155, %v6742
        %v6744 = vsel %vm4671, %v6743, %v6739
        %v6745 = vlaneseq
        %v6746 = vshrl.u32 %v6745, 7
        %v6747 = vsub.s32 %v4673, %v6746
        %v6748 = vrot.slane %v6158, %v6747
        %v6749 = vsel %vm4678, %v6748, %v6744
        %v6750 = vlaneseq
        %v6751 = vshrl.u32 %v6750, 7
        %v6752 = vsub.s32 %v4680, %v6751
        %v6753 = vrot.slane %v6161, %v6752
        %v6754 = vsel %vm4685, %v6753, %v6749
        %v6755 = vlaneseq
        %v6756 = vshrl.u32 %v6755, 7
        %v6757 = vsub.s32 %v4687, %v6756
        %v6758 = vrot.slane %v6164, %v6757
        %v6759 = vsel %vm4692, %v6758, %v6754
        %v6760 = vlaneseq
        %v6761 = vshrl.u32 %v6760, 7
        %v6762 = vsub.s32 %v4694, %v6761
        %v6763 = vrot.slane %v6167, %v6762
        %v6764 = vsel %vm4699, %v6763, %v6759
        %v6765 = vlaneseq
        %v6766 = vshrl.u32 %v6765, 7
        %v6767 = vsub.s32 %v4701, %v6766
        %v6768 = vrot.slane %v6170, %v6767
        %v6769 = vsel %vm4706, %v6768, %v6764
        %v6770 = vlaneseq
        %v6771 = vshrl.u32 %v6770, 7
        %v6772 = vsub.s32 %v4708, %v6771
        %v6773 = vrot.slane %v6173, %v6772
        %v6774 = vsel %vm4713, %v6773, %v6769
        %v6775 = vlaneseq
        %v6776 = vshrl.u32 %v6775, 7
        %v6777 = vsub.s32 %v4605, %v6776
        %v6778 = vrot.slane %v6176, %v6777
        %v6779 = vlaneseq
        %v6780 = vshrl.u32 %v6779, 7
        %v6781 = vsub.s32 %v4610, %v6780
        %v6782 = vrot.slane %v6179, %v6781
        %v6783 = vsel %vm4615, %v6782, %v6778
        %v6784 = vlaneseq
        %v6785 = vshrl.u32 %v6784, 7
        %v6786 = vsub.s32 %v4617, %v6785
        %v6787 = vrot.slane %v6182, %v6786
        %v6788 = vsel %vm4622, %v6787, %v6783
        %v6789 = vlaneseq
        %v6790 = vshrl.u32 %v6789, 7
        %v6791 = vsub.s32 %v4624, %v6790
        %v6792 = vrot.slane %v6185, %v6791
        %v6793 = vsel %vm4629, %v6792, %v6788
        %v6794 = vlaneseq
        %v6795 = vshrl.u32 %v6794, 7
        %v6796 = vsub.s32 %v4631, %v6795
        %v6797 = vrot.slane %v6188, %v6796
        %v6798 = vsel %vm4636, %v6797, %v6793
        %v6799 = vlaneseq
        %v6800 = vshrl.u32 %v6799, 7
        %v6801 = vsub.s32 %v4638, %v6800
        %v6802 = vrot.slane %v6191, %v6801
        %v6803 = vsel %vm4643, %v6802, %v6798
        %v6804 = vlaneseq
        %v6805 = vshrl.u32 %v6804, 7
        %v6806 = vsub.s32 %v4645, %v6805
        %v6807 = vrot.slane %v6194, %v6806
        %v6808 = vsel %vm4650, %v6807, %v6803
        %v6809 = vlaneseq
        %v6810 = vshrl.u32 %v6809, 7
        %v6811 = vsub.s32 %v4652, %v6810
        %v6812 = vrot.slane %v6197, %v6811
        %v6813 = vsel %vm4657, %v6812, %v6808
        %v6814 = vlaneseq
        %v6815 = vshrl.u32 %v6814, 7
        %v6816 = vsub.s32 %v4659, %v6815
        %v6817 = vrot.slane %v6200, %v6816
        %v6818 = vsel %vm4664, %v6817, %v6813
        %v6819 = vlaneseq
        %v6820 = vshrl.u32 %v6819, 7
        %v6821 = vsub.s32 %v4666, %v6820
        %v6822 = vrot.slane %v6203, %v6821
        %v6823 = vsel %vm4671, %v6822, %v6818
        %v6824 = vlaneseq
        %v6825 = vshrl.u32 %v6824, 7
        %v6826 = vsub.s32 %v4673, %v6825
        %v6827 = vrot.slane %v6206, %v6826
        %v6828 = vsel %vm4678, %v6827, %v6823
        %v6829 = vlaneseq
        %v6830 = vshrl.u32 %v6829, 7
        %v6831 = vsub.s32 %v4680, %v6830
        %v6832 = vrot.slane %v6209, %v6831
        %v6833 = vsel %vm4685, %v6832, %v6828
        %v6834 = vlaneseq
        %v6835 = vshrl.u32 %v6834, 7
        %v6836 = vsub.s32 %v4687, %v6835
        %v6837 = vrot.slane %v6212, %v6836
        %v6838 = vsel %vm4692, %v6837, %v6833
        %v6839 = vlaneseq
        %v6840 = vshrl.u32 %v6839, 7
        %v6841 = vsub.s32 %v4694, %v6840
        %v6842 = vrot.slane %v6215, %v6841
        %v6843 = vsel %vm4699, %v6842, %v6838
        %v6844 = vlaneseq
        %v6845 = vshrl.u32 %v6844, 7
        %v6846 = vsub.s32 %v4701, %v6845
        %v6847 = vrot.slane %v6218, %v6846
        %v6848 = vsel %vm4706, %v6847, %v6843
        %v6849 = vlaneseq
        %v6850 = vshrl.u32 %v6849, 7
        %v6851 = vsub.s32 %v4708, %v6850
        %v6852 = vrot.slane %v6221, %v6851
        %v6853 = vsel %vm4713, %v6852, %v6848
        %v6854 = vsel %vm5268, %v6379, %v6300
        %v6855 = vsel %vm5270, %v6458, %v6854
        %v6856 = vsel %vm5272, %v6537, %v6855
        %v6857 = vsel %vm5274, %v6616, %v6856
        %v6858 = vsel %vm5276, %v6695, %v6857
        %v6859 = vsel %vm5278, %v6774, %v6858
        %v6860 = vsel %vm5280, %v6853, %v6859
        %6862 = vadd.xlane.f32.xlu0 %v6860
        %v6863 = vpop.xlane.xlu0 %6862
        %v6864 = vrcp.pop %v6863
        %v6866 = vlaneseq
        %v6867 = vshrl.u32 %v6866, 7
        %v6868 = vsub.s32 0, %v6867
        %v6869 = vrot.slane %v6864, %v6868
        %v6870 = vlaneseq
        %v6871 = vshrl.u32 %v6870, 7
        %v6872 = vsub.s32 1, %v6871
        %v6873 = vrot.slane %v6864, %v6872
        %v6874 = vlaneseq
        %v6875 = vshrl.u32 %v6874, 7
        %v6876 = vsub.s32 2, %v6875
        %v6877 = vrot.slane %v6864, %v6876
        %v6878 = vlaneseq
        %v6879 = vshrl.u32 %v6878, 7
        %v6880 = vsub.s32 3, %v6879
        %v6881 = vrot.slane %v6864, %v6880
        %v6882 = vlaneseq
        %v6883 = vshrl.u32 %v6882, 7
        %v6884 = vsub.s32 4, %v6883
        %v6885 = vrot.slane %v6864, %v6884
        %v6886 = vlaneseq
        %v6887 = vshrl.u32 %v6886, 7
        %v6888 = vsub.s32 5, %v6887
        %v6889 = vrot.slane %v6864, %v6888
        %v6890 = vlaneseq
        %v6891 = vshrl.u32 %v6890, 7
        %v6892 = vsub.s32 6, %v6891
        %v6893 = vrot.slane %v6864, %v6892
        %v6894 = vlaneseq
        %v6895 = vshrl.u32 %v6894, 7
        %v6896 = vsub.s32 7, %v6895
        %v6897 = vrot.slane %v6864, %v6896
        %v6906 = vmul.f32 %v5455, %v6869
        %v6907 = vmul.f32 %v5457, %v6869
        %v6908 = vmul.f32 %v5459, %v6869
        %v6909 = vmul.f32 %v5461, %v6869
        %v6910 = vmul.f32 %v5463, %v6869
        %v6911 = vmul.f32 %v5465, %v6869
        %v6912 = vmul.f32 %v5467, %v6869
        %v6913 = vmul.f32 %v5469, %v6869
        %v6914 = vmul.f32 %v5471, %v6869
        %v6915 = vmul.f32 %v5473, %v6869
        %v6916 = vmul.f32 %v5475, %v6869
        %v6917 = vmul.f32 %v5477, %v6869
        %v6918 = vmul.f32 %v5479, %v6869
        %v6919 = vmul.f32 %v5481, %v6869
        %v6920 = vmul.f32 %v5483, %v6869
        %v6921 = vmul.f32 %v5485, %v6869
        %v6922 = vmul.f32 %v5487, %v6873
        %v6923 = vmul.f32 %v5489, %v6873
        %v6924 = vmul.f32 %v5491, %v6873
        %v6925 = vmul.f32 %v5493, %v6873
        %v6926 = vmul.f32 %v5495, %v6873
        %v6927 = vmul.f32 %v5497, %v6873
        %v6928 = vmul.f32 %v5499, %v6873
        %v6929 = vmul.f32 %v5501, %v6873
        %v6930 = vmul.f32 %v5503, %v6873
        %v6931 = vmul.f32 %v5505, %v6873
        %v6932 = vmul.f32 %v5507, %v6873
        %v6933 = vmul.f32 %v5509, %v6873
        %v6934 = vmul.f32 %v5511, %v6873
        %v6935 = vmul.f32 %v5513, %v6873
        %v6936 = vmul.f32 %v5515, %v6873
        %v6937 = vmul.f32 %v5517, %v6873
        %v6938 = vmul.f32 %v5519, %v6877
        %v6939 = vmul.f32 %v5521, %v6877
        %v6940 = vmul.f32 %v5523, %v6877
        %v6941 = vmul.f32 %v5525, %v6877
        %v6942 = vmul.f32 %v5527, %v6877
        %v6943 = vmul.f32 %v5529, %v6877
        %v6944 = vmul.f32 %v5531, %v6877
        %v6945 = vmul.f32 %v5533, %v6877
        %v6946 = vmul.f32 %v5535, %v6877
        %v6947 = vmul.f32 %v5537, %v6877
        %v6948 = vmul.f32 %v5539, %v6877
        %v6949 = vmul.f32 %v5541, %v6877
        %v6950 = vmul.f32 %v5543, %v6877
        %v6951 = vmul.f32 %v5545, %v6877
        %v6952 = vmul.f32 %v5547, %v6877
        %v6953 = vmul.f32 %v5549, %v6877
        %v6954 = vmul.f32 %v5551, %v6881
        %v6955 = vmul.f32 %v5553, %v6881
        %v6956 = vmul.f32 %v5555, %v6881
        %v6957 = vmul.f32 %v5557, %v6881
        %v6958 = vmul.f32 %v5559, %v6881
        %v6959 = vmul.f32 %v5561, %v6881
        %v6960 = vmul.f32 %v5563, %v6881
        %v6961 = vmul.f32 %v5565, %v6881
        %v6962 = vmul.f32 %v5567, %v6881
        %v6963 = vmul.f32 %v5569, %v6881
        %v6964 = vmul.f32 %v5571, %v6881
        %v6965 = vmul.f32 %v5573, %v6881
        %v6966 = vmul.f32 %v5575, %v6881
        %v6967 = vmul.f32 %v5577, %v6881
        %v6968 = vmul.f32 %v5579, %v6881
        %v6969 = vmul.f32 %v5581, %v6881
        %v6970 = vmul.f32 %v5583, %v6885
        %v6971 = vmul.f32 %v5585, %v6885
        %v6972 = vmul.f32 %v5587, %v6885
        %v6973 = vmul.f32 %v5589, %v6885
        %v6974 = vmul.f32 %v5591, %v6885
        %v6975 = vmul.f32 %v5593, %v6885
        %v6976 = vmul.f32 %v5595, %v6885
        %v6977 = vmul.f32 %v5597, %v6885
        %v6978 = vmul.f32 %v5599, %v6885
        %v6979 = vmul.f32 %v5601, %v6885
        %v6980 = vmul.f32 %v5603, %v6885
        %v6981 = vmul.f32 %v5605, %v6885
        %v6982 = vmul.f32 %v5607, %v6885
        %v6983 = vmul.f32 %v5609, %v6885
        %v6984 = vmul.f32 %v5611, %v6885
        %v6985 = vmul.f32 %v5613, %v6885
        %v6986 = vmul.f32 %v5615, %v6889
        %v6987 = vmul.f32 %v5617, %v6889
        %v6988 = vmul.f32 %v5619, %v6889
        %v6989 = vmul.f32 %v5621, %v6889
        %v6990 = vmul.f32 %v5623, %v6889
        %v6991 = vmul.f32 %v5625, %v6889
        %v6992 = vmul.f32 %v5627, %v6889
        %v6993 = vmul.f32 %v5629, %v6889
        %v6994 = vmul.f32 %v5631, %v6889
        %v6995 = vmul.f32 %v5633, %v6889
        %v6996 = vmul.f32 %v5635, %v6889
        %v6997 = vmul.f32 %v5637, %v6889
        %v6998 = vmul.f32 %v5639, %v6889
        %v6999 = vmul.f32 %v5641, %v6889
        %v7000 = vmul.f32 %v5643, %v6889
        %v7001 = vmul.f32 %v5645, %v6889
        %v7002 = vmul.f32 %v5647, %v6893
        %v7003 = vmul.f32 %v5649, %v6893
        %v7004 = vmul.f32 %v5651, %v6893
        %v7005 = vmul.f32 %v5653, %v6893
        %v7006 = vmul.f32 %v5655, %v6893
        %v7007 = vmul.f32 %v5657, %v6893
        %v7008 = vmul.f32 %v5659, %v6893
        %v7009 = vmul.f32 %v5661, %v6893
        %v7010 = vmul.f32 %v5663, %v6893
        %v7011 = vmul.f32 %v5665, %v6893
        %v7012 = vmul.f32 %v5667, %v6893
        %v7013 = vmul.f32 %v5669, %v6893
        %v7014 = vmul.f32 %v5671, %v6893
        %v7015 = vmul.f32 %v5673, %v6893
        %v7016 = vmul.f32 %v5675, %v6893
        %v7017 = vmul.f32 %v5677, %v6893
        %v7018 = vmul.f32 %v5679, %v6897
        %v7019 = vmul.f32 %v5681, %v6897
        %v7020 = vmul.f32 %v5683, %v6897
        %v7021 = vmul.f32 %v5685, %v6897
        %v7022 = vmul.f32 %v5687, %v6897
        %v7023 = vmul.f32 %v5689, %v6897
        %v7024 = vmul.f32 %v5691, %v6897
        %v7025 = vmul.f32 %v5693, %v6897
        %v7026 = vmul.f32 %v5695, %v6897
        %v7027 = vmul.f32 %v5697, %v6897
        %v7028 = vmul.f32 %v5699, %v6897
        %v7029 = vmul.f32 %v5701, %v6897
        %v7030 = vmul.f32 %v5703, %v6897
        %v7031 = vmul.f32 %v5705, %v6897
        %v7032 = vmul.f32 %v5707, %v6897
        %v7033 = vmul.f32 %v5709, %v6897
        %v7042 = vlaneseq
        %v7043 = vshrl.u32 %v7042, 7
        %v7044 = vsub.s32 %v4605, %v7043
        %v7045 = vrot.slane %v4461, %v7044
        %v7046 = vlaneseq
        %v7047 = vshrl.u32 %v7046, 7
        %v7048 = vsub.s32 %v4605, %v7047
        %v7049 = vrot.slane %v4463, %v7048
        %v7050 = vlaneseq
        %v7051 = vshrl.u32 %v7050, 7
        %v7052 = vsub.s32 %v4605, %v7051
        %v7053 = vrot.slane %v4465, %v7052
        %v7054 = vlaneseq
        %v7055 = vshrl.u32 %v7054, 7
        %v7056 = vsub.s32 %v4605, %v7055
        %v7057 = vrot.slane %v4467, %v7056
        %v7058 = vlaneseq
        %v7059 = vshrl.u32 %v7058, 7
        %v7060 = vsub.s32 %v4605, %v7059
        %v7061 = vrot.slane %v4469, %v7060
        %v7062 = vlaneseq
        %v7063 = vshrl.u32 %v7062, 7
        %v7064 = vsub.s32 %v4605, %v7063
        %v7065 = vrot.slane %v4471, %v7064
        %v7066 = vlaneseq
        %v7067 = vshrl.u32 %v7066, 7
        %v7068 = vsub.s32 %v4605, %v7067
        %v7069 = vrot.slane %v4473, %v7068
        %v7070 = vlaneseq
        %v7071 = vshrl.u32 %v7070, 7
        %v7072 = vsub.s32 %v4605, %v7071
        %v7073 = vrot.slane %v4475, %v7072
        %v7074 = vsel %vm5268, %v7049, %v7045
        %v7075 = vsel %vm5270, %v7053, %v7074
        %v7076 = vsel %vm5272, %v7057, %v7075
        %v7077 = vsel %vm5274, %v7061, %v7076
        %v7078 = vsel %vm5276, %v7065, %v7077
        %v7079 = vsel %vm5278, %v7069, %v7078
        %v7080 = vsel %vm5280, %v7073, %v7079
        %v7082 = vsel %vm2362, %v7080, -inf
        %7083 = vmax.xlane.f32.xlu0 %v7082
        %v7084 = vpop.xlane.xlu0 %7083
        %v7086 = vlaneseq
        %v7087 = vshrl.u32 %v7086, 7
        %v7088 = vsub.s32 0, %v7087
        %v7089 = vrot.slane %v7084, %v7088
        %v7090 = vlaneseq
        %v7091 = vshrl.u32 %v7090, 7
        %v7092 = vsub.s32 1, %v7091
        %v7093 = vrot.slane %v7084, %v7092
        %v7094 = vlaneseq
        %v7095 = vshrl.u32 %v7094, 7
        %v7096 = vsub.s32 2, %v7095
        %v7097 = vrot.slane %v7084, %v7096
        %v7098 = vlaneseq
        %v7099 = vshrl.u32 %v7098, 7
        %v7100 = vsub.s32 3, %v7099
        %v7101 = vrot.slane %v7084, %v7100
        %v7102 = vlaneseq
        %v7103 = vshrl.u32 %v7102, 7
        %v7104 = vsub.s32 4, %v7103
        %v7105 = vrot.slane %v7084, %v7104
        %v7106 = vlaneseq
        %v7107 = vshrl.u32 %v7106, 7
        %v7108 = vsub.s32 5, %v7107
        %v7109 = vrot.slane %v7084, %v7108
        %v7110 = vlaneseq
        %v7111 = vshrl.u32 %v7110, 7
        %v7112 = vsub.s32 6, %v7111
        %v7113 = vrot.slane %v7084, %v7112
        %v7114 = vlaneseq
        %v7115 = vshrl.u32 %v7114, 7
        %v7116 = vsub.s32 7, %v7115
        %v7117 = vrot.slane %v7084, %v7116
        %v7126 = vsub.f32 %v4461, %v7089
        %v7127 = vsub.f32 %v4463, %v7093
        %v7128 = vsub.f32 %v4465, %v7097
        %v7129 = vsub.f32 %v4467, %v7101
        %v7130 = vsub.f32 %v4469, %v7105
        %v7131 = vsub.f32 %v4471, %v7109
        %v7132 = vsub.f32 %v4473, %v7113
        %v7133 = vsub.f32 %v4475, %v7117
        %v7134 = vmul.f32 %v7126, 1.442695
        %v7135 = vpow.pop %v7134
        %v7136 = vmul.f32 %v7127, 1.442695
        %v7137 = vpow.pop %v7136
        %v7138 = vmul.f32 %v7128, 1.442695
        %v7139 = vpow.pop %v7138
        %v7140 = vmul.f32 %v7129, 1.442695
        %v7141 = vpow.pop %v7140
        %v7142 = vmul.f32 %v7130, 1.442695
        %v7143 = vpow.pop %v7142
        %v7144 = vmul.f32 %v7131, 1.442695
        %v7145 = vpow.pop %v7144
        %v7146 = vmul.f32 %v7132, 1.442695
        %v7147 = vpow.pop %v7146
        %v7148 = vmul.f32 %v7133, 1.442695
        %v7149 = vpow.pop %v7148
        %7158 = vset.pattern.permute.xlu0 0
        %7159 = vperm.xlu0 %7158, %v7135
        %v7160 = vpop.permute.xlu0 %7159
        %7161 = vset.pattern.permute.xlu0 0
        %7162 = vperm.xlu0 %7161, %v7137
        %v7163 = vpop.permute.xlu0 %7162
        %7164 = vset.pattern.permute.xlu0 0
        %7165 = vperm.xlu0 %7164, %v7139
        %v7166 = vpop.permute.xlu0 %7165
        %7167 = vset.pattern.permute.xlu0 0
        %7168 = vperm.xlu0 %7167, %v7141
        %v7169 = vpop.permute.xlu0 %7168
        %7170 = vset.pattern.permute.xlu0 0
        %7171 = vperm.xlu0 %7170, %v7143
        %v7172 = vpop.permute.xlu0 %7171
        %7173 = vset.pattern.permute.xlu0 0
        %7174 = vperm.xlu0 %7173, %v7145
        %v7175 = vpop.permute.xlu0 %7174
        %7176 = vset.pattern.permute.xlu0 0
        %7177 = vperm.xlu0 %7176, %v7147
        %v7178 = vpop.permute.xlu0 %7177
        %7179 = vset.pattern.permute.xlu0 0
        %7180 = vperm.xlu0 %7179, %v7149
        %v7181 = vpop.permute.xlu0 %7180
        %v7182 = vlaneseq
        %v7183 = vshrl.u32 %v7182, 7
        %v7184 = vsub.s32 %v4605, %v7183
        %v7185 = vrot.slane %v7160, %v7184
        %v7186 = vlaneseq
        %v7187 = vshrl.u32 %v7186, 7
        %v7188 = vsub.s32 %v4605, %v7187
        %v7189 = vrot.slane %v7163, %v7188
        %v7190 = vlaneseq
        %v7191 = vshrl.u32 %v7190, 7
        %v7192 = vsub.s32 %v4605, %v7191
        %v7193 = vrot.slane %v7166, %v7192
        %v7194 = vlaneseq
        %v7195 = vshrl.u32 %v7194, 7
        %v7196 = vsub.s32 %v4605, %v7195
        %v7197 = vrot.slane %v7169, %v7196
        %v7198 = vlaneseq
        %v7199 = vshrl.u32 %v7198, 7
        %v7200 = vsub.s32 %v4605, %v7199
        %v7201 = vrot.slane %v7172, %v7200
        %v7202 = vlaneseq
        %v7203 = vshrl.u32 %v7202, 7
        %v7204 = vsub.s32 %v4605, %v7203
        %v7205 = vrot.slane %v7175, %v7204
        %v7206 = vlaneseq
        %v7207 = vshrl.u32 %v7206, 7
        %v7208 = vsub.s32 %v4605, %v7207
        %v7209 = vrot.slane %v7178, %v7208
        %v7210 = vlaneseq
        %v7211 = vshrl.u32 %v7210, 7
        %v7212 = vsub.s32 %v4605, %v7211
        %v7213 = vrot.slane %v7181, %v7212
        %v7214 = vsel %vm5268, %v7189, %v7185
        %v7215 = vsel %vm5270, %v7193, %v7214
        %v7216 = vsel %vm5272, %v7197, %v7215
        %v7217 = vsel %vm5274, %v7201, %v7216
        %v7218 = vsel %vm5276, %v7205, %v7217
        %v7219 = vsel %vm5278, %v7209, %v7218
        %v7220 = vsel %vm5280, %v7213, %v7219
        %v7222 = vsel %vm2362, %v7220, 0.0
        %7223 = vadd.xlane.f32.xlu0 %v7222
        %v7224 = vpop.xlane.xlu0 %7223
        %v7225 = vrcp.pop %v7224
        %v7227 = vlaneseq
        %v7228 = vshrl.u32 %v7227, 7
        %v7229 = vsub.s32 0, %v7228
        %v7230 = vrot.slane %v7225, %v7229
        %v7231 = vlaneseq
        %v7232 = vshrl.u32 %v7231, 7
        %v7233 = vsub.s32 1, %v7232
        %v7234 = vrot.slane %v7225, %v7233
        %v7235 = vlaneseq
        %v7236 = vshrl.u32 %v7235, 7
        %v7237 = vsub.s32 2, %v7236
        %v7238 = vrot.slane %v7225, %v7237
        %v7239 = vlaneseq
        %v7240 = vshrl.u32 %v7239, 7
        %v7241 = vsub.s32 3, %v7240
        %v7242 = vrot.slane %v7225, %v7241
        %v7243 = vlaneseq
        %v7244 = vshrl.u32 %v7243, 7
        %v7245 = vsub.s32 4, %v7244
        %v7246 = vrot.slane %v7225, %v7245
        %v7247 = vlaneseq
        %v7248 = vshrl.u32 %v7247, 7
        %v7249 = vsub.s32 5, %v7248
        %v7250 = vrot.slane %v7225, %v7249
        %v7251 = vlaneseq
        %v7252 = vshrl.u32 %v7251, 7
        %v7253 = vsub.s32 6, %v7252
        %v7254 = vrot.slane %v7225, %v7253
        %v7255 = vlaneseq
        %v7256 = vshrl.u32 %v7255, 7
        %v7257 = vsub.s32 7, %v7256
        %v7258 = vrot.slane %v7225, %v7257
        %v7267 = vmul.f32 %v7135, %v7230
        %v7268 = vmul.f32 %v7137, %v7234
        %v7269 = vmul.f32 %v7139, %v7238
        %v7270 = vmul.f32 %v7141, %v7242
        %v7271 = vmul.f32 %v7143, %v7246
        %v7272 = vmul.f32 %v7145, %v7250
        %v7273 = vmul.f32 %v7147, %v7254
        %v7274 = vmul.f32 %v7149, %v7258
        %v7275 = vpack.c.bf16 %v6907, %v6906
        %v7276 = vpack.c.bf16 %v6909, %v6908
        %v7277 = vpack.c.bf16 %v6911, %v6910
        %v7278 = vpack.c.bf16 %v6913, %v6912
        %v7279 = vpack.c.bf16 %v6915, %v6914
        %v7280 = vpack.c.bf16 %v6917, %v6916
        %v7281 = vpack.c.bf16 %v6919, %v6918
        %v7282 = vpack.c.bf16 %v6921, %v6920
        %v7283 = vpack.c.bf16 %v6923, %v6922
        %v7284 = vpack.c.bf16 %v6925, %v6924
        %v7285 = vpack.c.bf16 %v6927, %v6926
        %v7286 = vpack.c.bf16 %v6929, %v6928
        %v7287 = vpack.c.bf16 %v6931, %v6930
        %v7288 = vpack.c.bf16 %v6933, %v6932
        %v7289 = vpack.c.bf16 %v6935, %v6934
        %v7290 = vpack.c.bf16 %v6937, %v6936
        %v7291 = vpack.c.bf16 %v6939, %v6938
        %v7292 = vpack.c.bf16 %v6941, %v6940
        %v7293 = vpack.c.bf16 %v6943, %v6942
        %v7294 = vpack.c.bf16 %v6945, %v6944
        %v7295 = vpack.c.bf16 %v6947, %v6946
        %v7296 = vpack.c.bf16 %v6949, %v6948
        %v7297 = vpack.c.bf16 %v6951, %v6950
        %v7298 = vpack.c.bf16 %v6953, %v6952
        %v7299 = vpack.c.bf16 %v6955, %v6954
        %v7300 = vpack.c.bf16 %v6957, %v6956
        %v7301 = vpack.c.bf16 %v6959, %v6958
        %v7302 = vpack.c.bf16 %v6961, %v6960
        %v7303 = vpack.c.bf16 %v6963, %v6962
        %v7304 = vpack.c.bf16 %v6965, %v6964
        %v7305 = vpack.c.bf16 %v6967, %v6966
        %v7306 = vpack.c.bf16 %v6969, %v6968
        %v7307 = vpack.c.bf16 %v6971, %v6970
        %v7308 = vpack.c.bf16 %v6973, %v6972
        %v7309 = vpack.c.bf16 %v6975, %v6974
        %v7310 = vpack.c.bf16 %v6977, %v6976
        %v7311 = vpack.c.bf16 %v6979, %v6978
        %v7312 = vpack.c.bf16 %v6981, %v6980
        %v7313 = vpack.c.bf16 %v6983, %v6982
        %v7314 = vpack.c.bf16 %v6985, %v6984
        %v7315 = vpack.c.bf16 %v6987, %v6986
        %v7316 = vpack.c.bf16 %v6989, %v6988
        %v7317 = vpack.c.bf16 %v6991, %v6990
        %v7318 = vpack.c.bf16 %v6993, %v6992
        %v7319 = vpack.c.bf16 %v6995, %v6994
        %v7320 = vpack.c.bf16 %v6997, %v6996
        %v7321 = vpack.c.bf16 %v6999, %v6998
        %v7322 = vpack.c.bf16 %v7001, %v7000
        %v7323 = vpack.c.bf16 %v7003, %v7002
        %v7324 = vpack.c.bf16 %v7005, %v7004
        %v7325 = vpack.c.bf16 %v7007, %v7006
        %v7326 = vpack.c.bf16 %v7009, %v7008
        %v7327 = vpack.c.bf16 %v7011, %v7010
        %v7328 = vpack.c.bf16 %v7013, %v7012
        %v7329 = vpack.c.bf16 %v7015, %v7014
        %v7330 = vpack.c.bf16 %v7017, %v7016
        %v7331 = vpack.c.bf16 %v7019, %v7018
        %v7332 = vpack.c.bf16 %v7021, %v7020
        %v7333 = vpack.c.bf16 %v7023, %v7022
        %v7334 = vpack.c.bf16 %v7025, %v7024
        %v7335 = vpack.c.bf16 %v7027, %v7026
        %v7336 = vpack.c.bf16 %v7029, %v7028
        %v7337 = vpack.c.bf16 %v7031, %v7030
        %v7338 = vpack.c.bf16 %v7033, %v7032
        %v7347 = vunpack.c.l.b16 %v7275
        %v7348 = vunpack.c.h.b16 %v7275
        %v7349 = vunpack.c.l.b16 %v7276
        %v7350 = vunpack.c.h.b16 %v7276
        %v7351 = vunpack.c.l.b16 %v7277
        %v7352 = vunpack.c.h.b16 %v7277
        %v7353 = vunpack.c.l.b16 %v7278
        %v7354 = vunpack.c.h.b16 %v7278
        %v7355 = vunpack.c.l.b16 %v7279
        %v7356 = vunpack.c.h.b16 %v7279
        %v7357 = vunpack.c.l.b16 %v7280
        %v7358 = vunpack.c.h.b16 %v7280
        %v7359 = vunpack.c.l.b16 %v7281
        %v7360 = vunpack.c.h.b16 %v7281
        %v7361 = vunpack.c.l.b16 %v7282
        %v7362 = vunpack.c.h.b16 %v7282
        %7363 = vset.pattern.permute.xlu0 0
        %7364 = vperm.xlu0 %7363, %v7347
        %v7365 = vpop.permute.xlu0 %7364
        %7366 = vset.pattern.permute.xlu0 0
        %7367 = vperm.xlu0 %7366, %v7348
        %v7368 = vpop.permute.xlu0 %7367
        %7369 = vset.pattern.permute.xlu0 0
        %7370 = vperm.xlu0 %7369, %v7349
        %v7371 = vpop.permute.xlu0 %7370
        %7372 = vset.pattern.permute.xlu0 0
        %7373 = vperm.xlu0 %7372, %v7350
        %v7374 = vpop.permute.xlu0 %7373
        %7375 = vset.pattern.permute.xlu0 0
        %7376 = vperm.xlu0 %7375, %v7351
        %v7377 = vpop.permute.xlu0 %7376
        %7378 = vset.pattern.permute.xlu0 0
        %7379 = vperm.xlu0 %7378, %v7352
        %v7380 = vpop.permute.xlu0 %7379
        %7381 = vset.pattern.permute.xlu0 0
        %7382 = vperm.xlu0 %7381, %v7353
        %v7383 = vpop.permute.xlu0 %7382
        %7384 = vset.pattern.permute.xlu0 0
        %7385 = vperm.xlu0 %7384, %v7354
        %v7386 = vpop.permute.xlu0 %7385
        %7387 = vset.pattern.permute.xlu0 0
        %7388 = vperm.xlu0 %7387, %v7355
        %v7389 = vpop.permute.xlu0 %7388
        %7390 = vset.pattern.permute.xlu0 0
        %7391 = vperm.xlu0 %7390, %v7356
        %v7392 = vpop.permute.xlu0 %7391
        %7393 = vset.pattern.permute.xlu0 0
        %7394 = vperm.xlu0 %7393, %v7357
        %v7395 = vpop.permute.xlu0 %7394
        %7396 = vset.pattern.permute.xlu0 0
        %7397 = vperm.xlu0 %7396, %v7358
        %v7398 = vpop.permute.xlu0 %7397
        %7399 = vset.pattern.permute.xlu0 0
        %7400 = vperm.xlu0 %7399, %v7359
        %v7401 = vpop.permute.xlu0 %7400
        %7402 = vset.pattern.permute.xlu0 0
        %7403 = vperm.xlu0 %7402, %v7360
        %v7404 = vpop.permute.xlu0 %7403
        %7405 = vset.pattern.permute.xlu0 0
        %7406 = vperm.xlu0 %7405, %v7361
        %v7407 = vpop.permute.xlu0 %7406
        %7408 = vset.pattern.permute.xlu0 0
        %7409 = vperm.xlu0 %7408, %v7362
        %v7410 = vpop.permute.xlu0 %7409
        %v7411 = vlaneseq
        %v7412 = vshrl.u32 %v7411, 7
        %v7413 = vsub.s32 %v4605, %v7412
        %v7414 = vrot.slane %v7365, %v7413
        %v7415 = vlaneseq
        %v7416 = vshrl.u32 %v7415, 7
        %v7417 = vsub.s32 %v4610, %v7416
        %v7418 = vrot.slane %v7368, %v7417
        %v7419 = vsel %vm4615, %v7418, %v7414
        %v7420 = vlaneseq
        %v7421 = vshrl.u32 %v7420, 7
        %v7422 = vsub.s32 %v4617, %v7421
        %v7423 = vrot.slane %v7371, %v7422
        %v7424 = vsel %vm4622, %v7423, %v7419
        %v7425 = vlaneseq
        %v7426 = vshrl.u32 %v7425, 7
        %v7427 = vsub.s32 %v4624, %v7426
        %v7428 = vrot.slane %v7374, %v7427
        %v7429 = vsel %vm4629, %v7428, %v7424
        %v7430 = vlaneseq
        %v7431 = vshrl.u32 %v7430, 7
        %v7432 = vsub.s32 %v4631, %v7431
        %v7433 = vrot.slane %v7377, %v7432
        %v7434 = vsel %vm4636, %v7433, %v7429
        %v7435 = vlaneseq
        %v7436 = vshrl.u32 %v7435, 7
        %v7437 = vsub.s32 %v4638, %v7436
        %v7438 = vrot.slane %v7380, %v7437
        %v7439 = vsel %vm4643, %v7438, %v7434
        %v7440 = vlaneseq
        %v7441 = vshrl.u32 %v7440, 7
        %v7442 = vsub.s32 %v4645, %v7441
        %v7443 = vrot.slane %v7383, %v7442
        %v7444 = vsel %vm4650, %v7443, %v7439
        %v7445 = vlaneseq
        %v7446 = vshrl.u32 %v7445, 7
        %v7447 = vsub.s32 %v4652, %v7446
        %v7448 = vrot.slane %v7386, %v7447
        %v7449 = vsel %vm4657, %v7448, %v7444
        %v7450 = vlaneseq
        %v7451 = vshrl.u32 %v7450, 7
        %v7452 = vsub.s32 %v4659, %v7451
        %v7453 = vrot.slane %v7389, %v7452
        %v7454 = vsel %vm4664, %v7453, %v7449
        %v7455 = vlaneseq
        %v7456 = vshrl.u32 %v7455, 7
        %v7457 = vsub.s32 %v4666, %v7456
        %v7458 = vrot.slane %v7392, %v7457
        %v7459 = vsel %vm4671, %v7458, %v7454
        %v7460 = vlaneseq
        %v7461 = vshrl.u32 %v7460, 7
        %v7462 = vsub.s32 %v4673, %v7461
        %v7463 = vrot.slane %v7395, %v7462
        %v7464 = vsel %vm4678, %v7463, %v7459
        %v7465 = vlaneseq
        %v7466 = vshrl.u32 %v7465, 7
        %v7467 = vsub.s32 %v4680, %v7466
        %v7468 = vrot.slane %v7398, %v7467
        %v7469 = vsel %vm4685, %v7468, %v7464
        %v7470 = vlaneseq
        %v7471 = vshrl.u32 %v7470, 7
        %v7472 = vsub.s32 %v4687, %v7471
        %v7473 = vrot.slane %v7401, %v7472
        %v7474 = vsel %vm4692, %v7473, %v7469
        %v7475 = vlaneseq
        %v7476 = vshrl.u32 %v7475, 7
        %v7477 = vsub.s32 %v4694, %v7476
        %v7478 = vrot.slane %v7404, %v7477
        %v7479 = vsel %vm4699, %v7478, %v7474
        %v7480 = vlaneseq
        %v7481 = vshrl.u32 %v7480, 7
        %v7482 = vsub.s32 %v4701, %v7481
        %v7483 = vrot.slane %v7407, %v7482
        %v7484 = vsel %vm4706, %v7483, %v7479
        %v7485 = vlaneseq
        %v7486 = vshrl.u32 %v7485, 7
        %v7487 = vsub.s32 %v4708, %v7486
        %v7488 = vrot.slane %v7410, %v7487
        %v7489 = vsel %vm4713, %v7488, %v7484
        %v7490 = vpack.c.b16 %v7489, %v7489
        %7492 = vmatprep.subr.bf16.mxu0 0
        %7493 = vmatpush1.bf16.msra.mxu0 %v864
        %7494 = vmatprep.subr.bf16.mxu0 0
        %7495 = vmatpush1.bf16.msra.mxu0 %v865
        %7496 = vmatprep.subr.bf16.mxu0 0
        %7497 = vmatpush1.bf16.msra.mxu0 %v866
        %7498 = vmatprep.subr.bf16.mxu0 0
        %7499 = vmatpush1.bf16.msra.mxu0 %v867
        %7500 = vmatprep.subr.bf16.mxu0 0
        %7501 = vmatpush1.bf16.msra.mxu0 %v868
        %7502 = vmatprep.subr.bf16.mxu0 0
        %7503 = vmatpush1.bf16.msra.mxu0 %v869
        %7504 = vmatprep.subr.bf16.mxu0 0
        %7505 = vmatpush1.bf16.msra.mxu0 %v870
        %7506 = vmatprep.subr.bf16.mxu0 0
        %7507 = vmatpush1.bf16.msra.mxu0 %v871
        %7508 = vmatprep.subr.bf16.mxu0 0
        %7509 = vmatpush1.bf16.msra.mxu0 0
        %7510 = vmatprep.subr.bf16.mxu0 0
        %7511 = vmatpush1.bf16.msra.mxu0 0
        %7512 = vmatprep.subr.bf16.mxu0 0
        %7513 = vmatpush1.bf16.msra.mxu0 0
        %7514 = vmatprep.subr.bf16.mxu0 0
        %7515 = vmatpush1.bf16.msra.mxu0 0
        %7516 = vmatprep.subr.bf16.mxu0 0
        %7517 = vmatpush1.bf16.msra.mxu0 0
        %7518 = vmatprep.subr.bf16.mxu0 0
        %7519 = vmatpush1.bf16.msra.mxu0 0
        %7520 = vmatprep.subr.bf16.mxu0 0
        %7521 = vmatpush1.bf16.msra.mxu0 0
        %7522 = vmatprep.subr.bf16.mxu0 0
        %7523 = vmatpush1.bf16.msra.mxu0 0
        %7524 = vmatprep.mubr.bf16.mxu0 0
        %7525 = vmatmul.mubr.bf16.gmra.mrb[0].mxu0 %v7490
        %v7526 = vpop.f32.mrb[0].mxu0
        %v7527 = vadd.f32 0.0, %v7526
        %v7528 = vpop.f32.mrb[0].mxu0
        %v7529 = vpop.f32.mrb[0].mxu0
        %v7530 = vpop.f32.mrb[0].mxu0
        %7531 = vdwg.mxu0
        %v7540 = vunpack.c.l.b16 %v7283
        %v7541 = vunpack.c.h.b16 %v7283
        %v7542 = vunpack.c.l.b16 %v7284
        %v7543 = vunpack.c.h.b16 %v7284
        %v7544 = vunpack.c.l.b16 %v7285
        %v7545 = vunpack.c.h.b16 %v7285
        %v7546 = vunpack.c.l.b16 %v7286
        %v7547 = vunpack.c.h.b16 %v7286
        %v7548 = vunpack.c.l.b16 %v7287
        %v7549 = vunpack.c.h.b16 %v7287
        %v7550 = vunpack.c.l.b16 %v7288
        %v7551 = vunpack.c.h.b16 %v7288
        %v7552 = vunpack.c.l.b16 %v7289
        %v7553 = vunpack.c.h.b16 %v7289
        %v7554 = vunpack.c.l.b16 %v7290
        %v7555 = vunpack.c.h.b16 %v7290
        %7556 = vset.pattern.permute.xlu0 0
        %7557 = vperm.xlu0 %7556, %v7540
        %v7558 = vpop.permute.xlu0 %7557
        %7559 = vset.pattern.permute.xlu0 0
        %7560 = vperm.xlu0 %7559, %v7541
        %v7561 = vpop.permute.xlu0 %7560
        %7562 = vset.pattern.permute.xlu0 0
        %7563 = vperm.xlu0 %7562, %v7542
        %v7564 = vpop.permute.xlu0 %7563
        %7565 = vset.pattern.permute.xlu0 0
        %7566 = vperm.xlu0 %7565, %v7543
        %v7567 = vpop.permute.xlu0 %7566
        %7568 = vset.pattern.permute.xlu0 0
        %7569 = vperm.xlu0 %7568, %v7544
        %v7570 = vpop.permute.xlu0 %7569
        %7571 = vset.pattern.permute.xlu0 0
        %7572 = vperm.xlu0 %7571, %v7545
        %v7573 = vpop.permute.xlu0 %7572
        %7574 = vset.pattern.permute.xlu0 0
        %7575 = vperm.xlu0 %7574, %v7546
        %v7576 = vpop.permute.xlu0 %7575
        %7577 = vset.pattern.permute.xlu0 0
        %7578 = vperm.xlu0 %7577, %v7547
        %v7579 = vpop.permute.xlu0 %7578
        %7580 = vset.pattern.permute.xlu0 0
        %7581 = vperm.xlu0 %7580, %v7548
        %v7582 = vpop.permute.xlu0 %7581
        %7583 = vset.pattern.permute.xlu0 0
        %7584 = vperm.xlu0 %7583, %v7549
        %v7585 = vpop.permute.xlu0 %7584
        %7586 = vset.pattern.permute.xlu0 0
        %7587 = vperm.xlu0 %7586, %v7550
        %v7588 = vpop.permute.xlu0 %7587
        %7589 = vset.pattern.permute.xlu0 0
        %7590 = vperm.xlu0 %7589, %v7551
        %v7591 = vpop.permute.xlu0 %7590
        %7592 = vset.pattern.permute.xlu0 0
        %7593 = vperm.xlu0 %7592, %v7552
        %v7594 = vpop.permute.xlu0 %7593
        %7595 = vset.pattern.permute.xlu0 0
        %7596 = vperm.xlu0 %7595, %v7553
        %v7597 = vpop.permute.xlu0 %7596
        %7598 = vset.pattern.permute.xlu0 0
        %7599 = vperm.xlu0 %7598, %v7554
        %v7600 = vpop.permute.xlu0 %7599
        %7601 = vset.pattern.permute.xlu0 0
        %7602 = vperm.xlu0 %7601, %v7555
        %v7603 = vpop.permute.xlu0 %7602
        %v7604 = vlaneseq
        %v7605 = vshrl.u32 %v7604, 7
        %v7606 = vsub.s32 %v4605, %v7605
        %v7607 = vrot.slane %v7558, %v7606
        %v7608 = vlaneseq
        %v7609 = vshrl.u32 %v7608, 7
        %v7610 = vsub.s32 %v4610, %v7609
        %v7611 = vrot.slane %v7561, %v7610
        %v7612 = vsel %vm4615, %v7611, %v7607
        %v7613 = vlaneseq
        %v7614 = vshrl.u32 %v7613, 7
        %v7615 = vsub.s32 %v4617, %v7614
        %v7616 = vrot.slane %v7564, %v7615
        %v7617 = vsel %vm4622, %v7616, %v7612
        %v7618 = vlaneseq
        %v7619 = vshrl.u32 %v7618, 7
        %v7620 = vsub.s32 %v4624, %v7619
        %v7621 = vrot.slane %v7567, %v7620
        %v7622 = vsel %vm4629, %v7621, %v7617
        %v7623 = vlaneseq
        %v7624 = vshrl.u32 %v7623, 7
        %v7625 = vsub.s32 %v4631, %v7624
        %v7626 = vrot.slane %v7570, %v7625
        %v7627 = vsel %vm4636, %v7626, %v7622
        %v7628 = vlaneseq
        %v7629 = vshrl.u32 %v7628, 7
        %v7630 = vsub.s32 %v4638, %v7629
        %v7631 = vrot.slane %v7573, %v7630
        %v7632 = vsel %vm4643, %v7631, %v7627
        %v7633 = vlaneseq
        %v7634 = vshrl.u32 %v7633, 7
        %v7635 = vsub.s32 %v4645, %v7634
        %v7636 = vrot.slane %v7576, %v7635
        %v7637 = vsel %vm4650, %v7636, %v7632
        %v7638 = vlaneseq
        %v7639 = vshrl.u32 %v7638, 7
        %v7640 = vsub.s32 %v4652, %v7639
        %v7641 = vrot.slane %v7579, %v7640
        %v7642 = vsel %vm4657, %v7641, %v7637
        %v7643 = vlaneseq
        %v7644 = vshrl.u32 %v7643, 7
        %v7645 = vsub.s32 %v4659, %v7644
        %v7646 = vrot.slane %v7582, %v7645
        %v7647 = vsel %vm4664, %v7646, %v7642
        %v7648 = vlaneseq
        %v7649 = vshrl.u32 %v7648, 7
        %v7650 = vsub.s32 %v4666, %v7649
        %v7651 = vrot.slane %v7585, %v7650
        %v7652 = vsel %vm4671, %v7651, %v7647
        %v7653 = vlaneseq
        %v7654 = vshrl.u32 %v7653, 7
        %v7655 = vsub.s32 %v4673, %v7654
        %v7656 = vrot.slane %v7588, %v7655
        %v7657 = vsel %vm4678, %v7656, %v7652
        %v7658 = vlaneseq
        %v7659 = vshrl.u32 %v7658, 7
        %v7660 = vsub.s32 %v4680, %v7659
        %v7661 = vrot.slane %v7591, %v7660
        %v7662 = vsel %vm4685, %v7661, %v7657
        %v7663 = vlaneseq
        %v7664 = vshrl.u32 %v7663, 7
        %v7665 = vsub.s32 %v4687, %v7664
        %v7666 = vrot.slane %v7594, %v7665
        %v7667 = vsel %vm4692, %v7666, %v7662
        %v7668 = vlaneseq
        %v7669 = vshrl.u32 %v7668, 7
        %v7670 = vsub.s32 %v4694, %v7669
        %v7671 = vrot.slane %v7597, %v7670
        %v7672 = vsel %vm4699, %v7671, %v7667
        %v7673 = vlaneseq
        %v7674 = vshrl.u32 %v7673, 7
        %v7675 = vsub.s32 %v4701, %v7674
        %v7676 = vrot.slane %v7600, %v7675
        %v7677 = vsel %vm4706, %v7676, %v7672
        %v7678 = vlaneseq
        %v7679 = vshrl.u32 %v7678, 7
        %v7680 = vsub.s32 %v4708, %v7679
        %v7681 = vrot.slane %v7603, %v7680
        %v7682 = vsel %vm4713, %v7681, %v7677
        %v7683 = vpack.c.b16 %v7682, %v7682
        %7685 = vmatprep.subr.bf16.mxu0 0
        %7686 = vmatpush1.bf16.msra.mxu0 %v872
        %7687 = vmatprep.subr.bf16.mxu0 0
        %7688 = vmatpush1.bf16.msra.mxu0 %v873
        %7689 = vmatprep.subr.bf16.mxu0 0
        %7690 = vmatpush1.bf16.msra.mxu0 %v874
        %7691 = vmatprep.subr.bf16.mxu0 0
        %7692 = vmatpush1.bf16.msra.mxu0 %v875
        %7693 = vmatprep.subr.bf16.mxu0 0
        %7694 = vmatpush1.bf16.msra.mxu0 %v876
        %7695 = vmatprep.subr.bf16.mxu0 0
        %7696 = vmatpush1.bf16.msra.mxu0 %v877
        %7697 = vmatprep.subr.bf16.mxu0 0
        %7698 = vmatpush1.bf16.msra.mxu0 %v878
        %7699 = vmatprep.subr.bf16.mxu0 0
        %7700 = vmatpush1.bf16.msra.mxu0 %v879
        %7701 = vmatprep.subr.bf16.mxu0 0
        %7702 = vmatpush1.bf16.msra.mxu0 0
        %7703 = vmatprep.subr.bf16.mxu0 0
        %7704 = vmatpush1.bf16.msra.mxu0 0
        %7705 = vmatprep.subr.bf16.mxu0 0
        %7706 = vmatpush1.bf16.msra.mxu0 0
        %7707 = vmatprep.subr.bf16.mxu0 0
        %7708 = vmatpush1.bf16.msra.mxu0 0
        %7709 = vmatprep.subr.bf16.mxu0 0
        %7710 = vmatpush1.bf16.msra.mxu0 0
        %7711 = vmatprep.subr.bf16.mxu0 0
        %7712 = vmatpush1.bf16.msra.mxu0 0
        %7713 = vmatprep.subr.bf16.mxu0 0
        %7714 = vmatpush1.bf16.msra.mxu0 0
        %7715 = vmatprep.subr.bf16.mxu0 0
        %7716 = vmatpush1.bf16.msra.mxu0 0
        %7717 = vmatprep.mubr.bf16.mxu0 0
        %7718 = vmatmul.mubr.bf16.gmra.mrb[0].mxu0 %v7683
        %v7719 = vpop.f32.mrb[0].mxu0
        %v7720 = vadd.f32 0.0, %v7719
        %v7721 = vpop.f32.mrb[0].mxu0
        %v7722 = vpop.f32.mrb[0].mxu0
        %v7723 = vpop.f32.mrb[0].mxu0
        %7724 = vdwg.mxu0
        %v7733 = vunpack.c.l.b16 %v7291
        %v7734 = vunpack.c.h.b16 %v7291
        %v7735 = vunpack.c.l.b16 %v7292
        %v7736 = vunpack.c.h.b16 %v7292
        %v7737 = vunpack.c.l.b16 %v7293
        %v7738 = vunpack.c.h.b16 %v7293
        %v7739 = vunpack.c.l.b16 %v7294
        %v7740 = vunpack.c.h.b16 %v7294
        %v7741 = vunpack.c.l.b16 %v7295
        %v7742 = vunpack.c.h.b16 %v7295
        %v7743 = vunpack.c.l.b16 %v7296
        %v7744 = vunpack.c.h.b16 %v7296
        %v7745 = vunpack.c.l.b16 %v7297
        %v7746 = vunpack.c.h.b16 %v7297
        %v7747 = vunpack.c.l.b16 %v7298
        %v7748 = vunpack.c.h.b16 %v7298
        %7749 = vset.pattern.permute.xlu0 0
        %7750 = vperm.xlu0 %7749, %v7733
        %v7751 = vpop.permute.xlu0 %7750
        %7752 = vset.pattern.permute.xlu0 0
        %7753 = vperm.xlu0 %7752, %v7734
        %v7754 = vpop.permute.xlu0 %7753
        %7755 = vset.pattern.permute.xlu0 0
        %7756 = vperm.xlu0 %7755, %v7735
        %v7757 = vpop.permute.xlu0 %7756
        %7758 = vset.pattern.permute.xlu0 0
        %7759 = vperm.xlu0 %7758, %v7736
        %v7760 = vpop.permute.xlu0 %7759
        %7761 = vset.pattern.permute.xlu0 0
        %7762 = vperm.xlu0 %7761, %v7737
        %v7763 = vpop.permute.xlu0 %7762
        %7764 = vset.pattern.permute.xlu0 0
        %7765 = vperm.xlu0 %7764, %v7738
        %v7766 = vpop.permute.xlu0 %7765
        %7767 = vset.pattern.permute.xlu0 0
        %7768 = vperm.xlu0 %7767, %v7739
        %v7769 = vpop.permute.xlu0 %7768
        %7770 = vset.pattern.permute.xlu0 0
        %7771 = vperm.xlu0 %7770, %v7740
        %v7772 = vpop.permute.xlu0 %7771
        %7773 = vset.pattern.permute.xlu0 0
        %7774 = vperm.xlu0 %7773, %v7741
        %v7775 = vpop.permute.xlu0 %7774
        %7776 = vset.pattern.permute.xlu0 0
        %7777 = vperm.xlu0 %7776, %v7742
        %v7778 = vpop.permute.xlu0 %7777
        %7779 = vset.pattern.permute.xlu0 0
        %7780 = vperm.xlu0 %7779, %v7743
        %v7781 = vpop.permute.xlu0 %7780
        %7782 = vset.pattern.permute.xlu0 0
        %7783 = vperm.xlu0 %7782, %v7744
        %v7784 = vpop.permute.xlu0 %7783
        %7785 = vset.pattern.permute.xlu0 0
        %7786 = vperm.xlu0 %7785, %v7745
        %v7787 = vpop.permute.xlu0 %7786
        %7788 = vset.pattern.permute.xlu0 0
        %7789 = vperm.xlu0 %7788, %v7746
        %v7790 = vpop.permute.xlu0 %7789
        %7791 = vset.pattern.permute.xlu0 0
        %7792 = vperm.xlu0 %7791, %v7747
        %v7793 = vpop.permute.xlu0 %7792
        %7794 = vset.pattern.permute.xlu0 0
        %7795 = vperm.xlu0 %7794, %v7748
        %v7796 = vpop.permute.xlu0 %7795
        %v7797 = vlaneseq
        %v7798 = vshrl.u32 %v7797, 7
        %v7799 = vsub.s32 %v4605, %v7798
        %v7800 = vrot.slane %v7751, %v7799
        %v7801 = vlaneseq
        %v7802 = vshrl.u32 %v7801, 7
        %v7803 = vsub.s32 %v4610, %v7802
        %v7804 = vrot.slane %v7754, %v7803
        %v7805 = vsel %vm4615, %v7804, %v7800
        %v7806 = vlaneseq
        %v7807 = vshrl.u32 %v7806, 7
        %v7808 = vsub.s32 %v4617, %v7807
        %v7809 = vrot.slane %v7757, %v7808
        %v7810 = vsel %vm4622, %v7809, %v7805
        %v7811 = vlaneseq
        %v7812 = vshrl.u32 %v7811, 7
        %v7813 = vsub.s32 %v4624, %v7812
        %v7814 = vrot.slane %v7760, %v7813
        %v7815 = vsel %vm4629, %v7814, %v7810
        %v7816 = vlaneseq
        %v7817 = vshrl.u32 %v7816, 7
        %v7818 = vsub.s32 %v4631, %v7817
        %v7819 = vrot.slane %v7763, %v7818
        %v7820 = vsel %vm4636, %v7819, %v7815
        %v7821 = vlaneseq
        %v7822 = vshrl.u32 %v7821, 7
        %v7823 = vsub.s32 %v4638, %v7822
        %v7824 = vrot.slane %v7766, %v7823
        %v7825 = vsel %vm4643, %v7824, %v7820
        %v7826 = vlaneseq
        %v7827 = vshrl.u32 %v7826, 7
        %v7828 = vsub.s32 %v4645, %v7827
        %v7829 = vrot.slane %v7769, %v7828
        %v7830 = vsel %vm4650, %v7829, %v7825
        %v7831 = vlaneseq
        %v7832 = vshrl.u32 %v7831, 7
        %v7833 = vsub.s32 %v4652, %v7832
        %v7834 = vrot.slane %v7772, %v7833
        %v7835 = vsel %vm4657, %v7834, %v7830
        %v7836 = vlaneseq
        %v7837 = vshrl.u32 %v7836, 7
        %v7838 = vsub.s32 %v4659, %v7837
        %v7839 = vrot.slane %v7775, %v7838
        %v7840 = vsel %vm4664, %v7839, %v7835
        %v7841 = vlaneseq
        %v7842 = vshrl.u32 %v7841, 7
        %v7843 = vsub.s32 %v4666, %v7842
        %v7844 = vrot.slane %v7778, %v7843
        %v7845 = vsel %vm4671, %v7844, %v7840
        %v7846 = vlaneseq
        %v7847 = vshrl.u32 %v7846, 7
        %v7848 = vsub.s32 %v4673, %v7847
        %v7849 = vrot.slane %v7781, %v7848
        %v7850 = vsel %vm4678, %v7849, %v7845
        %v7851 = vlaneseq
        %v7852 = vshrl.u32 %v7851, 7
        %v7853 = vsub.s32 %v4680, %v7852
        %v7854 = vrot.slane %v7784, %v7853
        %v7855 = vsel %vm4685, %v7854, %v7850
        %v7856 = vlaneseq
        %v7857 = vshrl.u32 %v7856, 7
        %v7858 = vsub.s32 %v4687, %v7857
        %v7859 = vrot.slane %v7787, %v7858
        %v7860 = vsel %vm4692, %v7859, %v7855
        %v7861 = vlaneseq
        %v7862 = vshrl.u32 %v7861, 7
        %v7863 = vsub.s32 %v4694, %v7862
        %v7864 = vrot.slane %v7790, %v7863
        %v7865 = vsel %vm4699, %v7864, %v7860
        %v7866 = vlaneseq
        %v7867 = vshrl.u32 %v7866, 7
        %v7868 = vsub.s32 %v4701, %v7867
        %v7869 = vrot.slane %v7793, %v7868
        %v7870 = vsel %vm4706, %v7869, %v7865
        %v7871 = vlaneseq
        %v7872 = vshrl.u32 %v7871, 7
        %v7873 = vsub.s32 %v4708, %v7872
        %v7874 = vrot.slane %v7796, %v7873
        %v7875 = vsel %vm4713, %v7874, %v7870
        %v7876 = vpack.c.b16 %v7875, %v7875
        %7878 = vmatprep.subr.bf16.mxu0 0
        %7879 = vmatpush1.bf16.msra.mxu0 %v880
        %7880 = vmatprep.subr.bf16.mxu0 0
        %7881 = vmatpush1.bf16.msra.mxu0 %v881
        %7882 = vmatprep.subr.bf16.mxu0 0
        %7883 = vmatpush1.bf16.msra.mxu0 %v882
        %7884 = vmatprep.subr.bf16.mxu0 0
        %7885 = vmatpush1.bf16.msra.mxu0 %v883
        %7886 = vmatprep.subr.bf16.mxu0 0
        %7887 = vmatpush1.bf16.msra.mxu0 %v884
        %7888 = vmatprep.subr.bf16.mxu0 0
        %7889 = vmatpush1.bf16.msra.mxu0 %v885
        %7890 = vmatprep.subr.bf16.mxu0 0
        %7891 = vmatpush1.bf16.msra.mxu0 %v886
        %7892 = vmatprep.subr.bf16.mxu0 0
        %7893 = vmatpush1.bf16.msra.mxu0 %v887
        %7894 = vmatprep.subr.bf16.mxu0 0
        %7895 = vmatpush1.bf16.msra.mxu0 0
        %7896 = vmatprep.subr.bf16.mxu0 0
        %7897 = vmatpush1.bf16.msra.mxu0 0
        %7898 = vmatprep.subr.bf16.mxu0 0
        %7899 = vmatpush1.bf16.msra.mxu0 0
        %7900 = vmatprep.subr.bf16.mxu0 0
        %7901 = vmatpush1.bf16.msra.mxu0 0
        %7902 = vmatprep.subr.bf16.mxu0 0
        %7903 = vmatpush1.bf16.msra.mxu0 0
        %7904 = vmatprep.subr.bf16.mxu0 0
        %7905 = vmatpush1.bf16.msra.mxu0 0
        %7906 = vmatprep.subr.bf16.mxu0 0
        %7907 = vmatpush1.bf16.msra.mxu0 0
        %7908 = vmatprep.subr.bf16.mxu0 0
        %7909 = vmatpush1.bf16.msra.mxu0 0
        %7910 = vmatprep.mubr.bf16.mxu0 0
        %7911 = vmatmul.mubr.bf16.gmra.mrb[0].mxu0 %v7876
        %v7912 = vpop.f32.mrb[0].mxu0
        %v7913 = vadd.f32 0.0, %v7912
        %v7914 = vpop.f32.mrb[0].mxu0
        %v7915 = vpop.f32.mrb[0].mxu0
        %v7916 = vpop.f32.mrb[0].mxu0
        %7917 = vdwg.mxu0
        %v7926 = vunpack.c.l.b16 %v7299
        %v7927 = vunpack.c.h.b16 %v7299
        %v7928 = vunpack.c.l.b16 %v7300
        %v7929 = vunpack.c.h.b16 %v7300
        %v7930 = vunpack.c.l.b16 %v7301
        %v7931 = vunpack.c.h.b16 %v7301
        %v7932 = vunpack.c.l.b16 %v7302
        %v7933 = vunpack.c.h.b16 %v7302
        %v7934 = vunpack.c.l.b16 %v7303
        %v7935 = vunpack.c.h.b16 %v7303
        %v7936 = vunpack.c.l.b16 %v7304
        %v7937 = vunpack.c.h.b16 %v7304
        %v7938 = vunpack.c.l.b16 %v7305
        %v7939 = vunpack.c.h.b16 %v7305
        %v7940 = vunpack.c.l.b16 %v7306
        %v7941 = vunpack.c.h.b16 %v7306
        %7942 = vset.pattern.permute.xlu0 0
        %7943 = vperm.xlu0 %7942, %v7926
        %v7944 = vpop.permute.xlu0 %7943
        %7945 = vset.pattern.permute.xlu0 0
        %7946 = vperm.xlu0 %7945, %v7927
        %v7947 = vpop.permute.xlu0 %7946
        %7948 = vset.pattern.permute.xlu0 0
        %7949 = vperm.xlu0 %7948, %v7928
        %v7950 = vpop.permute.xlu0 %7949
        %7951 = vset.pattern.permute.xlu0 0
        %7952 = vperm.xlu0 %7951, %v7929
        %v7953 = vpop.permute.xlu0 %7952
        %7954 = vset.pattern.permute.xlu0 0
        %7955 = vperm.xlu0 %7954, %v7930
        %v7956 = vpop.permute.xlu0 %7955
        %7957 = vset.pattern.permute.xlu0 0
        %7958 = vperm.xlu0 %7957, %v7931
        %v7959 = vpop.permute.xlu0 %7958
        %7960 = vset.pattern.permute.xlu0 0
        %7961 = vperm.xlu0 %7960, %v7932
        %v7962 = vpop.permute.xlu0 %7961
        %7963 = vset.pattern.permute.xlu0 0
        %7964 = vperm.xlu0 %7963, %v7933
        %v7965 = vpop.permute.xlu0 %7964
        %7966 = vset.pattern.permute.xlu0 0
        %7967 = vperm.xlu0 %7966, %v7934
        %v7968 = vpop.permute.xlu0 %7967
        %7969 = vset.pattern.permute.xlu0 0
        %7970 = vperm.xlu0 %7969, %v7935
        %v7971 = vpop.permute.xlu0 %7970
        %7972 = vset.pattern.permute.xlu0 0
        %7973 = vperm.xlu0 %7972, %v7936
        %v7974 = vpop.permute.xlu0 %7973
        %7975 = vset.pattern.permute.xlu0 0
        %7976 = vperm.xlu0 %7975, %v7937
        %v7977 = vpop.permute.xlu0 %7976
        %7978 = vset.pattern.permute.xlu0 0
        %7979 = vperm.xlu0 %7978, %v7938
        %v7980 = vpop.permute.xlu0 %7979
        %7981 = vset.pattern.permute.xlu0 0
        %7982 = vperm.xlu0 %7981, %v7939
        %v7983 = vpop.permute.xlu0 %7982
        %7984 = vset.pattern.permute.xlu0 0
        %7985 = vperm.xlu0 %7984, %v7940
        %v7986 = vpop.permute.xlu0 %7985
        %7987 = vset.pattern.permute.xlu0 0
        %7988 = vperm.xlu0 %7987, %v7941
        %v7989 = vpop.permute.xlu0 %7988
        %v7990 = vlaneseq
        %v7991 = vshrl.u32 %v7990, 7
        %v7992 = vsub.s32 %v4605, %v7991
        %v7993 = vrot.slane %v7944, %v7992
        %v7994 = vlaneseq
        %v7995 = vshrl.u32 %v7994, 7
        %v7996 = vsub.s32 %v4610, %v7995
        %v7997 = vrot.slane %v7947, %v7996
        %v7998 = vsel %vm4615, %v7997, %v7993
        %v7999 = vlaneseq
        %v8000 = vshrl.u32 %v7999, 7
        %v8001 = vsub.s32 %v4617, %v8000
        %v8002 = vrot.slane %v7950, %v8001
        %v8003 = vsel %vm4622, %v8002, %v7998
        %v8004 = vlaneseq
        %v8005 = vshrl.u32 %v8004, 7
        %v8006 = vsub.s32 %v4624, %v8005
        %v8007 = vrot.slane %v7953, %v8006
        %v8008 = vsel %vm4629, %v8007, %v8003
        %v8009 = vlaneseq
        %v8010 = vshrl.u32 %v8009, 7
        %v8011 = vsub.s32 %v4631, %v8010
        %v8012 = vrot.slane %v7956, %v8011
        %v8013 = vsel %vm4636, %v8012, %v8008
        %v8014 = vlaneseq
        %v8015 = vshrl.u32 %v8014, 7
        %v8016 = vsub.s32 %v4638, %v8015
        %v8017 = vrot.slane %v7959, %v8016
        %v8018 = vsel %vm4643, %v8017, %v8013
        %v8019 = vlaneseq
        %v8020 = vshrl.u32 %v8019, 7
        %v8021 = vsub.s32 %v4645, %v8020
        %v8022 = vrot.slane %v7962, %v8021
        %v8023 = vsel %vm4650, %v8022, %v8018
        %v8024 = vlaneseq
        %v8025 = vshrl.u32 %v8024, 7
        %v8026 = vsub.s32 %v4652, %v8025
        %v8027 = vrot.slane %v7965, %v8026
        %v8028 = vsel %vm4657, %v8027, %v8023
        %v8029 = vlaneseq
        %v8030 = vshrl.u32 %v8029, 7
        %v8031 = vsub.s32 %v4659, %v8030
        %v8032 = vrot.slane %v7968, %v8031
        %v8033 = vsel %vm4664, %v8032, %v8028
        %v8034 = vlaneseq
        %v8035 = vshrl.u32 %v8034, 7
        %v8036 = vsub.s32 %v4666, %v8035
        %v8037 = vrot.slane %v7971, %v8036
        %v8038 = vsel %vm4671, %v8037, %v8033
        %v8039 = vlaneseq
        %v8040 = vshrl.u32 %v8039, 7
        %v8041 = vsub.s32 %v4673, %v8040
        %v8042 = vrot.slane %v7974, %v8041
        %v8043 = vsel %vm4678, %v8042, %v8038
        %v8044 = vlaneseq
        %v8045 = vshrl.u32 %v8044, 7
        %v8046 = vsub.s32 %v4680, %v8045
        %v8047 = vrot.slane %v7977, %v8046
        %v8048 = vsel %vm4685, %v8047, %v8043
        %v8049 = vlaneseq
        %v8050 = vshrl.u32 %v8049, 7
        %v8051 = vsub.s32 %v4687, %v8050
        %v8052 = vrot.slane %v7980, %v8051
        %v8053 = vsel %vm4692, %v8052, %v8048
        %v8054 = vlaneseq
        %v8055 = vshrl.u32 %v8054, 7
        %v8056 = vsub.s32 %v4694, %v8055
        %v8057 = vrot.slane %v7983, %v8056
        %v8058 = vsel %vm4699, %v8057, %v8053
        %v8059 = vlaneseq
        %v8060 = vshrl.u32 %v8059, 7
        %v8061 = vsub.s32 %v4701, %v8060
        %v8062 = vrot.slane %v7986, %v8061
        %v8063 = vsel %vm4706, %v8062, %v8058
        %v8064 = vlaneseq
        %v8065 = vshrl.u32 %v8064, 7
        %v8066 = vsub.s32 %v4708, %v8065
        %v8067 = vrot.slane %v7989, %v8066
        %v8068 = vsel %vm4713, %v8067, %v8063
        %v8069 = vpack.c.b16 %v8068, %v8068
        %8071 = vmatprep.subr.bf16.mxu0 0
        %8072 = vmatpush1.bf16.msra.mxu0 %v888
        %8073 = vmatprep.subr.bf16.mxu0 0
        %8074 = vmatpush1.bf16.msra.mxu0 %v889
        %8075 = vmatprep.subr.bf16.mxu0 0
        %8076 = vmatpush1.bf16.msra.mxu0 %v890
        %8077 = vmatprep.subr.bf16.mxu0 0
        %8078 = vmatpush1.bf16.msra.mxu0 %v891
        %8079 = vmatprep.subr.bf16.mxu0 0
        %8080 = vmatpush1.bf16.msra.mxu0 %v892
        %8081 = vmatprep.subr.bf16.mxu0 0
        %8082 = vmatpush1.bf16.msra.mxu0 %v893
        %8083 = vmatprep.subr.bf16.mxu0 0
        %8084 = vmatpush1.bf16.msra.mxu0 %v894
        %8085 = vmatprep.subr.bf16.mxu0 0
        %8086 = vmatpush1.bf16.msra.mxu0 %v895
        %8087 = vmatprep.subr.bf16.mxu0 0
        %8088 = vmatpush1.bf16.msra.mxu0 0
        %8089 = vmatprep.subr.bf16.mxu0 0
        %8090 = vmatpush1.bf16.msra.mxu0 0
        %8091 = vmatprep.subr.bf16.mxu0 0
        %8092 = vmatpush1.bf16.msra.mxu0 0
        %8093 = vmatprep.subr.bf16.mxu0 0
        %8094 = vmatpush1.bf16.msra.mxu0 0
        %8095 = vmatprep.subr.bf16.mxu0 0
        %8096 = vmatpush1.bf16.msra.mxu0 0
        %8097 = vmatprep.subr.bf16.mxu0 0
        %8098 = vmatpush1.bf16.msra.mxu0 0
        %8099 = vmatprep.subr.bf16.mxu0 0
        %8100 = vmatpush1.bf16.msra.mxu0 0
        %8101 = vmatprep.subr.bf16.mxu0 0
        %8102 = vmatpush1.bf16.msra.mxu0 0
        %8103 = vmatprep.mubr.bf16.mxu0 0
        %8104 = vmatmul.mubr.bf16.gmra.mrb[0].mxu0 %v8069
        %v8105 = vpop.f32.mrb[0].mxu0
        %v8106 = vadd.f32 0.0, %v8105
        %v8107 = vpop.f32.mrb[0].mxu0
        %v8108 = vpop.f32.mrb[0].mxu0
        %v8109 = vpop.f32.mrb[0].mxu0
        %8110 = vdwg.mxu0
        %v8119 = vunpack.c.l.b16 %v7307
        %v8120 = vunpack.c.h.b16 %v7307
        %v8121 = vunpack.c.l.b16 %v7308
        %v8122 = vunpack.c.h.b16 %v7308
        %v8123 = vunpack.c.l.b16 %v7309
        %v8124 = vunpack.c.h.b16 %v7309
        %v8125 = vunpack.c.l.b16 %v7310
        %v8126 = vunpack.c.h.b16 %v7310
        %v8127 = vunpack.c.l.b16 %v7311
        %v8128 = vunpack.c.h.b16 %v7311
        %v8129 = vunpack.c.l.b16 %v7312
        %v8130 = vunpack.c.h.b16 %v7312
        %v8131 = vunpack.c.l.b16 %v7313
        %v8132 = vunpack.c.h.b16 %v7313
        %v8133 = vunpack.c.l.b16 %v7314
        %v8134 = vunpack.c.h.b16 %v7314
        %8135 = vset.pattern.permute.xlu0 0
        %8136 = vperm.xlu0 %8135, %v8119
        %v8137 = vpop.permute.xlu0 %8136
        %8138 = vset.pattern.permute.xlu0 0
        %8139 = vperm.xlu0 %8138, %v8120
        %v8140 = vpop.permute.xlu0 %8139
        %8141 = vset.pattern.permute.xlu0 0
        %8142 = vperm.xlu0 %8141, %v8121
        %v8143 = vpop.permute.xlu0 %8142
        %8144 = vset.pattern.permute.xlu0 0
        %8145 = vperm.xlu0 %8144, %v8122
        %v8146 = vpop.permute.xlu0 %8145
        %8147 = vset.pattern.permute.xlu0 0
        %8148 = vperm.xlu0 %8147, %v8123
        %v8149 = vpop.permute.xlu0 %8148
        %8150 = vset.pattern.permute.xlu0 0
        %8151 = vperm.xlu0 %8150, %v8124
        %v8152 = vpop.permute.xlu0 %8151
        %8153 = vset.pattern.permute.xlu0 0
        %8154 = vperm.xlu0 %8153, %v8125
        %v8155 = vpop.permute.xlu0 %8154
        %8156 = vset.pattern.permute.xlu0 0
        %8157 = vperm.xlu0 %8156, %v8126
        %v8158 = vpop.permute.xlu0 %8157
        %8159 = vset.pattern.permute.xlu0 0
        %8160 = vperm.xlu0 %8159, %v8127
        %v8161 = vpop.permute.xlu0 %8160
        %8162 = vset.pattern.permute.xlu0 0
        %8163 = vperm.xlu0 %8162, %v8128
        %v8164 = vpop.permute.xlu0 %8163
        %8165 = vset.pattern.permute.xlu0 0
        %8166 = vperm.xlu0 %8165, %v8129
        %v8167 = vpop.permute.xlu0 %8166
        %8168 = vset.pattern.permute.xlu0 0
        %8169 = vperm.xlu0 %8168, %v8130
        %v8170 = vpop.permute.xlu0 %8169
        %8171 = vset.pattern.permute.xlu0 0
        %8172 = vperm.xlu0 %8171, %v8131
        %v8173 = vpop.permute.xlu0 %8172
        %8174 = vset.pattern.permute.xlu0 0
        %8175 = vperm.xlu0 %8174, %v8132
        %v8176 = vpop.permute.xlu0 %8175
        %8177 = vset.pattern.permute.xlu0 0
        %8178 = vperm.xlu0 %8177, %v8133
        %v8179 = vpop.permute.xlu0 %8178
        %8180 = vset.pattern.permute.xlu0 0
        %8181 = vperm.xlu0 %8180, %v8134
        %v8182 = vpop.permute.xlu0 %8181
        %v8183 = vlaneseq
        %v8184 = vshrl.u32 %v8183, 7
        %v8185 = vsub.s32 %v4605, %v8184
        %v8186 = vrot.slane %v8137, %v8185
        %v8187 = vlaneseq
        %v8188 = vshrl.u32 %v8187, 7
        %v8189 = vsub.s32 %v4610, %v8188
        %v8190 = vrot.slane %v8140, %v8189
        %v8191 = vsel %vm4615, %v8190, %v8186
        %v8192 = vlaneseq
        %v8193 = vshrl.u32 %v8192, 7
        %v8194 = vsub.s32 %v4617, %v8193
        %v8195 = vrot.slane %v8143, %v8194
        %v8196 = vsel %vm4622, %v8195, %v8191
        %v8197 = vlaneseq
        %v8198 = vshrl.u32 %v8197, 7
        %v8199 = vsub.s32 %v4624, %v8198
        %v8200 = vrot.slane %v8146, %v8199
        %v8201 = vsel %vm4629, %v8200, %v8196
        %v8202 = vlaneseq
        %v8203 = vshrl.u32 %v8202, 7
        %v8204 = vsub.s32 %v4631, %v8203
        %v8205 = vrot.slane %v8149, %v8204
        %v8206 = vsel %vm4636, %v8205, %v8201
        %v8207 = vlaneseq
        %v8208 = vshrl.u32 %v8207, 7
        %v8209 = vsub.s32 %v4638, %v8208
        %v8210 = vrot.slane %v8152, %v8209
        %v8211 = vsel %vm4643, %v8210, %v8206
        %v8212 = vlaneseq
        %v8213 = vshrl.u32 %v8212, 7
        %v8214 = vsub.s32 %v4645, %v8213
        %v8215 = vrot.slane %v8155, %v8214
        %v8216 = vsel %vm4650, %v8215, %v8211
        %v8217 = vlaneseq
        %v8218 = vshrl.u32 %v8217, 7
        %v8219 = vsub.s32 %v4652, %v8218
        %v8220 = vrot.slane %v8158, %v8219
        %v8221 = vsel %vm4657, %v8220, %v8216
        %v8222 = vlaneseq
        %v8223 = vshrl.u32 %v8222, 7
        %v8224 = vsub.s32 %v4659, %v8223
        %v8225 = vrot.slane %v8161, %v8224
        %v8226 = vsel %vm4664, %v8225, %v8221
        %v8227 = vlaneseq
        %v8228 = vshrl.u32 %v8227, 7
        %v8229 = vsub.s32 %v4666, %v8228
        %v8230 = vrot.slane %v8164, %v8229
        %v8231 = vsel %vm4671, %v8230, %v8226
        %v8232 = vlaneseq
        %v8233 = vshrl.u32 %v8232, 7
        %v8234 = vsub.s32 %v4673, %v8233
        %v8235 = vrot.slane %v8167, %v8234
        %v8236 = vsel %vm4678, %v8235, %v8231
        %v8237 = vlaneseq
        %v8238 = vshrl.u32 %v8237, 7
        %v8239 = vsub.s32 %v4680, %v8238
        %v8240 = vrot.slane %v8170, %v8239
        %v8241 = vsel %vm4685, %v8240, %v8236
        %v8242 = vlaneseq
        %v8243 = vshrl.u32 %v8242, 7
        %v8244 = vsub.s32 %v4687, %v8243
        %v8245 = vrot.slane %v8173, %v8244
        %v8246 = vsel %vm4692, %v8245, %v8241
        %v8247 = vlaneseq
        %v8248 = vshrl.u32 %v8247, 7
        %v8249 = vsub.s32 %v4694, %v8248
        %v8250 = vrot.slane %v8176, %v8249
        %v8251 = vsel %vm4699, %v8250, %v8246
        %v8252 = vlaneseq
        %v8253 = vshrl.u32 %v8252, 7
        %v8254 = vsub.s32 %v4701, %v8253
        %v8255 = vrot.slane %v8179, %v8254
        %v8256 = vsel %vm4706, %v8255, %v8251
        %v8257 = vlaneseq
        %v8258 = vshrl.u32 %v8257, 7
        %v8259 = vsub.s32 %v4708, %v8258
        %v8260 = vrot.slane %v8182, %v8259
        %v8261 = vsel %vm4713, %v8260, %v8256
        %v8262 = vpack.c.b16 %v8261, %v8261
        %8264 = vmatprep.subr.bf16.mxu0 0
        %8265 = vmatpush1.bf16.msra.mxu0 %v896
        %8266 = vmatprep.subr.bf16.mxu0 0
        %8267 = vmatpush1.bf16.msra.mxu0 %v897
        %8268 = vmatprep.subr.bf16.mxu0 0
        %8269 = vmatpush1.bf16.msra.mxu0 %v898
        %8270 = vmatprep.subr.bf16.mxu0 0
        %8271 = vmatpush1.bf16.msra.mxu0 %v899
        %8272 = vmatprep.subr.bf16.mxu0 0
        %8273 = vmatpush1.bf16.msra.mxu0 %v900
        %8274 = vmatprep.subr.bf16.mxu0 0
        %8275 = vmatpush1.bf16.msra.mxu0 %v901
        %8276 = vmatprep.subr.bf16.mxu0 0
        %8277 = vmatpush1.bf16.msra.mxu0 %v902
        %8278 = vmatprep.subr.bf16.mxu0 0
        %8279 = vmatpush1.bf16.msra.mxu0 %v903
        %8280 = vmatprep.subr.bf16.mxu0 0
        %8281 = vmatpush1.bf16.msra.mxu0 0
        %8282 = vmatprep.subr.bf16.mxu0 0
        %8283 = vmatpush1.bf16.msra.mxu0 0
        %8284 = vmatprep.subr.bf16.mxu0 0
        %8285 = vmatpush1.bf16.msra.mxu0 0
        %8286 = vmatprep.subr.bf16.mxu0 0
        %8287 = vmatpush1.bf16.msra.mxu0 0
        %8288 = vmatprep.subr.bf16.mxu0 0
        %8289 = vmatpush1.bf16.msra.mxu0 0
        %8290 = vmatprep.subr.bf16.mxu0 0
        %8291 = vmatpush1.bf16.msra.mxu0 0
        %8292 = vmatprep.subr.bf16.mxu0 0
        %8293 = vmatpush1.bf16.msra.mxu0 0
        %8294 = vmatprep.subr.bf16.mxu0 0
        %8295 = vmatpush1.bf16.msra.mxu0 0
        %8296 = vmatprep.mubr.bf16.mxu0 0
        %8297 = vmatmul.mubr.bf16.gmra.mrb[0].mxu0 %v8262
        %v8298 = vpop.f32.mrb[0].mxu0
        %v8299 = vadd.f32 0.0, %v8298
        %v8300 = vpop.f32.mrb[0].mxu0
        %v8301 = vpop.f32.mrb[0].mxu0
        %v8302 = vpop.f32.mrb[0].mxu0
        %8303 = vdwg.mxu0
        %v8312 = vunpack.c.l.b16 %v7315
        %v8313 = vunpack.c.h.b16 %v7315
        %v8314 = vunpack.c.l.b16 %v7316
        %v8315 = vunpack.c.h.b16 %v7316
        %v8316 = vunpack.c.l.b16 %v7317
        %v8317 = vunpack.c.h.b16 %v7317
        %v8318 = vunpack.c.l.b16 %v7318
        %v8319 = vunpack.c.h.b16 %v7318
        %v8320 = vunpack.c.l.b16 %v7319
        %v8321 = vunpack.c.h.b16 %v7319
        %v8322 = vunpack.c.l.b16 %v7320
        %v8323 = vunpack.c.h.b16 %v7320
        %v8324 = vunpack.c.l.b16 %v7321
        %v8325 = vunpack.c.h.b16 %v7321
        %v8326 = vunpack.c.l.b16 %v7322
        %v8327 = vunpack.c.h.b16 %v7322
        %8328 = vset.pattern.permute.xlu0 0
        %8329 = vperm.xlu0 %8328, %v8312
        %v8330 = vpop.permute.xlu0 %8329
        %8331 = vset.pattern.permute.xlu0 0
        %8332 = vperm.xlu0 %8331, %v8313
        %v8333 = vpop.permute.xlu0 %8332
        %8334 = vset.pattern.permute.xlu0 0
        %8335 = vperm.xlu0 %8334, %v8314
        %v8336 = vpop.permute.xlu0 %8335
        %8337 = vset.pattern.permute.xlu0 0
        %8338 = vperm.xlu0 %8337, %v8315
        %v8339 = vpop.permute.xlu0 %8338
        %8340 = vset.pattern.permute.xlu0 0
        %8341 = vperm.xlu0 %8340, %v8316
        %v8342 = vpop.permute.xlu0 %8341
        %8343 = vset.pattern.permute.xlu0 0
        %8344 = vperm.xlu0 %8343, %v8317
        %v8345 = vpop.permute.xlu0 %8344
        %8346 = vset.pattern.permute.xlu0 0
        %8347 = vperm.xlu0 %8346, %v8318
        %v8348 = vpop.permute.xlu0 %8347
        %8349 = vset.pattern.permute.xlu0 0
        %8350 = vperm.xlu0 %8349, %v8319
        %v8351 = vpop.permute.xlu0 %8350
        %8352 = vset.pattern.permute.xlu0 0
        %8353 = vperm.xlu0 %8352, %v8320
        %v8354 = vpop.permute.xlu0 %8353
        %8355 = vset.pattern.permute.xlu0 0
        %8356 = vperm.xlu0 %8355, %v8321
        %v8357 = vpop.permute.xlu0 %8356
        %8358 = vset.pattern.permute.xlu0 0
        %8359 = vperm.xlu0 %8358, %v8322
        %v8360 = vpop.permute.xlu0 %8359
        %8361 = vset.pattern.permute.xlu0 0
        %8362 = vperm.xlu0 %8361, %v8323
        %v8363 = vpop.permute.xlu0 %8362
        %8364 = vset.pattern.permute.xlu0 0
        %8365 = vperm.xlu0 %8364, %v8324
        %v8366 = vpop.permute.xlu0 %8365
        %8367 = vset.pattern.permute.xlu0 0
        %8368 = vperm.xlu0 %8367, %v8325
        %v8369 = vpop.permute.xlu0 %8368
        %8370 = vset.pattern.permute.xlu0 0
        %8371 = vperm.xlu0 %8370, %v8326
        %v8372 = vpop.permute.xlu0 %8371
        %8373 = vset.pattern.permute.xlu0 0
        %8374 = vperm.xlu0 %8373, %v8327
        %v8375 = vpop.permute.xlu0 %8374
        %v8376 = vlaneseq
        %v8377 = vshrl.u32 %v8376, 7
        %v8378 = vsub.s32 %v4605, %v8377
        %v8379 = vrot.slane %v8330, %v8378
        %v8380 = vlaneseq
        %v8381 = vshrl.u32 %v8380, 7
        %v8382 = vsub.s32 %v4610, %v8381
        %v8383 = vrot.slane %v8333, %v8382
        %v8384 = vsel %vm4615, %v8383, %v8379
        %v8385 = vlaneseq
        %v8386 = vshrl.u32 %v8385, 7
        %v8387 = vsub.s32 %v4617, %v8386
        %v8388 = vrot.slane %v8336, %v8387
        %v8389 = vsel %vm4622, %v8388, %v8384
        %v8390 = vlaneseq
        %v8391 = vshrl.u32 %v8390, 7
        %v8392 = vsub.s32 %v4624, %v8391
        %v8393 = vrot.slane %v8339, %v8392
        %v8394 = vsel %vm4629, %v8393, %v8389
        %v8395 = vlaneseq
        %v8396 = vshrl.u32 %v8395, 7
        %v8397 = vsub.s32 %v4631, %v8396
        %v8398 = vrot.slane %v8342, %v8397
        %v8399 = vsel %vm4636, %v8398, %v8394
        %v8400 = vlaneseq
        %v8401 = vshrl.u32 %v8400, 7
        %v8402 = vsub.s32 %v4638, %v8401
        %v8403 = vrot.slane %v8345, %v8402
        %v8404 = vsel %vm4643, %v8403, %v8399
        %v8405 = vlaneseq
        %v8406 = vshrl.u32 %v8405, 7
        %v8407 = vsub.s32 %v4645, %v8406
        %v8408 = vrot.slane %v8348, %v8407
        %v8409 = vsel %vm4650, %v8408, %v8404
        %v8410 = vlaneseq
        %v8411 = vshrl.u32 %v8410, 7
        %v8412 = vsub.s32 %v4652, %v8411
        %v8413 = vrot.slane %v8351, %v8412
        %v8414 = vsel %vm4657, %v8413, %v8409
        %v8415 = vlaneseq
        %v8416 = vshrl.u32 %v8415, 7
        %v8417 = vsub.s32 %v4659, %v8416
        %v8418 = vrot.slane %v8354, %v8417
        %v8419 = vsel %vm4664, %v8418, %v8414
        %v8420 = vlaneseq
        %v8421 = vshrl.u32 %v8420, 7
        %v8422 = vsub.s32 %v4666, %v8421
        %v8423 = vrot.slane %v8357, %v8422
        %v8424 = vsel %vm4671, %v8423, %v8419
        %v8425 = vlaneseq
        %v8426 = vshrl.u32 %v8425, 7
        %v8427 = vsub.s32 %v4673, %v8426
        %v8428 = vrot.slane %v8360, %v8427
        %v8429 = vsel %vm4678, %v8428, %v8424
        %v8430 = vlaneseq
        %v8431 = vshrl.u32 %v8430, 7
        %v8432 = vsub.s32 %v4680, %v8431
        %v8433 = vrot.slane %v8363, %v8432
        %v8434 = vsel %vm4685, %v8433, %v8429
        %v8435 = vlaneseq
        %v8436 = vshrl.u32 %v8435, 7
        %v8437 = vsub.s32 %v4687, %v8436
        %v8438 = vrot.slane %v8366, %v8437
        %v8439 = vsel %vm4692, %v8438, %v8434
        %v8440 = vlaneseq
        %v8441 = vshrl.u32 %v8440, 7
        %v8442 = vsub.s32 %v4694, %v8441
        %v8443 = vrot.slane %v8369, %v8442
        %v8444 = vsel %vm4699, %v8443, %v8439
        %v8445 = vlaneseq
        %v8446 = vshrl.u32 %v8445, 7
        %v8447 = vsub.s32 %v4701, %v8446
        %v8448 = vrot.slane %v8372, %v8447
        %v8449 = vsel %vm4706, %v8448, %v8444
        %v8450 = vlaneseq
        %v8451 = vshrl.u32 %v8450, 7
        %v8452 = vsub.s32 %v4708, %v8451
        %v8453 = vrot.slane %v8375, %v8452
        %v8454 = vsel %vm4713, %v8453, %v8449
        %v8455 = vpack.c.b16 %v8454, %v8454
        %8457 = vmatprep.subr.bf16.mxu0 0
        %8458 = vmatpush1.bf16.msra.mxu0 %v904
        %8459 = vmatprep.subr.bf16.mxu0 0
        %8460 = vmatpush1.bf16.msra.mxu0 %v905
        %8461 = vmatprep.subr.bf16.mxu0 0
        %8462 = vmatpush1.bf16.msra.mxu0 %v906
        %8463 = vmatprep.subr.bf16.mxu0 0
        %8464 = vmatpush1.bf16.msra.mxu0 %v907
        %8465 = vmatprep.subr.bf16.mxu0 0
        %8466 = vmatpush1.bf16.msra.mxu0 %v908
        %8467 = vmatprep.subr.bf16.mxu0 0
        %8468 = vmatpush1.bf16.msra.mxu0 %v909
        %8469 = vmatprep.subr.bf16.mxu0 0
        %8470 = vmatpush1.bf16.msra.mxu0 %v910
        %8471 = vmatprep.subr.bf16.mxu0 0
        %8472 = vmatpush1.bf16.msra.mxu0 %v911
        %8473 = vmatprep.subr.bf16.mxu0 0
        %8474 = vmatpush1.bf16.msra.mxu0 0
        %8475 = vmatprep.subr.bf16.mxu0 0
        %8476 = vmatpush1.bf16.msra.mxu0 0
        %8477 = vmatprep.subr.bf16.mxu0 0
        %8478 = vmatpush1.bf16.msra.mxu0 0
        %8479 = vmatprep.subr.bf16.mxu0 0
        %8480 = vmatpush1.bf16.msra.mxu0 0
        %8481 = vmatprep.subr.bf16.mxu0 0
        %8482 = vmatpush1.bf16.msra.mxu0 0
        %8483 = vmatprep.subr.bf16.mxu0 0
        %8484 = vmatpush1.bf16.msra.mxu0 0
        %8485 = vmatprep.subr.bf16.mxu0 0
        %8486 = vmatpush1.bf16.msra.mxu0 0
        %8487 = vmatprep.subr.bf16.mxu0 0
        %8488 = vmatpush1.bf16.msra.mxu0 0
        %8489 = vmatprep.mubr.bf16.mxu0 0
        %8490 = vmatmul.mubr.bf16.gmra.mrb[0].mxu0 %v8455
        %v8491 = vpop.f32.mrb[0].mxu0
        %v8492 = vadd.f32 0.0, %v8491
        %v8493 = vpop.f32.mrb[0].mxu0
        %v8494 = vpop.f32.mrb[0].mxu0
        %v8495 = vpop.f32.mrb[0].mxu0
        %8496 = vdwg.mxu0
        %v8505 = vunpack.c.l.b16 %v7323
        %v8506 = vunpack.c.h.b16 %v7323
        %v8507 = vunpack.c.l.b16 %v7324
        %v8508 = vunpack.c.h.b16 %v7324
        %v8509 = vunpack.c.l.b16 %v7325
        %v8510 = vunpack.c.h.b16 %v7325
        %v8511 = vunpack.c.l.b16 %v7326
        %v8512 = vunpack.c.h.b16 %v7326
        %v8513 = vunpack.c.l.b16 %v7327
        %v8514 = vunpack.c.h.b16 %v7327
        %v8515 = vunpack.c.l.b16 %v7328
        %v8516 = vunpack.c.h.b16 %v7328
        %v8517 = vunpack.c.l.b16 %v7329
        %v8518 = vunpack.c.h.b16 %v7329
        %v8519 = vunpack.c.l.b16 %v7330
        %v8520 = vunpack.c.h.b16 %v7330
        %8521 = vset.pattern.permute.xlu0 0
        %8522 = vperm.xlu0 %8521, %v8505
        %v8523 = vpop.permute.xlu0 %8522
        %8524 = vset.pattern.permute.xlu0 0
        %8525 = vperm.xlu0 %8524, %v8506
        %v8526 = vpop.permute.xlu0 %8525
        %8527 = vset.pattern.permute.xlu0 0
        %8528 = vperm.xlu0 %8527, %v8507
        %v8529 = vpop.permute.xlu0 %8528
        %8530 = vset.pattern.permute.xlu0 0
        %8531 = vperm.xlu0 %8530, %v8508
        %v8532 = vpop.permute.xlu0 %8531
        %8533 = vset.pattern.permute.xlu0 0
        %8534 = vperm.xlu0 %8533, %v8509
        %v8535 = vpop.permute.xlu0 %8534
        %8536 = vset.pattern.permute.xlu0 0
        %8537 = vperm.xlu0 %8536, %v8510
        %v8538 = vpop.permute.xlu0 %8537
        %8539 = vset.pattern.permute.xlu0 0
        %8540 = vperm.xlu0 %8539, %v8511
        %v8541 = vpop.permute.xlu0 %8540
        %8542 = vset.pattern.permute.xlu0 0
        %8543 = vperm.xlu0 %8542, %v8512
        %v8544 = vpop.permute.xlu0 %8543
        %8545 = vset.pattern.permute.xlu0 0
        %8546 = vperm.xlu0 %8545, %v8513
        %v8547 = vpop.permute.xlu0 %8546
        %8548 = vset.pattern.permute.xlu0 0
        %8549 = vperm.xlu0 %8548, %v8514
        %v8550 = vpop.permute.xlu0 %8549
        %8551 = vset.pattern.permute.xlu0 0
        %8552 = vperm.xlu0 %8551, %v8515
        %v8553 = vpop.permute.xlu0 %8552
        %8554 = vset.pattern.permute.xlu0 0
        %8555 = vperm.xlu0 %8554, %v8516
        %v8556 = vpop.permute.xlu0 %8555
        %8557 = vset.pattern.permute.xlu0 0
        %8558 = vperm.xlu0 %8557, %v8517
        %v8559 = vpop.permute.xlu0 %8558
        %8560 = vset.pattern.permute.xlu0 0
        %8561 = vperm.xlu0 %8560, %v8518
        %v8562 = vpop.permute.xlu0 %8561
        %8563 = vset.pattern.permute.xlu0 0
        %8564 = vperm.xlu0 %8563, %v8519
        %v8565 = vpop.permute.xlu0 %8564
        %8566 = vset.pattern.permute.xlu0 0
        %8567 = vperm.xlu0 %8566, %v8520
        %v8568 = vpop.permute.xlu0 %8567
        %v8569 = vlaneseq
        %v8570 = vshrl.u32 %v8569, 7
        %v8571 = vsub.s32 %v4605, %v8570
        %v8572 = vrot.slane %v8523, %v8571
        %v8573 = vlaneseq
        %v8574 = vshrl.u32 %v8573, 7
        %v8575 = vsub.s32 %v4610, %v8574
        %v8576 = vrot.slane %v8526, %v8575
        %v8577 = vsel %vm4615, %v8576, %v8572
        %v8578 = vlaneseq
        %v8579 = vshrl.u32 %v8578, 7
        %v8580 = vsub.s32 %v4617, %v8579
        %v8581 = vrot.slane %v8529, %v8580
        %v8582 = vsel %vm4622, %v8581, %v8577
        %v8583 = vlaneseq
        %v8584 = vshrl.u32 %v8583, 7
        %v8585 = vsub.s32 %v4624, %v8584
        %v8586 = vrot.slane %v8532, %v8585
        %v8587 = vsel %vm4629, %v8586, %v8582
        %v8588 = vlaneseq
        %v8589 = vshrl.u32 %v8588, 7
        %v8590 = vsub.s32 %v4631, %v8589
        %v8591 = vrot.slane %v8535, %v8590
        %v8592 = vsel %vm4636, %v8591, %v8587
        %v8593 = vlaneseq
        %v8594 = vshrl.u32 %v8593, 7
        %v8595 = vsub.s32 %v4638, %v8594
        %v8596 = vrot.slane %v8538, %v8595
        %v8597 = vsel %vm4643, %v8596, %v8592
        %v8598 = vlaneseq
        %v8599 = vshrl.u32 %v8598, 7
        %v8600 = vsub.s32 %v4645, %v8599
        %v8601 = vrot.slane %v8541, %v8600
        %v8602 = vsel %vm4650, %v8601, %v8597
        %v8603 = vlaneseq
        %v8604 = vshrl.u32 %v8603, 7
        %v8605 = vsub.s32 %v4652, %v8604
        %v8606 = vrot.slane %v8544, %v8605
        %v8607 = vsel %vm4657, %v8606, %v8602
        %v8608 = vlaneseq
        %v8609 = vshrl.u32 %v8608, 7
        %v8610 = vsub.s32 %v4659, %v8609
        %v8611 = vrot.slane %v8547, %v8610
        %v8612 = vsel %vm4664, %v8611, %v8607
        %v8613 = vlaneseq
        %v8614 = vshrl.u32 %v8613, 7
        %v8615 = vsub.s32 %v4666, %v8614
        %v8616 = vrot.slane %v8550, %v8615
        %v8617 = vsel %vm4671, %v8616, %v8612
        %v8618 = vlaneseq
        %v8619 = vshrl.u32 %v8618, 7
        %v8620 = vsub.s32 %v4673, %v8619
        %v8621 = vrot.slane %v8553, %v8620
        %v8622 = vsel %vm4678, %v8621, %v8617
        %v8623 = vlaneseq
        %v8624 = vshrl.u32 %v8623, 7
        %v8625 = vsub.s32 %v4680, %v8624
        %v8626 = vrot.slane %v8556, %v8625
        %v8627 = vsel %vm4685, %v8626, %v8622
        %v8628 = vlaneseq
        %v8629 = vshrl.u32 %v8628, 7
        %v8630 = vsub.s32 %v4687, %v8629
        %v8631 = vrot.slane %v8559, %v8630
        %v8632 = vsel %vm4692, %v8631, %v8627
        %v8633 = vlaneseq
        %v8634 = vshrl.u32 %v8633, 7
        %v8635 = vsub.s32 %v4694, %v8634
        %v8636 = vrot.slane %v8562, %v8635
        %v8637 = vsel %vm4699, %v8636, %v8632
        %v8638 = vlaneseq
        %v8639 = vshrl.u32 %v8638, 7
        %v8640 = vsub.s32 %v4701, %v8639
        %v8641 = vrot.slane %v8565, %v8640
        %v8642 = vsel %vm4706, %v8641, %v8637
        %v8643 = vlaneseq
        %v8644 = vshrl.u32 %v8643, 7
        %v8645 = vsub.s32 %v4708, %v8644
        %v8646 = vrot.slane %v8568, %v8645
        %v8647 = vsel %vm4713, %v8646, %v8642
        %v8648 = vpack.c.b16 %v8647, %v8647
        %8650 = vmatprep.subr.bf16.mxu0 0
        %8651 = vmatpush1.bf16.msra.mxu0 %v912
        %8652 = vmatprep.subr.bf16.mxu0 0
        %8653 = vmatpush1.bf16.msra.mxu0 %v913
        %8654 = vmatprep.subr.bf16.mxu0 0
        %8655 = vmatpush1.bf16.msra.mxu0 %v914
        %8656 = vmatprep.subr.bf16.mxu0 0
        %8657 = vmatpush1.bf16.msra.mxu0 %v915
        %8658 = vmatprep.subr.bf16.mxu0 0
        %8659 = vmatpush1.bf16.msra.mxu0 %v916
        %8660 = vmatprep.subr.bf16.mxu0 0
        %8661 = vmatpush1.bf16.msra.mxu0 %v917
        %8662 = vmatprep.subr.bf16.mxu0 0
        %8663 = vmatpush1.bf16.msra.mxu0 %v918
        %8664 = vmatprep.subr.bf16.mxu0 0
        %8665 = vmatpush1.bf16.msra.mxu0 %v919
        %8666 = vmatprep.subr.bf16.mxu0 0
        %8667 = vmatpush1.bf16.msra.mxu0 0
        %8668 = vmatprep.subr.bf16.mxu0 0
        %8669 = vmatpush1.bf16.msra.mxu0 0
        %8670 = vmatprep.subr.bf16.mxu0 0
        %8671 = vmatpush1.bf16.msra.mxu0 0
        %8672 = vmatprep.subr.bf16.mxu0 0
        %8673 = vmatpush1.bf16.msra.mxu0 0
        %8674 = vmatprep.subr.bf16.mxu0 0
        %8675 = vmatpush1.bf16.msra.mxu0 0
        %8676 = vmatprep.subr.bf16.mxu0 0
        %8677 = vmatpush1.bf16.msra.mxu0 0
        %8678 = vmatprep.subr.bf16.mxu0 0
        %8679 = vmatpush1.bf16.msra.mxu0 0
        %8680 = vmatprep.subr.bf16.mxu0 0
        %8681 = vmatpush1.bf16.msra.mxu0 0
        %8682 = vmatprep.mubr.bf16.mxu0 0
        %8683 = vmatmul.mubr.bf16.gmra.mrb[0].mxu0 %v8648
        %v8684 = vpop.f32.mrb[0].mxu0
        %v8685 = vadd.f32 0.0, %v8684
        %v8686 = vpop.f32.mrb[0].mxu0
        %v8687 = vpop.f32.mrb[0].mxu0
        %v8688 = vpop.f32.mrb[0].mxu0
        %8689 = vdwg.mxu0
        %v8698 = vunpack.c.l.b16 %v7331
        %v8699 = vunpack.c.h.b16 %v7331
        %v8700 = vunpack.c.l.b16 %v7332
        %v8701 = vunpack.c.h.b16 %v7332
        %v8702 = vunpack.c.l.b16 %v7333
        %v8703 = vunpack.c.h.b16 %v7333
        %v8704 = vunpack.c.l.b16 %v7334
        %v8705 = vunpack.c.h.b16 %v7334
        %v8706 = vunpack.c.l.b16 %v7335
        %v8707 = vunpack.c.h.b16 %v7335
        %v8708 = vunpack.c.l.b16 %v7336
        %v8709 = vunpack.c.h.b16 %v7336
        %v8710 = vunpack.c.l.b16 %v7337
        %v8711 = vunpack.c.h.b16 %v7337
        %v8712 = vunpack.c.l.b16 %v7338
        %v8713 = vunpack.c.h.b16 %v7338
        %8714 = vset.pattern.permute.xlu0 0
        %8715 = vperm.xlu0 %8714, %v8698
        %v8716 = vpop.permute.xlu0 %8715
        %8717 = vset.pattern.permute.xlu0 0
        %8718 = vperm.xlu0 %8717, %v8699
        %v8719 = vpop.permute.xlu0 %8718
        %8720 = vset.pattern.permute.xlu0 0
        %8721 = vperm.xlu0 %8720, %v8700
        %v8722 = vpop.permute.xlu0 %8721
        %8723 = vset.pattern.permute.xlu0 0
        %8724 = vperm.xlu0 %8723, %v8701
        %v8725 = vpop.permute.xlu0 %8724
        %8726 = vset.pattern.permute.xlu0 0
        %8727 = vperm.xlu0 %8726, %v8702
        %v8728 = vpop.permute.xlu0 %8727
        %8729 = vset.pattern.permute.xlu0 0
        %8730 = vperm.xlu0 %8729, %v8703
        %v8731 = vpop.permute.xlu0 %8730
        %8732 = vset.pattern.permute.xlu0 0
        %8733 = vperm.xlu0 %8732, %v8704
        %v8734 = vpop.permute.xlu0 %8733
        %8735 = vset.pattern.permute.xlu0 0
        %8736 = vperm.xlu0 %8735, %v8705
        %v8737 = vpop.permute.xlu0 %8736
        %8738 = vset.pattern.permute.xlu0 0
        %8739 = vperm.xlu0 %8738, %v8706
        %v8740 = vpop.permute.xlu0 %8739
        %8741 = vset.pattern.permute.xlu0 0
        %8742 = vperm.xlu0 %8741, %v8707
        %v8743 = vpop.permute.xlu0 %8742
        %8744 = vset.pattern.permute.xlu0 0
        %8745 = vperm.xlu0 %8744, %v8708
        %v8746 = vpop.permute.xlu0 %8745
        %8747 = vset.pattern.permute.xlu0 0
        %8748 = vperm.xlu0 %8747, %v8709
        %v8749 = vpop.permute.xlu0 %8748
        %8750 = vset.pattern.permute.xlu0 0
        %8751 = vperm.xlu0 %8750, %v8710
        %v8752 = vpop.permute.xlu0 %8751
        %8753 = vset.pattern.permute.xlu0 0
        %8754 = vperm.xlu0 %8753, %v8711
        %v8755 = vpop.permute.xlu0 %8754
        %8756 = vset.pattern.permute.xlu0 0
        %8757 = vperm.xlu0 %8756, %v8712
        %v8758 = vpop.permute.xlu0 %8757
        %8759 = vset.pattern.permute.xlu0 0
        %8760 = vperm.xlu0 %8759, %v8713
        %v8761 = vpop.permute.xlu0 %8760
        %v8762 = vlaneseq
        %v8763 = vshrl.u32 %v8762, 7
        %v8764 = vsub.s32 %v4605, %v8763
        %v8765 = vrot.slane %v8716, %v8764
        %v8766 = vlaneseq
        %v8767 = vshrl.u32 %v8766, 7
        %v8768 = vsub.s32 %v4610, %v8767
        %v8769 = vrot.slane %v8719, %v8768
        %v8770 = vsel %vm4615, %v8769, %v8765
        %v8771 = vlaneseq
        %v8772 = vshrl.u32 %v8771, 7
        %v8773 = vsub.s32 %v4617, %v8772
        %v8774 = vrot.slane %v8722, %v8773
        %v8775 = vsel %vm4622, %v8774, %v8770
        %v8776 = vlaneseq
        %v8777 = vshrl.u32 %v8776, 7
        %v8778 = vsub.s32 %v4624, %v8777
        %v8779 = vrot.slane %v8725, %v8778
        %v8780 = vsel %vm4629, %v8779, %v8775
        %v8781 = vlaneseq
        %v8782 = vshrl.u32 %v8781, 7
        %v8783 = vsub.s32 %v4631, %v8782
        %v8784 = vrot.slane %v8728, %v8783
        %v8785 = vsel %vm4636, %v8784, %v8780
        %v8786 = vlaneseq
        %v8787 = vshrl.u32 %v8786, 7
        %v8788 = vsub.s32 %v4638, %v8787
        %v8789 = vrot.slane %v8731, %v8788
        %v8790 = vsel %vm4643, %v8789, %v8785
        %v8791 = vlaneseq
        %v8792 = vshrl.u32 %v8791, 7
        %v8793 = vsub.s32 %v4645, %v8792
        %v8794 = vrot.slane %v8734, %v8793
        %v8795 = vsel %vm4650, %v8794, %v8790
        %v8796 = vlaneseq
        %v8797 = vshrl.u32 %v8796, 7
        %v8798 = vsub.s32 %v4652, %v8797
        %v8799 = vrot.slane %v8737, %v8798
        %v8800 = vsel %vm4657, %v8799, %v8795
        %v8801 = vlaneseq
        %v8802 = vshrl.u32 %v8801, 7
        %v8803 = vsub.s32 %v4659, %v8802
        %v8804 = vrot.slane %v8740, %v8803
        %v8805 = vsel %vm4664, %v8804, %v8800
        %v8806 = vlaneseq
        %v8807 = vshrl.u32 %v8806, 7
        %v8808 = vsub.s32 %v4666, %v8807
        %v8809 = vrot.slane %v8743, %v8808
        %v8810 = vsel %vm4671, %v8809, %v8805
        %v8811 = vlaneseq
        %v8812 = vshrl.u32 %v8811, 7
        %v8813 = vsub.s32 %v4673, %v8812
        %v8814 = vrot.slane %v8746, %v8813
        %v8815 = vsel %vm4678, %v8814, %v8810
        %v8816 = vlaneseq
        %v8817 = vshrl.u32 %v8816, 7
        %v8818 = vsub.s32 %v4680, %v8817
        %v8819 = vrot.slane %v8749, %v8818
        %v8820 = vsel %vm4685, %v8819, %v8815
        %v8821 = vlaneseq
        %v8822 = vshrl.u32 %v8821, 7
        %v8823 = vsub.s32 %v4687, %v8822
        %v8824 = vrot.slane %v8752, %v8823
        %v8825 = vsel %vm4692, %v8824, %v8820
        %v8826 = vlaneseq
        %v8827 = vshrl.u32 %v8826, 7
        %v8828 = vsub.s32 %v4694, %v8827
        %v8829 = vrot.slane %v8755, %v8828
        %v8830 = vsel %vm4699, %v8829, %v8825
        %v8831 = vlaneseq
        %v8832 = vshrl.u32 %v8831, 7
        %v8833 = vsub.s32 %v4701, %v8832
        %v8834 = vrot.slane %v8758, %v8833
        %v8835 = vsel %vm4706, %v8834, %v8830
        %v8836 = vlaneseq
        %v8837 = vshrl.u32 %v8836, 7
        %v8838 = vsub.s32 %v4708, %v8837
        %v8839 = vrot.slane %v8761, %v8838
        %v8840 = vsel %vm4713, %v8839, %v8835
        %v8841 = vpack.c.b16 %v8840, %v8840
        %8843 = vmatprep.subr.bf16.mxu0 0
        %8844 = vmatpush1.bf16.msra.mxu0 %v920
        %8845 = vmatprep.subr.bf16.mxu0 0
        %8846 = vmatpush1.bf16.msra.mxu0 %v921
        %8847 = vmatprep.subr.bf16.mxu0 0
        %8848 = vmatpush1.bf16.msra.mxu0 %v922
        %8849 = vmatprep.subr.bf16.mxu0 0
        %8850 = vmatpush1.bf16.msra.mxu0 %v923
        %8851 = vmatprep.subr.bf16.mxu0 0
        %8852 = vmatpush1.bf16.msra.mxu0 %v924
        %8853 = vmatprep.subr.bf16.mxu0 0
        %8854 = vmatpush1.bf16.msra.mxu0 %v925
        %8855 = vmatprep.subr.bf16.mxu0 0
        %8856 = vmatpush1.bf16.msra.mxu0 %v926
        %8857 = vmatprep.subr.bf16.mxu0 0
        %8858 = vmatpush1.bf16.msra.mxu0 %v927
        %8859 = vmatprep.subr.bf16.mxu0 0
        %8860 = vmatpush1.bf16.msra.mxu0 0
        %8861 = vmatprep.subr.bf16.mxu0 0
        %8862 = vmatpush1.bf16.msra.mxu0 0
        %8863 = vmatprep.subr.bf16.mxu0 0
        %8864 = vmatpush1.bf16.msra.mxu0 0
        %8865 = vmatprep.subr.bf16.mxu0 0
        %8866 = vmatpush1.bf16.msra.mxu0 0
        %8867 = vmatprep.subr.bf16.mxu0 0
        %8868 = vmatpush1.bf16.msra.mxu0 0
        %8869 = vmatprep.subr.bf16.mxu0 0
        %8870 = vmatpush1.bf16.msra.mxu0 0
        %8871 = vmatprep.subr.bf16.mxu0 0
        %8872 = vmatpush1.bf16.msra.mxu0 0
        %8873 = vmatprep.subr.bf16.mxu0 0
        %8874 = vmatpush1.bf16.msra.mxu0 0
        %8875 = vmatprep.mubr.bf16.mxu0 0
        %8876 = vmatmul.mubr.bf16.gmra.mrb[0].mxu0 %v8841
        %v8877 = vpop.f32.mrb[0].mxu0
        %v8878 = vadd.f32 0.0, %v8877
        %v8879 = vpop.f32.mrb[0].mxu0
        %v8880 = vpop.f32.mrb[0].mxu0
        %v8881 = vpop.f32.mrb[0].mxu0
        %8882 = vdwg.mxu0
        %v8883 = vpack.c.bf16 %v7267, %v7267
        %v8884 = vpack.c.bf16 %v7268, %v7268
        %v8885 = vpack.c.bf16 %v7269, %v7269
        %v8886 = vpack.c.bf16 %v7270, %v7270
        %v8887 = vpack.c.bf16 %v7271, %v7271
        %v8888 = vpack.c.bf16 %v7272, %v7272
        %v8889 = vpack.c.bf16 %v7273, %v7273
        %v8890 = vpack.c.bf16 %v7274, %v7274
        %v8892 = vunpack.c.l.b16 %v8883
        %8893 = vset.pattern.permute.xlu0 0
        %8894 = vperm.xlu0 %8893, %v8892
        %v8895 = vpop.permute.xlu0 %8894
        %v8896 = vlaneseq
        %v8897 = vshrl.u32 %v8896, 7
        %v8898 = vsub.s32 %v4605, %v8897
        %v8899 = vrot.slane %v8895, %v8898
        %v8900 = vpack.c.b16 %v8899, %v8899
        %v8902 = vsel %vm2362, %v8900, 0
        %v8905 = vsel %vm2387, %v422, 0
        %8907 = vmatprep.subr.bf16.mxu0 0
        %8908 = vmatpush1.bf16.msra.mxu0 %v8905
        %8909 = vmatprep.subr.bf16.mxu0 0
        %8910 = vmatpush1.bf16.msra.mxu0 0
        %8911 = vmatprep.subr.bf16.mxu0 0
        %8912 = vmatpush1.bf16.msra.mxu0 0
        %8913 = vmatprep.subr.bf16.mxu0 0
        %8914 = vmatpush1.bf16.msra.mxu0 0
        %8915 = vmatprep.subr.bf16.mxu0 0
        %8916 = vmatpush1.bf16.msra.mxu0 0
        %8917 = vmatprep.subr.bf16.mxu0 0
        %8918 = vmatpush1.bf16.msra.mxu0 0
        %8919 = vmatprep.subr.bf16.mxu0 0
        %8920 = vmatpush1.bf16.msra.mxu0 0
        %8921 = vmatprep.subr.bf16.mxu0 0
        %8922 = vmatpush1.bf16.msra.mxu0 0
        %8923 = vmatprep.subr.bf16.mxu0 0
        %8924 = vmatpush1.bf16.msra.mxu0 0
        %8925 = vmatprep.subr.bf16.mxu0 0
        %8926 = vmatpush1.bf16.msra.mxu0 0
        %8927 = vmatprep.subr.bf16.mxu0 0
        %8928 = vmatpush1.bf16.msra.mxu0 0
        %8929 = vmatprep.subr.bf16.mxu0 0
        %8930 = vmatpush1.bf16.msra.mxu0 0
        %8931 = vmatprep.subr.bf16.mxu0 0
        %8932 = vmatpush1.bf16.msra.mxu0 0
        %8933 = vmatprep.subr.bf16.mxu0 0
        %8934 = vmatpush1.bf16.msra.mxu0 0
        %8935 = vmatprep.subr.bf16.mxu0 0
        %8936 = vmatpush1.bf16.msra.mxu0 0
        %8937 = vmatprep.subr.bf16.mxu0 0
        %8938 = vmatpush1.bf16.msra.mxu0 0
        %8939 = vmatprep.mubr.bf16.mxu0 0
        %8940 = vmatmul.mubr.bf16.gmra.mrb[0].mxu0 %v8902
        %v8941 = vpop.f32.mrb[0].mxu0
        %v8942 = vadd.f32 0.0, %v8941
        %v8943 = vpop.f32.mrb[0].mxu0
        %v8944 = vpop.f32.mrb[0].mxu0
        %v8945 = vpop.f32.mrb[0].mxu0
        %8946 = vdwg.mxu0
        %v8948 = vunpack.c.l.b16 %v8884
        %8949 = vset.pattern.permute.xlu0 0
        %8950 = vperm.xlu0 %8949, %v8948
        %v8951 = vpop.permute.xlu0 %8950
        %v8952 = vlaneseq
        %v8953 = vshrl.u32 %v8952, 7
        %v8954 = vsub.s32 %v4605, %v8953
        %v8955 = vrot.slane %v8951, %v8954
        %v8956 = vpack.c.b16 %v8955, %v8955
        %v8958 = vsel %vm2362, %v8956, 0
        %v8961 = vsel %vm2387, %v423, 0
        %8963 = vmatprep.subr.bf16.mxu0 0
        %8964 = vmatpush1.bf16.msra.mxu0 %v8961
        %8965 = vmatprep.subr.bf16.mxu0 0
        %8966 = vmatpush1.bf16.msra.mxu0 0
        %8967 = vmatprep.subr.bf16.mxu0 0
        %8968 = vmatpush1.bf16.msra.mxu0 0
        %8969 = vmatprep.subr.bf16.mxu0 0
        %8970 = vmatpush1.bf16.msra.mxu0 0
        %8971 = vmatprep.subr.bf16.mxu0 0
        %8972 = vmatpush1.bf16.msra.mxu0 0
        %8973 = vmatprep.subr.bf16.mxu0 0
        %8974 = vmatpush1.bf16.msra.mxu0 0
        %8975 = vmatprep.subr.bf16.mxu0 0
        %8976 = vmatpush1.bf16.msra.mxu0 0
        %8977 = vmatprep.subr.bf16.mxu0 0
        %8978 = vmatpush1.bf16.msra.mxu0 0
        %8979 = vmatprep.subr.bf16.mxu0 0
        %8980 = vmatpush1.bf16.msra.mxu0 0
        %8981 = vmatprep.subr.bf16.mxu0 0
        %8982 = vmatpush1.bf16.msra.mxu0 0
        %8983 = vmatprep.subr.bf16.mxu0 0
        %8984 = vmatpush1.bf16.msra.mxu0 0
        %8985 = vmatprep.subr.bf16.mxu0 0
        %8986 = vmatpush1.bf16.msra.mxu0 0
        %8987 = vmatprep.subr.bf16.mxu0 0
        %8988 = vmatpush1.bf16.msra.mxu0 0
        %8989 = vmatprep.subr.bf16.mxu0 0
        %8990 = vmatpush1.bf16.msra.mxu0 0
        %8991 = vmatprep.subr.bf16.mxu0 0
        %8992 = vmatpush1.bf16.msra.mxu0 0
        %8993 = vmatprep.subr.bf16.mxu0 0
        %8994 = vmatpush1.bf16.msra.mxu0 0
        %8995 = vmatprep.mubr.bf16.mxu0 0
        %8996 = vmatmul.mubr.bf16.gmra.mrb[0].mxu0 %v8958
        %v8997 = vpop.f32.mrb[0].mxu0
        %v8998 = vadd.f32 0.0, %v8997
        %v8999 = vpop.f32.mrb[0].mxu0
        %v9000 = vpop.f32.mrb[0].mxu0
        %v9001 = vpop.f32.mrb[0].mxu0
        %9002 = vdwg.mxu0
        %v9004 = vunpack.c.l.b16 %v8885
        %9005 = vset.pattern.permute.xlu0 0
        %9006 = vperm.xlu0 %9005, %v9004
        %v9007 = vpop.permute.xlu0 %9006
        %v9008 = vlaneseq
        %v9009 = vshrl.u32 %v9008, 7
        %v9010 = vsub.s32 %v4605, %v9009
        %v9011 = vrot.slane %v9007, %v9010
        %v9012 = vpack.c.b16 %v9011, %v9011
        %v9014 = vsel %vm2362, %v9012, 0
        %v9017 = vsel %vm2387, %v424, 0
        %9019 = vmatprep.subr.bf16.mxu0 0
        %9020 = vmatpush1.bf16.msra.mxu0 %v9017
        %9021 = vmatprep.subr.bf16.mxu0 0
        %9022 = vmatpush1.bf16.msra.mxu0 0
        %9023 = vmatprep.subr.bf16.mxu0 0
        %9024 = vmatpush1.bf16.msra.mxu0 0
        %9025 = vmatprep.subr.bf16.mxu0 0
        %9026 = vmatpush1.bf16.msra.mxu0 0
        %9027 = vmatprep.subr.bf16.mxu0 0
        %9028 = vmatpush1.bf16.msra.mxu0 0
        %9029 = vmatprep.subr.bf16.mxu0 0
        %9030 = vmatpush1.bf16.msra.mxu0 0
        %9031 = vmatprep.subr.bf16.mxu0 0
        %9032 = vmatpush1.bf16.msra.mxu0 0
        %9033 = vmatprep.subr.bf16.mxu0 0
        %9034 = vmatpush1.bf16.msra.mxu0 0
        %9035 = vmatprep.subr.bf16.mxu0 0
        %9036 = vmatpush1.bf16.msra.mxu0 0
        %9037 = vmatprep.subr.bf16.mxu0 0
        %9038 = vmatpush1.bf16.msra.mxu0 0
        %9039 = vmatprep.subr.bf16.mxu0 0
        %9040 = vmatpush1.bf16.msra.mxu0 0
        %9041 = vmatprep.subr.bf16.mxu0 0
        %9042 = vmatpush1.bf16.msra.mxu0 0
        %9043 = vmatprep.subr.bf16.mxu0 0
        %9044 = vmatpush1.bf16.msra.mxu0 0
        %9045 = vmatprep.subr.bf16.mxu0 0
        %9046 = vmatpush1.bf16.msra.mxu0 0
        %9047 = vmatprep.subr.bf16.mxu0 0
        %9048 = vmatpush1.bf16.msra.mxu0 0
        %9049 = vmatprep.subr.bf16.mxu0 0
        %9050 = vmatpush1.bf16.msra.mxu0 0
        %9051 = vmatprep.mubr.bf16.mxu0 0
        %9052 = vmatmul.mubr.bf16.gmra.mrb[0].mxu0 %v9014
        %v9053 = vpop.f32.mrb[0].mxu0
        %v9054 = vadd.f32 0.0, %v9053
        %v9055 = vpop.f32.mrb[0].mxu0
        %v9056 = vpop.f32.mrb[0].mxu0
        %v9057 = vpop.f32.mrb[0].mxu0
        %9058 = vdwg.mxu0
        %v9060 = vunpack.c.l.b16 %v8886
        %9061 = vset.pattern.permute.xlu0 0
        %9062 = vperm.xlu0 %9061, %v9060
        %v9063 = vpop.permute.xlu0 %9062
        %v9064 = vlaneseq
        %v9065 = vshrl.u32 %v9064, 7
        %v9066 = vsub.s32 %v4605, %v9065
        %v9067 = vrot.slane %v9063, %v9066
        %v9068 = vpack.c.b16 %v9067, %v9067
        %v9070 = vsel %vm2362, %v9068, 0
        %v9073 = vsel %vm2387, %v425, 0
        %9075 = vmatprep.subr.bf16.mxu0 0
        %9076 = vmatpush1.bf16.msra.mxu0 %v9073
        %9077 = vmatprep.subr.bf16.mxu0 0
        %9078 = vmatpush1.bf16.msra.mxu0 0
        %9079 = vmatprep.subr.bf16.mxu0 0
        %9080 = vmatpush1.bf16.msra.mxu0 0
        %9081 = vmatprep.subr.bf16.mxu0 0
        %9082 = vmatpush1.bf16.msra.mxu0 0
        %9083 = vmatprep.subr.bf16.mxu0 0
        %9084 = vmatpush1.bf16.msra.mxu0 0
        %9085 = vmatprep.subr.bf16.mxu0 0
        %9086 = vmatpush1.bf16.msra.mxu0 0
        %9087 = vmatprep.subr.bf16.mxu0 0
        %9088 = vmatpush1.bf16.msra.mxu0 0
        %9089 = vmatprep.subr.bf16.mxu0 0
        %9090 = vmatpush1.bf16.msra.mxu0 0
        %9091 = vmatprep.subr.bf16.mxu0 0
        %9092 = vmatpush1.bf16.msra.mxu0 0
        %9093 = vmatprep.subr.bf16.mxu0 0
        %9094 = vmatpush1.bf16.msra.mxu0 0
        %9095 = vmatprep.subr.bf16.mxu0 0
        %9096 = vmatpush1.bf16.msra.mxu0 0
        %9097 = vmatprep.subr.bf16.mxu0 0
        %9098 = vmatpush1.bf16.msra.mxu0 0
        %9099 = vmatprep.subr.bf16.mxu0 0
        %9100 = vmatpush1.bf16.msra.mxu0 0
        %9101 = vmatprep.subr.bf16.mxu0 0
        %9102 = vmatpush1.bf16.msra.mxu0 0
        %9103 = vmatprep.subr.bf16.mxu0 0
        %9104 = vmatpush1.bf16.msra.mxu0 0
        %9105 = vmatprep.subr.bf16.mxu0 0
        %9106 = vmatpush1.bf16.msra.mxu0 0
        %9107 = vmatprep.mubr.bf16.mxu0 0
        %9108 = vmatmul.mubr.bf16.gmra.mrb[0].mxu0 %v9070
        %v9109 = vpop.f32.mrb[0].mxu0
        %v9110 = vadd.f32 0.0, %v9109
        %v9111 = vpop.f32.mrb[0].mxu0
        %v9112 = vpop.f32.mrb[0].mxu0
        %v9113 = vpop.f32.mrb[0].mxu0
        %9114 = vdwg.mxu0
        %v9116 = vunpack.c.l.b16 %v8887
        %9117 = vset.pattern.permute.xlu0 0
        %9118 = vperm.xlu0 %9117, %v9116
        %v9119 = vpop.permute.xlu0 %9118
        %v9120 = vlaneseq
        %v9121 = vshrl.u32 %v9120, 7
        %v9122 = vsub.s32 %v4605, %v9121
        %v9123 = vrot.slane %v9119, %v9122
        %v9124 = vpack.c.b16 %v9123, %v9123
        %v9126 = vsel %vm2362, %v9124, 0
        %v9129 = vsel %vm2387, %v426, 0
        %9131 = vmatprep.subr.bf16.mxu0 0
        %9132 = vmatpush1.bf16.msra.mxu0 %v9129
        %9133 = vmatprep.subr.bf16.mxu0 0
        %9134 = vmatpush1.bf16.msra.mxu0 0
        %9135 = vmatprep.subr.bf16.mxu0 0
        %9136 = vmatpush1.bf16.msra.mxu0 0
        %9137 = vmatprep.subr.bf16.mxu0 0
        %9138 = vmatpush1.bf16.msra.mxu0 0
        %9139 = vmatprep.subr.bf16.mxu0 0
        %9140 = vmatpush1.bf16.msra.mxu0 0
        %9141 = vmatprep.subr.bf16.mxu0 0
        %9142 = vmatpush1.bf16.msra.mxu0 0
        %9143 = vmatprep.subr.bf16.mxu0 0
        %9144 = vmatpush1.bf16.msra.mxu0 0
        %9145 = vmatprep.subr.bf16.mxu0 0
        %9146 = vmatpush1.bf16.msra.mxu0 0
        %9147 = vmatprep.subr.bf16.mxu0 0
        %9148 = vmatpush1.bf16.msra.mxu0 0
        %9149 = vmatprep.subr.bf16.mxu0 0
        %9150 = vmatpush1.bf16.msra.mxu0 0
        %9151 = vmatprep.subr.bf16.mxu0 0
        %9152 = vmatpush1.bf16.msra.mxu0 0
        %9153 = vmatprep.subr.bf16.mxu0 0
        %9154 = vmatpush1.bf16.msra.mxu0 0
        %9155 = vmatprep.subr.bf16.mxu0 0
        %9156 = vmatpush1.bf16.msra.mxu0 0
        %9157 = vmatprep.subr.bf16.mxu0 0
        %9158 = vmatpush1.bf16.msra.mxu0 0
        %9159 = vmatprep.subr.bf16.mxu0 0
        %9160 = vmatpush1.bf16.msra.mxu0 0
        %9161 = vmatprep.subr.bf16.mxu0 0
        %9162 = vmatpush1.bf16.msra.mxu0 0
        %9163 = vmatprep.mubr.bf16.mxu0 0
        %9164 = vmatmul.mubr.bf16.gmra.mrb[0].mxu0 %v9126
        %v9165 = vpop.f32.mrb[0].mxu0
        %v9166 = vadd.f32 0.0, %v9165
        %v9167 = vpop.f32.mrb[0].mxu0
        %v9168 = vpop.f32.mrb[0].mxu0
        %v9169 = vpop.f32.mrb[0].mxu0
        %9170 = vdwg.mxu0
        %v9172 = vunpack.c.l.b16 %v8888
        %9173 = vset.pattern.permute.xlu0 0
        %9174 = vperm.xlu0 %9173, %v9172
        %v9175 = vpop.permute.xlu0 %9174
        %v9176 = vlaneseq
        %v9177 = vshrl.u32 %v9176, 7
        %v9178 = vsub.s32 %v4605, %v9177
        %v9179 = vrot.slane %v9175, %v9178
        %v9180 = vpack.c.b16 %v9179, %v9179
        %v9182 = vsel %vm2362, %v9180, 0
        %v9185 = vsel %vm2387, %v427, 0
        %9187 = vmatprep.subr.bf16.mxu0 0
        %9188 = vmatpush1.bf16.msra.mxu0 %v9185
        %9189 = vmatprep.subr.bf16.mxu0 0
        %9190 = vmatpush1.bf16.msra.mxu0 0
        %9191 = vmatprep.subr.bf16.mxu0 0
        %9192 = vmatpush1.bf16.msra.mxu0 0
        %9193 = vmatprep.subr.bf16.mxu0 0
        %9194 = vmatpush1.bf16.msra.mxu0 0
        %9195 = vmatprep.subr.bf16.mxu0 0
        %9196 = vmatpush1.bf16.msra.mxu0 0
        %9197 = vmatprep.subr.bf16.mxu0 0
        %9198 = vmatpush1.bf16.msra.mxu0 0
        %9199 = vmatprep.subr.bf16.mxu0 0
        %9200 = vmatpush1.bf16.msra.mxu0 0
        %9201 = vmatprep.subr.bf16.mxu0 0
        %9202 = vmatpush1.bf16.msra.mxu0 0
        %9203 = vmatprep.subr.bf16.mxu0 0
        %9204 = vmatpush1.bf16.msra.mxu0 0
        %9205 = vmatprep.subr.bf16.mxu0 0
        %9206 = vmatpush1.bf16.msra.mxu0 0
        %9207 = vmatprep.subr.bf16.mxu0 0
        %9208 = vmatpush1.bf16.msra.mxu0 0
        %9209 = vmatprep.subr.bf16.mxu0 0
        %9210 = vmatpush1.bf16.msra.mxu0 0
        %9211 = vmatprep.subr.bf16.mxu0 0
        %9212 = vmatpush1.bf16.msra.mxu0 0
        %9213 = vmatprep.subr.bf16.mxu0 0
        %9214 = vmatpush1.bf16.msra.mxu0 0
        %9215 = vmatprep.subr.bf16.mxu0 0
        %9216 = vmatpush1.bf16.msra.mxu0 0
        %9217 = vmatprep.subr.bf16.mxu0 0
        %9218 = vmatpush1.bf16.msra.mxu0 0
        %9219 = vmatprep.mubr.bf16.mxu0 0
        %9220 = vmatmul.mubr.bf16.gmra.mrb[0].mxu0 %v9182
        %v9221 = vpop.f32.mrb[0].mxu0
        %v9222 = vadd.f32 0.0, %v9221
        %v9223 = vpop.f32.mrb[0].mxu0
        %v9224 = vpop.f32.mrb[0].mxu0
        %v9225 = vpop.f32.mrb[0].mxu0
        %9226 = vdwg.mxu0
        %v9228 = vunpack.c.l.b16 %v8889
        %9229 = vset.pattern.permute.xlu0 0
        %9230 = vperm.xlu0 %9229, %v9228
        %v9231 = vpop.permute.xlu0 %9230
        %v9232 = vlaneseq
        %v9233 = vshrl.u32 %v9232, 7
        %v9234 = vsub.s32 %v4605, %v9233
        %v9235 = vrot.slane %v9231, %v9234
        %v9236 = vpack.c.b16 %v9235, %v9235
        %v9238 = vsel %vm2362, %v9236, 0
        %v9241 = vsel %vm2387, %v428, 0
        %9243 = vmatprep.subr.bf16.mxu0 0
        %9244 = vmatpush1.bf16.msra.mxu0 %v9241
        %9245 = vmatprep.subr.bf16.mxu0 0
        %9246 = vmatpush1.bf16.msra.mxu0 0
        %9247 = vmatprep.subr.bf16.mxu0 0
        %9248 = vmatpush1.bf16.msra.mxu0 0
        %9249 = vmatprep.subr.bf16.mxu0 0
        %9250 = vmatpush1.bf16.msra.mxu0 0
        %9251 = vmatprep.subr.bf16.mxu0 0
        %9252 = vmatpush1.bf16.msra.mxu0 0
        %9253 = vmatprep.subr.bf16.mxu0 0
        %9254 = vmatpush1.bf16.msra.mxu0 0
        %9255 = vmatprep.subr.bf16.mxu0 0
        %9256 = vmatpush1.bf16.msra.mxu0 0
        %9257 = vmatprep.subr.bf16.mxu0 0
        %9258 = vmatpush1.bf16.msra.mxu0 0
        %9259 = vmatprep.subr.bf16.mxu0 0
        %9260 = vmatpush1.bf16.msra.mxu0 0
        %9261 = vmatprep.subr.bf16.mxu0 0
        %9262 = vmatpush1.bf16.msra.mxu0 0
        %9263 = vmatprep.subr.bf16.mxu0 0
        %9264 = vmatpush1.bf16.msra.mxu0 0
        %9265 = vmatprep.subr.bf16.mxu0 0
        %9266 = vmatpush1.bf16.msra.mxu0 0
        %9267 = vmatprep.subr.bf16.mxu0 0
        %9268 = vmatpush1.bf16.msra.mxu0 0
        %9269 = vmatprep.subr.bf16.mxu0 0
        %9270 = vmatpush1.bf16.msra.mxu0 0
        %9271 = vmatprep.subr.bf16.mxu0 0
        %9272 = vmatpush1.bf16.msra.mxu0 0
        %9273 = vmatprep.subr.bf16.mxu0 0
        %9274 = vmatpush1.bf16.msra.mxu0 0
        %9275 = vmatprep.mubr.bf16.mxu0 0
        %9276 = vmatmul.mubr.bf16.gmra.mrb[0].mxu0 %v9238
        %v9277 = vpop.f32.mrb[0].mxu0
        %v9278 = vadd.f32 0.0, %v9277
        %v9279 = vpop.f32.mrb[0].mxu0
        %v9280 = vpop.f32.mrb[0].mxu0
        %v9281 = vpop.f32.mrb[0].mxu0
        %9282 = vdwg.mxu0
        %v9284 = vunpack.c.l.b16 %v8890
        %9285 = vset.pattern.permute.xlu0 0
        %9286 = vperm.xlu0 %9285, %v9284
        %v9287 = vpop.permute.xlu0 %9286
        %v9288 = vlaneseq
        %v9289 = vshrl.u32 %v9288, 7
        %v9290 = vsub.s32 %v4605, %v9289
        %v9291 = vrot.slane %v9287, %v9290
        %v9292 = vpack.c.b16 %v9291, %v9291
        %v9294 = vsel %vm2362, %v9292, 0
        %v9297 = vsel %vm2387, %v429, 0
        %9299 = vmatprep.subr.bf16.mxu0 0
        %9300 = vmatpush1.bf16.msra.mxu0 %v9297
        %9301 = vmatprep.subr.bf16.mxu0 0
        %9302 = vmatpush1.bf16.msra.mxu0 0
        %9303 = vmatprep.subr.bf16.mxu0 0
        %9304 = vmatpush1.bf16.msra.mxu0 0
        %9305 = vmatprep.subr.bf16.mxu0 0
        %9306 = vmatpush1.bf16.msra.mxu0 0
        %9307 = vmatprep.subr.bf16.mxu0 0
        %9308 = vmatpush1.bf16.msra.mxu0 0
        %9309 = vmatprep.subr.bf16.mxu0 0
        %9310 = vmatpush1.bf16.msra.mxu0 0
        %9311 = vmatprep.subr.bf16.mxu0 0
        %9312 = vmatpush1.bf16.msra.mxu0 0
        %9313 = vmatprep.subr.bf16.mxu0 0
        %9314 = vmatpush1.bf16.msra.mxu0 0
        %9315 = vmatprep.subr.bf16.mxu0 0
        %9316 = vmatpush1.bf16.msra.mxu0 0
        %9317 = vmatprep.subr.bf16.mxu0 0
        %9318 = vmatpush1.bf16.msra.mxu0 0
        %9319 = vmatprep.subr.bf16.mxu0 0
        %9320 = vmatpush1.bf16.msra.mxu0 0
        %9321 = vmatprep.subr.bf16.mxu0 0
        %9322 = vmatpush1.bf16.msra.mxu0 0
        %9323 = vmatprep.subr.bf16.mxu0 0
        %9324 = vmatpush1.bf16.msra.mxu0 0
        %9325 = vmatprep.subr.bf16.mxu0 0
        %9326 = vmatpush1.bf16.msra.mxu0 0
        %9327 = vmatprep.subr.bf16.mxu0 0
        %9328 = vmatpush1.bf16.msra.mxu0 0
        %9329 = vmatprep.subr.bf16.mxu0 0
        %9330 = vmatpush1.bf16.msra.mxu0 0
        %9331 = vmatprep.mubr.bf16.mxu0 0
        %9332 = vmatmul.mubr.bf16.gmra.mrb[0].mxu0 %v9294
        %v9333 = vpop.f32.mrb[0].mxu0
        %v9334 = vadd.f32 0.0, %v9333
        %v9335 = vpop.f32.mrb[0].mxu0
        %v9336 = vpop.f32.mrb[0].mxu0
        %v9337 = vpop.f32.mrb[0].mxu0
        %9338 = vdwg.mxu0
        %v9339 = vadd.f32 %v8942, %v7527
        %v9340 = vadd.f32 %v8998, %v7720
        %v9341 = vadd.f32 %v9054, %v7913
        %v9342 = vadd.f32 %v9110, %v8106
        %v9343 = vadd.f32 %v9166, %v8299
        %v9344 = vadd.f32 %v9222, %v8492
        %v9345 = vadd.f32 %v9278, %v8685
        %v9346 = vadd.f32 %v9334, %v8878
        %v9347 = vpack.c.bf16 %v9339, %v9339
        %v9348 = vpack.c.bf16 %v9340, %v9340
        %v9349 = vpack.c.bf16 %v9341, %v9341
        %v9350 = vpack.c.bf16 %v9342, %v9342
        %v9351 = vpack.c.bf16 %v9343, %v9343
        %v9352 = vpack.c.bf16 %v9344, %v9344
        %v9353 = vpack.c.bf16 %v9345, %v9345
        %v9354 = vpack.c.bf16 %v9346, %v9346
        %v9356 = vlaneseq
        %v9357 = vshrl.u32 %v9356, 7
        %v9358 = vsub.s32 0, %v9357
        %v9359 = vrot.slane %v607, %v9358
        %v9369 = vunpack.c.l.b16 %v9347
        %v9370 = vunpack.c.l.b16 %v9348
        %v9371 = vunpack.c.l.b16 %v9349
        %v9372 = vunpack.c.l.b16 %v9350
        %v9373 = vunpack.c.l.b16 %v9351
        %v9374 = vunpack.c.l.b16 %v9352
        %v9375 = vunpack.c.l.b16 %v9353
        %v9376 = vunpack.c.l.b16 %v9354
        %v9377 = vrot.slane %v9370, 7
        %v9378 = vsel %vm5268, %v9377, %v9369
        %v9379 = vrot.slane %v9371, 6
        %v9380 = vsel %vm5270, %v9379, %v9378
        %v9381 = vrot.slane %v9372, 5
        %v9382 = vsel %vm5272, %v9381, %v9380
        %v9383 = vrot.slane %v9373, 4
        %v9384 = vsel %vm5274, %v9383, %v9382
        %v9385 = vrot.slane %v9374, 3
        %v9386 = vsel %vm5276, %v9385, %v9384
        %v9387 = vrot.slane %v9375, 2
        %v9388 = vsel %vm5278, %v9387, %v9386
        %v9389 = vrot.slane %v9376, 1
        %v9390 = vsel %vm5280, %v9389, %v9388
        %v9391 = vpack.c.b16 %v9390, %v9390
        %v9409 = vunpack.c.l.b16 %v591
        %v9410 = vunpack.c.l.b16 %v592
        %v9411 = vunpack.c.l.b16 %v593
        %v9412 = vunpack.c.l.b16 %v594
        %v9413 = vunpack.c.l.b16 %v595
        %v9414 = vunpack.c.l.b16 %v596
        %v9415 = vunpack.c.l.b16 %v597
        %v9416 = vunpack.c.l.b16 %v598
        %v9417 = vunpack.c.l.b16 %v599
        %v9418 = vunpack.c.l.b16 %v600
        %v9419 = vunpack.c.l.b16 %v601
        %v9420 = vunpack.c.l.b16 %v602
        %v9421 = vunpack.c.l.b16 %v603
        %v9422 = vunpack.c.l.b16 %v604
        %v9423 = vunpack.c.l.b16 %v605
        %v9424 = vunpack.c.l.b16 %v606
        %v9425 = vpack.c.b16 %v9410, %v9409
        %v9426 = vpack.c.b16 %v9412, %v9411
        %v9427 = vpack.c.b16 %v9414, %v9413
        %v9428 = vpack.c.b16 %v9416, %v9415
        %v9429 = vpack.c.b16 %v9418, %v9417
        %v9430 = vpack.c.b16 %v9420, %v9419
        %v9431 = vpack.c.b16 %v9422, %v9421
        %v9432 = vpack.c.b16 %v9424, %v9423
        %9441 = vmatprep.subr.bf16.mxu0 0
        %9442 = vmatpush1.bf16.msra.mxu0 %v9425
        %9443 = vmatprep.subr.bf16.mxu0 0
        %9444 = vmatpush1.bf16.msra.mxu0 %v9426
        %9445 = vmatprep.subr.bf16.mxu0 0
        %9446 = vmatpush1.bf16.msra.mxu0 %v9427
        %9447 = vmatprep.subr.bf16.mxu0 0
        %9448 = vmatpush1.bf16.msra.mxu0 %v9428
        %9449 = vmatprep.subr.bf16.mxu0 0
        %9450 = vmatpush1.bf16.msra.mxu0 %v9429
        %9451 = vmatprep.subr.bf16.mxu0 0
        %9452 = vmatpush1.bf16.msra.mxu0 %v9430
        %9453 = vmatprep.subr.bf16.mxu0 0
        %9454 = vmatpush1.bf16.msra.mxu0 %v9431
        %9455 = vmatprep.subr.bf16.mxu0 0
        %9456 = vmatpush1.bf16.msra.mxu0 %v9432
        %9457 = vmatprep.subr.bf16.mxu0 0
        %9458 = vmatpush1.bf16.msra.mxu0 0
        %9459 = vmatprep.subr.bf16.mxu0 0
        %9460 = vmatpush1.bf16.msra.mxu0 0
        %9461 = vmatprep.subr.bf16.mxu0 0
        %9462 = vmatpush1.bf16.msra.mxu0 0
        %9463 = vmatprep.subr.bf16.mxu0 0
        %9464 = vmatpush1.bf16.msra.mxu0 0
        %9465 = vmatprep.subr.bf16.mxu0 0
        %9466 = vmatpush1.bf16.msra.mxu0 0
        %9467 = vmatprep.subr.bf16.mxu0 0
        %9468 = vmatpush1.bf16.msra.mxu0 0
        %9469 = vmatprep.subr.bf16.mxu0 0
        %9470 = vmatpush1.bf16.msra.mxu0 0
        %9471 = vmatprep.subr.bf16.mxu0 0
        %9472 = vmatpush1.bf16.msra.mxu0 0
        %9473 = vmatprep.mubr.bf16.mxu0 0
        %9474 = vmatmul.mubr.bf16.gmra.mrb[0].mxu0 %v9391
        %v9475 = vpop.f32.mrb[0].mxu0
        %v9476 = vadd.f32 %v9359, %v9475
        %v9477 = vpop.f32.mrb[0].mxu0
        %v9478 = vpop.f32.mrb[0].mxu0
        %v9479 = vpop.f32.mrb[0].mxu0
        %9480 = vdwg.mxu0
        %v9481 = vtanh.pop %v9476
        %9482 = vst [vmem:[%s411] sm:$0xff] %v9481
        %v9491 = vrot.slane %v7720, 7
        %v9492 = vsel %vm5268, %v9491, %v7527
        %v9493 = vrot.slane %v7913, 6
        %v9494 = vsel %vm5270, %v9493, %v9492
        %v9495 = vrot.slane %v8106, 5
        %v9496 = vsel %vm5272, %v9495, %v9494
        %v9497 = vrot.slane %v8299, 4
        %v9498 = vsel %vm5274, %v9497, %v9496
        %v9499 = vrot.slane %v8492, 3
        %v9500 = vsel %vm5276, %v9499, %v9498
        %v9501 = vrot.slane %v8685, 2
        %v9502 = vsel %vm5278, %v9501, %v9500
        %v9503 = vrot.slane %v8878, 1
        %v9504 = vsel %vm5280, %v9503, %v9502
        %9506 = vst [vmem:[%s418] sm:$0xff] %v9504
        %s9507 = sand.u32 %s198, 1
        %s9508 = scalar_lea.sflag [#allocation4], %s9507
        %s9509 = sand.u32 %s198, 1
        %s9510 = smul.addr %s9509, 8
        %s9511 = scalar_lea.vmem [#allocation11], %s9510
        %s9512 = sand.u32 %s224, 1
        %s9513 = scalar_lea.sflag [#allocation13], %s9512
        %s9514 = sand.u32 %s224, 1
        %s9515 = smul.addr %s9514, 8
        %s9516 = scalar_lea.vmem [#allocation12], %s9515
        // Predicated region
        $region69: #{tpu_custom_call.1} parent=47 // pred_check
          %p9517 = pneg %p208
        $region70: #{tpu_custom_call.1} parent=47 // pred_check_branch
          %9519 = sbr.rel (%p9517) target = $region72
        $region71: #{tpu_custom_call.1} parent=47 // pred_region
          %s9521 = ssub.s32 128, 128
          %9522 = vsyncadd %s9508, %s9521
          %s9523 = smul.addr %s33, 128
          %s9524 = scalar_lea.hbm %s7, %s9523
          %s9526 = sshll.u32 %s9511, 4
          %s9527 = int_to_ptr.vmem [resolvable:$true] %s9526
          %9529 = dma.vmem_to_hbm [thread:$0]  %s9527, 128, %s9524, %s9508
        $region72: #{tpu_custom_call.1} parent=47 // pred_fallthru
          _
        // Predicated region
        $region73: #{tpu_custom_call.1} parent=47 // pred_check
          %p9530 = pneg %p234
        $region74: #{tpu_custom_call.1} parent=47 // pred_check_branch
          %9532 = sbr.rel (%p9530) target = $region76
        $region75: #{tpu_custom_call.1} parent=47 // pred_region
          %s9534 = ssub.s32 128, 128
          %9535 = vsyncadd %s9513, %s9534
          %s9536 = smul.addr %s33, 128
          %s9537 = scalar_lea.hbm %s8, %s9536
          %s9539 = sshll.u32 %s9516, 4
          %s9540 = int_to_ptr.vmem [resolvable:$true] %s9539
          %9542 = dma.vmem_to_hbm [thread:$0]  %s9540, 128, %s9537, %s9513
        $region76: #{tpu_custom_call.1} parent=47 // pred_fallthru
          _
      $region48: #{tpu_custom_call.1} parent=5 // pred_fallthru
        _
      %p9543 = scmp.le.s32.totalorder 2, %s28
      // Predicated region
      $region77: #{tpu_custom_call.1} parent=5 // pred_check
        %p9544 = pneg %p9543
      $region78: #{tpu_custom_call.1} parent=5 // pred_check_branch
        %9546 = sbr.rel (%p9544) target = $region80
      $region79: #{tpu_custom_call.1} parent=5 // pred_region
        %s9547 = ssub.s32 %s28, 2
        // Predicated region
        $region81: #{tpu_custom_call.1} parent=79 // pred_check
          %p9548 = pneg %p214
        $region82: #{tpu_custom_call.1} parent=79 // pred_check_branch
          %9550 = sbr.rel (%p9548) target = $region84
        $region83: #{tpu_custom_call.1} parent=79 // pred_region
          %s9551 = sand.u32 %s199, 1
          %s9552 = scalar_lea.sflag [#allocation4], %s9551
          %s9553 = sand.u32 %s199, 1
          %s9554 = smul.addr %s9553, 8
          %s9555 = scalar_lea.vmem [#allocation11], %s9554
          %9556 = dma.done %s9552, 128
        $region84: #{tpu_custom_call.1} parent=79 // pred_fallthru
          _
        // Predicated region
        $region85: #{tpu_custom_call.1} parent=79 // pred_check
          %p9557 = pneg %p240
        $region86: #{tpu_custom_call.1} parent=79 // pred_check_branch
          %9559 = sbr.rel (%p9557) target = $region88
        $region87: #{tpu_custom_call.1} parent=79 // pred_region
          %s9560 = sand.u32 %s225, 1
          %s9561 = scalar_lea.sflag [#allocation13], %s9560
          %s9562 = sand.u32 %s225, 1
          %s9563 = smul.addr %s9562, 8
          %s9564 = scalar_lea.vmem [#allocation12], %s9563
          %9565 = dma.done %s9561, 128
        $region88: #{tpu_custom_call.1} parent=79 // pred_fallthru
          _
      $region80: #{tpu_custom_call.1} parent=5 // pred_fallthru
        _
    $region6: #{tpu_custom_call.1} parent=1 // loop_footer
      %s32 = sadd.s32 1, %s28
    $region7: #{tpu_custom_call.1} parent=1 // loop_footer_branch
      %27 = sbr.rel target = $region3
    $region8: #{tpu_custom_call.1} parent=1 // loop_exit
      _
    %9566 = vsyncpa [#allocation3], 1
    %s9567 = scalar_lea.sflag [#allocation3], 1
    %9568 = vsyncpa %s9567, 1
    %9569 = vsyncpa [#allocation6], 1
    %s9570 = scalar_lea.sflag [#allocation6], 1
    %9571 = vsyncpa %s9570, 1
    %9572 = vsyncpa [#allocation9], 1
    %9573 = vsyncpa [#allocation4], 1
    %s9574 = scalar_lea.sflag [#allocation4], 1
    %9575 = vsyncpa %s9574, 1
    %9576 = vsyncpa [#allocation13], 1
    %s9577 = scalar_lea.sflag [#allocation13], 1
    %9578 = vsyncpa %s9577, 1

</llo_original>
